<compile_context>
chip_gen: v7x
topology: tpu7x:2x2x1
jax: 0.10.0
libtpu: 0.0.40
codegen_flags: <defaults>
</compile_context>

<pallas_src>
import functools

import jax
import jax.numpy as jnp
from jax import lax
from jax.experimental import pallas as pl
from jax.experimental.pallas import tpu as pltpu


def _l2norm_lastdim(x, eps=1e-12):
    # Matches torch.nn.functional.normalize(x, dim=-1): x / clamp_min(||x||_2, eps).
    # Written as rsqrt * x so the transcendental goes to the EUP slot.
    ss = jnp.sum(x * x, axis=-1, keepdims=True)
    return x * lax.rsqrt(jnp.maximum(ss, eps * eps))


def _round_up(x, m):
    return ((x + m - 1) // m) * m


def cross_attn_block_kernel(fmap_ref, k_ref, v_ref,
                            g_attn_ref, wq_ref, wo_ref,
                            g_ff_ref, w1_ref, b1_ref, w2_ref, b2_ref,
                            out_ref, *, heads, dim_head):
    f32 = jnp.float32
    bf16 = jnp.bfloat16

    fmap = fmap_ref[...].astype(f32)                 # (TN, C) token tile of one batch elem
    TN, C = fmap.shape

    # --- CrossAttention.norm (ChannelRMSNorm); softmax scale pre-folded into wq ---
    fn = _l2norm_lastdim(fmap) * (C ** 0.5) * g_attn_ref[...].astype(f32)    # (TN, C)

    # --- to_q (1x1 conv) + head split (heads in the leading dim, one relayout) ---
    q2 = jnp.dot(fn.astype(bf16), wq_ref[...], preferred_element_type=f32)   # (TN, H*D)
    q3 = jnp.transpose(q2.reshape(TN, heads, dim_head).astype(bf16), (1, 0, 2))  # (H,TN,D)

    # --- attention against per-batch precomputed k / v (both (H, M, D) bf16) ---
    # TODO(synk): optional `mask` argument of CrossAttention.forward not implemented
    #             (module is exercised with mask=None).
    sim = lax.dot_general(q3, k_ref[...], (((2,), (2,)), ((0,), (0,))),
                          preferred_element_type=f32)                        # (H, TN, M)
    sim = sim - jnp.max(sim, axis=-1, keepdims=True)
    p = jnp.exp(sim)
    # exact reciprocal over the small (H, TN, 1) denominator (PyTorch softmax parity)
    attn = p * pl.reciprocal(jnp.sum(p, axis=-1, keepdims=True))
    o3 = lax.dot_general(attn.astype(bf16), v_ref[...], (((2,), (1,)), ((0,), (0,))),
                         preferred_element_type=f32)                         # (H, TN, D)

    # --- to_out as a head-batched matmul + sum over heads (no XLU head-merge) ---
    oc = lax.dot_general(o3.astype(bf16), wo_ref[...], (((2,), (1,)), ((0,), (0,))),
                         preferred_element_type=f32)                         # (H, TN, C)
    x1 = jnp.sum(oc, axis=0) + fmap                                          # residual

    # --- FeedForward (ChannelRMSNorm -> 1x1 conv -> GELU -> 1x1 conv) + residual ---
    xn = _l2norm_lastdim(x1) * (C ** 0.5) * g_ff_ref[...].astype(f32)
    h1 = jnp.dot(xn.astype(bf16), w1_ref[...], preferred_element_type=f32) + b1_ref[...]
    # TODO(synk): PyTorch nn.GELU() is erf-exact; tanh approximation used here
    #             (erf lowering in Mosaic is not guaranteed).
    h1 = jax.nn.gelu(h1, approximate=True)
    ffo = jnp.dot(h1.astype(bf16), w2_ref[...], preferred_element_type=f32) + b2_ref[...]

    out_ref[...] = (ffo + x1).astype(out_ref.dtype)


def cross_attention_block(x_nchw, context, params, *, heads, dim_head, tile_n=256):
    """x_nchw: (B, C, H, W), context: (B, M, Cc) -> (B, C, H, W)."""
    f32, bf16 = jnp.float32, jnp.bfloat16
    B, C, H, W = x_nchw.shape
    N = H * W
    _, M, Cc = context.shape
    dim_inner = heads * dim_head
    dim_hidden = params["w1"].shape[1]

    # Token tile: full (8-padded) N for small maps, else tile_n; cdiv + zero-padded tail.
    TILE_N = min(tile_n, _round_up(N, 8))
    n_tiles = int(pl.cdiv(N, TILE_N))
    Npad = n_tiles * TILE_N

    # TODO(synk): if the surrounding network can produce/consume NHWC / (B, N, C)
    #             activations, drop these two transposes (each is a full HBM
    #             read+write of the feature map outside the kernel).
    tokens = jnp.transpose(x_nchw, (0, 2, 3, 1)).reshape(B, N, C)
    if Npad != N:
        tokens = jnp.pad(tokens, ((0, 0), (0, Npad - N), (0, 0)))

    # --- one-time parameter prep: bf16 MXU operands, attention scale folded into wq ---
    wq = (params["wq"] * (dim_head ** -0.5)).astype(bf16)           # (C, H*D)
    wo_h = params["wo"].reshape(heads, dim_head, C).astype(bf16)    # (H, D, C)
    w1 = params["w1"].astype(bf16)                                  # (C, dim_hidden)
    w2 = params["w2"].astype(bf16)                                  # (dim_hidden, C)

    # --- per-batch (token-tile-invariant) context branch, hoisted out of the kernel:
    #     RMSNorm(context) -> to_k / to_v -> (B, H, M, D) bf16 (tiny XLA matmuls) ---
    cn = _l2norm_lastdim(context.astype(f32)) * (Cc ** 0.5) * params["g_ctx"].astype(f32)
    k = jnp.einsum("bmc,cd->bmd", cn, params["wk"])
    v = jnp.einsum("bmc,cd->bmd", cn, params["wv"])
    k = jnp.transpose(k.reshape(B, M, heads, dim_head), (0, 2, 1, 3)).astype(bf16)
    v = jnp.transpose(v.reshape(B, M, heads, dim_head), (0, 2, 1, 3)).astype(bf16)

    kernel = functools.partial(cross_attn_block_kernel, heads=heads, dim_head=dim_head)

    # Constant-index operands: fetched once, single-buffered (no double-buffer waste).
    def const(shape):
        return pl.BlockSpec(shape, lambda b, t: (0,) * len(shape),
                            pipeline_mode=pl.Buffered(1))

    # VMEM budget derived from the actual block footprints (+ headroom for compute
    # temporaries / compiler scratch), clamped to [16, 32] MiB: well inside v7x's
    # 64 MiB physical per-TC VMEM while raising v5e/v6e scoped defaults as needed.
    blk_bytes = (
        2 * 2 * (TILE_N * C * 4)                          # in + out token tiles, 2-buffered f32
        + 2 * 2 * (heads * M * dim_head * 2)              # k + v tiles, 2-buffered bf16
        + (C * dim_inner + heads * dim_head * C
           + C * dim_hidden + dim_hidden * C) * 2         # bf16 weights, single-buffered
        + (3 * C + dim_hidden) * 4                        # gammas + biases, f32
    )
    vmem_limit = int(min(32 * 1024 * 1024, max(16 * 1024 * 1024, 6 * blk_bytes)))

    out_tokens = pl.pallas_call(
        kernel,
        out_shape=jax.ShapeDtypeStruct((B, Npad, C), x_nchw.dtype),
        grid=(B, n_tiles),                  # B * n_tiles >= 2 keeps both v7x TCs busy
        in_specs=[
            pl.BlockSpec((None, TILE_N, C), lambda b, t: (b, t, 0)),              # fmap tile
            pl.BlockSpec((None, heads, M, dim_head), lambda b, t: (b, 0, 0, 0)),  # k (per-b)
            pl.BlockSpec((None, heads, M, dim_head), lambda b, t: (b, 0, 0, 0)),  # v (per-b)
            const((1, C)),                 # attn ChannelRMSNorm gamma
            const((C, dim_inner)),         # to_q  (1x1 conv, scale folded, bf16)
            const((heads, dim_head, C)),   # to_out per-head weight (bf16)
            const((1, C)),                 # FF ChannelRMSNorm gamma
            const((C, dim_hidden)),        # FF conv1 weight (bf16)
            const((1, dim_hidden)),        # FF conv1 bias (f32)
            const((dim_hidden, C)),        # FF conv2 weight (bf16)
            const((1, C)),                 # FF conv2 bias (f32)
        ],
        out_specs=pl.BlockSpec((None, TILE_N, C), lambda b, t: (b, t, 0)),
        compiler_params=pltpu.CompilerParams(
            dimension_semantics=("parallel", "parallel"),
            vmem_limit_bytes=vmem_limit,
        ),
    )(tokens, k, v,
      params["g_attn"], wq, wo_h,
      params["g_ff"], w1, params["b1"], w2, params["b2"])

    out_tokens = out_tokens[:, :N, :]
    return jnp.transpose(out_tokens.reshape(B, H, W, C), (0, 3, 1, 2))


if __name__ == "__main__":
    # Small, TPU-tile-aligned shapes consistent with the module's forward
    # (C and dim_head chosen as 128 so the head split and output stores are
    #  lane-dense; spatial 16x16 -> N = 256 -> one full-N token tile per batch,
    #  so the grid is (2, 1) and both v7x TensorCores still get a step each).
    B, dim, Hs, Ws = 2, 128, 16, 16        # NCHW feature map
    dim_context, seq = 64, 8               # context sequence
    heads, dim_head, ff_mult = 2, 128, 4
    dim_inner = heads * dim_head
    dim_hidden = dim * ff_mult

    key = jax.random.PRNGKey(0)
    ks = jax.random.split(key, 10)

    x = jax.random.normal(ks[0], (B, dim, Hs, Ws), jnp.float32)
    context = jax.random.normal(ks[1], (B, seq, dim_context), jnp.float32)

    params = {
        # norm gammas initialized to ones, as in the PyTorch __init__
        "g_attn": jnp.ones((1, dim), jnp.float32),
        "g_ctx": jnp.ones((1, dim_context), jnp.float32),
        "g_ff": jnp.ones((1, dim), jnp.float32),
        # projection weights, stored (in_features, out_features)
        "wq": 0.1 * jax.random.normal(ks[2], (dim, dim_inner), jnp.float32),
        "wk": 0.1 * jax.random.normal(ks[3], (dim_context, dim_inner), jnp.float32),
        "wv": 0.1 * jax.random.normal(ks[4], (dim_context, dim_inner), jnp.float32),
        "wo": 0.1 * jax.random.normal(ks[5], (dim_inner, dim), jnp.float32),
        "w1": 0.1 * jax.random.normal(ks[6], (dim, dim_hidden), jnp.float32),
        "b1": 0.1 * jax.random.normal(ks[7], (1, dim_hidden), jnp.float32),
        "w2": 0.1 * jax.random.normal(ks[8], (dim_hidden, dim), jnp.float32),
        "b2": 0.1 * jax.random.normal(ks[9], (1, dim), jnp.float32),
    }

    fn = jax.jit(functools.partial(cross_attention_block, heads=heads, dim_head=dim_head))
    out = fn(x, context, params)
    jax.block_until_ready(out)
    assert out.shape == (B, dim, Hs, Ws) and out.dtype == jnp.float32
    print("KERNEL_OK")
</pallas_src>

<mosaic_0001>
module attributes {stable_mosaic.version = 11 : i64} {
  func.func @cross_attn_block_kernel(%arg0: i32, %arg1: i32, %arg2: memref<1x256x128xf32, #tpu.memory_space<vmem>>, %arg3: memref<1x2x8x128xbf16, #tpu.memory_space<vmem>>, %arg4: memref<1x2x8x128xbf16, #tpu.memory_space<vmem>>, %arg5: memref<1x128xf32, #tpu.memory_space<vmem>>, %arg6: memref<128x256xbf16, #tpu.memory_space<vmem>>, %arg7: memref<2x128x128xbf16, #tpu.memory_space<vmem>>, %arg8: memref<1x128xf32, #tpu.memory_space<vmem>>, %arg9: memref<128x512xbf16, #tpu.memory_space<vmem>>, %arg10: memref<1x512xf32, #tpu.memory_space<vmem>>, %arg11: memref<512x128xbf16, #tpu.memory_space<vmem>>, %arg12: memref<1x128xf32, #tpu.memory_space<vmem>>, %arg13: memref<1x256x128xf32, #tpu.memory_space<vmem>>) attributes {dimension_semantics = [#tpu.dimension_semantics<parallel>, #tpu.dimension_semantics<parallel>], iteration_bounds = array<i64: 2, 1>, scalar_prefetch = 0 : i64, scratch_operands = 0 : i64, tpu.core_type = #tpu.core_type<tc>, window_params = [{transform_indices = @transform_0, window_bounds = array<i64: 1, 256, 128>}, {transform_indices = @transform_1, window_bounds = array<i64: 1, 2, 8, 128>}, {transform_indices = @transform_2, window_bounds = array<i64: 1, 2, 8, 128>}, {pipeline_mode = #tpu.pipeline_mode<synchronous>, transform_indices = @transform_3, window_bounds = array<i64: 1, 128>}, {pipeline_mode = #tpu.pipeline_mode<synchronous>, transform_indices = @transform_4, window_bounds = array<i64: 128, 256>}, {pipeline_mode = #tpu.pipeline_mode<synchronous>, transform_indices = @transform_5, window_bounds = array<i64: 2, 128, 128>}, {pipeline_mode = #tpu.pipeline_mode<synchronous>, transform_indices = @transform_6, window_bounds = array<i64: 1, 128>}, {pipeline_mode = #tpu.pipeline_mode<synchronous>, transform_indices = @transform_7, window_bounds = array<i64: 128, 512>}, {pipeline_mode = #tpu.pipeline_mode<synchronous>, transform_indices = @transform_8, window_bounds = array<i64: 1, 512>}, {pipeline_mode = #tpu.pipeline_mode<synchronous>, transform_indices = @transform_9, window_bounds = array<i64: 512, 128>}, {pipeline_mode = #tpu.pipeline_mode<synchronous>, transform_indices = @transform_10, window_bounds = array<i64: 1, 128>}, {transform_indices = @transform_11, window_bounds = array<i64: 1, 256, 128>}]} {
    %c0 = arith.constant 0 : index
    %c0_0 = arith.constant 0 : index
    %c0_1 = arith.constant 0 : index
    %0 = vector.load %arg2[%c0, %c0_0, %c0_1] : memref<1x256x128xf32, #tpu.memory_space<vmem>>, vector<1x256x128xf32>
    %1 = vector.shape_cast %0 : vector<1x256x128xf32> to vector<256x128xf32>
    %2 = arith.mulf %1, %1 : vector<256x128xf32>
    %cst = arith.constant dense<0.000000e+00> : vector<256xf32>
    %3 = vector.multi_reduction <add>, %2, %cst [1] : vector<256x128xf32> to vector<256xf32>
    %4 = vector.shape_cast %3 : vector<256xf32> to vector<256x1xf32>
    %cst_2 = arith.constant 1.000000e-24 : f32
    %5 = vector.broadcast %cst_2 : f32 to vector<256x1xf32>
    %6 = arith.maximumf %4, %5 : vector<256x1xf32>
    %7 = math.rsqrt %6 : vector<256x1xf32>
    %8 = vector.broadcast %7 : vector<256x1xf32> to vector<256x128xf32>
    %9 = arith.mulf %1, %8 : vector<256x128xf32>
    %cst_3 = arith.constant 11.3137083 : f32
    %10 = vector.broadcast %cst_3 : f32 to vector<256x128xf32>
    %11 = arith.mulf %9, %10 : vector<256x128xf32>
    %c0_4 = arith.constant 0 : index
    %c0_5 = arith.constant 0 : index
    %12 = vector.load %arg5[%c0_4, %c0_5] : memref<1x128xf32, #tpu.memory_space<vmem>>, vector<1x128xf32>
    %13 = vector.broadcast %12 : vector<1x128xf32> to vector<256x128xf32>
    %14 = arith.mulf %11, %13 : vector<256x128xf32>
    %15 = arith.truncf %14 : vector<256x128xf32> to vector<256x128xbf16>
    %c0_6 = arith.constant 0 : index
    %c0_7 = arith.constant 0 : index
    %16 = vector.load %arg6[%c0_6, %c0_7] : memref<128x256xbf16, #tpu.memory_space<vmem>>, vector<128x256xbf16>
    %cst_8 = arith.constant dense<0.000000e+00> : vector<256x256xf32>
    %17 = tpu.matmul %15, %16, %cst_8 {dimension_numbers = #tpu.dot_dimension_numbers<[1], [0], [0], [1], [0, 0, 1, 1], [], []>} : vector<256x128xbf16>, vector<128x256xbf16>, vector<256x256xf32> -> vector<256x256xf32>
    %18 = vector.shape_cast %17 : vector<256x256xf32> to vector<256x2x128xf32>
    %19 = arith.truncf %18 : vector<256x2x128xf32> to vector<256x2x128xbf16>
    %20 = tpu.transpose %19, [1, 0, 2] : vector<256x2x128xbf16> -> vector<2x256x128xbf16>
    %c0_9 = arith.constant 0 : index
    %c0_10 = arith.constant 0 : index
    %c0_11 = arith.constant 0 : index
    %c0_12 = arith.constant 0 : index
    %21 = vector.load %arg3[%c0_9, %c0_10, %c0_11, %c0_12] : memref<1x2x8x128xbf16, #tpu.memory_space<vmem>>, vector<1x2x8x128xbf16>
    %22 = vector.shape_cast %21 : vector<1x2x8x128xbf16> to vector<2x8x128xbf16>
    %cst_13 = arith.constant dense<0.000000e+00> : vector<2x256x8xf32>
    %23 = tpu.matmul %20, %22, %cst_13 {dimension_numbers = #tpu.dot_dimension_numbers<[2], [2], [1], [1], [0, 0, 0, 1, 1, 1], [0], [0]>} : vector<2x256x128xbf16>, vector<2x8x128xbf16>, vector<2x256x8xf32> -> vector<2x256x8xf32>
    %cst_14 = arith.constant dense<0xFF800000> : vector<2x256xf32>
    %24 = vector.multi_reduction <maximumf>, %23, %cst_14 [2] : vector<2x256x8xf32> to vector<2x256xf32>
    %25 = vector.shape_cast %24 : vector<2x256xf32> to vector<2x256x1xf32>
    %26 = vector.broadcast %25 : vector<2x256x1xf32> to vector<2x256x8xf32>
    %27 = arith.subf %23, %26 : vector<2x256x8xf32>
    %28 = math.exp %27 : vector<2x256x8xf32>
    %cst_15 = arith.constant dense<0.000000e+00> : vector<2x256xf32>
    %29 = vector.multi_reduction <add>, %28, %cst_15 [2] : vector<2x256x8xf32> to vector<2x256xf32>
    %30 = vector.shape_cast %29 : vector<2x256xf32> to vector<2x256x1xf32>
    %31 = tpu.reciprocal %30 : vector<2x256x1xf32> -> vector<2x256x1xf32>
    %32 = vector.broadcast %31 : vector<2x256x1xf32> to vector<2x256x8xf32>
    %33 = arith.mulf %28, %32 : vector<2x256x8xf32>
    %34 = arith.truncf %33 : vector<2x256x8xf32> to vector<2x256x8xbf16>
    %c0_16 = arith.constant 0 : index
    %c0_17 = arith.constant 0 : index
    %c0_18 = arith.constant 0 : index
    %c0_19 = arith.constant 0 : index
    %35 = vector.load %arg4[%c0_16, %c0_17, %c0_18, %c0_19] : memref<1x2x8x128xbf16, #tpu.memory_space<vmem>>, vector<1x2x8x128xbf16>
    %36 = vector.shape_cast %35 : vector<1x2x8x128xbf16> to vector<2x8x128xbf16>
    %cst_20 = arith.constant dense<0.000000e+00> : vector<2x256x128xf32>
    %37 = tpu.matmul %34, %36, %cst_20 {dimension_numbers = #tpu.dot_dimension_numbers<[2], [1], [1], [2], [0, 0, 0, 1, 1, 2], [0], [0]>} : vector<2x256x8xbf16>, vector<2x8x128xbf16>, vector<2x256x128xf32> -> vector<2x256x128xf32>
    %38 = arith.truncf %37 : vector<2x256x128xf32> to vector<2x256x128xbf16>
    %c0_21 = arith.constant 0 : index
    %c0_22 = arith.constant 0 : index
    %c0_23 = arith.constant 0 : index
    %39 = vector.load %arg7[%c0_21, %c0_22, %c0_23] : memref<2x128x128xbf16, #tpu.memory_space<vmem>>, vector<2x128x128xbf16>
    %cst_24 = arith.constant dense<0.000000e+00> : vector<2x256x128xf32>
    %40 = tpu.matmul %38, %39, %cst_24 {dimension_numbers = #tpu.dot_dimension_numbers<[2], [1], [1], [2], [0, 0, 0, 1, 1, 2], [0], [0]>} : vector<2x256x128xbf16>, vector<2x128x128xbf16>, vector<2x256x128xf32> -> vector<2x256x128xf32>
    %cst_25 = arith.constant dense<0.000000e+00> : vector<256x128xf32>
    %41 = vector.multi_reduction <add>, %40, %cst_25 [0] : vector<2x256x128xf32> to vector<256x128xf32>
    %42 = arith.addf %41, %1 : vector<256x128xf32>
    %43 = arith.mulf %42, %42 : vector<256x128xf32>
    %cst_26 = arith.constant dense<0.000000e+00> : vector<256xf32>
    %44 = vector.multi_reduction <add>, %43, %cst_26 [1] : vector<256x128xf32> to vector<256xf32>
    %45 = vector.shape_cast %44 : vector<256xf32> to vector<256x1xf32>
    %cst_27 = arith.constant 1.000000e-24 : f32
    %46 = vector.broadcast %cst_27 : f32 to vector<256x1xf32>
    %47 = arith.maximumf %45, %46 : vector<256x1xf32>
    %48 = math.rsqrt %47 : vector<256x1xf32>
    %49 = vector.broadcast %48 : vector<256x1xf32> to vector<256x128xf32>
    %50 = arith.mulf %42, %49 : vector<256x128xf32>
    %cst_28 = arith.constant 11.3137083 : f32
    %51 = vector.broadcast %cst_28 : f32 to vector<256x128xf32>
    %52 = arith.mulf %50, %51 : vector<256x128xf32>
    %c0_29 = arith.constant 0 : index
    %c0_30 = arith.constant 0 : index
    %53 = vector.load %arg8[%c0_29, %c0_30] : memref<1x128xf32, #tpu.memory_space<vmem>>, vector<1x128xf32>
    %54 = vector.broadcast %53 : vector<1x128xf32> to vector<256x128xf32>
    %55 = arith.mulf %52, %54 : vector<256x128xf32>
    %56 = arith.truncf %55 : vector<256x128xf32> to vector<256x128xbf16>
    %c0_31 = arith.constant 0 : index
    %c0_32 = arith.constant 0 : index
    %57 = vector.load %arg9[%c0_31, %c0_32] : memref<128x512xbf16, #tpu.memory_space<vmem>>, vector<128x512xbf16>
    %cst_33 = arith.constant dense<0.000000e+00> : vector<256x512xf32>
    %58 = tpu.matmul %56, %57, %cst_33 {dimension_numbers = #tpu.dot_dimension_numbers<[1], [0], [0], [1], [0, 0, 1, 1], [], []>} : vector<256x128xbf16>, vector<128x512xbf16>, vector<256x512xf32> -> vector<256x512xf32>
    %c0_34 = arith.constant 0 : index
    %c0_35 = arith.constant 0 : index
    %59 = vector.load %arg10[%c0_34, %c0_35] : memref<1x512xf32, #tpu.memory_space<vmem>>, vector<1x512xf32>
    %60 = vector.broadcast %59 : vector<1x512xf32> to vector<256x512xf32>
    %61 = arith.addf %58, %60 : vector<256x512xf32>
    %62 = arith.mulf %61, %61 : vector<256x512xf32>
    %63 = arith.mulf %61, %62 : vector<256x512xf32>
    %cst_36 = arith.constant 4.471500e-02 : f32
    %64 = vector.broadcast %cst_36 : f32 to vector<256x512xf32>
    %65 = arith.mulf %64, %63 : vector<256x512xf32>
    %66 = arith.addf %61, %65 : vector<256x512xf32>
    %cst_37 = arith.constant 0.797884583 : f32
    %67 = vector.broadcast %cst_37 : f32 to vector<256x512xf32>
    %68 = arith.mulf %67, %66 : vector<256x512xf32>
    %69 = math.tanh %68 : vector<256x512xf32>
    %cst_38 = arith.constant 1.000000e+00 : f32
    %70 = vector.broadcast %cst_38 : f32 to vector<256x512xf32>
    %71 = arith.addf %70, %69 : vector<256x512xf32>
    %cst_39 = arith.constant 5.000000e-01 : f32
    %72 = vector.broadcast %cst_39 : f32 to vector<256x512xf32>
    %73 = arith.mulf %72, %71 : vector<256x512xf32>
    %74 = arith.mulf %61, %73 : vector<256x512xf32>
    %75 = arith.truncf %74 : vector<256x512xf32> to vector<256x512xbf16>
    %c0_40 = arith.constant 0 : index
    %c0_41 = arith.constant 0 : index
    %76 = vector.load %arg11[%c0_40, %c0_41] : memref<512x128xbf16, #tpu.memory_space<vmem>>, vector<512x128xbf16>
    %cst_42 = arith.constant dense<0.000000e+00> : vector<256x128xf32>
    %77 = tpu.matmul %75, %76, %cst_42 {dimension_numbers = #tpu.dot_dimension_numbers<[1], [0], [0], [1], [0, 0, 1, 1], [], []>} : vector<256x512xbf16>, vector<512x128xbf16>, vector<256x128xf32> -> vector<256x128xf32>
    %c0_43 = arith.constant 0 : index
    %c0_44 = arith.constant 0 : index
    %78 = vector.load %arg12[%c0_43, %c0_44] : memref<1x128xf32, #tpu.memory_space<vmem>>, vector<1x128xf32>
    %79 = vector.broadcast %78 : vector<1x128xf32> to vector<256x128xf32>
    %80 = arith.addf %77, %79 : vector<256x128xf32>
    %81 = arith.addf %80, %42 : vector<256x128xf32>
    %c0_45 = arith.constant 0 : index
    %c0_46 = arith.constant 0 : index
    %c0_47 = arith.constant 0 : index
    %82 = vector.load %arg13[%c0_45, %c0_46, %c0_47] : memref<1x256x128xf32, #tpu.memory_space<vmem>>, vector<1x256x128xf32>
    %83 = vector.shape_cast %82 : vector<1x256x128xf32> to vector<256x128xf32>
    %84 = vector.shape_cast %81 : vector<256x128xf32> to vector<1x256x128xf32>
    tpu.vector_store %arg13[%c0_45, %c0_46, %c0_47], %84 {strides = array<i32>} : memref<1x256x128xf32, #tpu.memory_space<vmem>>, vector<1x256x128xf32>,
    return
  }
  func.func @transform_0(%arg0: i32, %arg1: i32) -> (i32, i32, i32) {
    %c0_i32 = arith.constant 0 : i32
    %c0_i32_0 = arith.constant 0 : i32
    return %arg0, %arg1, %c0_i32 : i32, i32, i32
  }
  func.func @transform_1(%arg0: i32, %arg1: i32) -> (i32, i32, i32, i32) {
    %c0_i32 = arith.constant 0 : i32
    %c0_i32_0 = arith.constant 0 : i32
    %c0_i32_1 = arith.constant 0 : i32
    %c0_i32_2 = arith.constant 0 : i32
    return %arg0, %c0_i32, %c0_i32_0, %c0_i32_1 : i32, i32, i32, i32
  }
  func.func @transform_2(%arg0: i32, %arg1: i32) -> (i32, i32, i32, i32) {
    %c0_i32 = arith.constant 0 : i32
    %c0_i32_0 = arith.constant 0 : i32
    %c0_i32_1 = arith.constant 0 : i32
    %c0_i32_2 = arith.constant 0 : i32
    return %arg0, %c0_i32, %c0_i32_0, %c0_i32_1 : i32, i32, i32, i32
  }
  func.func @transform_3(%arg0: i32, %arg1: i32) -> (i32, i32) {
    %c0_i32 = arith.constant 0 : i32
    %c0_i32_0 = arith.constant 0 : i32
    %c0_i32_1 = arith.constant 0 : i32
    return %c0_i32, %c0_i32_0 : i32, i32
  }
  func.func @transform_4(%arg0: i32, %arg1: i32) -> (i32, i32) {
    %c0_i32 = arith.constant 0 : i32
    %c0_i32_0 = arith.constant 0 : i32
    %c0_i32_1 = arith.constant 0 : i32
    return %c0_i32, %c0_i32_0 : i32, i32
  }
  func.func @transform_5(%arg0: i32, %arg1: i32) -> (i32, i32, i32) {
    %c0_i32 = arith.constant 0 : i32
    %c0_i32_0 = arith.constant 0 : i32
    %c0_i32_1 = arith.constant 0 : i32
    %c0_i32_2 = arith.constant 0 : i32
    return %c0_i32, %c0_i32_0, %c0_i32_1 : i32, i32, i32
  }
  func.func @transform_6(%arg0: i32, %arg1: i32) -> (i32, i32) {
    %c0_i32 = arith.constant 0 : i32
    %c0_i32_0 = arith.constant 0 : i32
    %c0_i32_1 = arith.constant 0 : i32
    return %c0_i32, %c0_i32_0 : i32, i32
  }
  func.func @transform_7(%arg0: i32, %arg1: i32) -> (i32, i32) {
    %c0_i32 = arith.constant 0 : i32
    %c0_i32_0 = arith.constant 0 : i32
    %c0_i32_1 = arith.constant 0 : i32
    return %c0_i32, %c0_i32_0 : i32, i32
  }
  func.func @transform_8(%arg0: i32, %arg1: i32) -> (i32, i32) {
    %c0_i32 = arith.constant 0 : i32
    %c0_i32_0 = arith.constant 0 : i32
    %c0_i32_1 = arith.constant 0 : i32
    return %c0_i32, %c0_i32_0 : i32, i32
  }
  func.func @transform_9(%arg0: i32, %arg1: i32) -> (i32, i32) {
    %c0_i32 = arith.constant 0 : i32
    %c0_i32_0 = arith.constant 0 : i32
    %c0_i32_1 = arith.constant 0 : i32
    return %c0_i32, %c0_i32_0 : i32, i32
  }
  func.func @transform_10(%arg0: i32, %arg1: i32) -> (i32, i32) {
    %c0_i32 = arith.constant 0 : i32
    %c0_i32_0 = arith.constant 0 : i32
    %c0_i32_1 = arith.constant 0 : i32
    return %c0_i32, %c0_i32_0 : i32, i32
  }
  func.func @transform_11(%arg0: i32, %arg1: i32) -> (i32, i32, i32) {
    %c0_i32 = arith.constant 0 : i32
    %c0_i32_0 = arith.constant 0 : i32
    return %arg0, %arg1, %c0_i32 : i32, i32, i32
  }
}

</mosaic_0001>

<llo_original>
// kernel: cross_attention_block.1
$region0: #{cross_attention_block.1}
  #allocation0 [shape = 'u32[]', space=smem, size = 0x4, offset = 0x4, fixed_abs, tag = 'smem constant byte address 0x4 - core index']
  #allocation1 [shape = 'u32[144,128]{1,0:T(1,128)}', space=vmem, size = 0x12000, scoped, tag = 'internal scratch']
  %s0 = inlined_call_operand.vmem [shape: f32[2,256,128], index: 0, kind: input, shape index: {}]
  %s1 = inlined_call_operand.vmem [shape: bf16[2,2,8,128], index: 1, kind: input, shape index: {}]
  %s2 = inlined_call_operand.vmem [shape: bf16[2,2,8,128], index: 2, kind: input, shape index: {}]
  %s3 = inlined_call_operand.vmem [shape: f32[1,128], index: 3, kind: input, shape index: {}]
  %s4 = inlined_call_operand.vmem [shape: bf16[128,256], index: 4, kind: input, shape index: {}]
  %s5 = inlined_call_operand.vmem [shape: bf16[2,128,128], index: 5, kind: input, shape index: {}]
  %s6 = inlined_call_operand.vmem [shape: f32[1,128], index: 6, kind: input, shape index: {}]
  %s7 = inlined_call_operand.vmem [shape: bf16[128,512], index: 7, kind: input, shape index: {}]
  %s8 = inlined_call_operand.vmem [shape: f32[1,512], index: 8, kind: input, shape index: {}]
  %s9 = inlined_call_operand.vmem [shape: bf16[512,128], index: 9, kind: input, shape index: {}]
  %s10 = inlined_call_operand.vmem [shape: f32[1,128], index: 10, kind: input, shape index: {}]
  %s11 = inlined_call_operand.hbm [shape: f32[2,256,128], index: 11, kind: output, shape index: {}]
  %s12 = sld [smem:[#allocation0]]
  $region77: #{cross_attention_block.1} parent=0
    _
  %s14 = ssub.s32 1, %s12
  %s15 = scalar_select 0, %s14, %s12
  $region1: #{cross_attention_block.1} parent=0
    #allocation2 [shape = 'u8[262144]{0}', space=vmem, size = 0x40000, scoped, tag = 'output window, operand 0']
    #allocation3 [shape = 's32[2]{0}', space=sflag, size = 0x8, scoped, tag = 'scoped memory for cross_attention_block.1']
    %16 = vsyncpa [#allocation3], 0
    %s17 = scalar_lea.sflag [#allocation3], 1
    %18 = vsyncpa %s17, 0
    loop: start=0, step=1, limit=4
    $region2: #{cross_attention_block.1} parent=1 // loop_pre_header
      _
    $region3: #{cross_attention_block.1} parent=1 // loop_header
      %s20 = sphi 0, %s24
      %p21 = scmp.ge.s32.totalorder %s20, 4
      %s27 = sphi 0, %s39
      %s28 = sphi 0, %s35
      %s29 = sphi 0, %s27
      %s30 = sphi 0, %s28
      %s31 = sphi 0, %s29
      %s32 = sphi 0, %s30
      %s44 = sphi 0, %s46
      %s47 = sphi 0, %s44
      %s48 = sphi 0, %s47
      %s64 = sphi 0, %s48
      %s70 = sphi 0, %s72
      %s73 = sphi 0, %s70
      %s74 = sphi 0, %s73
      %s90 = sphi 0, %s74
      %s96 = sphi 0, %s98
      %s99 = sphi 0, %s96
      %s100 = sphi 0, %s99
      %s116 = sphi 0, %s100
      %s120 = sphi 0, %s120
      %s122 = sphi 0, %s120
      %s123 = sphi 0, %s122
      %s137 = sphi 0, %s123
      %s141 = sphi 0, %s141
      %s143 = sphi 0, %s141
      %s144 = sphi 0, %s143
      %s158 = sphi 0, %s144
      %s162 = sphi 0, %s162
      %s164 = sphi 0, %s162
      %s165 = sphi 0, %s164
      %s179 = sphi 0, %s165
      %s183 = sphi 0, %s183
      %s185 = sphi 0, %s183
      %s186 = sphi 0, %s185
      %s200 = sphi 0, %s186
      %s204 = sphi 0, %s204
      %s206 = sphi 0, %s204
      %s207 = sphi 0, %s206
      %s221 = sphi 0, %s207
      %s225 = sphi 0, %s225
      %s227 = sphi 0, %s225
      %s228 = sphi 0, %s227
      %s242 = sphi 0, %s228
      %s246 = sphi 0, %s246
      %s248 = sphi 0, %s246
      %s249 = sphi 0, %s248
      %s263 = sphi 0, %s249
      %s267 = sphi 0, %s267
      %s269 = sphi 0, %s267
      %s270 = sphi 0, %s269
      %s284 = sphi 0, %s270
      %s292 = sphi 0, %s294
      %s295 = sphi 0, %s292
      %s296 = sphi 0, %s295
      %s312 = sphi 0, %s296
    $region4: #{cross_attention_block.1} parent=1 // loop_header_branch
      %23 = sbr.rel (%p21) target = $region8
    $region5: #{cross_attention_block.1} parent=1 // loop_body
      %s25 = ssub.s32 %s20, 1
      %s26 = ssub.s32 %s20, 2
      %s33 = sadd.s32 1, %s28
      %p34 = scmp.ge.s32.totalorder %s33, 1
      %s35 = scalar_select %p34, 0, %s33
      %s36 = sadd.s32 1, %s27
      %s37 = scalar_select %p34, %s36, %s27
      %p38 = scmp.ge.s32.totalorder %s37, 2
      %s39 = scalar_select %p38, 0, %s37
      %s40 = ssub.s32 %s27, %s39
      %s41 = ssub.s32 %s28, %s35
      %s42 = sor.u32 %s40, %s41
      %p43 = scmp.eq.s32.totalorder %s42, 0
      %s45 = sadd.s32 %s44, 1
      %s46 = scalar_select %p43, %s44, %s45
      %p49 = pneg %p43
      %p50 = scmp.eq.s32.totalorder %s20, 1
      %p51 = por %p49, %p50
      %p52 = scmp.ne.s32.totalorder %s44, %s47
      %p53 = scmp.eq.s32.totalorder %s20, 0
      %p54 = por %p52, %p53
      %p55 = scmp.ne.s32.totalorder %s44, %s47
      %p56 = scmp.eq.s32.totalorder %s25, 1
      %p57 = por %p55, %p56
      %p58 = scmp.ne.s32.totalorder %s47, %s48
      %p59 = scmp.eq.s32.totalorder %s25, 0
      %p60 = por %p58, %p59
      %p61 = scmp.ne.s32.totalorder %s47, %s48
      %p62 = scmp.eq.s32.totalorder %s26, 1
      %p63 = por %p61, %p62
      %p65 = scmp.ne.s32.totalorder %s48, %s64
      %p66 = scmp.eq.s32.totalorder %s26, 0
      %p67 = por %p65, %p66
      %s68 = ssub.s32 %s27, %s39
      %p69 = scmp.eq.s32.totalorder %s68, 0
      %s71 = sadd.s32 %s70, 1
      %s72 = scalar_select %p69, %s70, %s71
      %p75 = pneg %p69
      %p76 = scmp.eq.s32.totalorder %s20, 1
      %p77 = por %p75, %p76
      %p78 = scmp.ne.s32.totalorder %s70, %s73
      %p79 = scmp.eq.s32.totalorder %s20, 0
      %p80 = por %p78, %p79
      %p81 = scmp.ne.s32.totalorder %s70, %s73
      %p82 = scmp.eq.s32.totalorder %s25, 1
      %p83 = por %p81, %p82
      %p84 = scmp.ne.s32.totalorder %s73, %s74
      %p85 = scmp.eq.s32.totalorder %s25, 0
      %p86 = por %p84, %p85
      %p87 = scmp.ne.s32.totalorder %s73, %s74
      %p88 = scmp.eq.s32.totalorder %s26, 1
      %p89 = por %p87, %p88
      %p91 = scmp.ne.s32.totalorder %s74, %s90
      %p92 = scmp.eq.s32.totalorder %s26, 0
      %p93 = por %p91, %p92
      %s94 = ssub.s32 %s27, %s39
      %p95 = scmp.eq.s32.totalorder %s94, 0
      %s97 = sadd.s32 %s96, 1
      %s98 = scalar_select %p95, %s96, %s97
      %p101 = pneg %p95
      %p102 = scmp.eq.s32.totalorder %s20, 1
      %p103 = por %p101, %p102
      %p104 = scmp.ne.s32.totalorder %s96, %s99
      %p105 = scmp.eq.s32.totalorder %s20, 0
      %p106 = por %p104, %p105
      %p107 = scmp.ne.s32.totalorder %s96, %s99
      %p108 = scmp.eq.s32.totalorder %s25, 1
      %p109 = por %p107, %p108
      %p110 = scmp.ne.s32.totalorder %s99, %s100
      %p111 = scmp.eq.s32.totalorder %s25, 0
      %p112 = por %p110, %p111
      %p113 = scmp.ne.s32.totalorder %s99, %s100
      %p114 = scmp.eq.s32.totalorder %s26, 1
      %p115 = por %p113, %p114
      %p117 = scmp.ne.s32.totalorder %s100, %s116
      %p118 = scmp.eq.s32.totalorder %s26, 0
      %p119 = por %p117, %p118
      %s121 = sadd.s32 %s120, 1
      %p124 = scmp.eq.s32.totalorder %s20, 1
      %p125 = scmp.ne.s32.totalorder %s120, %s122
      %p126 = scmp.eq.s32.totalorder %s20, 0
      %p127 = por %p125, %p126
      %p128 = scmp.ne.s32.totalorder %s120, %s122
      %p129 = scmp.eq.s32.totalorder %s25, 1
      %p130 = por %p128, %p129
      %p131 = scmp.ne.s32.totalorder %s122, %s123
      %p132 = scmp.eq.s32.totalorder %s25, 0
      %p133 = por %p131, %p132
      %p134 = scmp.ne.s32.totalorder %s122, %s123
      %p135 = scmp.eq.s32.totalorder %s26, 1
      %p136 = por %p134, %p135
      %p138 = scmp.ne.s32.totalorder %s123, %s137
      %p139 = scmp.eq.s32.totalorder %s26, 0
      %p140 = por %p138, %p139
      %s142 = sadd.s32 %s141, 1
      %p145 = scmp.eq.s32.totalorder %s20, 1
      %p146 = scmp.ne.s32.totalorder %s141, %s143
      %p147 = scmp.eq.s32.totalorder %s20, 0
      %p148 = por %p146, %p147
      %p149 = scmp.ne.s32.totalorder %s141, %s143
      %p150 = scmp.eq.s32.totalorder %s25, 1
      %p151 = por %p149, %p150
      %p152 = scmp.ne.s32.totalorder %s143, %s144
      %p153 = scmp.eq.s32.totalorder %s25, 0
      %p154 = por %p152, %p153
      %p155 = scmp.ne.s32.totalorder %s143, %s144
      %p156 = scmp.eq.s32.totalorder %s26, 1
      %p157 = por %p155, %p156
      %p159 = scmp.ne.s32.totalorder %s144, %s158
      %p160 = scmp.eq.s32.totalorder %s26, 0
      %p161 = por %p159, %p160
      %s163 = sadd.s32 %s162, 1
      %p166 = scmp.eq.s32.totalorder %s20, 1
      %p167 = scmp.ne.s32.totalorder %s162, %s164
      %p168 = scmp.eq.s32.totalorder %s20, 0
      %p169 = por %p167, %p168
      %p170 = scmp.ne.s32.totalorder %s162, %s164
      %p171 = scmp.eq.s32.totalorder %s25, 1
      %p172 = por %p170, %p171
      %p173 = scmp.ne.s32.totalorder %s164, %s165
      %p174 = scmp.eq.s32.totalorder %s25, 0
      %p175 = por %p173, %p174
      %p176 = scmp.ne.s32.totalorder %s164, %s165
      %p177 = scmp.eq.s32.totalorder %s26, 1
      %p178 = por %p176, %p177
      %p180 = scmp.ne.s32.totalorder %s165, %s179
      %p181 = scmp.eq.s32.totalorder %s26, 0
      %p182 = por %p180, %p181
      %s184 = sadd.s32 %s183, 1
      %p187 = scmp.eq.s32.totalorder %s20, 1
      %p188 = scmp.ne.s32.totalorder %s183, %s185
      %p189 = scmp.eq.s32.totalorder %s20, 0
      %p190 = por %p188, %p189
      %p191 = scmp.ne.s32.totalorder %s183, %s185
      %p192 = scmp.eq.s32.totalorder %s25, 1
      %p193 = por %p191, %p192
      %p194 = scmp.ne.s32.totalorder %s185, %s186
      %p195 = scmp.eq.s32.totalorder %s25, 0
      %p196 = por %p194, %p195
      %p197 = scmp.ne.s32.totalorder %s185, %s186
      %p198 = scmp.eq.s32.totalorder %s26, 1
      %p199 = por %p197, %p198
      %p201 = scmp.ne.s32.totalorder %s186, %s200
      %p202 = scmp.eq.s32.totalorder %s26, 0
      %p203 = por %p201, %p202
      %s205 = sadd.s32 %s204, 1
      %p208 = scmp.eq.s32.totalorder %s20, 1
      %p209 = scmp.ne.s32.totalorder %s204, %s206
      %p210 = scmp.eq.s32.totalorder %s20, 0
      %p211 = por %p209, %p210
      %p212 = scmp.ne.s32.totalorder %s204, %s206
      %p213 = scmp.eq.s32.totalorder %s25, 1
      %p214 = por %p212, %p213
      %p215 = scmp.ne.s32.totalorder %s206, %s207
      %p216 = scmp.eq.s32.totalorder %s25, 0
      %p217 = por %p215, %p216
      %p218 = scmp.ne.s32.totalorder %s206, %s207
      %p219 = scmp.eq.s32.totalorder %s26, 1
      %p220 = por %p218, %p219
      %p222 = scmp.ne.s32.totalorder %s207, %s221
      %p223 = scmp.eq.s32.totalorder %s26, 0
      %p224 = por %p222, %p223
      %s226 = sadd.s32 %s225, 1
      %p229 = scmp.eq.s32.totalorder %s20, 1
      %p230 = scmp.ne.s32.totalorder %s225, %s227
      %p231 = scmp.eq.s32.totalorder %s20, 0
      %p232 = por %p230, %p231
      %p233 = scmp.ne.s32.totalorder %s225, %s227
      %p234 = scmp.eq.s32.totalorder %s25, 1
      %p235 = por %p233, %p234
      %p236 = scmp.ne.s32.totalorder %s227, %s228
      %p237 = scmp.eq.s32.totalorder %s25, 0
      %p238 = por %p236, %p237
      %p239 = scmp.ne.s32.totalorder %s227, %s228
      %p240 = scmp.eq.s32.totalorder %s26, 1
      %p241 = por %p239, %p240
      %p243 = scmp.ne.s32.totalorder %s228, %s242
      %p244 = scmp.eq.s32.totalorder %s26, 0
      %p245 = por %p243, %p244
      %s247 = sadd.s32 %s246, 1
      %p250 = scmp.eq.s32.totalorder %s20, 1
      %p251 = scmp.ne.s32.totalorder %s246, %s248
      %p252 = scmp.eq.s32.totalorder %s20, 0
      %p253 = por %p251, %p252
      %p254 = scmp.ne.s32.totalorder %s246, %s248
      %p255 = scmp.eq.s32.totalorder %s25, 1
      %p256 = por %p254, %p255
      %p257 = scmp.ne.s32.totalorder %s248, %s249
      %p258 = scmp.eq.s32.totalorder %s25, 0
      %p259 = por %p257, %p258
      %p260 = scmp.ne.s32.totalorder %s248, %s249
      %p261 = scmp.eq.s32.totalorder %s26, 1
      %p262 = por %p260, %p261
      %p264 = scmp.ne.s32.totalorder %s249, %s263
      %p265 = scmp.eq.s32.totalorder %s26, 0
      %p266 = por %p264, %p265
      %s268 = sadd.s32 %s267, 1
      %p271 = scmp.eq.s32.totalorder %s20, 1
      %p272 = scmp.ne.s32.totalorder %s267, %s269
      %p273 = scmp.eq.s32.totalorder %s20, 0
      %p274 = por %p272, %p273
      %p275 = scmp.ne.s32.totalorder %s267, %s269
      %p276 = scmp.eq.s32.totalorder %s25, 1
      %p277 = por %p275, %p276
      %p278 = scmp.ne.s32.totalorder %s269, %s270
      %p279 = scmp.eq.s32.totalorder %s25, 0
      %p280 = por %p278, %p279
      %p281 = scmp.ne.s32.totalorder %s269, %s270
      %p282 = scmp.eq.s32.totalorder %s26, 1
      %p283 = por %p281, %p282
      %p285 = scmp.ne.s32.totalorder %s270, %s284
      %p286 = scmp.eq.s32.totalorder %s26, 0
      %p287 = por %p285, %p286
      %s288 = ssub.s32 %s27, %s39
      %s289 = ssub.s32 %s28, %s35
      %s290 = sor.u32 %s288, %s289
      %p291 = scmp.eq.s32.totalorder %s290, 0
      %s293 = sadd.s32 %s292, 1
      %s294 = scalar_select %p291, %s292, %s293
      %p297 = pneg %p291
      %p298 = scmp.eq.s32.totalorder %s20, 1
      %p299 = por %p297, %p298
      %p300 = scmp.ne.s32.totalorder %s292, %s295
      %p301 = scmp.eq.s32.totalorder %s20, 0
      %p302 = por %p300, %p301
      %p303 = scmp.ne.s32.totalorder %s292, %s295
      %p304 = scmp.eq.s32.totalorder %s25, 1
      %p305 = por %p303, %p304
      %p306 = scmp.ne.s32.totalorder %s295, %s296
      %p307 = scmp.eq.s32.totalorder %s25, 0
      %p308 = por %p306, %p307
      %p309 = scmp.ne.s32.totalorder %s295, %s296
      %p310 = scmp.eq.s32.totalorder %s26, 1
      %p311 = por %p309, %p310
      %p313 = scmp.ne.s32.totalorder %s296, %s312
      %p314 = scmp.eq.s32.totalorder %s26, 0
      %p315 = por %p313, %p314
      %p316 = scmp.le.s32.totalorder 1, %s20
      %p317 = scmp.lt.s32.totalorder %s20, 3
      %p318 = pnand %p316, %p317
      %p319 = pneg %p318
      // Predicated region
      $region9: #{cross_attention_block.1} parent=5 // pred_check
        _
      $region10: #{cross_attention_block.1} parent=5 // pred_check_branch
        %321 = sbr.rel (%p318) target = $region12
      $region11: #{cross_attention_block.1} parent=5 // pred_region
        %s322 = ssub.s32 %s20, 1
        // Predicated region
        $region13: #{cross_attention_block.1} parent=11 // pred_check
          %p323 = pneg %p133
        $region14: #{cross_attention_block.1} parent=11 // pred_check_branch
          %325 = sbr.rel (%p323) target = $region16
        $region15: #{cross_attention_block.1} parent=11 // pred_region
          _
        $region16: #{cross_attention_block.1} parent=11 // pred_fallthru
          _
        // Predicated region
        $region17: #{cross_attention_block.1} parent=11 // pred_check
          %p326 = pneg %p154
        $region18: #{cross_attention_block.1} parent=11 // pred_check_branch
          %328 = sbr.rel (%p326) target = $region20
        $region19: #{cross_attention_block.1} parent=11 // pred_region
          _
        $region20: #{cross_attention_block.1} parent=11 // pred_fallthru
          _
        // Predicated region
        $region21: #{cross_attention_block.1} parent=11 // pred_check
          %p329 = pneg %p175
        $region22: #{cross_attention_block.1} parent=11 // pred_check_branch
          %331 = sbr.rel (%p329) target = $region24
        $region23: #{cross_attention_block.1} parent=11 // pred_region
          _
        $region24: #{cross_attention_block.1} parent=11 // pred_fallthru
          _
        // Predicated region
        $region25: #{cross_attention_block.1} parent=11 // pred_check
          %p332 = pneg %p196
        $region26: #{cross_attention_block.1} parent=11 // pred_check_branch
          %334 = sbr.rel (%p332) target = $region28
        $region27: #{cross_attention_block.1} parent=11 // pred_region
          _
        $region28: #{cross_attention_block.1} parent=11 // pred_fallthru
          _
        // Predicated region
        $region29: #{cross_attention_block.1} parent=11 // pred_check
          %p335 = pneg %p217
        $region30: #{cross_attention_block.1} parent=11 // pred_check_branch
          %337 = sbr.rel (%p335) target = $region32
        $region31: #{cross_attention_block.1} parent=11 // pred_region
          _
        $region32: #{cross_attention_block.1} parent=11 // pred_fallthru
          _
        // Predicated region
        $region33: #{cross_attention_block.1} parent=11 // pred_check
          %p338 = pneg %p238
        $region34: #{cross_attention_block.1} parent=11 // pred_check_branch
          %340 = sbr.rel (%p338) target = $region36
        $region35: #{cross_attention_block.1} parent=11 // pred_region
          _
        $region36: #{cross_attention_block.1} parent=11 // pred_fallthru
          _
        // Predicated region
        $region37: #{cross_attention_block.1} parent=11 // pred_check
          %p341 = pneg %p259
        $region38: #{cross_attention_block.1} parent=11 // pred_check_branch
          %343 = sbr.rel (%p341) target = $region40
        $region39: #{cross_attention_block.1} parent=11 // pred_region
          _
        $region40: #{cross_attention_block.1} parent=11 // pred_fallthru
          _
        // Predicated region
        $region41: #{cross_attention_block.1} parent=11 // pred_check
          %p344 = pneg %p280
        $region42: #{cross_attention_block.1} parent=11 // pred_check_branch
          %346 = sbr.rel (%p344) target = $region44
        $region43: #{cross_attention_block.1} parent=11 // pred_region
          _
        $region44: #{cross_attention_block.1} parent=11 // pred_fallthru
          _
      $region12: #{cross_attention_block.1} parent=5 // pred_fallthru
        _
      %p347 = scmp.lt.s32.totalorder %s20, 2
      // Predicated region
      $region45: #{cross_attention_block.1} parent=5 // pred_check
        %p348 = pneg %p347
      $region46: #{cross_attention_block.1} parent=5 // pred_check_branch
        %350 = sbr.rel (%p348) target = $region48
      $region47: #{cross_attention_block.1} parent=5 // pred_region
        // Predicated region
        $region49: #{cross_attention_block.1} parent=47 // pred_check
          %p351 = pneg %p54
        $region50: #{cross_attention_block.1} parent=47 // pred_check_branch
          %353 = sbr.rel (%p351) target = $region52
        $region51: #{cross_attention_block.1} parent=47 // pred_region
          %s354 = smul.u32 32, %s28
          %p355 = scmp.lt.s32.totalorder %s27, 1
          %s356 = scalar_select %p355, %s27, 1
          %p357 = scmp.lt.s32.totalorder %s354, 31
          %s358 = scalar_select %p357, %s354, 31
          %s359 = smul.addr %s356, 32
          %s360 = sadd.s32 %s358, %s359
          %s361 = smul.addr %s360, 8
          %s362 = scalar_lea.vmem %s0, %s361
          %s363 = smul.u32 32, %s28
        $region52: #{cross_attention_block.1} parent=47 // pred_fallthru
          _
        // Predicated region
        $region53: #{cross_attention_block.1} parent=47 // pred_check
          %p364 = pneg %p80
        $region54: #{cross_attention_block.1} parent=47 // pred_check_branch
          %366 = sbr.rel (%p364) target = $region56
        $region55: #{cross_attention_block.1} parent=47 // pred_region
          %p367 = scmp.lt.s32.totalorder %s27, 1
          %s368 = scalar_select %p367, %s27, 1
          %s369 = smul.addr %s368, 2
          %s370 = smul.addr %s369, 4
          %s371 = scalar_lea.vmem %s1, %s370
        $region56: #{cross_attention_block.1} parent=47 // pred_fallthru
          _
        // Predicated region
        $region57: #{cross_attention_block.1} parent=47 // pred_check
          %p372 = pneg %p106
        $region58: #{cross_attention_block.1} parent=47 // pred_check_branch
          %374 = sbr.rel (%p372) target = $region60
        $region59: #{cross_attention_block.1} parent=47 // pred_region
          %p375 = scmp.lt.s32.totalorder %s27, 1
          %s376 = scalar_select %p375, %s27, 1
          %s377 = smul.addr %s376, 2
          %s378 = smul.addr %s377, 4
          %s379 = scalar_lea.vmem %s2, %s378
        $region60: #{cross_attention_block.1} parent=47 // pred_fallthru
          _
      $region48: #{cross_attention_block.1} parent=5 // pred_fallthru
        _
      %p380 = scmp.le.s32.totalorder 1, %s20
      %p381 = scmp.lt.s32.totalorder %s20, 3
      %p382 = pnand %p380, %p381
      %p383 = pneg %p382
      // Predicated region
      $region61: #{cross_attention_block.1} parent=5 // pred_check
        _
      $region62: #{cross_attention_block.1} parent=5 // pred_check_branch
        %385 = sbr.rel (%p382) target = $region64
      $region63: #{cross_attention_block.1} parent=5 // pred_region
        %s386 = ssub.s32 %s20, 1
        %s387 = smul.u32 32, %s30
        %p388 = scmp.lt.s32.totalorder %s29, 1
        %s389 = scalar_select %p388, %s29, 1
        %p390 = scmp.lt.s32.totalorder %s387, 31
        %s391 = scalar_select %p390, %s387, 31
        %s392 = smul.addr %s389, 32
        %s393 = sadd.s32 %s391, %s392
        %s394 = smul.addr %s393, 8
        %s395 = scalar_lea.vmem %s0, %s394
        %p396 = pneg %p60
        %p397 = pneg %p57
        %p398 = scmp.lt.s32.totalorder %s29, 1
        %s399 = scalar_select %p398, %s29, 1
        %s400 = smul.addr %s399, 2
        %s401 = smul.addr %s400, 4
        %s402 = scalar_lea.vmem %s1, %s401
        %p403 = pneg %p86
        %p404 = pneg %p83
        %p405 = scmp.lt.s32.totalorder %s29, 1
        %s406 = scalar_select %p405, %s29, 1
        %s407 = smul.addr %s406, 2
        %s408 = smul.addr %s407, 4
        %s409 = scalar_lea.vmem %s2, %s408
        %p410 = pneg %p112
        %p411 = pneg %p109
        %p412 = pneg %p133
        %p413 = pneg %p130
        %p414 = pneg %p154
        %p415 = pneg %p151
        %p416 = pneg %p175
        %p417 = pneg %p172
        %p418 = pneg %p196
        %p419 = pneg %p193
        %p420 = pneg %p217
        %p421 = pneg %p214
        %p422 = pneg %p238
        %p423 = pneg %p235
        %p424 = pneg %p259
        %p425 = pneg %p256
        %p426 = pneg %p280
        %p427 = pneg %p277
        %p428 = pneg %p308
        %p429 = pneg %p305
        %s430 = sand.u32 %s295, 1
        %s431 = scalar_lea.sflag [#allocation3], %s430
        %s432 = sand.u32 %s295, 1
        %s433 = smul.addr %s432, 256
        %s434 = scalar_lea.vmem [#allocation2], %s433
        %s435 = smul.u32 32, %s30
        %p436 = scmp.lt.s32.totalorder %s29, 1
        %s437 = scalar_select %p436, %s29, 1
        %p438 = scmp.lt.s32.totalorder %s435, 31
        %s439 = scalar_select %p438, %s435, 31
        %s440 = smul.addr %s437, 32
        %s441 = sadd.s32 %s439, %s440
        %s442 = smul.addr %s441, 8
        %s443 = scalar_lea.vmem %s0, %s442
        %s444 = smul.u32 32, %s30
        %p445 = scmp.lt.s32.totalorder %s29, 1
        %s446 = scalar_select %p445, %s29, 1
        %s447 = smul.addr %s446, 2
        %s448 = smul.addr %s447, 4
        %s449 = scalar_lea.vmem %s1, %s448
        %p450 = scmp.lt.s32.totalorder %s29, 1
        %s451 = scalar_select %p450, %s29, 1
        %s452 = smul.addr %s451, 2
        %s453 = smul.addr %s452, 4
        %s454 = scalar_lea.vmem %s2, %s453
        %s455 = smul.u32 32, %s30
        %v457 = vld [vmem:[%s443] sm:$0xff]
        %v458 = vld [vmem:[%s443 + $0x8] sm:$0xff]
        %v459 = vld [vmem:[%s443 + $0x10] sm:$0xff]
        %v460 = vld [vmem:[%s443 + $0x18] sm:$0xff]
        %v461 = vld [vmem:[%s443 + $0x20] sm:$0xff]
        %v462 = vld [vmem:[%s443 + $0x28] sm:$0xff]
        %v463 = vld [vmem:[%s443 + $0x30] sm:$0xff]
        %v464 = vld [vmem:[%s443 + $0x38] sm:$0xff]
        %v465 = vld [vmem:[%s443 + $0x40] sm:$0xff]
        %v466 = vld [vmem:[%s443 + $0x48] sm:$0xff]
        %v467 = vld [vmem:[%s443 + $0x50] sm:$0xff]
        %v468 = vld [vmem:[%s443 + $0x58] sm:$0xff]
        %v469 = vld [vmem:[%s443 + $0x60] sm:$0xff]
        %v470 = vld [vmem:[%s443 + $0x68] sm:$0xff]
        %v471 = vld [vmem:[%s443 + $0x70] sm:$0xff]
        %v472 = vld [vmem:[%s443 + $0x78] sm:$0xff]
        %v473 = vld [vmem:[%s443 + $0x80] sm:$0xff]
        %v474 = vld [vmem:[%s443 + $0x88] sm:$0xff]
        %v475 = vld [vmem:[%s443 + $0x90] sm:$0xff]
        %v476 = vld [vmem:[%s443 + $0x98] sm:$0xff]
        %v477 = vld [vmem:[%s443 + $0xa0] sm:$0xff]
        %v478 = vld [vmem:[%s443 + $0xa8] sm:$0xff]
        %v479 = vld [vmem:[%s443 + $0xb0] sm:$0xff]
        %v480 = vld [vmem:[%s443 + $0xb8] sm:$0xff]
        %v481 = vld [vmem:[%s443 + $0xc0] sm:$0xff]
        %v482 = vld [vmem:[%s443 + $0xc8] sm:$0xff]
        %v483 = vld [vmem:[%s443 + $0xd0] sm:$0xff]
        %v484 = vld [vmem:[%s443 + $0xd8] sm:$0xff]
        %v485 = vld [vmem:[%s443 + $0xe0] sm:$0xff]
        %v486 = vld [vmem:[%s443 + $0xe8] sm:$0xff]
        %v487 = vld [vmem:[%s443 + $0xf0] sm:$0xff]
        %v488 = vld [vmem:[%s443 + $0xf8] sm:$0xff]
        %v489 = vmul.f32 %v457, %v457
        %v490 = vmul.f32 %v458, %v458
        %v491 = vmul.f32 %v459, %v459
        %v492 = vmul.f32 %v460, %v460
        %v493 = vmul.f32 %v461, %v461
        %v494 = vmul.f32 %v462, %v462
        %v495 = vmul.f32 %v463, %v463
        %v496 = vmul.f32 %v464, %v464
        %v497 = vmul.f32 %v465, %v465
        %v498 = vmul.f32 %v466, %v466
        %v499 = vmul.f32 %v467, %v467
        %v500 = vmul.f32 %v468, %v468
        %v501 = vmul.f32 %v469, %v469
        %v502 = vmul.f32 %v470, %v470
        %v503 = vmul.f32 %v471, %v471
        %v504 = vmul.f32 %v472, %v472
        %v505 = vmul.f32 %v473, %v473
        %v506 = vmul.f32 %v474, %v474
        %v507 = vmul.f32 %v475, %v475
        %v508 = vmul.f32 %v476, %v476
        %v509 = vmul.f32 %v477, %v477
        %v510 = vmul.f32 %v478, %v478
        %v511 = vmul.f32 %v479, %v479
        %v512 = vmul.f32 %v480, %v480
        %v513 = vmul.f32 %v481, %v481
        %v514 = vmul.f32 %v482, %v482
        %v515 = vmul.f32 %v483, %v483
        %v516 = vmul.f32 %v484, %v484
        %v517 = vmul.f32 %v485, %v485
        %v518 = vmul.f32 %v486, %v486
        %v519 = vmul.f32 %v487, %v487
        %v520 = vmul.f32 %v488, %v488
        %521 = vadd.xlane.f32.xlu0 %v489
        %v522 = vpop.xlane.xlu0 %521
        %523 = vadd.xlane.f32.xlu0 %v490
        %v524 = vpop.xlane.xlu0 %523
        %525 = vadd.xlane.f32.xlu0 %v491
        %v526 = vpop.xlane.xlu0 %525
        %527 = vadd.xlane.f32.xlu0 %v492
        %v528 = vpop.xlane.xlu0 %527
        %529 = vadd.xlane.f32.xlu0 %v493
        %v530 = vpop.xlane.xlu0 %529
        %531 = vadd.xlane.f32.xlu0 %v494
        %v532 = vpop.xlane.xlu0 %531
        %533 = vadd.xlane.f32.xlu0 %v495
        %v534 = vpop.xlane.xlu0 %533
        %535 = vadd.xlane.f32.xlu0 %v496
        %v536 = vpop.xlane.xlu0 %535
        %537 = vadd.xlane.f32.xlu0 %v497
        %v538 = vpop.xlane.xlu0 %537
        %539 = vadd.xlane.f32.xlu0 %v498
        %v540 = vpop.xlane.xlu0 %539
        %541 = vadd.xlane.f32.xlu0 %v499
        %v542 = vpop.xlane.xlu0 %541
        %543 = vadd.xlane.f32.xlu0 %v500
        %v544 = vpop.xlane.xlu0 %543
        %545 = vadd.xlane.f32.xlu0 %v501
        %v546 = vpop.xlane.xlu0 %545
        %547 = vadd.xlane.f32.xlu0 %v502
        %v548 = vpop.xlane.xlu0 %547
        %549 = vadd.xlane.f32.xlu0 %v503
        %v550 = vpop.xlane.xlu0 %549
        %551 = vadd.xlane.f32.xlu0 %v504
        %v552 = vpop.xlane.xlu0 %551
        %553 = vadd.xlane.f32.xlu0 %v505
        %v554 = vpop.xlane.xlu0 %553
        %555 = vadd.xlane.f32.xlu0 %v506
        %v556 = vpop.xlane.xlu0 %555
        %557 = vadd.xlane.f32.xlu0 %v507
        %v558 = vpop.xlane.xlu0 %557
        %559 = vadd.xlane.f32.xlu0 %v508
        %v560 = vpop.xlane.xlu0 %559
        %561 = vadd.xlane.f32.xlu0 %v509
        %v562 = vpop.xlane.xlu0 %561
        %563 = vadd.xlane.f32.xlu0 %v510
        %v564 = vpop.xlane.xlu0 %563
        %565 = vadd.xlane.f32.xlu0 %v511
        %v566 = vpop.xlane.xlu0 %565
        %567 = vadd.xlane.f32.xlu0 %v512
        %v568 = vpop.xlane.xlu0 %567
        %569 = vadd.xlane.f32.xlu0 %v513
        %v570 = vpop.xlane.xlu0 %569
        %571 = vadd.xlane.f32.xlu0 %v514
        %v572 = vpop.xlane.xlu0 %571
        %573 = vadd.xlane.f32.xlu0 %v515
        %v574 = vpop.xlane.xlu0 %573
        %575 = vadd.xlane.f32.xlu0 %v516
        %v576 = vpop.xlane.xlu0 %575
        %577 = vadd.xlane.f32.xlu0 %v517
        %v578 = vpop.xlane.xlu0 %577
        %579 = vadd.xlane.f32.xlu0 %v518
        %v580 = vpop.xlane.xlu0 %579
        %581 = vadd.xlane.f32.xlu0 %v519
        %v582 = vpop.xlane.xlu0 %581
        %583 = vadd.xlane.f32.xlu0 %v520
        %v584 = vpop.xlane.xlu0 %583
        %v585 = vmax.f32 %v522, 1e-24
        %v586 = vmax.f32 %v524, 1e-24
        %v587 = vmax.f32 %v526, 1e-24
        %v588 = vmax.f32 %v528, 1e-24
        %v589 = vmax.f32 %v530, 1e-24
        %v590 = vmax.f32 %v532, 1e-24
        %v591 = vmax.f32 %v534, 1e-24
        %v592 = vmax.f32 %v536, 1e-24
        %v593 = vmax.f32 %v538, 1e-24
        %v594 = vmax.f32 %v540, 1e-24
        %v595 = vmax.f32 %v542, 1e-24
        %v596 = vmax.f32 %v544, 1e-24
        %v597 = vmax.f32 %v546, 1e-24
        %v598 = vmax.f32 %v548, 1e-24
        %v599 = vmax.f32 %v550, 1e-24
        %v600 = vmax.f32 %v552, 1e-24
        %v601 = vmax.f32 %v554, 1e-24
        %v602 = vmax.f32 %v556, 1e-24
        %v603 = vmax.f32 %v558, 1e-24
        %v604 = vmax.f32 %v560, 1e-24
        %v605 = vmax.f32 %v562, 1e-24
        %v606 = vmax.f32 %v564, 1e-24
        %v607 = vmax.f32 %v566, 1e-24
        %v608 = vmax.f32 %v568, 1e-24
        %v609 = vmax.f32 %v570, 1e-24
        %v610 = vmax.f32 %v572, 1e-24
        %v611 = vmax.f32 %v574, 1e-24
        %v612 = vmax.f32 %v576, 1e-24
        %v613 = vmax.f32 %v578, 1e-24
        %v614 = vmax.f32 %v580, 1e-24
        %v615 = vmax.f32 %v582, 1e-24
        %v616 = vmax.f32 %v584, 1e-24
        %v617 = vrsqrt.pop %v585
        %v618 = vrsqrt.pop %v586
        %v619 = vrsqrt.pop %v587
        %v620 = vrsqrt.pop %v588
        %v621 = vrsqrt.pop %v589
        %v622 = vrsqrt.pop %v590
        %v623 = vrsqrt.pop %v591
        %v624 = vrsqrt.pop %v592
        %v625 = vrsqrt.pop %v593
        %v626 = vrsqrt.pop %v594
        %v627 = vrsqrt.pop %v595
        %v628 = vrsqrt.pop %v596
        %v629 = vrsqrt.pop %v597
        %v630 = vrsqrt.pop %v598
        %v631 = vrsqrt.pop %v599
        %v632 = vrsqrt.pop %v600
        %v633 = vrsqrt.pop %v601
        %v634 = vrsqrt.pop %v602
        %v635 = vrsqrt.pop %v603
        %v636 = vrsqrt.pop %v604
        %v637 = vrsqrt.pop %v605
        %v638 = vrsqrt.pop %v606
        %v639 = vrsqrt.pop %v607
        %v640 = vrsqrt.pop %v608
        %v641 = vrsqrt.pop %v609
        %v642 = vrsqrt.pop %v610
        %v643 = vrsqrt.pop %v611
        %v644 = vrsqrt.pop %v612
        %v645 = vrsqrt.pop %v613
        %v646 = vrsqrt.pop %v614
        %v647 = vrsqrt.pop %v615
        %v648 = vrsqrt.pop %v616
        %v649 = vmul.f32 %v457, %v617
        %v650 = vmul.f32 %v458, %v618
        %v651 = vmul.f32 %v459, %v619
        %v652 = vmul.f32 %v460, %v620
        %v653 = vmul.f32 %v461, %v621
        %v654 = vmul.f32 %v462, %v622
        %v655 = vmul.f32 %v463, %v623
        %v656 = vmul.f32 %v464, %v624
        %v657 = vmul.f32 %v465, %v625
        %v658 = vmul.f32 %v466, %v626
        %v659 = vmul.f32 %v467, %v627
        %v660 = vmul.f32 %v468, %v628
        %v661 = vmul.f32 %v469, %v629
        %v662 = vmul.f32 %v470, %v630
        %v663 = vmul.f32 %v471, %v631
        %v664 = vmul.f32 %v472, %v632
        %v665 = vmul.f32 %v473, %v633
        %v666 = vmul.f32 %v474, %v634
        %v667 = vmul.f32 %v475, %v635
        %v668 = vmul.f32 %v476, %v636
        %v669 = vmul.f32 %v477, %v637
        %v670 = vmul.f32 %v478, %v638
        %v671 = vmul.f32 %v479, %v639
        %v672 = vmul.f32 %v480, %v640
        %v673 = vmul.f32 %v481, %v641
        %v674 = vmul.f32 %v482, %v642
        %v675 = vmul.f32 %v483, %v643
        %v676 = vmul.f32 %v484, %v644
        %v677 = vmul.f32 %v485, %v645
        %v678 = vmul.f32 %v486, %v646
        %v679 = vmul.f32 %v487, %v647
        %v680 = vmul.f32 %v488, %v648
        %v681 = vmul.f32 %v649, 11.313708
        %v682 = vmul.f32 %v650, 11.313708
        %v683 = vmul.f32 %v651, 11.313708
        %v684 = vmul.f32 %v652, 11.313708
        %v685 = vmul.f32 %v653, 11.313708
        %v686 = vmul.f32 %v654, 11.313708
        %v687 = vmul.f32 %v655, 11.313708
        %v688 = vmul.f32 %v656, 11.313708
        %v689 = vmul.f32 %v657, 11.313708
        %v690 = vmul.f32 %v658, 11.313708
        %v691 = vmul.f32 %v659, 11.313708
        %v692 = vmul.f32 %v660, 11.313708
        %v693 = vmul.f32 %v661, 11.313708
        %v694 = vmul.f32 %v662, 11.313708
        %v695 = vmul.f32 %v663, 11.313708
        %v696 = vmul.f32 %v664, 11.313708
        %v697 = vmul.f32 %v665, 11.313708
        %v698 = vmul.f32 %v666, 11.313708
        %v699 = vmul.f32 %v667, 11.313708
        %v700 = vmul.f32 %v668, 11.313708
        %v701 = vmul.f32 %v669, 11.313708
        %v702 = vmul.f32 %v670, 11.313708
        %v703 = vmul.f32 %v671, 11.313708
        %v704 = vmul.f32 %v672, 11.313708
        %v705 = vmul.f32 %v673, 11.313708
        %v706 = vmul.f32 %v674, 11.313708
        %v707 = vmul.f32 %v675, 11.313708
        %v708 = vmul.f32 %v676, 11.313708
        %v709 = vmul.f32 %v677, 11.313708
        %v710 = vmul.f32 %v678, 11.313708
        %v711 = vmul.f32 %v679, 11.313708
        %v712 = vmul.f32 %v680, 11.313708
        %v713 = vld [vmem:[%s3] sm:$0x1]
        %v715 = vlaneseq
        %v716 = vshrl.u32 %v715, 7
        %v717 = vsub.s32 0, %v716
        %v718 = vrot.slane %v713, %v717
        %v720 = vmul.f32 %v681, %v718
        %v721 = vmul.f32 %v682, %v718
        %v722 = vmul.f32 %v683, %v718
        %v723 = vmul.f32 %v684, %v718
        %v724 = vmul.f32 %v685, %v718
        %v725 = vmul.f32 %v686, %v718
        %v726 = vmul.f32 %v687, %v718
        %v727 = vmul.f32 %v688, %v718
        %v728 = vmul.f32 %v689, %v718
        %v729 = vmul.f32 %v690, %v718
        %v730 = vmul.f32 %v691, %v718
        %v731 = vmul.f32 %v692, %v718
        %v732 = vmul.f32 %v693, %v718
        %v733 = vmul.f32 %v694, %v718
        %v734 = vmul.f32 %v695, %v718
        %v735 = vmul.f32 %v696, %v718
        %v736 = vmul.f32 %v697, %v718
        %v737 = vmul.f32 %v698, %v718
        %v738 = vmul.f32 %v699, %v718
        %v739 = vmul.f32 %v700, %v718
        %v740 = vmul.f32 %v701, %v718
        %v741 = vmul.f32 %v702, %v718
        %v742 = vmul.f32 %v703, %v718
        %v743 = vmul.f32 %v704, %v718
        %v744 = vmul.f32 %v705, %v718
        %v745 = vmul.f32 %v706, %v718
        %v746 = vmul.f32 %v707, %v718
        %v747 = vmul.f32 %v708, %v718
        %v748 = vmul.f32 %v709, %v718
        %v749 = vmul.f32 %v710, %v718
        %v750 = vmul.f32 %v711, %v718
        %v751 = vmul.f32 %v712, %v718
        %v752 = vpack.c.bf16 %v721, %v720
        %v753 = vpack.c.bf16 %v723, %v722
        %v754 = vpack.c.bf16 %v725, %v724
        %v755 = vpack.c.bf16 %v727, %v726
        %v756 = vpack.c.bf16 %v729, %v728
        %v757 = vpack.c.bf16 %v731, %v730
        %v758 = vpack.c.bf16 %v733, %v732
        %v759 = vpack.c.bf16 %v735, %v734
        %v760 = vpack.c.bf16 %v737, %v736
        %v761 = vpack.c.bf16 %v739, %v738
        %v762 = vpack.c.bf16 %v741, %v740
        %v763 = vpack.c.bf16 %v743, %v742
        %v764 = vpack.c.bf16 %v745, %v744
        %v765 = vpack.c.bf16 %v747, %v746
        %v766 = vpack.c.bf16 %v749, %v748
        %v767 = vpack.c.bf16 %v751, %v750
        %v768 = vld [vmem:[%s4] sm:$0xff]
        %v769 = vld [vmem:[%s4 + $0x8] sm:$0xff]
        %v770 = vld [vmem:[%s4 + $0x10] sm:$0xff]
        %v771 = vld [vmem:[%s4 + $0x18] sm:$0xff]
        %v772 = vld [vmem:[%s4 + $0x20] sm:$0xff]
        %v773 = vld [vmem:[%s4 + $0x28] sm:$0xff]
        %v774 = vld [vmem:[%s4 + $0x30] sm:$0xff]
        %v775 = vld [vmem:[%s4 + $0x38] sm:$0xff]
        %v776 = vld [vmem:[%s4 + $0x40] sm:$0xff]
        %v777 = vld [vmem:[%s4 + $0x48] sm:$0xff]
        %v778 = vld [vmem:[%s4 + $0x50] sm:$0xff]
        %v779 = vld [vmem:[%s4 + $0x58] sm:$0xff]
        %v780 = vld [vmem:[%s4 + $0x60] sm:$0xff]
        %v781 = vld [vmem:[%s4 + $0x68] sm:$0xff]
        %v782 = vld [vmem:[%s4 + $0x70] sm:$0xff]
        %v783 = vld [vmem:[%s4 + $0x78] sm:$0xff]
        %v800 = vunpack.c.l.b16 %v768
        %v801 = vunpack.c.h.b16 %v768
        %v802 = vunpack.c.l.b16 %v769
        %v803 = vunpack.c.h.b16 %v769
        %v804 = vunpack.c.l.b16 %v770
        %v805 = vunpack.c.h.b16 %v770
        %v806 = vunpack.c.l.b16 %v771
        %v807 = vunpack.c.h.b16 %v771
        %v808 = vunpack.c.l.b16 %v772
        %v809 = vunpack.c.h.b16 %v772
        %v810 = vunpack.c.l.b16 %v773
        %v811 = vunpack.c.h.b16 %v773
        %v812 = vunpack.c.l.b16 %v774
        %v813 = vunpack.c.h.b16 %v774
        %v814 = vunpack.c.l.b16 %v775
        %v815 = vunpack.c.h.b16 %v775
        %v816 = vunpack.c.l.b16 %v776
        %v817 = vunpack.c.h.b16 %v776
        %v818 = vunpack.c.l.b16 %v777
        %v819 = vunpack.c.h.b16 %v777
        %v820 = vunpack.c.l.b16 %v778
        %v821 = vunpack.c.h.b16 %v778
        %v822 = vunpack.c.l.b16 %v779
        %v823 = vunpack.c.h.b16 %v779
        %v824 = vunpack.c.l.b16 %v780
        %v825 = vunpack.c.h.b16 %v780
        %v826 = vunpack.c.l.b16 %v781
        %v827 = vunpack.c.h.b16 %v781
        %v828 = vunpack.c.l.b16 %v782
        %v829 = vunpack.c.h.b16 %v782
        %v830 = vunpack.c.l.b16 %v783
        %v831 = vunpack.c.h.b16 %v783
        %v832 = vpack.c.b16 %v802, %v800
        %v833 = vpack.c.b16 %v803, %v801
        %v834 = vpack.c.b16 %v806, %v804
        %v835 = vpack.c.b16 %v807, %v805
        %v836 = vpack.c.b16 %v810, %v808
        %v837 = vpack.c.b16 %v811, %v809
        %v838 = vpack.c.b16 %v814, %v812
        %v839 = vpack.c.b16 %v815, %v813
        %v840 = vpack.c.b16 %v818, %v816
        %v841 = vpack.c.b16 %v819, %v817
        %v842 = vpack.c.b16 %v822, %v820
        %v843 = vpack.c.b16 %v823, %v821
        %v844 = vpack.c.b16 %v826, %v824
        %v845 = vpack.c.b16 %v827, %v825
        %v846 = vpack.c.b16 %v830, %v828
        %v847 = vpack.c.b16 %v831, %v829
        %864 = vmatprep.subr.bf16.mxu0 %v833
        %865 = vmatpush1.bf16.msra.mxu0 %v832
        %866 = vmatprep.subr.bf16.mxu0 %v835
        %867 = vmatpush1.bf16.msra.mxu0 %v834
        %868 = vmatprep.subr.bf16.mxu0 %v837
        %869 = vmatpush1.bf16.msra.mxu0 %v836
        %870 = vmatprep.subr.bf16.mxu0 %v839
        %871 = vmatpush1.bf16.msra.mxu0 %v838
        %872 = vmatprep.subr.bf16.mxu0 %v841
        %873 = vmatpush1.bf16.msra.mxu0 %v840
        %874 = vmatprep.subr.bf16.mxu0 %v843
        %875 = vmatpush1.bf16.msra.mxu0 %v842
        %876 = vmatprep.subr.bf16.mxu0 %v845
        %877 = vmatpush1.bf16.msra.mxu0 %v844
        %878 = vmatprep.subr.bf16.mxu0 %v847
        %879 = vmatpush1.bf16.msra.mxu0 %v846
        %880 = vmatprep.subr.bf16.mxu0 0
        %881 = vmatpush1.bf16.msra.mxu0 0
        %882 = vmatprep.subr.bf16.mxu0 0
        %883 = vmatpush1.bf16.msra.mxu0 0
        %884 = vmatprep.subr.bf16.mxu0 0
        %885 = vmatpush1.bf16.msra.mxu0 0
        %886 = vmatprep.subr.bf16.mxu0 0
        %887 = vmatpush1.bf16.msra.mxu0 0
        %888 = vmatprep.subr.bf16.mxu0 0
        %889 = vmatpush1.bf16.msra.mxu0 0
        %890 = vmatprep.subr.bf16.mxu0 0
        %891 = vmatpush1.bf16.msra.mxu0 0
        %892 = vmatprep.subr.bf16.mxu0 0
        %893 = vmatpush1.bf16.msra.mxu0 0
        %894 = vmatprep.subr.bf16.mxu0 0
        %895 = vmatpush1.bf16.msra.mxu0 0
        %896 = vmatprep.mubr.bf16.mxu0 0
        %897 = vmatmul.mubr.bf16.gmra.mrb[0].mxu0 %v752
        %v898 = vpop.f32.mrb[0].mxu0
        %v899 = vadd.f32 0.0, %v898
        %v900 = vpop.f32.mrb[0].mxu0
        %v901 = vadd.f32 0.0, %v900
        %v902 = vpop.f32.mrb[0].mxu0
        %v903 = vadd.f32 0.0, %v902
        %v904 = vpop.f32.mrb[0].mxu0
        %v905 = vadd.f32 0.0, %v904
        %906 = vmatprep.mubr.bf16.mxu0 0
        %907 = vmatmul.mubr.bf16.gmra.mrb[0].mxu0 %v753
        %v908 = vpop.f32.mrb[0].mxu0
        %v909 = vadd.f32 0.0, %v908
        %v910 = vpop.f32.mrb[0].mxu0
        %v911 = vadd.f32 0.0, %v910
        %v912 = vpop.f32.mrb[0].mxu0
        %v913 = vadd.f32 0.0, %v912
        %v914 = vpop.f32.mrb[0].mxu0
        %v915 = vadd.f32 0.0, %v914
        %916 = vmatprep.mubr.bf16.mxu0 0
        %917 = vmatmul.mubr.bf16.gmra.mrb[0].mxu0 %v754
        %v918 = vpop.f32.mrb[0].mxu0
        %v919 = vadd.f32 0.0, %v918
        %v920 = vpop.f32.mrb[0].mxu0
        %v921 = vadd.f32 0.0, %v920
        %v922 = vpop.f32.mrb[0].mxu0
        %v923 = vadd.f32 0.0, %v922
        %v924 = vpop.f32.mrb[0].mxu0
        %v925 = vadd.f32 0.0, %v924
        %926 = vmatprep.mubr.bf16.mxu0 0
        %927 = vmatmul.mubr.bf16.gmra.mrb[0].mxu0 %v755
        %v928 = vpop.f32.mrb[0].mxu0
        %v929 = vadd.f32 0.0, %v928
        %v930 = vpop.f32.mrb[0].mxu0
        %v931 = vadd.f32 0.0, %v930
        %v932 = vpop.f32.mrb[0].mxu0
        %v933 = vadd.f32 0.0, %v932
        %v934 = vpop.f32.mrb[0].mxu0
        %v935 = vadd.f32 0.0, %v934
        %936 = vmatprep.mubr.bf16.mxu0 0
        %937 = vmatmul.mubr.bf16.gmra.mrb[0].mxu0 %v756
        %v938 = vpop.f32.mrb[0].mxu0
        %v939 = vadd.f32 0.0, %v938
        %v940 = vpop.f32.mrb[0].mxu0
        %v941 = vadd.f32 0.0, %v940
        %v942 = vpop.f32.mrb[0].mxu0
        %v943 = vadd.f32 0.0, %v942
        %v944 = vpop.f32.mrb[0].mxu0
        %v945 = vadd.f32 0.0, %v944
        %946 = vmatprep.mubr.bf16.mxu0 0
        %947 = vmatmul.mubr.bf16.gmra.mrb[0].mxu0 %v757
        %v948 = vpop.f32.mrb[0].mxu0
        %v949 = vadd.f32 0.0, %v948
        %v950 = vpop.f32.mrb[0].mxu0
        %v951 = vadd.f32 0.0, %v950
        %v952 = vpop.f32.mrb[0].mxu0
        %v953 = vadd.f32 0.0, %v952
        %v954 = vpop.f32.mrb[0].mxu0
        %v955 = vadd.f32 0.0, %v954
        %956 = vmatprep.mubr.bf16.mxu0 0
        %957 = vmatmul.mubr.bf16.gmra.mrb[0].mxu0 %v758
        %v958 = vpop.f32.mrb[0].mxu0
        %v959 = vadd.f32 0.0, %v958
        %v960 = vpop.f32.mrb[0].mxu0
        %v961 = vadd.f32 0.0, %v960
        %v962 = vpop.f32.mrb[0].mxu0
        %v963 = vadd.f32 0.0, %v962
        %v964 = vpop.f32.mrb[0].mxu0
        %v965 = vadd.f32 0.0, %v964
        %966 = vmatprep.mubr.bf16.mxu0 0
        %967 = vmatmul.mubr.bf16.gmra.mrb[0].mxu0 %v759
        %v968 = vpop.f32.mrb[0].mxu0
        %v969 = vadd.f32 0.0, %v968
        %v970 = vpop.f32.mrb[0].mxu0
        %v971 = vadd.f32 0.0, %v970
        %v972 = vpop.f32.mrb[0].mxu0
        %v973 = vadd.f32 0.0, %v972
        %v974 = vpop.f32.mrb[0].mxu0
        %v975 = vadd.f32 0.0, %v974
        %976 = vmatprep.mubr.bf16.mxu0 0
        %977 = vmatmul.mubr.bf16.gmra.mrb[0].mxu0 %v760
        %v978 = vpop.f32.mrb[0].mxu0
        %v979 = vadd.f32 0.0, %v978
        %v980 = vpop.f32.mrb[0].mxu0
        %v981 = vadd.f32 0.0, %v980
        %v982 = vpop.f32.mrb[0].mxu0
        %v983 = vadd.f32 0.0, %v982
        %v984 = vpop.f32.mrb[0].mxu0
        %v985 = vadd.f32 0.0, %v984
        %986 = vmatprep.mubr.bf16.mxu0 0
        %987 = vmatmul.mubr.bf16.gmra.mrb[0].mxu0 %v761
        %v988 = vpop.f32.mrb[0].mxu0
        %v989 = vadd.f32 0.0, %v988
        %v990 = vpop.f32.mrb[0].mxu0
        %v991 = vadd.f32 0.0, %v990
        %v992 = vpop.f32.mrb[0].mxu0
        %v993 = vadd.f32 0.0, %v992
        %v994 = vpop.f32.mrb[0].mxu0
        %v995 = vadd.f32 0.0, %v994
        %996 = vmatprep.mubr.bf16.mxu0 0
        %997 = vmatmul.mubr.bf16.gmra.mrb[0].mxu0 %v762
        %v998 = vpop.f32.mrb[0].mxu0
        %v999 = vadd.f32 0.0, %v998
        %v1000 = vpop.f32.mrb[0].mxu0
        %v1001 = vadd.f32 0.0, %v1000
        %v1002 = vpop.f32.mrb[0].mxu0
        %v1003 = vadd.f32 0.0, %v1002
        %v1004 = vpop.f32.mrb[0].mxu0
        %v1005 = vadd.f32 0.0, %v1004
        %1006 = vmatprep.mubr.bf16.mxu0 0
        %1007 = vmatmul.mubr.bf16.gmra.mrb[0].mxu0 %v763
        %v1008 = vpop.f32.mrb[0].mxu0
        %v1009 = vadd.f32 0.0, %v1008
        %v1010 = vpop.f32.mrb[0].mxu0
        %v1011 = vadd.f32 0.0, %v1010
        %v1012 = vpop.f32.mrb[0].mxu0
        %v1013 = vadd.f32 0.0, %v1012
        %v1014 = vpop.f32.mrb[0].mxu0
        %v1015 = vadd.f32 0.0, %v1014
        %1016 = vmatprep.mubr.bf16.mxu0 0
        %1017 = vmatmul.mubr.bf16.gmra.mrb[0].mxu0 %v764
        %v1018 = vpop.f32.mrb[0].mxu0
        %v1019 = vadd.f32 0.0, %v1018
        %v1020 = vpop.f32.mrb[0].mxu0
        %v1021 = vadd.f32 0.0, %v1020
        %v1022 = vpop.f32.mrb[0].mxu0
        %v1023 = vadd.f32 0.0, %v1022
        %v1024 = vpop.f32.mrb[0].mxu0
        %v1025 = vadd.f32 0.0, %v1024
        %1026 = vmatprep.mubr.bf16.mxu0 0
        %1027 = vmatmul.mubr.bf16.gmra.mrb[0].mxu0 %v765
        %v1028 = vpop.f32.mrb[0].mxu0
        %v1029 = vadd.f32 0.0, %v1028
        %v1030 = vpop.f32.mrb[0].mxu0
        %v1031 = vadd.f32 0.0, %v1030
        %v1032 = vpop.f32.mrb[0].mxu0
        %v1033 = vadd.f32 0.0, %v1032
        %v1034 = vpop.f32.mrb[0].mxu0
        %v1035 = vadd.f32 0.0, %v1034
        %1036 = vmatprep.mubr.bf16.mxu0 0
        %1037 = vmatmul.mubr.bf16.gmra.mrb[0].mxu0 %v766
        %v1038 = vpop.f32.mrb[0].mxu0
        %v1039 = vadd.f32 0.0, %v1038
        %v1040 = vpop.f32.mrb[0].mxu0
        %v1041 = vadd.f32 0.0, %v1040
        %v1042 = vpop.f32.mrb[0].mxu0
        %v1043 = vadd.f32 0.0, %v1042
        %v1044 = vpop.f32.mrb[0].mxu0
        %v1045 = vadd.f32 0.0, %v1044
        %1046 = vmatprep.mubr.bf16.mxu0 0
        %1047 = vmatmul.mubr.bf16.gmra.mrb[0].mxu0 %v767
        %v1048 = vpop.f32.mrb[0].mxu0
        %v1049 = vadd.f32 0.0, %v1048
        %v1050 = vpop.f32.mrb[0].mxu0
        %v1051 = vadd.f32 0.0, %v1050
        %v1052 = vpop.f32.mrb[0].mxu0
        %v1053 = vadd.f32 0.0, %v1052
        %v1054 = vpop.f32.mrb[0].mxu0
        %v1055 = vadd.f32 0.0, %v1054
        %1056 = vdwg.mxu0
        %v1057 = vcombine.high %v899, 0.0
        %v1059 = vunpack.c.l.s4 1983009808
        %v1060 = vunpack.c.0.s8 %v1059
        %v1061 = vlaneseq
        %v1062 = vshrl.u32 %v1061, 7
        %v1063 = vsub.s32 %v1060, %v1062
        %v1064 = vrot.slane %v899, %v1063
        %v1066 = vunpack.c.l.s4 1983009808
        %v1067 = vunpack.c.0.s8 %v1066
        %v1068 = vlaneseq
        %v1069 = vshrl.u32 %v1068, 7
        %v1070 = vsub.s32 %v1067, %v1069
        %v1071 = vrot.slane %v1057, %v1070
        %v1072 = vcombine.high %v901, 0.0
        %v1074 = vunpack.c.l.s4 1983009808
        %v1075 = vunpack.c.0.s8 %v1074
        %v1076 = vlaneseq
        %v1077 = vshrl.u32 %v1076, 7
        %v1078 = vsub.s32 %v1075, %v1077
        %v1079 = vrot.slane %v901, %v1078
        %v1081 = vunpack.c.l.s4 1983009808
        %v1082 = vunpack.c.0.s8 %v1081
        %v1083 = vlaneseq
        %v1084 = vshrl.u32 %v1083, 7
        %v1085 = vsub.s32 %v1082, %v1084
        %v1086 = vrot.slane %v1072, %v1085
        %v1087 = vcombine.low %v1064, %v1079
        %v1088 = vcombine.high %v1064, %v1079
        %v1090 = vunpack.c.l.s4 1934713408
        %v1091 = vunpack.c.0.s8 %v1090
        %v1092 = vlaneseq
        %v1093 = vshrl.u32 %v1092, 7
        %v1094 = vsub.s32 %v1091, %v1093
        %v1095 = vrot.slane %v1087, %v1094
        %v1097 = vunpack.c.l.s4 1934713408
        %v1098 = vunpack.c.0.s8 %v1097
        %v1099 = vlaneseq
        %v1100 = vshrl.u32 %v1099, 7
        %v1101 = vsub.s32 %v1098, %v1100
        %v1102 = vrot.slane %v1088, %v1101
        %v1103 = vcombine.low %v1071, %v1086
        %v1104 = vcombine.high %v1071, %v1086
        %v1106 = vunpack.c.l.s4 1934713408
        %v1107 = vunpack.c.0.s8 %v1106
        %v1108 = vlaneseq
        %v1109 = vshrl.u32 %v1108, 7
        %v1110 = vsub.s32 %v1107, %v1109
        %v1111 = vrot.slane %v1103, %v1110
        %v1113 = vunpack.c.l.s4 1934713408
        %v1114 = vunpack.c.0.s8 %v1113
        %v1115 = vlaneseq
        %v1116 = vshrl.u32 %v1115, 7
        %v1117 = vsub.s32 %v1114, %v1116
        %v1118 = vrot.slane %v1104, %v1117
        %v1119 = vcombine.high %v1095, 0.0
        %v1120 = vcombine.high %v1102, 0.0
        %v1121 = vcombine.high %v1111, 0.0
        %v1122 = vcombine.high %v1118, 0.0
        %v1123 = vcombine.high %v903, 0.0
        %v1125 = vunpack.c.l.s4 1983009808
        %v1126 = vunpack.c.0.s8 %v1125
        %v1127 = vlaneseq
        %v1128 = vshrl.u32 %v1127, 7
        %v1129 = vsub.s32 %v1126, %v1128
        %v1130 = vrot.slane %v903, %v1129
        %v1132 = vunpack.c.l.s4 1983009808
        %v1133 = vunpack.c.0.s8 %v1132
        %v1134 = vlaneseq
        %v1135 = vshrl.u32 %v1134, 7
        %v1136 = vsub.s32 %v1133, %v1135
        %v1137 = vrot.slane %v1123, %v1136
        %v1138 = vcombine.high %v905, 0.0
        %v1140 = vunpack.c.l.s4 1983009808
        %v1141 = vunpack.c.0.s8 %v1140
        %v1142 = vlaneseq
        %v1143 = vshrl.u32 %v1142, 7
        %v1144 = vsub.s32 %v1141, %v1143
        %v1145 = vrot.slane %v905, %v1144
        %v1147 = vunpack.c.l.s4 1983009808
        %v1148 = vunpack.c.0.s8 %v1147
        %v1149 = vlaneseq
        %v1150 = vshrl.u32 %v1149, 7
        %v1151 = vsub.s32 %v1148, %v1150
        %v1152 = vrot.slane %v1138, %v1151
        %v1153 = vcombine.low %v1130, %v1145
        %v1154 = vcombine.high %v1130, %v1145
        %v1156 = vunpack.c.l.s4 1934713408
        %v1157 = vunpack.c.0.s8 %v1156
        %v1158 = vlaneseq
        %v1159 = vshrl.u32 %v1158, 7
        %v1160 = vsub.s32 %v1157, %v1159
        %v1161 = vrot.slane %v1153, %v1160
        %v1163 = vunpack.c.l.s4 1934713408
        %v1164 = vunpack.c.0.s8 %v1163
        %v1165 = vlaneseq
        %v1166 = vshrl.u32 %v1165, 7
        %v1167 = vsub.s32 %v1164, %v1166
        %v1168 = vrot.slane %v1154, %v1167
        %v1169 = vcombine.low %v1137, %v1152
        %v1170 = vcombine.high %v1137, %v1152
        %v1172 = vunpack.c.l.s4 1934713408
        %v1173 = vunpack.c.0.s8 %v1172
        %v1174 = vlaneseq
        %v1175 = vshrl.u32 %v1174, 7
        %v1176 = vsub.s32 %v1173, %v1175
        %v1177 = vrot.slane %v1169, %v1176
        %v1179 = vunpack.c.l.s4 1934713408
        %v1180 = vunpack.c.0.s8 %v1179
        %v1181 = vlaneseq
        %v1182 = vshrl.u32 %v1181, 7
        %v1183 = vsub.s32 %v1180, %v1182
        %v1184 = vrot.slane %v1170, %v1183
        %v1185 = vcombine.high %v1161, 0.0
        %v1186 = vcombine.high %v1168, 0.0
        %v1187 = vcombine.high %v1177, 0.0
        %v1188 = vcombine.high %v1184, 0.0
        %v1189 = vcombine.high %v909, 0.0
        %v1191 = vunpack.c.l.s4 1983009808
        %v1192 = vunpack.c.0.s8 %v1191
        %v1193 = vlaneseq
        %v1194 = vshrl.u32 %v1193, 7
        %v1195 = vsub.s32 %v1192, %v1194
        %v1196 = vrot.slane %v909, %v1195
        %v1198 = vunpack.c.l.s4 1983009808
        %v1199 = vunpack.c.0.s8 %v1198
        %v1200 = vlaneseq
        %v1201 = vshrl.u32 %v1200, 7
        %v1202 = vsub.s32 %v1199, %v1201
        %v1203 = vrot.slane %v1189, %v1202
        %v1204 = vcombine.high %v911, 0.0
        %v1206 = vunpack.c.l.s4 1983009808
        %v1207 = vunpack.c.0.s8 %v1206
        %v1208 = vlaneseq
        %v1209 = vshrl.u32 %v1208, 7
        %v1210 = vsub.s32 %v1207, %v1209
        %v1211 = vrot.slane %v911, %v1210
        %v1213 = vunpack.c.l.s4 1983009808
        %v1214 = vunpack.c.0.s8 %v1213
        %v1215 = vlaneseq
        %v1216 = vshrl.u32 %v1215, 7
        %v1217 = vsub.s32 %v1214, %v1216
        %v1218 = vrot.slane %v1204, %v1217
        %v1219 = vcombine.low %v1196, %v1211
        %v1220 = vcombine.high %v1196, %v1211
        %v1222 = vunpack.c.l.s4 1934713408
        %v1223 = vunpack.c.0.s8 %v1222
        %v1224 = vlaneseq
        %v1225 = vshrl.u32 %v1224, 7
        %v1226 = vsub.s32 %v1223, %v1225
        %v1227 = vrot.slane %v1219, %v1226
        %v1229 = vunpack.c.l.s4 1934713408
        %v1230 = vunpack.c.0.s8 %v1229
        %v1231 = vlaneseq
        %v1232 = vshrl.u32 %v1231, 7
        %v1233 = vsub.s32 %v1230, %v1232
        %v1234 = vrot.slane %v1220, %v1233
        %v1235 = vcombine.low %v1203, %v1218
        %v1236 = vcombine.high %v1203, %v1218
        %v1238 = vunpack.c.l.s4 1934713408
        %v1239 = vunpack.c.0.s8 %v1238
        %v1240 = vlaneseq
        %v1241 = vshrl.u32 %v1240, 7
        %v1242 = vsub.s32 %v1239, %v1241
        %v1243 = vrot.slane %v1235, %v1242
        %v1245 = vunpack.c.l.s4 1934713408
        %v1246 = vunpack.c.0.s8 %v1245
        %v1247 = vlaneseq
        %v1248 = vshrl.u32 %v1247, 7
        %v1249 = vsub.s32 %v1246, %v1248
        %v1250 = vrot.slane %v1236, %v1249
        %v1251 = vcombine.high %v1227, 0.0
        %v1252 = vcombine.high %v1234, 0.0
        %v1253 = vcombine.high %v1243, 0.0
        %v1254 = vcombine.high %v1250, 0.0
        %v1255 = vcombine.high %v913, 0.0
        %v1257 = vunpack.c.l.s4 1983009808
        %v1258 = vunpack.c.0.s8 %v1257
        %v1259 = vlaneseq
        %v1260 = vshrl.u32 %v1259, 7
        %v1261 = vsub.s32 %v1258, %v1260
        %v1262 = vrot.slane %v913, %v1261
        %v1264 = vunpack.c.l.s4 1983009808
        %v1265 = vunpack.c.0.s8 %v1264
        %v1266 = vlaneseq
        %v1267 = vshrl.u32 %v1266, 7
        %v1268 = vsub.s32 %v1265, %v1267
        %v1269 = vrot.slane %v1255, %v1268
        %v1270 = vcombine.high %v915, 0.0
        %v1272 = vunpack.c.l.s4 1983009808
        %v1273 = vunpack.c.0.s8 %v1272
        %v1274 = vlaneseq
        %v1275 = vshrl.u32 %v1274, 7
        %v1276 = vsub.s32 %v1273, %v1275
        %v1277 = vrot.slane %v915, %v1276
        %v1279 = vunpack.c.l.s4 1983009808
        %v1280 = vunpack.c.0.s8 %v1279
        %v1281 = vlaneseq
        %v1282 = vshrl.u32 %v1281, 7
        %v1283 = vsub.s32 %v1280, %v1282
        %v1284 = vrot.slane %v1270, %v1283
        %v1285 = vcombine.low %v1262, %v1277
        %v1286 = vcombine.high %v1262, %v1277
        %v1288 = vunpack.c.l.s4 1934713408
        %v1289 = vunpack.c.0.s8 %v1288
        %v1290 = vlaneseq
        %v1291 = vshrl.u32 %v1290, 7
        %v1292 = vsub.s32 %v1289, %v1291
        %v1293 = vrot.slane %v1285, %v1292
        %v1295 = vunpack.c.l.s4 1934713408
        %v1296 = vunpack.c.0.s8 %v1295
        %v1297 = vlaneseq
        %v1298 = vshrl.u32 %v1297, 7
        %v1299 = vsub.s32 %v1296, %v1298
        %v1300 = vrot.slane %v1286, %v1299
        %v1301 = vcombine.low %v1269, %v1284
        %v1302 = vcombine.high %v1269, %v1284
        %v1304 = vunpack.c.l.s4 1934713408
        %v1305 = vunpack.c.0.s8 %v1304
        %v1306 = vlaneseq
        %v1307 = vshrl.u32 %v1306, 7
        %v1308 = vsub.s32 %v1305, %v1307
        %v1309 = vrot.slane %v1301, %v1308
        %v1311 = vunpack.c.l.s4 1934713408
        %v1312 = vunpack.c.0.s8 %v1311
        %v1313 = vlaneseq
        %v1314 = vshrl.u32 %v1313, 7
        %v1315 = vsub.s32 %v1312, %v1314
        %v1316 = vrot.slane %v1302, %v1315
        %v1317 = vcombine.high %v1293, 0.0
        %v1318 = vcombine.high %v1300, 0.0
        %v1319 = vcombine.high %v1309, 0.0
        %v1320 = vcombine.high %v1316, 0.0
        %v1321 = vcombine.high %v919, 0.0
        %v1323 = vunpack.c.l.s4 1983009808
        %v1324 = vunpack.c.0.s8 %v1323
        %v1325 = vlaneseq
        %v1326 = vshrl.u32 %v1325, 7
        %v1327 = vsub.s32 %v1324, %v1326
        %v1328 = vrot.slane %v919, %v1327
        %v1330 = vunpack.c.l.s4 1983009808
        %v1331 = vunpack.c.0.s8 %v1330
        %v1332 = vlaneseq
        %v1333 = vshrl.u32 %v1332, 7
        %v1334 = vsub.s32 %v1331, %v1333
        %v1335 = vrot.slane %v1321, %v1334
        %v1336 = vcombine.high %v921, 0.0
        %v1338 = vunpack.c.l.s4 1983009808
        %v1339 = vunpack.c.0.s8 %v1338
        %v1340 = vlaneseq
        %v1341 = vshrl.u32 %v1340, 7
        %v1342 = vsub.s32 %v1339, %v1341
        %v1343 = vrot.slane %v921, %v1342
        %v1345 = vunpack.c.l.s4 1983009808
        %v1346 = vunpack.c.0.s8 %v1345
        %v1347 = vlaneseq
        %v1348 = vshrl.u32 %v1347, 7
        %v1349 = vsub.s32 %v1346, %v1348
        %v1350 = vrot.slane %v1336, %v1349
        %v1351 = vcombine.low %v1328, %v1343
        %v1352 = vcombine.high %v1328, %v1343
        %v1354 = vunpack.c.l.s4 1934713408
        %v1355 = vunpack.c.0.s8 %v1354
        %v1356 = vlaneseq
        %v1357 = vshrl.u32 %v1356, 7
        %v1358 = vsub.s32 %v1355, %v1357
        %v1359 = vrot.slane %v1351, %v1358
        %v1361 = vunpack.c.l.s4 1934713408
        %v1362 = vunpack.c.0.s8 %v1361
        %v1363 = vlaneseq
        %v1364 = vshrl.u32 %v1363, 7
        %v1365 = vsub.s32 %v1362, %v1364
        %v1366 = vrot.slane %v1352, %v1365
        %v1367 = vcombine.low %v1335, %v1350
        %v1368 = vcombine.high %v1335, %v1350
        %v1370 = vunpack.c.l.s4 1934713408
        %v1371 = vunpack.c.0.s8 %v1370
        %v1372 = vlaneseq
        %v1373 = vshrl.u32 %v1372, 7
        %v1374 = vsub.s32 %v1371, %v1373
        %v1375 = vrot.slane %v1367, %v1374
        %v1377 = vunpack.c.l.s4 1934713408
        %v1378 = vunpack.c.0.s8 %v1377
        %v1379 = vlaneseq
        %v1380 = vshrl.u32 %v1379, 7
        %v1381 = vsub.s32 %v1378, %v1380
        %v1382 = vrot.slane %v1368, %v1381
        %v1383 = vcombine.high %v1359, 0.0
        %v1384 = vcombine.high %v1366, 0.0
        %v1385 = vcombine.high %v1375, 0.0
        %v1386 = vcombine.high %v1382, 0.0
        %v1387 = vcombine.high %v923, 0.0
        %v1389 = vunpack.c.l.s4 1983009808
        %v1390 = vunpack.c.0.s8 %v1389
        %v1391 = vlaneseq
        %v1392 = vshrl.u32 %v1391, 7
        %v1393 = vsub.s32 %v1390, %v1392
        %v1394 = vrot.slane %v923, %v1393
        %v1396 = vunpack.c.l.s4 1983009808
        %v1397 = vunpack.c.0.s8 %v1396
        %v1398 = vlaneseq
        %v1399 = vshrl.u32 %v1398, 7
        %v1400 = vsub.s32 %v1397, %v1399
        %v1401 = vrot.slane %v1387, %v1400
        %v1402 = vcombine.high %v925, 0.0
        %v1404 = vunpack.c.l.s4 1983009808
        %v1405 = vunpack.c.0.s8 %v1404
        %v1406 = vlaneseq
        %v1407 = vshrl.u32 %v1406, 7
        %v1408 = vsub.s32 %v1405, %v1407
        %v1409 = vrot.slane %v925, %v1408
        %v1411 = vunpack.c.l.s4 1983009808
        %v1412 = vunpack.c.0.s8 %v1411
        %v1413 = vlaneseq
        %v1414 = vshrl.u32 %v1413, 7
        %v1415 = vsub.s32 %v1412, %v1414
        %v1416 = vrot.slane %v1402, %v1415
        %v1417 = vcombine.low %v1394, %v1409
        %v1418 = vcombine.high %v1394, %v1409
        %v1420 = vunpack.c.l.s4 1934713408
        %v1421 = vunpack.c.0.s8 %v1420
        %v1422 = vlaneseq
        %v1423 = vshrl.u32 %v1422, 7
        %v1424 = vsub.s32 %v1421, %v1423
        %v1425 = vrot.slane %v1417, %v1424
        %v1427 = vunpack.c.l.s4 1934713408
        %v1428 = vunpack.c.0.s8 %v1427
        %v1429 = vlaneseq
        %v1430 = vshrl.u32 %v1429, 7
        %v1431 = vsub.s32 %v1428, %v1430
        %v1432 = vrot.slane %v1418, %v1431
        %v1433 = vcombine.low %v1401, %v1416
        %v1434 = vcombine.high %v1401, %v1416
        %v1436 = vunpack.c.l.s4 1934713408
        %v1437 = vunpack.c.0.s8 %v1436
        %v1438 = vlaneseq
        %v1439 = vshrl.u32 %v1438, 7
        %v1440 = vsub.s32 %v1437, %v1439
        %v1441 = vrot.slane %v1433, %v1440
        %v1443 = vunpack.c.l.s4 1934713408
        %v1444 = vunpack.c.0.s8 %v1443
        %v1445 = vlaneseq
        %v1446 = vshrl.u32 %v1445, 7
        %v1447 = vsub.s32 %v1444, %v1446
        %v1448 = vrot.slane %v1434, %v1447
        %v1449 = vcombine.high %v1425, 0.0
        %v1450 = vcombine.high %v1432, 0.0
        %v1451 = vcombine.high %v1441, 0.0
        %v1452 = vcombine.high %v1448, 0.0
        %v1453 = vcombine.high %v929, 0.0
        %v1455 = vunpack.c.l.s4 1983009808
        %v1456 = vunpack.c.0.s8 %v1455
        %v1457 = vlaneseq
        %v1458 = vshrl.u32 %v1457, 7
        %v1459 = vsub.s32 %v1456, %v1458
        %v1460 = vrot.slane %v929, %v1459
        %v1462 = vunpack.c.l.s4 1983009808
        %v1463 = vunpack.c.0.s8 %v1462
        %v1464 = vlaneseq
        %v1465 = vshrl.u32 %v1464, 7
        %v1466 = vsub.s32 %v1463, %v1465
        %v1467 = vrot.slane %v1453, %v1466
        %v1468 = vcombine.high %v931, 0.0
        %v1470 = vunpack.c.l.s4 1983009808
        %v1471 = vunpack.c.0.s8 %v1470
        %v1472 = vlaneseq
        %v1473 = vshrl.u32 %v1472, 7
        %v1474 = vsub.s32 %v1471, %v1473
        %v1475 = vrot.slane %v931, %v1474
        %v1477 = vunpack.c.l.s4 1983009808
        %v1478 = vunpack.c.0.s8 %v1477
        %v1479 = vlaneseq
        %v1480 = vshrl.u32 %v1479, 7
        %v1481 = vsub.s32 %v1478, %v1480
        %v1482 = vrot.slane %v1468, %v1481
        %v1483 = vcombine.low %v1460, %v1475
        %v1484 = vcombine.high %v1460, %v1475
        %v1486 = vunpack.c.l.s4 1934713408
        %v1487 = vunpack.c.0.s8 %v1486
        %v1488 = vlaneseq
        %v1489 = vshrl.u32 %v1488, 7
        %v1490 = vsub.s32 %v1487, %v1489
        %v1491 = vrot.slane %v1483, %v1490
        %v1493 = vunpack.c.l.s4 1934713408
        %v1494 = vunpack.c.0.s8 %v1493
        %v1495 = vlaneseq
        %v1496 = vshrl.u32 %v1495, 7
        %v1497 = vsub.s32 %v1494, %v1496
        %v1498 = vrot.slane %v1484, %v1497
        %v1499 = vcombine.low %v1467, %v1482
        %v1500 = vcombine.high %v1467, %v1482
        %v1502 = vunpack.c.l.s4 1934713408
        %v1503 = vunpack.c.0.s8 %v1502
        %v1504 = vlaneseq
        %v1505 = vshrl.u32 %v1504, 7
        %v1506 = vsub.s32 %v1503, %v1505
        %v1507 = vrot.slane %v1499, %v1506
        %v1509 = vunpack.c.l.s4 1934713408
        %v1510 = vunpack.c.0.s8 %v1509
        %v1511 = vlaneseq
        %v1512 = vshrl.u32 %v1511, 7
        %v1513 = vsub.s32 %v1510, %v1512
        %v1514 = vrot.slane %v1500, %v1513
        %v1515 = vcombine.high %v1491, 0.0
        %v1516 = vcombine.high %v1498, 0.0
        %v1517 = vcombine.high %v1507, 0.0
        %v1518 = vcombine.high %v1514, 0.0
        %v1519 = vcombine.high %v933, 0.0
        %v1521 = vunpack.c.l.s4 1983009808
        %v1522 = vunpack.c.0.s8 %v1521
        %v1523 = vlaneseq
        %v1524 = vshrl.u32 %v1523, 7
        %v1525 = vsub.s32 %v1522, %v1524
        %v1526 = vrot.slane %v933, %v1525
        %v1528 = vunpack.c.l.s4 1983009808
        %v1529 = vunpack.c.0.s8 %v1528
        %v1530 = vlaneseq
        %v1531 = vshrl.u32 %v1530, 7
        %v1532 = vsub.s32 %v1529, %v1531
        %v1533 = vrot.slane %v1519, %v1532
        %v1534 = vcombine.high %v935, 0.0
        %v1536 = vunpack.c.l.s4 1983009808
        %v1537 = vunpack.c.0.s8 %v1536
        %v1538 = vlaneseq
        %v1539 = vshrl.u32 %v1538, 7
        %v1540 = vsub.s32 %v1537, %v1539
        %v1541 = vrot.slane %v935, %v1540
        %v1543 = vunpack.c.l.s4 1983009808
        %v1544 = vunpack.c.0.s8 %v1543
        %v1545 = vlaneseq
        %v1546 = vshrl.u32 %v1545, 7
        %v1547 = vsub.s32 %v1544, %v1546
        %v1548 = vrot.slane %v1534, %v1547
        %v1549 = vcombine.low %v1526, %v1541
        %v1550 = vcombine.high %v1526, %v1541
        %v1552 = vunpack.c.l.s4 1934713408
        %v1553 = vunpack.c.0.s8 %v1552
        %v1554 = vlaneseq
        %v1555 = vshrl.u32 %v1554, 7
        %v1556 = vsub.s32 %v1553, %v1555
        %v1557 = vrot.slane %v1549, %v1556
        %v1559 = vunpack.c.l.s4 1934713408
        %v1560 = vunpack.c.0.s8 %v1559
        %v1561 = vlaneseq
        %v1562 = vshrl.u32 %v1561, 7
        %v1563 = vsub.s32 %v1560, %v1562
        %v1564 = vrot.slane %v1550, %v1563
        %v1565 = vcombine.low %v1533, %v1548
        %v1566 = vcombine.high %v1533, %v1548
        %v1568 = vunpack.c.l.s4 1934713408
        %v1569 = vunpack.c.0.s8 %v1568
        %v1570 = vlaneseq
        %v1571 = vshrl.u32 %v1570, 7
        %v1572 = vsub.s32 %v1569, %v1571
        %v1573 = vrot.slane %v1565, %v1572
        %v1575 = vunpack.c.l.s4 1934713408
        %v1576 = vunpack.c.0.s8 %v1575
        %v1577 = vlaneseq
        %v1578 = vshrl.u32 %v1577, 7
        %v1579 = vsub.s32 %v1576, %v1578
        %v1580 = vrot.slane %v1566, %v1579
        %v1581 = vcombine.high %v1557, 0.0
        %v1582 = vcombine.high %v1564, 0.0
        %v1583 = vcombine.high %v1573, 0.0
        %v1584 = vcombine.high %v1580, 0.0
        %v1585 = vcombine.high %v939, 0.0
        %v1587 = vunpack.c.l.s4 1983009808
        %v1588 = vunpack.c.0.s8 %v1587
        %v1589 = vlaneseq
        %v1590 = vshrl.u32 %v1589, 7
        %v1591 = vsub.s32 %v1588, %v1590
        %v1592 = vrot.slane %v939, %v1591
        %v1594 = vunpack.c.l.s4 1983009808
        %v1595 = vunpack.c.0.s8 %v1594
        %v1596 = vlaneseq
        %v1597 = vshrl.u32 %v1596, 7
        %v1598 = vsub.s32 %v1595, %v1597
        %v1599 = vrot.slane %v1585, %v1598
        %v1600 = vcombine.high %v941, 0.0
        %v1602 = vunpack.c.l.s4 1983009808
        %v1603 = vunpack.c.0.s8 %v1602
        %v1604 = vlaneseq
        %v1605 = vshrl.u32 %v1604, 7
        %v1606 = vsub.s32 %v1603, %v1605
        %v1607 = vrot.slane %v941, %v1606
        %v1609 = vunpack.c.l.s4 1983009808
        %v1610 = vunpack.c.0.s8 %v1609
        %v1611 = vlaneseq
        %v1612 = vshrl.u32 %v1611, 7
        %v1613 = vsub.s32 %v1610, %v1612
        %v1614 = vrot.slane %v1600, %v1613
        %v1615 = vcombine.low %v1592, %v1607
        %v1616 = vcombine.high %v1592, %v1607
        %v1618 = vunpack.c.l.s4 1934713408
        %v1619 = vunpack.c.0.s8 %v1618
        %v1620 = vlaneseq
        %v1621 = vshrl.u32 %v1620, 7
        %v1622 = vsub.s32 %v1619, %v1621
        %v1623 = vrot.slane %v1615, %v1622
        %v1625 = vunpack.c.l.s4 1934713408
        %v1626 = vunpack.c.0.s8 %v1625
        %v1627 = vlaneseq
        %v1628 = vshrl.u32 %v1627, 7
        %v1629 = vsub.s32 %v1626, %v1628
        %v1630 = vrot.slane %v1616, %v1629
        %v1631 = vcombine.low %v1599, %v1614
        %v1632 = vcombine.high %v1599, %v1614
        %v1634 = vunpack.c.l.s4 1934713408
        %v1635 = vunpack.c.0.s8 %v1634
        %v1636 = vlaneseq
        %v1637 = vshrl.u32 %v1636, 7
        %v1638 = vsub.s32 %v1635, %v1637
        %v1639 = vrot.slane %v1631, %v1638
        %v1641 = vunpack.c.l.s4 1934713408
        %v1642 = vunpack.c.0.s8 %v1641
        %v1643 = vlaneseq
        %v1644 = vshrl.u32 %v1643, 7
        %v1645 = vsub.s32 %v1642, %v1644
        %v1646 = vrot.slane %v1632, %v1645
        %v1647 = vcombine.high %v1623, 0.0
        %v1648 = vcombine.high %v1630, 0.0
        %v1649 = vcombine.high %v1639, 0.0
        %v1650 = vcombine.high %v1646, 0.0
        %v1651 = vcombine.high %v943, 0.0
        %v1653 = vunpack.c.l.s4 1983009808
        %v1654 = vunpack.c.0.s8 %v1653
        %v1655 = vlaneseq
        %v1656 = vshrl.u32 %v1655, 7
        %v1657 = vsub.s32 %v1654, %v1656
        %v1658 = vrot.slane %v943, %v1657
        %v1660 = vunpack.c.l.s4 1983009808
        %v1661 = vunpack.c.0.s8 %v1660
        %v1662 = vlaneseq
        %v1663 = vshrl.u32 %v1662, 7
        %v1664 = vsub.s32 %v1661, %v1663
        %v1665 = vrot.slane %v1651, %v1664
        %v1666 = vcombine.high %v945, 0.0
        %v1668 = vunpack.c.l.s4 1983009808
        %v1669 = vunpack.c.0.s8 %v1668
        %v1670 = vlaneseq
        %v1671 = vshrl.u32 %v1670, 7
        %v1672 = vsub.s32 %v1669, %v1671
        %v1673 = vrot.slane %v945, %v1672
        %v1675 = vunpack.c.l.s4 1983009808
        %v1676 = vunpack.c.0.s8 %v1675
        %v1677 = vlaneseq
        %v1678 = vshrl.u32 %v1677, 7
        %v1679 = vsub.s32 %v1676, %v1678
        %v1680 = vrot.slane %v1666, %v1679
        %v1681 = vcombine.low %v1658, %v1673
        %v1682 = vcombine.high %v1658, %v1673
        %v1684 = vunpack.c.l.s4 1934713408
        %v1685 = vunpack.c.0.s8 %v1684
        %v1686 = vlaneseq
        %v1687 = vshrl.u32 %v1686, 7
        %v1688 = vsub.s32 %v1685, %v1687
        %v1689 = vrot.slane %v1681, %v1688
        %v1691 = vunpack.c.l.s4 1934713408
        %v1692 = vunpack.c.0.s8 %v1691
        %v1693 = vlaneseq
        %v1694 = vshrl.u32 %v1693, 7
        %v1695 = vsub.s32 %v1692, %v1694
        %v1696 = vrot.slane %v1682, %v1695
        %v1697 = vcombine.low %v1665, %v1680
        %v1698 = vcombine.high %v1665, %v1680
        %v1700 = vunpack.c.l.s4 1934713408
        %v1701 = vunpack.c.0.s8 %v1700
        %v1702 = vlaneseq
        %v1703 = vshrl.u32 %v1702, 7
        %v1704 = vsub.s32 %v1701, %v1703
        %v1705 = vrot.slane %v1697, %v1704
        %v1707 = vunpack.c.l.s4 1934713408
        %v1708 = vunpack.c.0.s8 %v1707
        %v1709 = vlaneseq
        %v1710 = vshrl.u32 %v1709, 7
        %v1711 = vsub.s32 %v1708, %v1710
        %v1712 = vrot.slane %v1698, %v1711
        %v1713 = vcombine.high %v1689, 0.0
        %v1714 = vcombine.high %v1696, 0.0
        %v1715 = vcombine.high %v1705, 0.0
        %v1716 = vcombine.high %v1712, 0.0
        %v1717 = vcombine.high %v949, 0.0
        %v1719 = vunpack.c.l.s4 1983009808
        %v1720 = vunpack.c.0.s8 %v1719
        %v1721 = vlaneseq
        %v1722 = vshrl.u32 %v1721, 7
        %v1723 = vsub.s32 %v1720, %v1722
        %v1724 = vrot.slane %v949, %v1723
        %v1726 = vunpack.c.l.s4 1983009808
        %v1727 = vunpack.c.0.s8 %v1726
        %v1728 = vlaneseq
        %v1729 = vshrl.u32 %v1728, 7
        %v1730 = vsub.s32 %v1727, %v1729
        %v1731 = vrot.slane %v1717, %v1730
        %v1732 = vcombine.high %v951, 0.0
        %v1734 = vunpack.c.l.s4 1983009808
        %v1735 = vunpack.c.0.s8 %v1734
        %v1736 = vlaneseq
        %v1737 = vshrl.u32 %v1736, 7
        %v1738 = vsub.s32 %v1735, %v1737
        %v1739 = vrot.slane %v951, %v1738
        %v1741 = vunpack.c.l.s4 1983009808
        %v1742 = vunpack.c.0.s8 %v1741
        %v1743 = vlaneseq
        %v1744 = vshrl.u32 %v1743, 7
        %v1745 = vsub.s32 %v1742, %v1744
        %v1746 = vrot.slane %v1732, %v1745
        %v1747 = vcombine.low %v1724, %v1739
        %v1748 = vcombine.high %v1724, %v1739
        %v1750 = vunpack.c.l.s4 1934713408
        %v1751 = vunpack.c.0.s8 %v1750
        %v1752 = vlaneseq
        %v1753 = vshrl.u32 %v1752, 7
        %v1754 = vsub.s32 %v1751, %v1753
        %v1755 = vrot.slane %v1747, %v1754
        %v1757 = vunpack.c.l.s4 1934713408
        %v1758 = vunpack.c.0.s8 %v1757
        %v1759 = vlaneseq
        %v1760 = vshrl.u32 %v1759, 7
        %v1761 = vsub.s32 %v1758, %v1760
        %v1762 = vrot.slane %v1748, %v1761
        %v1763 = vcombine.low %v1731, %v1746
        %v1764 = vcombine.high %v1731, %v1746
        %v1766 = vunpack.c.l.s4 1934713408
        %v1767 = vunpack.c.0.s8 %v1766
        %v1768 = vlaneseq
        %v1769 = vshrl.u32 %v1768, 7
        %v1770 = vsub.s32 %v1767, %v1769
        %v1771 = vrot.slane %v1763, %v1770
        %v1773 = vunpack.c.l.s4 1934713408
        %v1774 = vunpack.c.0.s8 %v1773
        %v1775 = vlaneseq
        %v1776 = vshrl.u32 %v1775, 7
        %v1777 = vsub.s32 %v1774, %v1776
        %v1778 = vrot.slane %v1764, %v1777
        %v1779 = vcombine.high %v1755, 0.0
        %v1780 = vcombine.high %v1762, 0.0
        %v1781 = vcombine.high %v1771, 0.0
        %v1782 = vcombine.high %v1778, 0.0
        %v1783 = vcombine.high %v953, 0.0
        %v1785 = vunpack.c.l.s4 1983009808
        %v1786 = vunpack.c.0.s8 %v1785
        %v1787 = vlaneseq
        %v1788 = vshrl.u32 %v1787, 7
        %v1789 = vsub.s32 %v1786, %v1788
        %v1790 = vrot.slane %v953, %v1789
        %v1792 = vunpack.c.l.s4 1983009808
        %v1793 = vunpack.c.0.s8 %v1792
        %v1794 = vlaneseq
        %v1795 = vshrl.u32 %v1794, 7
        %v1796 = vsub.s32 %v1793, %v1795
        %v1797 = vrot.slane %v1783, %v1796
        %v1798 = vcombine.high %v955, 0.0
        %v1800 = vunpack.c.l.s4 1983009808
        %v1801 = vunpack.c.0.s8 %v1800
        %v1802 = vlaneseq
        %v1803 = vshrl.u32 %v1802, 7
        %v1804 = vsub.s32 %v1801, %v1803
        %v1805 = vrot.slane %v955, %v1804
        %v1807 = vunpack.c.l.s4 1983009808
        %v1808 = vunpack.c.0.s8 %v1807
        %v1809 = vlaneseq
        %v1810 = vshrl.u32 %v1809, 7
        %v1811 = vsub.s32 %v1808, %v1810
        %v1812 = vrot.slane %v1798, %v1811
        %v1813 = vcombine.low %v1790, %v1805
        %v1814 = vcombine.high %v1790, %v1805
        %v1816 = vunpack.c.l.s4 1934713408
        %v1817 = vunpack.c.0.s8 %v1816
        %v1818 = vlaneseq
        %v1819 = vshrl.u32 %v1818, 7
        %v1820 = vsub.s32 %v1817, %v1819
        %v1821 = vrot.slane %v1813, %v1820
        %v1823 = vunpack.c.l.s4 1934713408
        %v1824 = vunpack.c.0.s8 %v1823
        %v1825 = vlaneseq
        %v1826 = vshrl.u32 %v1825, 7
        %v1827 = vsub.s32 %v1824, %v1826
        %v1828 = vrot.slane %v1814, %v1827
        %v1829 = vcombine.low %v1797, %v1812
        %v1830 = vcombine.high %v1797, %v1812
        %v1832 = vunpack.c.l.s4 1934713408
        %v1833 = vunpack.c.0.s8 %v1832
        %v1834 = vlaneseq
        %v1835 = vshrl.u32 %v1834, 7
        %v1836 = vsub.s32 %v1833, %v1835
        %v1837 = vrot.slane %v1829, %v1836
        %v1839 = vunpack.c.l.s4 1934713408
        %v1840 = vunpack.c.0.s8 %v1839
        %v1841 = vlaneseq
        %v1842 = vshrl.u32 %v1841, 7
        %v1843 = vsub.s32 %v1840, %v1842
        %v1844 = vrot.slane %v1830, %v1843
        %v1845 = vcombine.high %v1821, 0.0
        %v1846 = vcombine.high %v1828, 0.0
        %v1847 = vcombine.high %v1837, 0.0
        %v1848 = vcombine.high %v1844, 0.0
        %v1849 = vcombine.high %v959, 0.0
        %v1851 = vunpack.c.l.s4 1983009808
        %v1852 = vunpack.c.0.s8 %v1851
        %v1853 = vlaneseq
        %v1854 = vshrl.u32 %v1853, 7
        %v1855 = vsub.s32 %v1852, %v1854
        %v1856 = vrot.slane %v959, %v1855
        %v1858 = vunpack.c.l.s4 1983009808
        %v1859 = vunpack.c.0.s8 %v1858
        %v1860 = vlaneseq
        %v1861 = vshrl.u32 %v1860, 7
        %v1862 = vsub.s32 %v1859, %v1861
        %v1863 = vrot.slane %v1849, %v1862
        %v1864 = vcombine.high %v961, 0.0
        %v1866 = vunpack.c.l.s4 1983009808
        %v1867 = vunpack.c.0.s8 %v1866
        %v1868 = vlaneseq
        %v1869 = vshrl.u32 %v1868, 7
        %v1870 = vsub.s32 %v1867, %v1869
        %v1871 = vrot.slane %v961, %v1870
        %v1873 = vunpack.c.l.s4 1983009808
        %v1874 = vunpack.c.0.s8 %v1873
        %v1875 = vlaneseq
        %v1876 = vshrl.u32 %v1875, 7
        %v1877 = vsub.s32 %v1874, %v1876
        %v1878 = vrot.slane %v1864, %v1877
        %v1879 = vcombine.low %v1856, %v1871
        %v1880 = vcombine.high %v1856, %v1871
        %v1882 = vunpack.c.l.s4 1934713408
        %v1883 = vunpack.c.0.s8 %v1882
        %v1884 = vlaneseq
        %v1885 = vshrl.u32 %v1884, 7
        %v1886 = vsub.s32 %v1883, %v1885
        %v1887 = vrot.slane %v1879, %v1886
        %v1889 = vunpack.c.l.s4 1934713408
        %v1890 = vunpack.c.0.s8 %v1889
        %v1891 = vlaneseq
        %v1892 = vshrl.u32 %v1891, 7
        %v1893 = vsub.s32 %v1890, %v1892
        %v1894 = vrot.slane %v1880, %v1893
        %v1895 = vcombine.low %v1863, %v1878
        %v1896 = vcombine.high %v1863, %v1878
        %v1898 = vunpack.c.l.s4 1934713408
        %v1899 = vunpack.c.0.s8 %v1898
        %v1900 = vlaneseq
        %v1901 = vshrl.u32 %v1900, 7
        %v1902 = vsub.s32 %v1899, %v1901
        %v1903 = vrot.slane %v1895, %v1902
        %v1905 = vunpack.c.l.s4 1934713408
        %v1906 = vunpack.c.0.s8 %v1905
        %v1907 = vlaneseq
        %v1908 = vshrl.u32 %v1907, 7
        %v1909 = vsub.s32 %v1906, %v1908
        %v1910 = vrot.slane %v1896, %v1909
        %v1911 = vcombine.high %v1887, 0.0
        %v1912 = vcombine.high %v1894, 0.0
        %v1913 = vcombine.high %v1903, 0.0
        %v1914 = vcombine.high %v1910, 0.0
        %v1915 = vcombine.high %v963, 0.0
        %v1917 = vunpack.c.l.s4 1983009808
        %v1918 = vunpack.c.0.s8 %v1917
        %v1919 = vlaneseq
        %v1920 = vshrl.u32 %v1919, 7
        %v1921 = vsub.s32 %v1918, %v1920
        %v1922 = vrot.slane %v963, %v1921
        %v1924 = vunpack.c.l.s4 1983009808
        %v1925 = vunpack.c.0.s8 %v1924
        %v1926 = vlaneseq
        %v1927 = vshrl.u32 %v1926, 7
        %v1928 = vsub.s32 %v1925, %v1927
        %v1929 = vrot.slane %v1915, %v1928
        %v1930 = vcombine.high %v965, 0.0
        %v1932 = vunpack.c.l.s4 1983009808
        %v1933 = vunpack.c.0.s8 %v1932
        %v1934 = vlaneseq
        %v1935 = vshrl.u32 %v1934, 7
        %v1936 = vsub.s32 %v1933, %v1935
        %v1937 = vrot.slane %v965, %v1936
        %v1939 = vunpack.c.l.s4 1983009808
        %v1940 = vunpack.c.0.s8 %v1939
        %v1941 = vlaneseq
        %v1942 = vshrl.u32 %v1941, 7
        %v1943 = vsub.s32 %v1940, %v1942
        %v1944 = vrot.slane %v1930, %v1943
        %v1945 = vcombine.low %v1922, %v1937
        %v1946 = vcombine.high %v1922, %v1937
        %v1948 = vunpack.c.l.s4 1934713408
        %v1949 = vunpack.c.0.s8 %v1948
        %v1950 = vlaneseq
        %v1951 = vshrl.u32 %v1950, 7
        %v1952 = vsub.s32 %v1949, %v1951
        %v1953 = vrot.slane %v1945, %v1952
        %v1955 = vunpack.c.l.s4 1934713408
        %v1956 = vunpack.c.0.s8 %v1955
        %v1957 = vlaneseq
        %v1958 = vshrl.u32 %v1957, 7
        %v1959 = vsub.s32 %v1956, %v1958
        %v1960 = vrot.slane %v1946, %v1959
        %v1961 = vcombine.low %v1929, %v1944
        %v1962 = vcombine.high %v1929, %v1944
        %v1964 = vunpack.c.l.s4 1934713408
        %v1965 = vunpack.c.0.s8 %v1964
        %v1966 = vlaneseq
        %v1967 = vshrl.u32 %v1966, 7
        %v1968 = vsub.s32 %v1965, %v1967
        %v1969 = vrot.slane %v1961, %v1968
        %v1971 = vunpack.c.l.s4 1934713408
        %v1972 = vunpack.c.0.s8 %v1971
        %v1973 = vlaneseq
        %v1974 = vshrl.u32 %v1973, 7
        %v1975 = vsub.s32 %v1972, %v1974
        %v1976 = vrot.slane %v1962, %v1975
        %v1977 = vcombine.high %v1953, 0.0
        %v1978 = vcombine.high %v1960, 0.0
        %v1979 = vcombine.high %v1969, 0.0
        %v1980 = vcombine.high %v1976, 0.0
        %v1981 = vcombine.high %v969, 0.0
        %v1983 = vunpack.c.l.s4 1983009808
        %v1984 = vunpack.c.0.s8 %v1983
        %v1985 = vlaneseq
        %v1986 = vshrl.u32 %v1985, 7
        %v1987 = vsub.s32 %v1984, %v1986
        %v1988 = vrot.slane %v969, %v1987
        %v1990 = vunpack.c.l.s4 1983009808
        %v1991 = vunpack.c.0.s8 %v1990
        %v1992 = vlaneseq
        %v1993 = vshrl.u32 %v1992, 7
        %v1994 = vsub.s32 %v1991, %v1993
        %v1995 = vrot.slane %v1981, %v1994
        %v1996 = vcombine.high %v971, 0.0
        %v1998 = vunpack.c.l.s4 1983009808
        %v1999 = vunpack.c.0.s8 %v1998
        %v2000 = vlaneseq
        %v2001 = vshrl.u32 %v2000, 7
        %v2002 = vsub.s32 %v1999, %v2001
        %v2003 = vrot.slane %v971, %v2002
        %v2005 = vunpack.c.l.s4 1983009808
        %v2006 = vunpack.c.0.s8 %v2005
        %v2007 = vlaneseq
        %v2008 = vshrl.u32 %v2007, 7
        %v2009 = vsub.s32 %v2006, %v2008
        %v2010 = vrot.slane %v1996, %v2009
        %v2011 = vcombine.low %v1988, %v2003
        %v2012 = vcombine.high %v1988, %v2003
        %v2014 = vunpack.c.l.s4 1934713408
        %v2015 = vunpack.c.0.s8 %v2014
        %v2016 = vlaneseq
        %v2017 = vshrl.u32 %v2016, 7
        %v2018 = vsub.s32 %v2015, %v2017
        %v2019 = vrot.slane %v2011, %v2018
        %v2021 = vunpack.c.l.s4 1934713408
        %v2022 = vunpack.c.0.s8 %v2021
        %v2023 = vlaneseq
        %v2024 = vshrl.u32 %v2023, 7
        %v2025 = vsub.s32 %v2022, %v2024
        %v2026 = vrot.slane %v2012, %v2025
        %v2027 = vcombine.low %v1995, %v2010
        %v2028 = vcombine.high %v1995, %v2010
        %v2030 = vunpack.c.l.s4 1934713408
        %v2031 = vunpack.c.0.s8 %v2030
        %v2032 = vlaneseq
        %v2033 = vshrl.u32 %v2032, 7
        %v2034 = vsub.s32 %v2031, %v2033
        %v2035 = vrot.slane %v2027, %v2034
        %v2037 = vunpack.c.l.s4 1934713408
        %v2038 = vunpack.c.0.s8 %v2037
        %v2039 = vlaneseq
        %v2040 = vshrl.u32 %v2039, 7
        %v2041 = vsub.s32 %v2038, %v2040
        %v2042 = vrot.slane %v2028, %v2041
        %v2043 = vcombine.high %v2019, 0.0
        %v2044 = vcombine.high %v2026, 0.0
        %v2045 = vcombine.high %v2035, 0.0
        %v2046 = vcombine.high %v2042, 0.0
        %v2047 = vcombine.high %v973, 0.0
        %v2049 = vunpack.c.l.s4 1983009808
        %v2050 = vunpack.c.0.s8 %v2049
        %v2051 = vlaneseq
        %v2052 = vshrl.u32 %v2051, 7
        %v2053 = vsub.s32 %v2050, %v2052
        %v2054 = vrot.slane %v973, %v2053
        %v2056 = vunpack.c.l.s4 1983009808
        %v2057 = vunpack.c.0.s8 %v2056
        %v2058 = vlaneseq
        %v2059 = vshrl.u32 %v2058, 7
        %v2060 = vsub.s32 %v2057, %v2059
        %v2061 = vrot.slane %v2047, %v2060
        %v2062 = vcombine.high %v975, 0.0
        %v2064 = vunpack.c.l.s4 1983009808
        %v2065 = vunpack.c.0.s8 %v2064
        %v2066 = vlaneseq
        %v2067 = vshrl.u32 %v2066, 7
        %v2068 = vsub.s32 %v2065, %v2067
        %v2069 = vrot.slane %v975, %v2068
        %v2071 = vunpack.c.l.s4 1983009808
        %v2072 = vunpack.c.0.s8 %v2071
        %v2073 = vlaneseq
        %v2074 = vshrl.u32 %v2073, 7
        %v2075 = vsub.s32 %v2072, %v2074
        %v2076 = vrot.slane %v2062, %v2075
        %v2077 = vcombine.low %v2054, %v2069
        %v2078 = vcombine.high %v2054, %v2069
        %v2080 = vunpack.c.l.s4 1934713408
        %v2081 = vunpack.c.0.s8 %v2080
        %v2082 = vlaneseq
        %v2083 = vshrl.u32 %v2082, 7
        %v2084 = vsub.s32 %v2081, %v2083
        %v2085 = vrot.slane %v2077, %v2084
        %v2087 = vunpack.c.l.s4 1934713408
        %v2088 = vunpack.c.0.s8 %v2087
        %v2089 = vlaneseq
        %v2090 = vshrl.u32 %v2089, 7
        %v2091 = vsub.s32 %v2088, %v2090
        %v2092 = vrot.slane %v2078, %v2091
        %v2093 = vcombine.low %v2061, %v2076
        %v2094 = vcombine.high %v2061, %v2076
        %v2096 = vunpack.c.l.s4 1934713408
        %v2097 = vunpack.c.0.s8 %v2096
        %v2098 = vlaneseq
        %v2099 = vshrl.u32 %v2098, 7
        %v2100 = vsub.s32 %v2097, %v2099
        %v2101 = vrot.slane %v2093, %v2100
        %v2103 = vunpack.c.l.s4 1934713408
        %v2104 = vunpack.c.0.s8 %v2103
        %v2105 = vlaneseq
        %v2106 = vshrl.u32 %v2105, 7
        %v2107 = vsub.s32 %v2104, %v2106
        %v2108 = vrot.slane %v2094, %v2107
        %v2109 = vcombine.high %v2085, 0.0
        %v2110 = vcombine.high %v2092, 0.0
        %v2111 = vcombine.high %v2101, 0.0
        %v2112 = vcombine.high %v2108, 0.0
        %v2113 = vcombine.high %v979, 0.0
        %v2115 = vunpack.c.l.s4 1983009808
        %v2116 = vunpack.c.0.s8 %v2115
        %v2117 = vlaneseq
        %v2118 = vshrl.u32 %v2117, 7
        %v2119 = vsub.s32 %v2116, %v2118
        %v2120 = vrot.slane %v979, %v2119
        %v2122 = vunpack.c.l.s4 1983009808
        %v2123 = vunpack.c.0.s8 %v2122
        %v2124 = vlaneseq
        %v2125 = vshrl.u32 %v2124, 7
        %v2126 = vsub.s32 %v2123, %v2125
        %v2127 = vrot.slane %v2113, %v2126
        %v2128 = vcombine.high %v981, 0.0
        %v2130 = vunpack.c.l.s4 1983009808
        %v2131 = vunpack.c.0.s8 %v2130
        %v2132 = vlaneseq
        %v2133 = vshrl.u32 %v2132, 7
        %v2134 = vsub.s32 %v2131, %v2133
        %v2135 = vrot.slane %v981, %v2134
        %v2137 = vunpack.c.l.s4 1983009808
        %v2138 = vunpack.c.0.s8 %v2137
        %v2139 = vlaneseq
        %v2140 = vshrl.u32 %v2139, 7
        %v2141 = vsub.s32 %v2138, %v2140
        %v2142 = vrot.slane %v2128, %v2141
        %v2143 = vcombine.low %v2120, %v2135
        %v2144 = vcombine.high %v2120, %v2135
        %v2146 = vunpack.c.l.s4 1934713408
        %v2147 = vunpack.c.0.s8 %v2146
        %v2148 = vlaneseq
        %v2149 = vshrl.u32 %v2148, 7
        %v2150 = vsub.s32 %v2147, %v2149
        %v2151 = vrot.slane %v2143, %v2150
        %v2153 = vunpack.c.l.s4 1934713408
        %v2154 = vunpack.c.0.s8 %v2153
        %v2155 = vlaneseq
        %v2156 = vshrl.u32 %v2155, 7
        %v2157 = vsub.s32 %v2154, %v2156
        %v2158 = vrot.slane %v2144, %v2157
        %v2159 = vcombine.low %v2127, %v2142
        %v2160 = vcombine.high %v2127, %v2142
        %v2162 = vunpack.c.l.s4 1934713408
        %v2163 = vunpack.c.0.s8 %v2162
        %v2164 = vlaneseq
        %v2165 = vshrl.u32 %v2164, 7
        %v2166 = vsub.s32 %v2163, %v2165
        %v2167 = vrot.slane %v2159, %v2166
        %v2169 = vunpack.c.l.s4 1934713408
        %v2170 = vunpack.c.0.s8 %v2169
        %v2171 = vlaneseq
        %v2172 = vshrl.u32 %v2171, 7
        %v2173 = vsub.s32 %v2170, %v2172
        %v2174 = vrot.slane %v2160, %v2173
        %v2175 = vcombine.high %v2151, 0.0
        %v2176 = vcombine.high %v2158, 0.0
        %v2177 = vcombine.high %v2167, 0.0
        %v2178 = vcombine.high %v2174, 0.0
        %v2179 = vcombine.high %v983, 0.0
        %v2181 = vunpack.c.l.s4 1983009808
        %v2182 = vunpack.c.0.s8 %v2181
        %v2183 = vlaneseq
        %v2184 = vshrl.u32 %v2183, 7
        %v2185 = vsub.s32 %v2182, %v2184
        %v2186 = vrot.slane %v983, %v2185
        %v2188 = vunpack.c.l.s4 1983009808
        %v2189 = vunpack.c.0.s8 %v2188
        %v2190 = vlaneseq
        %v2191 = vshrl.u32 %v2190, 7
        %v2192 = vsub.s32 %v2189, %v2191
        %v2193 = vrot.slane %v2179, %v2192
        %v2194 = vcombine.high %v985, 0.0
        %v2196 = vunpack.c.l.s4 1983009808
        %v2197 = vunpack.c.0.s8 %v2196
        %v2198 = vlaneseq
        %v2199 = vshrl.u32 %v2198, 7
        %v2200 = vsub.s32 %v2197, %v2199
        %v2201 = vrot.slane %v985, %v2200
        %v2203 = vunpack.c.l.s4 1983009808
        %v2204 = vunpack.c.0.s8 %v2203
        %v2205 = vlaneseq
        %v2206 = vshrl.u32 %v2205, 7
        %v2207 = vsub.s32 %v2204, %v2206
        %v2208 = vrot.slane %v2194, %v2207
        %v2209 = vcombine.low %v2186, %v2201
        %v2210 = vcombine.high %v2186, %v2201
        %v2212 = vunpack.c.l.s4 1934713408
        %v2213 = vunpack.c.0.s8 %v2212
        %v2214 = vlaneseq
        %v2215 = vshrl.u32 %v2214, 7
        %v2216 = vsub.s32 %v2213, %v2215
        %v2217 = vrot.slane %v2209, %v2216
        %v2219 = vunpack.c.l.s4 1934713408
        %v2220 = vunpack.c.0.s8 %v2219
        %v2221 = vlaneseq
        %v2222 = vshrl.u32 %v2221, 7
        %v2223 = vsub.s32 %v2220, %v2222
        %v2224 = vrot.slane %v2210, %v2223
        %v2225 = vcombine.low %v2193, %v2208
        %v2226 = vcombine.high %v2193, %v2208
        %v2228 = vunpack.c.l.s4 1934713408
        %v2229 = vunpack.c.0.s8 %v2228
        %v2230 = vlaneseq
        %v2231 = vshrl.u32 %v2230, 7
        %v2232 = vsub.s32 %v2229, %v2231
        %v2233 = vrot.slane %v2225, %v2232
        %v2235 = vunpack.c.l.s4 1934713408
        %v2236 = vunpack.c.0.s8 %v2235
        %v2237 = vlaneseq
        %v2238 = vshrl.u32 %v2237, 7
        %v2239 = vsub.s32 %v2236, %v2238
        %v2240 = vrot.slane %v2226, %v2239
        %v2241 = vcombine.high %v2217, 0.0
        %v2242 = vcombine.high %v2224, 0.0
        %v2243 = vcombine.high %v2233, 0.0
        %v2244 = vcombine.high %v2240, 0.0
        %v2245 = vcombine.high %v989, 0.0
        %v2247 = vunpack.c.l.s4 1983009808
        %v2248 = vunpack.c.0.s8 %v2247
        %v2249 = vlaneseq
        %v2250 = vshrl.u32 %v2249, 7
        %v2251 = vsub.s32 %v2248, %v2250
        %v2252 = vrot.slane %v989, %v2251
        %v2254 = vunpack.c.l.s4 1983009808
        %v2255 = vunpack.c.0.s8 %v2254
        %v2256 = vlaneseq
        %v2257 = vshrl.u32 %v2256, 7
        %v2258 = vsub.s32 %v2255, %v2257
        %v2259 = vrot.slane %v2245, %v2258
        %v2260 = vcombine.high %v991, 0.0
        %v2262 = vunpack.c.l.s4 1983009808
        %v2263 = vunpack.c.0.s8 %v2262
        %v2264 = vlaneseq
        %v2265 = vshrl.u32 %v2264, 7
        %v2266 = vsub.s32 %v2263, %v2265
        %v2267 = vrot.slane %v991, %v2266
        %v2269 = vunpack.c.l.s4 1983009808
        %v2270 = vunpack.c.0.s8 %v2269
        %v2271 = vlaneseq
        %v2272 = vshrl.u32 %v2271, 7
        %v2273 = vsub.s32 %v2270, %v2272
        %v2274 = vrot.slane %v2260, %v2273
        %v2275 = vcombine.low %v2252, %v2267
        %v2276 = vcombine.high %v2252, %v2267
        %v2278 = vunpack.c.l.s4 1934713408
        %v2279 = vunpack.c.0.s8 %v2278
        %v2280 = vlaneseq
        %v2281 = vshrl.u32 %v2280, 7
        %v2282 = vsub.s32 %v2279, %v2281
        %v2283 = vrot.slane %v2275, %v2282
        %v2285 = vunpack.c.l.s4 1934713408
        %v2286 = vunpack.c.0.s8 %v2285
        %v2287 = vlaneseq
        %v2288 = vshrl.u32 %v2287, 7
        %v2289 = vsub.s32 %v2286, %v2288
        %v2290 = vrot.slane %v2276, %v2289
        %v2291 = vcombine.low %v2259, %v2274
        %v2292 = vcombine.high %v2259, %v2274
        %v2294 = vunpack.c.l.s4 1934713408
        %v2295 = vunpack.c.0.s8 %v2294
        %v2296 = vlaneseq
        %v2297 = vshrl.u32 %v2296, 7
        %v2298 = vsub.s32 %v2295, %v2297
        %v2299 = vrot.slane %v2291, %v2298
        %v2301 = vunpack.c.l.s4 1934713408
        %v2302 = vunpack.c.0.s8 %v2301
        %v2303 = vlaneseq
        %v2304 = vshrl.u32 %v2303, 7
        %v2305 = vsub.s32 %v2302, %v2304
        %v2306 = vrot.slane %v2292, %v2305
        %v2307 = vcombine.high %v2283, 0.0
        %v2308 = vcombine.high %v2290, 0.0
        %v2309 = vcombine.high %v2299, 0.0
        %v2310 = vcombine.high %v2306, 0.0
        %v2311 = vcombine.high %v993, 0.0
        %v2313 = vunpack.c.l.s4 1983009808
        %v2314 = vunpack.c.0.s8 %v2313
        %v2315 = vlaneseq
        %v2316 = vshrl.u32 %v2315, 7
        %v2317 = vsub.s32 %v2314, %v2316
        %v2318 = vrot.slane %v993, %v2317
        %v2320 = vunpack.c.l.s4 1983009808
        %v2321 = vunpack.c.0.s8 %v2320
        %v2322 = vlaneseq
        %v2323 = vshrl.u32 %v2322, 7
        %v2324 = vsub.s32 %v2321, %v2323
        %v2325 = vrot.slane %v2311, %v2324
        %v2326 = vcombine.high %v995, 0.0
        %v2328 = vunpack.c.l.s4 1983009808
        %v2329 = vunpack.c.0.s8 %v2328
        %v2330 = vlaneseq
        %v2331 = vshrl.u32 %v2330, 7
        %v2332 = vsub.s32 %v2329, %v2331
        %v2333 = vrot.slane %v995, %v2332
        %v2335 = vunpack.c.l.s4 1983009808
        %v2336 = vunpack.c.0.s8 %v2335
        %v2337 = vlaneseq
        %v2338 = vshrl.u32 %v2337, 7
        %v2339 = vsub.s32 %v2336, %v2338
        %v2340 = vrot.slane %v2326, %v2339
        %v2341 = vcombine.low %v2318, %v2333
        %v2342 = vcombine.high %v2318, %v2333
        %v2344 = vunpack.c.l.s4 1934713408
        %v2345 = vunpack.c.0.s8 %v2344
        %v2346 = vlaneseq
        %v2347 = vshrl.u32 %v2346, 7
        %v2348 = vsub.s32 %v2345, %v2347
        %v2349 = vrot.slane %v2341, %v2348
        %v2351 = vunpack.c.l.s4 1934713408
        %v2352 = vunpack.c.0.s8 %v2351
        %v2353 = vlaneseq
        %v2354 = vshrl.u32 %v2353, 7
        %v2355 = vsub.s32 %v2352, %v2354
        %v2356 = vrot.slane %v2342, %v2355
        %v2357 = vcombine.low %v2325, %v2340
        %v2358 = vcombine.high %v2325, %v2340
        %v2360 = vunpack.c.l.s4 1934713408
        %v2361 = vunpack.c.0.s8 %v2360
        %v2362 = vlaneseq
        %v2363 = vshrl.u32 %v2362, 7
        %v2364 = vsub.s32 %v2361, %v2363
        %v2365 = vrot.slane %v2357, %v2364
        %v2367 = vunpack.c.l.s4 1934713408
        %v2368 = vunpack.c.0.s8 %v2367
        %v2369 = vlaneseq
        %v2370 = vshrl.u32 %v2369, 7
        %v2371 = vsub.s32 %v2368, %v2370
        %v2372 = vrot.slane %v2358, %v2371
        %v2373 = vcombine.high %v2349, 0.0
        %v2374 = vcombine.high %v2356, 0.0
        %v2375 = vcombine.high %v2365, 0.0
        %v2376 = vcombine.high %v2372, 0.0
        %v2377 = vcombine.high %v999, 0.0
        %v2379 = vunpack.c.l.s4 1983009808
        %v2380 = vunpack.c.0.s8 %v2379
        %v2381 = vlaneseq
        %v2382 = vshrl.u32 %v2381, 7
        %v2383 = vsub.s32 %v2380, %v2382
        %v2384 = vrot.slane %v999, %v2383
        %v2386 = vunpack.c.l.s4 1983009808
        %v2387 = vunpack.c.0.s8 %v2386
        %v2388 = vlaneseq
        %v2389 = vshrl.u32 %v2388, 7
        %v2390 = vsub.s32 %v2387, %v2389
        %v2391 = vrot.slane %v2377, %v2390
        %v2392 = vcombine.high %v1001, 0.0
        %v2394 = vunpack.c.l.s4 1983009808
        %v2395 = vunpack.c.0.s8 %v2394
        %v2396 = vlaneseq
        %v2397 = vshrl.u32 %v2396, 7
        %v2398 = vsub.s32 %v2395, %v2397
        %v2399 = vrot.slane %v1001, %v2398
        %v2401 = vunpack.c.l.s4 1983009808
        %v2402 = vunpack.c.0.s8 %v2401
        %v2403 = vlaneseq
        %v2404 = vshrl.u32 %v2403, 7
        %v2405 = vsub.s32 %v2402, %v2404
        %v2406 = vrot.slane %v2392, %v2405
        %v2407 = vcombine.low %v2384, %v2399
        %v2408 = vcombine.high %v2384, %v2399
        %v2410 = vunpack.c.l.s4 1934713408
        %v2411 = vunpack.c.0.s8 %v2410
        %v2412 = vlaneseq
        %v2413 = vshrl.u32 %v2412, 7
        %v2414 = vsub.s32 %v2411, %v2413
        %v2415 = vrot.slane %v2407, %v2414
        %v2417 = vunpack.c.l.s4 1934713408
        %v2418 = vunpack.c.0.s8 %v2417
        %v2419 = vlaneseq
        %v2420 = vshrl.u32 %v2419, 7
        %v2421 = vsub.s32 %v2418, %v2420
        %v2422 = vrot.slane %v2408, %v2421
        %v2423 = vcombine.low %v2391, %v2406
        %v2424 = vcombine.high %v2391, %v2406
        %v2426 = vunpack.c.l.s4 1934713408
        %v2427 = vunpack.c.0.s8 %v2426
        %v2428 = vlaneseq
        %v2429 = vshrl.u32 %v2428, 7
        %v2430 = vsub.s32 %v2427, %v2429
        %v2431 = vrot.slane %v2423, %v2430
        %v2433 = vunpack.c.l.s4 1934713408
        %v2434 = vunpack.c.0.s8 %v2433
        %v2435 = vlaneseq
        %v2436 = vshrl.u32 %v2435, 7
        %v2437 = vsub.s32 %v2434, %v2436
        %v2438 = vrot.slane %v2424, %v2437
        %v2439 = vcombine.high %v2415, 0.0
        %v2440 = vcombine.high %v2422, 0.0
        %v2441 = vcombine.high %v2431, 0.0
        %v2442 = vcombine.high %v2438, 0.0
        %v2443 = vcombine.high %v1003, 0.0
        %v2445 = vunpack.c.l.s4 1983009808
        %v2446 = vunpack.c.0.s8 %v2445
        %v2447 = vlaneseq
        %v2448 = vshrl.u32 %v2447, 7
        %v2449 = vsub.s32 %v2446, %v2448
        %v2450 = vrot.slane %v1003, %v2449
        %v2452 = vunpack.c.l.s4 1983009808
        %v2453 = vunpack.c.0.s8 %v2452
        %v2454 = vlaneseq
        %v2455 = vshrl.u32 %v2454, 7
        %v2456 = vsub.s32 %v2453, %v2455
        %v2457 = vrot.slane %v2443, %v2456
        %v2458 = vcombine.high %v1005, 0.0
        %v2460 = vunpack.c.l.s4 1983009808
        %v2461 = vunpack.c.0.s8 %v2460
        %v2462 = vlaneseq
        %v2463 = vshrl.u32 %v2462, 7
        %v2464 = vsub.s32 %v2461, %v2463
        %v2465 = vrot.slane %v1005, %v2464
        %v2467 = vunpack.c.l.s4 1983009808
        %v2468 = vunpack.c.0.s8 %v2467
        %v2469 = vlaneseq
        %v2470 = vshrl.u32 %v2469, 7
        %v2471 = vsub.s32 %v2468, %v2470
        %v2472 = vrot.slane %v2458, %v2471
        %v2473 = vcombine.low %v2450, %v2465
        %v2474 = vcombine.high %v2450, %v2465
        %v2476 = vunpack.c.l.s4 1934713408
        %v2477 = vunpack.c.0.s8 %v2476
        %v2478 = vlaneseq
        %v2479 = vshrl.u32 %v2478, 7
        %v2480 = vsub.s32 %v2477, %v2479
        %v2481 = vrot.slane %v2473, %v2480
        %v2483 = vunpack.c.l.s4 1934713408
        %v2484 = vunpack.c.0.s8 %v2483
        %v2485 = vlaneseq
        %v2486 = vshrl.u32 %v2485, 7
        %v2487 = vsub.s32 %v2484, %v2486
        %v2488 = vrot.slane %v2474, %v2487
        %v2489 = vcombine.low %v2457, %v2472
        %v2490 = vcombine.high %v2457, %v2472
        %v2492 = vunpack.c.l.s4 1934713408
        %v2493 = vunpack.c.0.s8 %v2492
        %v2494 = vlaneseq
        %v2495 = vshrl.u32 %v2494, 7
        %v2496 = vsub.s32 %v2493, %v2495
        %v2497 = vrot.slane %v2489, %v2496
        %v2499 = vunpack.c.l.s4 1934713408
        %v2500 = vunpack.c.0.s8 %v2499
        %v2501 = vlaneseq
        %v2502 = vshrl.u32 %v2501, 7
        %v2503 = vsub.s32 %v2500, %v2502
        %v2504 = vrot.slane %v2490, %v2503
        %v2505 = vcombine.high %v2481, 0.0
        %v2506 = vcombine.high %v2488, 0.0
        %v2507 = vcombine.high %v2497, 0.0
        %v2508 = vcombine.high %v2504, 0.0
        %v2509 = vcombine.high %v1009, 0.0
        %v2511 = vunpack.c.l.s4 1983009808
        %v2512 = vunpack.c.0.s8 %v2511
        %v2513 = vlaneseq
        %v2514 = vshrl.u32 %v2513, 7
        %v2515 = vsub.s32 %v2512, %v2514
        %v2516 = vrot.slane %v1009, %v2515
        %v2518 = vunpack.c.l.s4 1983009808
        %v2519 = vunpack.c.0.s8 %v2518
        %v2520 = vlaneseq
        %v2521 = vshrl.u32 %v2520, 7
        %v2522 = vsub.s32 %v2519, %v2521
        %v2523 = vrot.slane %v2509, %v2522
        %v2524 = vcombine.high %v1011, 0.0
        %v2526 = vunpack.c.l.s4 1983009808
        %v2527 = vunpack.c.0.s8 %v2526
        %v2528 = vlaneseq
        %v2529 = vshrl.u32 %v2528, 7
        %v2530 = vsub.s32 %v2527, %v2529
        %v2531 = vrot.slane %v1011, %v2530
        %v2533 = vunpack.c.l.s4 1983009808
        %v2534 = vunpack.c.0.s8 %v2533
        %v2535 = vlaneseq
        %v2536 = vshrl.u32 %v2535, 7
        %v2537 = vsub.s32 %v2534, %v2536
        %v2538 = vrot.slane %v2524, %v2537
        %v2539 = vcombine.low %v2516, %v2531
        %v2540 = vcombine.high %v2516, %v2531
        %v2542 = vunpack.c.l.s4 1934713408
        %v2543 = vunpack.c.0.s8 %v2542
        %v2544 = vlaneseq
        %v2545 = vshrl.u32 %v2544, 7
        %v2546 = vsub.s32 %v2543, %v2545
        %v2547 = vrot.slane %v2539, %v2546
        %v2549 = vunpack.c.l.s4 1934713408
        %v2550 = vunpack.c.0.s8 %v2549
        %v2551 = vlaneseq
        %v2552 = vshrl.u32 %v2551, 7
        %v2553 = vsub.s32 %v2550, %v2552
        %v2554 = vrot.slane %v2540, %v2553
        %v2555 = vcombine.low %v2523, %v2538
        %v2556 = vcombine.high %v2523, %v2538
        %v2558 = vunpack.c.l.s4 1934713408
        %v2559 = vunpack.c.0.s8 %v2558
        %v2560 = vlaneseq
        %v2561 = vshrl.u32 %v2560, 7
        %v2562 = vsub.s32 %v2559, %v2561
        %v2563 = vrot.slane %v2555, %v2562
        %v2565 = vunpack.c.l.s4 1934713408
        %v2566 = vunpack.c.0.s8 %v2565
        %v2567 = vlaneseq
        %v2568 = vshrl.u32 %v2567, 7
        %v2569 = vsub.s32 %v2566, %v2568
        %v2570 = vrot.slane %v2556, %v2569
        %v2571 = vcombine.high %v2547, 0.0
        %v2572 = vcombine.high %v2554, 0.0
        %v2573 = vcombine.high %v2563, 0.0
        %v2574 = vcombine.high %v2570, 0.0
        %v2575 = vcombine.high %v1013, 0.0
        %v2577 = vunpack.c.l.s4 1983009808
        %v2578 = vunpack.c.0.s8 %v2577
        %v2579 = vlaneseq
        %v2580 = vshrl.u32 %v2579, 7
        %v2581 = vsub.s32 %v2578, %v2580
        %v2582 = vrot.slane %v1013, %v2581
        %v2584 = vunpack.c.l.s4 1983009808
        %v2585 = vunpack.c.0.s8 %v2584
        %v2586 = vlaneseq
        %v2587 = vshrl.u32 %v2586, 7
        %v2588 = vsub.s32 %v2585, %v2587
        %v2589 = vrot.slane %v2575, %v2588
        %v2590 = vcombine.high %v1015, 0.0
        %v2592 = vunpack.c.l.s4 1983009808
        %v2593 = vunpack.c.0.s8 %v2592
        %v2594 = vlaneseq
        %v2595 = vshrl.u32 %v2594, 7
        %v2596 = vsub.s32 %v2593, %v2595
        %v2597 = vrot.slane %v1015, %v2596
        %v2599 = vunpack.c.l.s4 1983009808
        %v2600 = vunpack.c.0.s8 %v2599
        %v2601 = vlaneseq
        %v2602 = vshrl.u32 %v2601, 7
        %v2603 = vsub.s32 %v2600, %v2602
        %v2604 = vrot.slane %v2590, %v2603
        %v2605 = vcombine.low %v2582, %v2597
        %v2606 = vcombine.high %v2582, %v2597
        %v2608 = vunpack.c.l.s4 1934713408
        %v2609 = vunpack.c.0.s8 %v2608
        %v2610 = vlaneseq
        %v2611 = vshrl.u32 %v2610, 7
        %v2612 = vsub.s32 %v2609, %v2611
        %v2613 = vrot.slane %v2605, %v2612
        %v2615 = vunpack.c.l.s4 1934713408
        %v2616 = vunpack.c.0.s8 %v2615
        %v2617 = vlaneseq
        %v2618 = vshrl.u32 %v2617, 7
        %v2619 = vsub.s32 %v2616, %v2618
        %v2620 = vrot.slane %v2606, %v2619
        %v2621 = vcombine.low %v2589, %v2604
        %v2622 = vcombine.high %v2589, %v2604
        %v2624 = vunpack.c.l.s4 1934713408
        %v2625 = vunpack.c.0.s8 %v2624
        %v2626 = vlaneseq
        %v2627 = vshrl.u32 %v2626, 7
        %v2628 = vsub.s32 %v2625, %v2627
        %v2629 = vrot.slane %v2621, %v2628
        %v2631 = vunpack.c.l.s4 1934713408
        %v2632 = vunpack.c.0.s8 %v2631
        %v2633 = vlaneseq
        %v2634 = vshrl.u32 %v2633, 7
        %v2635 = vsub.s32 %v2632, %v2634
        %v2636 = vrot.slane %v2622, %v2635
        %v2637 = vcombine.high %v2613, 0.0
        %v2638 = vcombine.high %v2620, 0.0
        %v2639 = vcombine.high %v2629, 0.0
        %v2640 = vcombine.high %v2636, 0.0
        %v2641 = vcombine.high %v1019, 0.0
        %v2643 = vunpack.c.l.s4 1983009808
        %v2644 = vunpack.c.0.s8 %v2643
        %v2645 = vlaneseq
        %v2646 = vshrl.u32 %v2645, 7
        %v2647 = vsub.s32 %v2644, %v2646
        %v2648 = vrot.slane %v1019, %v2647
        %v2650 = vunpack.c.l.s4 1983009808
        %v2651 = vunpack.c.0.s8 %v2650
        %v2652 = vlaneseq
        %v2653 = vshrl.u32 %v2652, 7
        %v2654 = vsub.s32 %v2651, %v2653
        %v2655 = vrot.slane %v2641, %v2654
        %v2656 = vcombine.high %v1021, 0.0
        %v2658 = vunpack.c.l.s4 1983009808
        %v2659 = vunpack.c.0.s8 %v2658
        %v2660 = vlaneseq
        %v2661 = vshrl.u32 %v2660, 7
        %v2662 = vsub.s32 %v2659, %v2661
        %v2663 = vrot.slane %v1021, %v2662
        %v2665 = vunpack.c.l.s4 1983009808
        %v2666 = vunpack.c.0.s8 %v2665
        %v2667 = vlaneseq
        %v2668 = vshrl.u32 %v2667, 7
        %v2669 = vsub.s32 %v2666, %v2668
        %v2670 = vrot.slane %v2656, %v2669
        %v2671 = vcombine.low %v2648, %v2663
        %v2672 = vcombine.high %v2648, %v2663
        %v2674 = vunpack.c.l.s4 1934713408
        %v2675 = vunpack.c.0.s8 %v2674
        %v2676 = vlaneseq
        %v2677 = vshrl.u32 %v2676, 7
        %v2678 = vsub.s32 %v2675, %v2677
        %v2679 = vrot.slane %v2671, %v2678
        %v2681 = vunpack.c.l.s4 1934713408
        %v2682 = vunpack.c.0.s8 %v2681
        %v2683 = vlaneseq
        %v2684 = vshrl.u32 %v2683, 7
        %v2685 = vsub.s32 %v2682, %v2684
        %v2686 = vrot.slane %v2672, %v2685
        %v2687 = vcombine.low %v2655, %v2670
        %v2688 = vcombine.high %v2655, %v2670
        %v2690 = vunpack.c.l.s4 1934713408
        %v2691 = vunpack.c.0.s8 %v2690
        %v2692 = vlaneseq
        %v2693 = vshrl.u32 %v2692, 7
        %v2694 = vsub.s32 %v2691, %v2693
        %v2695 = vrot.slane %v2687, %v2694
        %v2697 = vunpack.c.l.s4 1934713408
        %v2698 = vunpack.c.0.s8 %v2697
        %v2699 = vlaneseq
        %v2700 = vshrl.u32 %v2699, 7
        %v2701 = vsub.s32 %v2698, %v2700
        %v2702 = vrot.slane %v2688, %v2701
        %v2703 = vcombine.high %v2679, 0.0
        %v2704 = vcombine.high %v2686, 0.0
        %v2705 = vcombine.high %v2695, 0.0
        %v2706 = vcombine.high %v2702, 0.0
        %v2707 = vcombine.high %v1023, 0.0
        %v2709 = vunpack.c.l.s4 1983009808
        %v2710 = vunpack.c.0.s8 %v2709
        %v2711 = vlaneseq
        %v2712 = vshrl.u32 %v2711, 7
        %v2713 = vsub.s32 %v2710, %v2712
        %v2714 = vrot.slane %v1023, %v2713
        %v2716 = vunpack.c.l.s4 1983009808
        %v2717 = vunpack.c.0.s8 %v2716
        %v2718 = vlaneseq
        %v2719 = vshrl.u32 %v2718, 7
        %v2720 = vsub.s32 %v2717, %v2719
        %v2721 = vrot.slane %v2707, %v2720
        %v2722 = vcombine.high %v1025, 0.0
        %v2724 = vunpack.c.l.s4 1983009808
        %v2725 = vunpack.c.0.s8 %v2724
        %v2726 = vlaneseq
        %v2727 = vshrl.u32 %v2726, 7
        %v2728 = vsub.s32 %v2725, %v2727
        %v2729 = vrot.slane %v1025, %v2728
        %v2731 = vunpack.c.l.s4 1983009808
        %v2732 = vunpack.c.0.s8 %v2731
        %v2733 = vlaneseq
        %v2734 = vshrl.u32 %v2733, 7
        %v2735 = vsub.s32 %v2732, %v2734
        %v2736 = vrot.slane %v2722, %v2735
        %v2737 = vcombine.low %v2714, %v2729
        %v2738 = vcombine.high %v2714, %v2729
        %v2740 = vunpack.c.l.s4 1934713408
        %v2741 = vunpack.c.0.s8 %v2740
        %v2742 = vlaneseq
        %v2743 = vshrl.u32 %v2742, 7
        %v2744 = vsub.s32 %v2741, %v2743
        %v2745 = vrot.slane %v2737, %v2744
        %v2747 = vunpack.c.l.s4 1934713408
        %v2748 = vunpack.c.0.s8 %v2747
        %v2749 = vlaneseq
        %v2750 = vshrl.u32 %v2749, 7
        %v2751 = vsub.s32 %v2748, %v2750
        %v2752 = vrot.slane %v2738, %v2751
        %v2753 = vcombine.low %v2721, %v2736
        %v2754 = vcombine.high %v2721, %v2736
        %v2756 = vunpack.c.l.s4 1934713408
        %v2757 = vunpack.c.0.s8 %v2756
        %v2758 = vlaneseq
        %v2759 = vshrl.u32 %v2758, 7
        %v2760 = vsub.s32 %v2757, %v2759
        %v2761 = vrot.slane %v2753, %v2760
        %v2763 = vunpack.c.l.s4 1934713408
        %v2764 = vunpack.c.0.s8 %v2763
        %v2765 = vlaneseq
        %v2766 = vshrl.u32 %v2765, 7
        %v2767 = vsub.s32 %v2764, %v2766
        %v2768 = vrot.slane %v2754, %v2767
        %v2769 = vcombine.high %v2745, 0.0
        %v2770 = vcombine.high %v2752, 0.0
        %v2771 = vcombine.high %v2761, 0.0
        %v2772 = vcombine.high %v2768, 0.0
        %v2773 = vcombine.high %v1029, 0.0
        %v2775 = vunpack.c.l.s4 1983009808
        %v2776 = vunpack.c.0.s8 %v2775
        %v2777 = vlaneseq
        %v2778 = vshrl.u32 %v2777, 7
        %v2779 = vsub.s32 %v2776, %v2778
        %v2780 = vrot.slane %v1029, %v2779
        %v2782 = vunpack.c.l.s4 1983009808
        %v2783 = vunpack.c.0.s8 %v2782
        %v2784 = vlaneseq
        %v2785 = vshrl.u32 %v2784, 7
        %v2786 = vsub.s32 %v2783, %v2785
        %v2787 = vrot.slane %v2773, %v2786
        %v2788 = vcombine.high %v1031, 0.0
        %v2790 = vunpack.c.l.s4 1983009808
        %v2791 = vunpack.c.0.s8 %v2790
        %v2792 = vlaneseq
        %v2793 = vshrl.u32 %v2792, 7
        %v2794 = vsub.s32 %v2791, %v2793
        %v2795 = vrot.slane %v1031, %v2794
        %v2797 = vunpack.c.l.s4 1983009808
        %v2798 = vunpack.c.0.s8 %v2797
        %v2799 = vlaneseq
        %v2800 = vshrl.u32 %v2799, 7
        %v2801 = vsub.s32 %v2798, %v2800
        %v2802 = vrot.slane %v2788, %v2801
        %v2803 = vcombine.low %v2780, %v2795
        %v2804 = vcombine.high %v2780, %v2795
        %v2806 = vunpack.c.l.s4 1934713408
        %v2807 = vunpack.c.0.s8 %v2806
        %v2808 = vlaneseq
        %v2809 = vshrl.u32 %v2808, 7
        %v2810 = vsub.s32 %v2807, %v2809
        %v2811 = vrot.slane %v2803, %v2810
        %v2813 = vunpack.c.l.s4 1934713408
        %v2814 = vunpack.c.0.s8 %v2813
        %v2815 = vlaneseq
        %v2816 = vshrl.u32 %v2815, 7
        %v2817 = vsub.s32 %v2814, %v2816
        %v2818 = vrot.slane %v2804, %v2817
        %v2819 = vcombine.low %v2787, %v2802
        %v2820 = vcombine.high %v2787, %v2802
        %v2822 = vunpack.c.l.s4 1934713408
        %v2823 = vunpack.c.0.s8 %v2822
        %v2824 = vlaneseq
        %v2825 = vshrl.u32 %v2824, 7
        %v2826 = vsub.s32 %v2823, %v2825
        %v2827 = vrot.slane %v2819, %v2826
        %v2829 = vunpack.c.l.s4 1934713408
        %v2830 = vunpack.c.0.s8 %v2829
        %v2831 = vlaneseq
        %v2832 = vshrl.u32 %v2831, 7
        %v2833 = vsub.s32 %v2830, %v2832
        %v2834 = vrot.slane %v2820, %v2833
        %v2835 = vcombine.high %v2811, 0.0
        %v2836 = vcombine.high %v2818, 0.0
        %v2837 = vcombine.high %v2827, 0.0
        %v2838 = vcombine.high %v2834, 0.0
        %v2839 = vcombine.high %v1033, 0.0
        %v2841 = vunpack.c.l.s4 1983009808
        %v2842 = vunpack.c.0.s8 %v2841
        %v2843 = vlaneseq
        %v2844 = vshrl.u32 %v2843, 7
        %v2845 = vsub.s32 %v2842, %v2844
        %v2846 = vrot.slane %v1033, %v2845
        %v2848 = vunpack.c.l.s4 1983009808
        %v2849 = vunpack.c.0.s8 %v2848
        %v2850 = vlaneseq
        %v2851 = vshrl.u32 %v2850, 7
        %v2852 = vsub.s32 %v2849, %v2851
        %v2853 = vrot.slane %v2839, %v2852
        %v2854 = vcombine.high %v1035, 0.0
        %v2856 = vunpack.c.l.s4 1983009808
        %v2857 = vunpack.c.0.s8 %v2856
        %v2858 = vlaneseq
        %v2859 = vshrl.u32 %v2858, 7
        %v2860 = vsub.s32 %v2857, %v2859
        %v2861 = vrot.slane %v1035, %v2860
        %v2863 = vunpack.c.l.s4 1983009808
        %v2864 = vunpack.c.0.s8 %v2863
        %v2865 = vlaneseq
        %v2866 = vshrl.u32 %v2865, 7
        %v2867 = vsub.s32 %v2864, %v2866
        %v2868 = vrot.slane %v2854, %v2867
        %v2869 = vcombine.low %v2846, %v2861
        %v2870 = vcombine.high %v2846, %v2861
        %v2872 = vunpack.c.l.s4 1934713408
        %v2873 = vunpack.c.0.s8 %v2872
        %v2874 = vlaneseq
        %v2875 = vshrl.u32 %v2874, 7
        %v2876 = vsub.s32 %v2873, %v2875
        %v2877 = vrot.slane %v2869, %v2876
        %v2879 = vunpack.c.l.s4 1934713408
        %v2880 = vunpack.c.0.s8 %v2879
        %v2881 = vlaneseq
        %v2882 = vshrl.u32 %v2881, 7
        %v2883 = vsub.s32 %v2880, %v2882
        %v2884 = vrot.slane %v2870, %v2883
        %v2885 = vcombine.low %v2853, %v2868
        %v2886 = vcombine.high %v2853, %v2868
        %v2888 = vunpack.c.l.s4 1934713408
        %v2889 = vunpack.c.0.s8 %v2888
        %v2890 = vlaneseq
        %v2891 = vshrl.u32 %v2890, 7
        %v2892 = vsub.s32 %v2889, %v2891
        %v2893 = vrot.slane %v2885, %v2892
        %v2895 = vunpack.c.l.s4 1934713408
        %v2896 = vunpack.c.0.s8 %v2895
        %v2897 = vlaneseq
        %v2898 = vshrl.u32 %v2897, 7
        %v2899 = vsub.s32 %v2896, %v2898
        %v2900 = vrot.slane %v2886, %v2899
        %v2901 = vcombine.high %v2877, 0.0
        %v2902 = vcombine.high %v2884, 0.0
        %v2903 = vcombine.high %v2893, 0.0
        %v2904 = vcombine.high %v2900, 0.0
        %v2905 = vcombine.high %v1039, 0.0
        %v2907 = vunpack.c.l.s4 1983009808
        %v2908 = vunpack.c.0.s8 %v2907
        %v2909 = vlaneseq
        %v2910 = vshrl.u32 %v2909, 7
        %v2911 = vsub.s32 %v2908, %v2910
        %v2912 = vrot.slane %v1039, %v2911
        %v2914 = vunpack.c.l.s4 1983009808
        %v2915 = vunpack.c.0.s8 %v2914
        %v2916 = vlaneseq
        %v2917 = vshrl.u32 %v2916, 7
        %v2918 = vsub.s32 %v2915, %v2917
        %v2919 = vrot.slane %v2905, %v2918
        %v2920 = vcombine.high %v1041, 0.0
        %v2922 = vunpack.c.l.s4 1983009808
        %v2923 = vunpack.c.0.s8 %v2922
        %v2924 = vlaneseq
        %v2925 = vshrl.u32 %v2924, 7
        %v2926 = vsub.s32 %v2923, %v2925
        %v2927 = vrot.slane %v1041, %v2926
        %v2929 = vunpack.c.l.s4 1983009808
        %v2930 = vunpack.c.0.s8 %v2929
        %v2931 = vlaneseq
        %v2932 = vshrl.u32 %v2931, 7
        %v2933 = vsub.s32 %v2930, %v2932
        %v2934 = vrot.slane %v2920, %v2933
        %v2935 = vcombine.low %v2912, %v2927
        %v2936 = vcombine.high %v2912, %v2927
        %v2938 = vunpack.c.l.s4 1934713408
        %v2939 = vunpack.c.0.s8 %v2938
        %v2940 = vlaneseq
        %v2941 = vshrl.u32 %v2940, 7
        %v2942 = vsub.s32 %v2939, %v2941
        %v2943 = vrot.slane %v2935, %v2942
        %v2945 = vunpack.c.l.s4 1934713408
        %v2946 = vunpack.c.0.s8 %v2945
        %v2947 = vlaneseq
        %v2948 = vshrl.u32 %v2947, 7
        %v2949 = vsub.s32 %v2946, %v2948
        %v2950 = vrot.slane %v2936, %v2949
        %v2951 = vcombine.low %v2919, %v2934
        %v2952 = vcombine.high %v2919, %v2934
        %v2954 = vunpack.c.l.s4 1934713408
        %v2955 = vunpack.c.0.s8 %v2954
        %v2956 = vlaneseq
        %v2957 = vshrl.u32 %v2956, 7
        %v2958 = vsub.s32 %v2955, %v2957
        %v2959 = vrot.slane %v2951, %v2958
        %v2961 = vunpack.c.l.s4 1934713408
        %v2962 = vunpack.c.0.s8 %v2961
        %v2963 = vlaneseq
        %v2964 = vshrl.u32 %v2963, 7
        %v2965 = vsub.s32 %v2962, %v2964
        %v2966 = vrot.slane %v2952, %v2965
        %v2967 = vcombine.high %v2943, 0.0
        %v2968 = vcombine.high %v2950, 0.0
        %v2969 = vcombine.high %v2959, 0.0
        %v2970 = vcombine.high %v2966, 0.0
        %v2971 = vcombine.high %v1043, 0.0
        %v2973 = vunpack.c.l.s4 1983009808
        %v2974 = vunpack.c.0.s8 %v2973
        %v2975 = vlaneseq
        %v2976 = vshrl.u32 %v2975, 7
        %v2977 = vsub.s32 %v2974, %v2976
        %v2978 = vrot.slane %v1043, %v2977
        %v2980 = vunpack.c.l.s4 1983009808
        %v2981 = vunpack.c.0.s8 %v2980
        %v2982 = vlaneseq
        %v2983 = vshrl.u32 %v2982, 7
        %v2984 = vsub.s32 %v2981, %v2983
        %v2985 = vrot.slane %v2971, %v2984
        %v2986 = vcombine.high %v1045, 0.0
        %v2988 = vunpack.c.l.s4 1983009808
        %v2989 = vunpack.c.0.s8 %v2988
        %v2990 = vlaneseq
        %v2991 = vshrl.u32 %v2990, 7
        %v2992 = vsub.s32 %v2989, %v2991
        %v2993 = vrot.slane %v1045, %v2992
        %v2995 = vunpack.c.l.s4 1983009808
        %v2996 = vunpack.c.0.s8 %v2995
        %v2997 = vlaneseq
        %v2998 = vshrl.u32 %v2997, 7
        %v2999 = vsub.s32 %v2996, %v2998
        %v3000 = vrot.slane %v2986, %v2999
        %v3001 = vcombine.low %v2978, %v2993
        %v3002 = vcombine.high %v2978, %v2993
        %v3004 = vunpack.c.l.s4 1934713408
        %v3005 = vunpack.c.0.s8 %v3004
        %v3006 = vlaneseq
        %v3007 = vshrl.u32 %v3006, 7
        %v3008 = vsub.s32 %v3005, %v3007
        %v3009 = vrot.slane %v3001, %v3008
        %v3011 = vunpack.c.l.s4 1934713408
        %v3012 = vunpack.c.0.s8 %v3011
        %v3013 = vlaneseq
        %v3014 = vshrl.u32 %v3013, 7
        %v3015 = vsub.s32 %v3012, %v3014
        %v3016 = vrot.slane %v3002, %v3015
        %v3017 = vcombine.low %v2985, %v3000
        %v3018 = vcombine.high %v2985, %v3000
        %v3020 = vunpack.c.l.s4 1934713408
        %v3021 = vunpack.c.0.s8 %v3020
        %v3022 = vlaneseq
        %v3023 = vshrl.u32 %v3022, 7
        %v3024 = vsub.s32 %v3021, %v3023
        %v3025 = vrot.slane %v3017, %v3024
        %v3027 = vunpack.c.l.s4 1934713408
        %v3028 = vunpack.c.0.s8 %v3027
        %v3029 = vlaneseq
        %v3030 = vshrl.u32 %v3029, 7
        %v3031 = vsub.s32 %v3028, %v3030
        %v3032 = vrot.slane %v3018, %v3031
        %v3033 = vcombine.high %v3009, 0.0
        %v3034 = vcombine.high %v3016, 0.0
        %v3035 = vcombine.high %v3025, 0.0
        %v3036 = vcombine.high %v3032, 0.0
        %v3037 = vcombine.high %v1049, 0.0
        %v3039 = vunpack.c.l.s4 1983009808
        %v3040 = vunpack.c.0.s8 %v3039
        %v3041 = vlaneseq
        %v3042 = vshrl.u32 %v3041, 7
        %v3043 = vsub.s32 %v3040, %v3042
        %v3044 = vrot.slane %v1049, %v3043
        %v3046 = vunpack.c.l.s4 1983009808
        %v3047 = vunpack.c.0.s8 %v3046
        %v3048 = vlaneseq
        %v3049 = vshrl.u32 %v3048, 7
        %v3050 = vsub.s32 %v3047, %v3049
        %v3051 = vrot.slane %v3037, %v3050
        %v3052 = vcombine.high %v1051, 0.0
        %v3054 = vunpack.c.l.s4 1983009808
        %v3055 = vunpack.c.0.s8 %v3054
        %v3056 = vlaneseq
        %v3057 = vshrl.u32 %v3056, 7
        %v3058 = vsub.s32 %v3055, %v3057
        %v3059 = vrot.slane %v1051, %v3058
        %v3061 = vunpack.c.l.s4 1983009808
        %v3062 = vunpack.c.0.s8 %v3061
        %v3063 = vlaneseq
        %v3064 = vshrl.u32 %v3063, 7
        %v3065 = vsub.s32 %v3062, %v3064
        %v3066 = vrot.slane %v3052, %v3065
        %v3067 = vcombine.low %v3044, %v3059
        %v3068 = vcombine.high %v3044, %v3059
        %v3070 = vunpack.c.l.s4 1934713408
        %v3071 = vunpack.c.0.s8 %v3070
        %v3072 = vlaneseq
        %v3073 = vshrl.u32 %v3072, 7
        %v3074 = vsub.s32 %v3071, %v3073
        %v3075 = vrot.slane %v3067, %v3074
        %v3077 = vunpack.c.l.s4 1934713408
        %v3078 = vunpack.c.0.s8 %v3077
        %v3079 = vlaneseq
        %v3080 = vshrl.u32 %v3079, 7
        %v3081 = vsub.s32 %v3078, %v3080
        %v3082 = vrot.slane %v3068, %v3081
        %v3083 = vcombine.low %v3051, %v3066
        %v3084 = vcombine.high %v3051, %v3066
        %v3086 = vunpack.c.l.s4 1934713408
        %v3087 = vunpack.c.0.s8 %v3086
        %v3088 = vlaneseq
        %v3089 = vshrl.u32 %v3088, 7
        %v3090 = vsub.s32 %v3087, %v3089
        %v3091 = vrot.slane %v3083, %v3090
        %v3093 = vunpack.c.l.s4 1934713408
        %v3094 = vunpack.c.0.s8 %v3093
        %v3095 = vlaneseq
        %v3096 = vshrl.u32 %v3095, 7
        %v3097 = vsub.s32 %v3094, %v3096
        %v3098 = vrot.slane %v3084, %v3097
        %v3099 = vcombine.high %v3075, 0.0
        %v3100 = vcombine.high %v3082, 0.0
        %v3101 = vcombine.high %v3091, 0.0
        %v3102 = vcombine.high %v3098, 0.0
        %v3103 = vcombine.high %v1053, 0.0
        %v3105 = vunpack.c.l.s4 1983009808
        %v3106 = vunpack.c.0.s8 %v3105
        %v3107 = vlaneseq
        %v3108 = vshrl.u32 %v3107, 7
        %v3109 = vsub.s32 %v3106, %v3108
        %v3110 = vrot.slane %v1053, %v3109
        %v3112 = vunpack.c.l.s4 1983009808
        %v3113 = vunpack.c.0.s8 %v3112
        %v3114 = vlaneseq
        %v3115 = vshrl.u32 %v3114, 7
        %v3116 = vsub.s32 %v3113, %v3115
        %v3117 = vrot.slane %v3103, %v3116
        %v3118 = vcombine.high %v1055, 0.0
        %v3120 = vunpack.c.l.s4 1983009808
        %v3121 = vunpack.c.0.s8 %v3120
        %v3122 = vlaneseq
        %v3123 = vshrl.u32 %v3122, 7
        %v3124 = vsub.s32 %v3121, %v3123
        %v3125 = vrot.slane %v1055, %v3124
        %v3127 = vunpack.c.l.s4 1983009808
        %v3128 = vunpack.c.0.s8 %v3127
        %v3129 = vlaneseq
        %v3130 = vshrl.u32 %v3129, 7
        %v3131 = vsub.s32 %v3128, %v3130
        %v3132 = vrot.slane %v3118, %v3131
        %v3133 = vcombine.low %v3110, %v3125
        %v3134 = vcombine.high %v3110, %v3125
        %v3136 = vunpack.c.l.s4 1934713408
        %v3137 = vunpack.c.0.s8 %v3136
        %v3138 = vlaneseq
        %v3139 = vshrl.u32 %v3138, 7
        %v3140 = vsub.s32 %v3137, %v3139
        %v3141 = vrot.slane %v3133, %v3140
        %v3143 = vunpack.c.l.s4 1934713408
        %v3144 = vunpack.c.0.s8 %v3143
        %v3145 = vlaneseq
        %v3146 = vshrl.u32 %v3145, 7
        %v3147 = vsub.s32 %v3144, %v3146
        %v3148 = vrot.slane %v3134, %v3147
        %v3149 = vcombine.low %v3117, %v3132
        %v3150 = vcombine.high %v3117, %v3132
        %v3152 = vunpack.c.l.s4 1934713408
        %v3153 = vunpack.c.0.s8 %v3152
        %v3154 = vlaneseq
        %v3155 = vshrl.u32 %v3154, 7
        %v3156 = vsub.s32 %v3153, %v3155
        %v3157 = vrot.slane %v3149, %v3156
        %v3159 = vunpack.c.l.s4 1934713408
        %v3160 = vunpack.c.0.s8 %v3159
        %v3161 = vlaneseq
        %v3162 = vshrl.u32 %v3161, 7
        %v3163 = vsub.s32 %v3160, %v3162
        %v3164 = vrot.slane %v3150, %v3163
        %v3165 = vcombine.high %v3141, 0.0
        %v3166 = vcombine.high %v3148, 0.0
        %v3167 = vcombine.high %v3157, 0.0
        %v3168 = vcombine.high %v3164, 0.0
        %v3169 = vpack.c.bf16 %v1095, %v1095
        %v3170 = vpack.c.bf16 %v1119, %v1119
        %v3171 = vpack.c.bf16 %v1102, %v1102
        %v3172 = vpack.c.bf16 %v1120, %v1120
        %v3173 = vpack.c.bf16 %v1111, %v1111
        %v3174 = vpack.c.bf16 %v1121, %v1121
        %v3175 = vpack.c.bf16 %v1118, %v1118
        %v3176 = vpack.c.bf16 %v1122, %v1122
        %v3177 = vpack.c.bf16 %v1161, %v1161
        %v3178 = vpack.c.bf16 %v1185, %v1185
        %v3179 = vpack.c.bf16 %v1168, %v1168
        %v3180 = vpack.c.bf16 %v1186, %v1186
        %v3181 = vpack.c.bf16 %v1177, %v1177
        %v3182 = vpack.c.bf16 %v1187, %v1187
        %v3183 = vpack.c.bf16 %v1184, %v1184
        %v3184 = vpack.c.bf16 %v1188, %v1188
        %v3185 = vpack.c.bf16 %v1227, %v1227
        %v3186 = vpack.c.bf16 %v1251, %v1251
        %v3187 = vpack.c.bf16 %v1234, %v1234
        %v3188 = vpack.c.bf16 %v1252, %v1252
        %v3189 = vpack.c.bf16 %v1243, %v1243
        %v3190 = vpack.c.bf16 %v1253, %v1253
        %v3191 = vpack.c.bf16 %v1250, %v1250
        %v3192 = vpack.c.bf16 %v1254, %v1254
        %v3193 = vpack.c.bf16 %v1293, %v1293
        %v3194 = vpack.c.bf16 %v1317, %v1317
        %v3195 = vpack.c.bf16 %v1300, %v1300
        %v3196 = vpack.c.bf16 %v1318, %v1318
        %v3197 = vpack.c.bf16 %v1309, %v1309
        %v3198 = vpack.c.bf16 %v1319, %v1319
        %v3199 = vpack.c.bf16 %v1316, %v1316
        %v3200 = vpack.c.bf16 %v1320, %v1320
        %v3201 = vpack.c.bf16 %v1359, %v1359
        %v3202 = vpack.c.bf16 %v1383, %v1383
        %v3203 = vpack.c.bf16 %v1366, %v1366
        %v3204 = vpack.c.bf16 %v1384, %v1384
        %v3205 = vpack.c.bf16 %v1375, %v1375
        %v3206 = vpack.c.bf16 %v1385, %v1385
        %v3207 = vpack.c.bf16 %v1382, %v1382
        %v3208 = vpack.c.bf16 %v1386, %v1386
        %v3209 = vpack.c.bf16 %v1425, %v1425
        %v3210 = vpack.c.bf16 %v1449, %v1449
        %v3211 = vpack.c.bf16 %v1432, %v1432
        %v3212 = vpack.c.bf16 %v1450, %v1450
        %v3213 = vpack.c.bf16 %v1441, %v1441
        %v3214 = vpack.c.bf16 %v1451, %v1451
        %v3215 = vpack.c.bf16 %v1448, %v1448
        %v3216 = vpack.c.bf16 %v1452, %v1452
        %v3217 = vpack.c.bf16 %v1491, %v1491
        %v3218 = vpack.c.bf16 %v1515, %v1515
        %v3219 = vpack.c.bf16 %v1498, %v1498
        %v3220 = vpack.c.bf16 %v1516, %v1516
        %v3221 = vpack.c.bf16 %v1507, %v1507
        %v3222 = vpack.c.bf16 %v1517, %v1517
        %v3223 = vpack.c.bf16 %v1514, %v1514
        %v3224 = vpack.c.bf16 %v1518, %v1518
        %v3225 = vpack.c.bf16 %v1557, %v1557
        %v3226 = vpack.c.bf16 %v1581, %v1581
        %v3227 = vpack.c.bf16 %v1564, %v1564
        %v3228 = vpack.c.bf16 %v1582, %v1582
        %v3229 = vpack.c.bf16 %v1573, %v1573
        %v3230 = vpack.c.bf16 %v1583, %v1583
        %v3231 = vpack.c.bf16 %v1580, %v1580
        %v3232 = vpack.c.bf16 %v1584, %v1584
        %v3233 = vpack.c.bf16 %v1623, %v1623
        %v3234 = vpack.c.bf16 %v1647, %v1647
        %v3235 = vpack.c.bf16 %v1630, %v1630
        %v3236 = vpack.c.bf16 %v1648, %v1648
        %v3237 = vpack.c.bf16 %v1639, %v1639
        %v3238 = vpack.c.bf16 %v1649, %v1649
        %v3239 = vpack.c.bf16 %v1646, %v1646
        %v3240 = vpack.c.bf16 %v1650, %v1650
        %v3241 = vpack.c.bf16 %v1689, %v1689
        %v3242 = vpack.c.bf16 %v1713, %v1713
        %v3243 = vpack.c.bf16 %v1696, %v1696
        %v3244 = vpack.c.bf16 %v1714, %v1714
        %v3245 = vpack.c.bf16 %v1705, %v1705
        %v3246 = vpack.c.bf16 %v1715, %v1715
        %v3247 = vpack.c.bf16 %v1712, %v1712
        %v3248 = vpack.c.bf16 %v1716, %v1716
        %v3249 = vpack.c.bf16 %v1755, %v1755
        %v3250 = vpack.c.bf16 %v1779, %v1779
        %v3251 = vpack.c.bf16 %v1762, %v1762
        %v3252 = vpack.c.bf16 %v1780, %v1780
        %v3253 = vpack.c.bf16 %v1771, %v1771
        %v3254 = vpack.c.bf16 %v1781, %v1781
        %v3255 = vpack.c.bf16 %v1778, %v1778
        %v3256 = vpack.c.bf16 %v1782, %v1782
        %v3257 = vpack.c.bf16 %v1821, %v1821
        %v3258 = vpack.c.bf16 %v1845, %v1845
        %v3259 = vpack.c.bf16 %v1828, %v1828
        %v3260 = vpack.c.bf16 %v1846, %v1846
        %v3261 = vpack.c.bf16 %v1837, %v1837
        %v3262 = vpack.c.bf16 %v1847, %v1847
        %v3263 = vpack.c.bf16 %v1844, %v1844
        %v3264 = vpack.c.bf16 %v1848, %v1848
        %v3265 = vpack.c.bf16 %v1887, %v1887
        %v3266 = vpack.c.bf16 %v1911, %v1911
        %v3267 = vpack.c.bf16 %v1894, %v1894
        %v3268 = vpack.c.bf16 %v1912, %v1912
        %v3269 = vpack.c.bf16 %v1903, %v1903
        %v3270 = vpack.c.bf16 %v1913, %v1913
        %v3271 = vpack.c.bf16 %v1910, %v1910
        %v3272 = vpack.c.bf16 %v1914, %v1914
        %v3273 = vpack.c.bf16 %v1953, %v1953
        %v3274 = vpack.c.bf16 %v1977, %v1977
        %v3275 = vpack.c.bf16 %v1960, %v1960
        %v3276 = vpack.c.bf16 %v1978, %v1978
        %v3277 = vpack.c.bf16 %v1969, %v1969
        %v3278 = vpack.c.bf16 %v1979, %v1979
        %v3279 = vpack.c.bf16 %v1976, %v1976
        %v3280 = vpack.c.bf16 %v1980, %v1980
        %v3281 = vpack.c.bf16 %v2019, %v2019
        %v3282 = vpack.c.bf16 %v2043, %v2043
        %v3283 = vpack.c.bf16 %v2026, %v2026
        %v3284 = vpack.c.bf16 %v2044, %v2044
        %v3285 = vpack.c.bf16 %v2035, %v2035
        %v3286 = vpack.c.bf16 %v2045, %v2045
        %v3287 = vpack.c.bf16 %v2042, %v2042
        %v3288 = vpack.c.bf16 %v2046, %v2046
        %v3289 = vpack.c.bf16 %v2085, %v2085
        %v3290 = vpack.c.bf16 %v2109, %v2109
        %v3291 = vpack.c.bf16 %v2092, %v2092
        %v3292 = vpack.c.bf16 %v2110, %v2110
        %v3293 = vpack.c.bf16 %v2101, %v2101
        %v3294 = vpack.c.bf16 %v2111, %v2111
        %v3295 = vpack.c.bf16 %v2108, %v2108
        %v3296 = vpack.c.bf16 %v2112, %v2112
        %v3297 = vpack.c.bf16 %v2151, %v2151
        %v3298 = vpack.c.bf16 %v2175, %v2175
        %v3299 = vpack.c.bf16 %v2158, %v2158
        %v3300 = vpack.c.bf16 %v2176, %v2176
        %v3301 = vpack.c.bf16 %v2167, %v2167
        %v3302 = vpack.c.bf16 %v2177, %v2177
        %v3303 = vpack.c.bf16 %v2174, %v2174
        %v3304 = vpack.c.bf16 %v2178, %v2178
        %v3305 = vpack.c.bf16 %v2217, %v2217
        %v3306 = vpack.c.bf16 %v2241, %v2241
        %v3307 = vpack.c.bf16 %v2224, %v2224
        %v3308 = vpack.c.bf16 %v2242, %v2242
        %v3309 = vpack.c.bf16 %v2233, %v2233
        %v3310 = vpack.c.bf16 %v2243, %v2243
        %v3311 = vpack.c.bf16 %v2240, %v2240
        %v3312 = vpack.c.bf16 %v2244, %v2244
        %v3313 = vpack.c.bf16 %v2283, %v2283
        %v3314 = vpack.c.bf16 %v2307, %v2307
        %v3315 = vpack.c.bf16 %v2290, %v2290
        %v3316 = vpack.c.bf16 %v2308, %v2308
        %v3317 = vpack.c.bf16 %v2299, %v2299
        %v3318 = vpack.c.bf16 %v2309, %v2309
        %v3319 = vpack.c.bf16 %v2306, %v2306
        %v3320 = vpack.c.bf16 %v2310, %v2310
        %v3321 = vpack.c.bf16 %v2349, %v2349
        %v3322 = vpack.c.bf16 %v2373, %v2373
        %v3323 = vpack.c.bf16 %v2356, %v2356
        %v3324 = vpack.c.bf16 %v2374, %v2374
        %v3325 = vpack.c.bf16 %v2365, %v2365
        %v3326 = vpack.c.bf16 %v2375, %v2375
        %v3327 = vpack.c.bf16 %v2372, %v2372
        %v3328 = vpack.c.bf16 %v2376, %v2376
        %v3329 = vpack.c.bf16 %v2415, %v2415
        %v3330 = vpack.c.bf16 %v2439, %v2439
        %v3331 = vpack.c.bf16 %v2422, %v2422
        %v3332 = vpack.c.bf16 %v2440, %v2440
        %v3333 = vpack.c.bf16 %v2431, %v2431
        %v3334 = vpack.c.bf16 %v2441, %v2441
        %v3335 = vpack.c.bf16 %v2438, %v2438
        %v3336 = vpack.c.bf16 %v2442, %v2442
        %v3337 = vpack.c.bf16 %v2481, %v2481
        %v3338 = vpack.c.bf16 %v2505, %v2505
        %v3339 = vpack.c.bf16 %v2488, %v2488
        %v3340 = vpack.c.bf16 %v2506, %v2506
        %v3341 = vpack.c.bf16 %v2497, %v2497
        %v3342 = vpack.c.bf16 %v2507, %v2507
        %v3343 = vpack.c.bf16 %v2504, %v2504
        %v3344 = vpack.c.bf16 %v2508, %v2508
        %v3345 = vpack.c.bf16 %v2547, %v2547
        %v3346 = vpack.c.bf16 %v2571, %v2571
        %v3347 = vpack.c.bf16 %v2554, %v2554
        %v3348 = vpack.c.bf16 %v2572, %v2572
        %v3349 = vpack.c.bf16 %v2563, %v2563
        %v3350 = vpack.c.bf16 %v2573, %v2573
        %v3351 = vpack.c.bf16 %v2570, %v2570
        %v3352 = vpack.c.bf16 %v2574, %v2574
        %v3353 = vpack.c.bf16 %v2613, %v2613
        %v3354 = vpack.c.bf16 %v2637, %v2637
        %v3355 = vpack.c.bf16 %v2620, %v2620
        %v3356 = vpack.c.bf16 %v2638, %v2638
        %v3357 = vpack.c.bf16 %v2629, %v2629
        %v3358 = vpack.c.bf16 %v2639, %v2639
        %v3359 = vpack.c.bf16 %v2636, %v2636
        %v3360 = vpack.c.bf16 %v2640, %v2640
        %v3361 = vpack.c.bf16 %v2679, %v2679
        %v3362 = vpack.c.bf16 %v2703, %v2703
        %v3363 = vpack.c.bf16 %v2686, %v2686
        %v3364 = vpack.c.bf16 %v2704, %v2704
        %v3365 = vpack.c.bf16 %v2695, %v2695
        %v3366 = vpack.c.bf16 %v2705, %v2705
        %v3367 = vpack.c.bf16 %v2702, %v2702
        %v3368 = vpack.c.bf16 %v2706, %v2706
        %v3369 = vpack.c.bf16 %v2745, %v2745
        %v3370 = vpack.c.bf16 %v2769, %v2769
        %v3371 = vpack.c.bf16 %v2752, %v2752
        %v3372 = vpack.c.bf16 %v2770, %v2770
        %v3373 = vpack.c.bf16 %v2761, %v2761
        %v3374 = vpack.c.bf16 %v2771, %v2771
        %v3375 = vpack.c.bf16 %v2768, %v2768
        %v3376 = vpack.c.bf16 %v2772, %v2772
        %v3377 = vpack.c.bf16 %v2811, %v2811
        %v3378 = vpack.c.bf16 %v2835, %v2835
        %v3379 = vpack.c.bf16 %v2818, %v2818
        %v3380 = vpack.c.bf16 %v2836, %v2836
        %v3381 = vpack.c.bf16 %v2827, %v2827
        %v3382 = vpack.c.bf16 %v2837, %v2837
        %v3383 = vpack.c.bf16 %v2834, %v2834
        %v3384 = vpack.c.bf16 %v2838, %v2838
        %v3385 = vpack.c.bf16 %v2877, %v2877
        %v3386 = vpack.c.bf16 %v2901, %v2901
        %v3387 = vpack.c.bf16 %v2884, %v2884
        %v3388 = vpack.c.bf16 %v2902, %v2902
        %v3389 = vpack.c.bf16 %v2893, %v2893
        %v3390 = vpack.c.bf16 %v2903, %v2903
        %v3391 = vpack.c.bf16 %v2900, %v2900
        %v3392 = vpack.c.bf16 %v2904, %v2904
        %v3393 = vpack.c.bf16 %v2943, %v2943
        %v3394 = vpack.c.bf16 %v2967, %v2967
        %v3395 = vpack.c.bf16 %v2950, %v2950
        %v3396 = vpack.c.bf16 %v2968, %v2968
        %v3397 = vpack.c.bf16 %v2959, %v2959
        %v3398 = vpack.c.bf16 %v2969, %v2969
        %v3399 = vpack.c.bf16 %v2966, %v2966
        %v3400 = vpack.c.bf16 %v2970, %v2970
        %v3401 = vpack.c.bf16 %v3009, %v3009
        %v3402 = vpack.c.bf16 %v3033, %v3033
        %v3403 = vpack.c.bf16 %v3016, %v3016
        %v3404 = vpack.c.bf16 %v3034, %v3034
        %v3405 = vpack.c.bf16 %v3025, %v3025
        %v3406 = vpack.c.bf16 %v3035, %v3035
        %v3407 = vpack.c.bf16 %v3032, %v3032
        %v3408 = vpack.c.bf16 %v3036, %v3036
        %v3409 = vpack.c.bf16 %v3075, %v3075
        %v3410 = vpack.c.bf16 %v3099, %v3099
        %v3411 = vpack.c.bf16 %v3082, %v3082
        %v3412 = vpack.c.bf16 %v3100, %v3100
        %v3413 = vpack.c.bf16 %v3091, %v3091
        %v3414 = vpack.c.bf16 %v3101, %v3101
        %v3415 = vpack.c.bf16 %v3098, %v3098
        %v3416 = vpack.c.bf16 %v3102, %v3102
        %v3417 = vpack.c.bf16 %v3141, %v3141
        %v3418 = vpack.c.bf16 %v3165, %v3165
        %v3419 = vpack.c.bf16 %v3148, %v3148
        %v3420 = vpack.c.bf16 %v3166, %v3166
        %v3421 = vpack.c.bf16 %v3157, %v3157
        %v3422 = vpack.c.bf16 %v3167, %v3167
        %v3423 = vpack.c.bf16 %v3164, %v3164
        %v3424 = vpack.c.bf16 %v3168, %v3168
        %v3425 = vcombine.low %v3169, %v3173
        %v3427 = vunpack.c.l.s4 1983009808
        %v3428 = vunpack.c.0.s8 %v3427
        %v3429 = vlaneseq
        %v3430 = vshrl.u32 %v3429, 7
        %v3431 = vsub.s32 %v3428, %v3430
        %v3432 = vrot.slane %v3425, %v3431
        %v3433 = vcombine.low %v3171, %v3175
        %v3435 = vunpack.c.l.s4 1983009808
        %v3436 = vunpack.c.0.s8 %v3435
        %v3437 = vlaneseq
        %v3438 = vshrl.u32 %v3437, 7
        %v3439 = vsub.s32 %v3436, %v3438
        %v3440 = vrot.slane %v3433, %v3439
        %v3441 = vcombine.low %v3177, %v3181
        %v3443 = vunpack.c.l.s4 1983009808
        %v3444 = vunpack.c.0.s8 %v3443
        %v3445 = vlaneseq
        %v3446 = vshrl.u32 %v3445, 7
        %v3447 = vsub.s32 %v3444, %v3446
        %v3448 = vrot.slane %v3441, %v3447
        %v3449 = vcombine.low %v3179, %v3183
        %v3451 = vunpack.c.l.s4 1983009808
        %v3452 = vunpack.c.0.s8 %v3451
        %v3453 = vlaneseq
        %v3454 = vshrl.u32 %v3453, 7
        %v3455 = vsub.s32 %v3452, %v3454
        %v3456 = vrot.slane %v3449, %v3455
        %v3457 = vcombine.low %v3432, %v3440
        %v3459 = vunpack.c.l.s4 1934713408
        %v3460 = vunpack.c.0.s8 %v3459
        %v3461 = vlaneseq
        %v3462 = vshrl.u32 %v3461, 7
        %v3463 = vsub.s32 %v3460, %v3462
        %v3464 = vrot.slane %v3457, %v3463
        %v3465 = vcombine.low %v3448, %v3456
        %v3467 = vunpack.c.l.s4 1934713408
        %v3468 = vunpack.c.0.s8 %v3467
        %v3469 = vlaneseq
        %v3470 = vshrl.u32 %v3469, 7
        %v3471 = vsub.s32 %v3468, %v3470
        %v3472 = vrot.slane %v3465, %v3471
        %v3473 = vcombine.low %v3464, %v3472
        %v3474 = vcombine.low %v3170, %v3174
        %v3476 = vunpack.c.l.s4 1983009808
        %v3477 = vunpack.c.0.s8 %v3476
        %v3478 = vlaneseq
        %v3479 = vshrl.u32 %v3478, 7
        %v3480 = vsub.s32 %v3477, %v3479
        %v3481 = vrot.slane %v3474, %v3480
        %v3482 = vcombine.low %v3172, %v3176
        %v3484 = vunpack.c.l.s4 1983009808
        %v3485 = vunpack.c.0.s8 %v3484
        %v3486 = vlaneseq
        %v3487 = vshrl.u32 %v3486, 7
        %v3488 = vsub.s32 %v3485, %v3487
        %v3489 = vrot.slane %v3482, %v3488
        %v3490 = vcombine.low %v3178, %v3182
        %v3492 = vunpack.c.l.s4 1983009808
        %v3493 = vunpack.c.0.s8 %v3492
        %v3494 = vlaneseq
        %v3495 = vshrl.u32 %v3494, 7
        %v3496 = vsub.s32 %v3493, %v3495
        %v3497 = vrot.slane %v3490, %v3496
        %v3498 = vcombine.low %v3180, %v3184
        %v3500 = vunpack.c.l.s4 1983009808
        %v3501 = vunpack.c.0.s8 %v3500
        %v3502 = vlaneseq
        %v3503 = vshrl.u32 %v3502, 7
        %v3504 = vsub.s32 %v3501, %v3503
        %v3505 = vrot.slane %v3498, %v3504
        %v3506 = vcombine.low %v3481, %v3489
        %v3508 = vunpack.c.l.s4 1934713408
        %v3509 = vunpack.c.0.s8 %v3508
        %v3510 = vlaneseq
        %v3511 = vshrl.u32 %v3510, 7
        %v3512 = vsub.s32 %v3509, %v3511
        %v3513 = vrot.slane %v3506, %v3512
        %v3514 = vcombine.low %v3497, %v3505
        %v3516 = vunpack.c.l.s4 1934713408
        %v3517 = vunpack.c.0.s8 %v3516
        %v3518 = vlaneseq
        %v3519 = vshrl.u32 %v3518, 7
        %v3520 = vsub.s32 %v3517, %v3519
        %v3521 = vrot.slane %v3514, %v3520
        %v3522 = vcombine.low %v3513, %v3521
        %v3523 = vcombine.low %v3185, %v3189
        %v3525 = vunpack.c.l.s4 1983009808
        %v3526 = vunpack.c.0.s8 %v3525
        %v3527 = vlaneseq
        %v3528 = vshrl.u32 %v3527, 7
        %v3529 = vsub.s32 %v3526, %v3528
        %v3530 = vrot.slane %v3523, %v3529
        %v3531 = vcombine.low %v3187, %v3191
        %v3533 = vunpack.c.l.s4 1983009808
        %v3534 = vunpack.c.0.s8 %v3533
        %v3535 = vlaneseq
        %v3536 = vshrl.u32 %v3535, 7
        %v3537 = vsub.s32 %v3534, %v3536
        %v3538 = vrot.slane %v3531, %v3537
        %v3539 = vcombine.low %v3193, %v3197
        %v3541 = vunpack.c.l.s4 1983009808
        %v3542 = vunpack.c.0.s8 %v3541
        %v3543 = vlaneseq
        %v3544 = vshrl.u32 %v3543, 7
        %v3545 = vsub.s32 %v3542, %v3544
        %v3546 = vrot.slane %v3539, %v3545
        %v3547 = vcombine.low %v3195, %v3199
        %v3549 = vunpack.c.l.s4 1983009808
        %v3550 = vunpack.c.0.s8 %v3549
        %v3551 = vlaneseq
        %v3552 = vshrl.u32 %v3551, 7
        %v3553 = vsub.s32 %v3550, %v3552
        %v3554 = vrot.slane %v3547, %v3553
        %v3555 = vcombine.low %v3530, %v3538
        %v3557 = vunpack.c.l.s4 1934713408
        %v3558 = vunpack.c.0.s8 %v3557
        %v3559 = vlaneseq
        %v3560 = vshrl.u32 %v3559, 7
        %v3561 = vsub.s32 %v3558, %v3560
        %v3562 = vrot.slane %v3555, %v3561
        %v3563 = vcombine.low %v3546, %v3554
        %v3565 = vunpack.c.l.s4 1934713408
        %v3566 = vunpack.c.0.s8 %v3565
        %v3567 = vlaneseq
        %v3568 = vshrl.u32 %v3567, 7
        %v3569 = vsub.s32 %v3566, %v3568
        %v3570 = vrot.slane %v3563, %v3569
        %v3571 = vcombine.low %v3562, %v3570
        %v3572 = vcombine.low %v3186, %v3190
        %v3574 = vunpack.c.l.s4 1983009808
        %v3575 = vunpack.c.0.s8 %v3574
        %v3576 = vlaneseq
        %v3577 = vshrl.u32 %v3576, 7
        %v3578 = vsub.s32 %v3575, %v3577
        %v3579 = vrot.slane %v3572, %v3578
        %v3580 = vcombine.low %v3188, %v3192
        %v3582 = vunpack.c.l.s4 1983009808
        %v3583 = vunpack.c.0.s8 %v3582
        %v3584 = vlaneseq
        %v3585 = vshrl.u32 %v3584, 7
        %v3586 = vsub.s32 %v3583, %v3585
        %v3587 = vrot.slane %v3580, %v3586
        %v3588 = vcombine.low %v3194, %v3198
        %v3590 = vunpack.c.l.s4 1983009808
        %v3591 = vunpack.c.0.s8 %v3590
        %v3592 = vlaneseq
        %v3593 = vshrl.u32 %v3592, 7
        %v3594 = vsub.s32 %v3591, %v3593
        %v3595 = vrot.slane %v3588, %v3594
        %v3596 = vcombine.low %v3196, %v3200
        %v3598 = vunpack.c.l.s4 1983009808
        %v3599 = vunpack.c.0.s8 %v3598
        %v3600 = vlaneseq
        %v3601 = vshrl.u32 %v3600, 7
        %v3602 = vsub.s32 %v3599, %v3601
        %v3603 = vrot.slane %v3596, %v3602
        %v3604 = vcombine.low %v3579, %v3587
        %v3606 = vunpack.c.l.s4 1934713408
        %v3607 = vunpack.c.0.s8 %v3606
        %v3608 = vlaneseq
        %v3609 = vshrl.u32 %v3608, 7
        %v3610 = vsub.s32 %v3607, %v3609
        %v3611 = vrot.slane %v3604, %v3610
        %v3612 = vcombine.low %v3595, %v3603
        %v3614 = vunpack.c.l.s4 1934713408
        %v3615 = vunpack.c.0.s8 %v3614
        %v3616 = vlaneseq
        %v3617 = vshrl.u32 %v3616, 7
        %v3618 = vsub.s32 %v3615, %v3617
        %v3619 = vrot.slane %v3612, %v3618
        %v3620 = vcombine.low %v3611, %v3619
        %v3621 = vcombine.low %v3201, %v3205
        %v3623 = vunpack.c.l.s4 1983009808
        %v3624 = vunpack.c.0.s8 %v3623
        %v3625 = vlaneseq
        %v3626 = vshrl.u32 %v3625, 7
        %v3627 = vsub.s32 %v3624, %v3626
        %v3628 = vrot.slane %v3621, %v3627
        %v3629 = vcombine.low %v3203, %v3207
        %v3631 = vunpack.c.l.s4 1983009808
        %v3632 = vunpack.c.0.s8 %v3631
        %v3633 = vlaneseq
        %v3634 = vshrl.u32 %v3633, 7
        %v3635 = vsub.s32 %v3632, %v3634
        %v3636 = vrot.slane %v3629, %v3635
        %v3637 = vcombine.low %v3209, %v3213
        %v3639 = vunpack.c.l.s4 1983009808
        %v3640 = vunpack.c.0.s8 %v3639
        %v3641 = vlaneseq
        %v3642 = vshrl.u32 %v3641, 7
        %v3643 = vsub.s32 %v3640, %v3642
        %v3644 = vrot.slane %v3637, %v3643
        %v3645 = vcombine.low %v3211, %v3215
        %v3647 = vunpack.c.l.s4 1983009808
        %v3648 = vunpack.c.0.s8 %v3647
        %v3649 = vlaneseq
        %v3650 = vshrl.u32 %v3649, 7
        %v3651 = vsub.s32 %v3648, %v3650
        %v3652 = vrot.slane %v3645, %v3651
        %v3653 = vcombine.low %v3628, %v3636
        %v3655 = vunpack.c.l.s4 1934713408
        %v3656 = vunpack.c.0.s8 %v3655
        %v3657 = vlaneseq
        %v3658 = vshrl.u32 %v3657, 7
        %v3659 = vsub.s32 %v3656, %v3658
        %v3660 = vrot.slane %v3653, %v3659
        %v3661 = vcombine.low %v3644, %v3652
        %v3663 = vunpack.c.l.s4 1934713408
        %v3664 = vunpack.c.0.s8 %v3663
        %v3665 = vlaneseq
        %v3666 = vshrl.u32 %v3665, 7
        %v3667 = vsub.s32 %v3664, %v3666
        %v3668 = vrot.slane %v3661, %v3667
        %v3669 = vcombine.low %v3660, %v3668
        %v3670 = vcombine.low %v3202, %v3206
        %v3672 = vunpack.c.l.s4 1983009808
        %v3673 = vunpack.c.0.s8 %v3672
        %v3674 = vlaneseq
        %v3675 = vshrl.u32 %v3674, 7
        %v3676 = vsub.s32 %v3673, %v3675
        %v3677 = vrot.slane %v3670, %v3676
        %v3678 = vcombine.low %v3204, %v3208
        %v3680 = vunpack.c.l.s4 1983009808
        %v3681 = vunpack.c.0.s8 %v3680
        %v3682 = vlaneseq
        %v3683 = vshrl.u32 %v3682, 7
        %v3684 = vsub.s32 %v3681, %v3683
        %v3685 = vrot.slane %v3678, %v3684
        %v3686 = vcombine.low %v3210, %v3214
        %v3688 = vunpack.c.l.s4 1983009808
        %v3689 = vunpack.c.0.s8 %v3688
        %v3690 = vlaneseq
        %v3691 = vshrl.u32 %v3690, 7
        %v3692 = vsub.s32 %v3689, %v3691
        %v3693 = vrot.slane %v3686, %v3692
        %v3694 = vcombine.low %v3212, %v3216
        %v3696 = vunpack.c.l.s4 1983009808
        %v3697 = vunpack.c.0.s8 %v3696
        %v3698 = vlaneseq
        %v3699 = vshrl.u32 %v3698, 7
        %v3700 = vsub.s32 %v3697, %v3699
        %v3701 = vrot.slane %v3694, %v3700
        %v3702 = vcombine.low %v3677, %v3685
        %v3704 = vunpack.c.l.s4 1934713408
        %v3705 = vunpack.c.0.s8 %v3704
        %v3706 = vlaneseq
        %v3707 = vshrl.u32 %v3706, 7
        %v3708 = vsub.s32 %v3705, %v3707
        %v3709 = vrot.slane %v3702, %v3708
        %v3710 = vcombine.low %v3693, %v3701
        %v3712 = vunpack.c.l.s4 1934713408
        %v3713 = vunpack.c.0.s8 %v3712
        %v3714 = vlaneseq
        %v3715 = vshrl.u32 %v3714, 7
        %v3716 = vsub.s32 %v3713, %v3715
        %v3717 = vrot.slane %v3710, %v3716
        %v3718 = vcombine.low %v3709, %v3717
        %v3719 = vcombine.low %v3217, %v3221
        %v3721 = vunpack.c.l.s4 1983009808
        %v3722 = vunpack.c.0.s8 %v3721
        %v3723 = vlaneseq
        %v3724 = vshrl.u32 %v3723, 7
        %v3725 = vsub.s32 %v3722, %v3724
        %v3726 = vrot.slane %v3719, %v3725
        %v3727 = vcombine.low %v3219, %v3223
        %v3729 = vunpack.c.l.s4 1983009808
        %v3730 = vunpack.c.0.s8 %v3729
        %v3731 = vlaneseq
        %v3732 = vshrl.u32 %v3731, 7
        %v3733 = vsub.s32 %v3730, %v3732
        %v3734 = vrot.slane %v3727, %v3733
        %v3735 = vcombine.low %v3225, %v3229
        %v3737 = vunpack.c.l.s4 1983009808
        %v3738 = vunpack.c.0.s8 %v3737
        %v3739 = vlaneseq
        %v3740 = vshrl.u32 %v3739, 7
        %v3741 = vsub.s32 %v3738, %v3740
        %v3742 = vrot.slane %v3735, %v3741
        %v3743 = vcombine.low %v3227, %v3231
        %v3745 = vunpack.c.l.s4 1983009808
        %v3746 = vunpack.c.0.s8 %v3745
        %v3747 = vlaneseq
        %v3748 = vshrl.u32 %v3747, 7
        %v3749 = vsub.s32 %v3746, %v3748
        %v3750 = vrot.slane %v3743, %v3749
        %v3751 = vcombine.low %v3726, %v3734
        %v3753 = vunpack.c.l.s4 1934713408
        %v3754 = vunpack.c.0.s8 %v3753
        %v3755 = vlaneseq
        %v3756 = vshrl.u32 %v3755, 7
        %v3757 = vsub.s32 %v3754, %v3756
        %v3758 = vrot.slane %v3751, %v3757
        %v3759 = vcombine.low %v3742, %v3750
        %v3761 = vunpack.c.l.s4 1934713408
        %v3762 = vunpack.c.0.s8 %v3761
        %v3763 = vlaneseq
        %v3764 = vshrl.u32 %v3763, 7
        %v3765 = vsub.s32 %v3762, %v3764
        %v3766 = vrot.slane %v3759, %v3765
        %v3767 = vcombine.low %v3758, %v3766
        %v3768 = vcombine.low %v3218, %v3222
        %v3770 = vunpack.c.l.s4 1983009808
        %v3771 = vunpack.c.0.s8 %v3770
        %v3772 = vlaneseq
        %v3773 = vshrl.u32 %v3772, 7
        %v3774 = vsub.s32 %v3771, %v3773
        %v3775 = vrot.slane %v3768, %v3774
        %v3776 = vcombine.low %v3220, %v3224
        %v3778 = vunpack.c.l.s4 1983009808
        %v3779 = vunpack.c.0.s8 %v3778
        %v3780 = vlaneseq
        %v3781 = vshrl.u32 %v3780, 7
        %v3782 = vsub.s32 %v3779, %v3781
        %v3783 = vrot.slane %v3776, %v3782
        %v3784 = vcombine.low %v3226, %v3230
        %v3786 = vunpack.c.l.s4 1983009808
        %v3787 = vunpack.c.0.s8 %v3786
        %v3788 = vlaneseq
        %v3789 = vshrl.u32 %v3788, 7
        %v3790 = vsub.s32 %v3787, %v3789
        %v3791 = vrot.slane %v3784, %v3790
        %v3792 = vcombine.low %v3228, %v3232
        %v3794 = vunpack.c.l.s4 1983009808
        %v3795 = vunpack.c.0.s8 %v3794
        %v3796 = vlaneseq
        %v3797 = vshrl.u32 %v3796, 7
        %v3798 = vsub.s32 %v3795, %v3797
        %v3799 = vrot.slane %v3792, %v3798
        %v3800 = vcombine.low %v3775, %v3783
        %v3802 = vunpack.c.l.s4 1934713408
        %v3803 = vunpack.c.0.s8 %v3802
        %v3804 = vlaneseq
        %v3805 = vshrl.u32 %v3804, 7
        %v3806 = vsub.s32 %v3803, %v3805
        %v3807 = vrot.slane %v3800, %v3806
        %v3808 = vcombine.low %v3791, %v3799
        %v3810 = vunpack.c.l.s4 1934713408
        %v3811 = vunpack.c.0.s8 %v3810
        %v3812 = vlaneseq
        %v3813 = vshrl.u32 %v3812, 7
        %v3814 = vsub.s32 %v3811, %v3813
        %v3815 = vrot.slane %v3808, %v3814
        %v3816 = vcombine.low %v3807, %v3815
        %v3817 = vcombine.low %v3233, %v3237
        %v3819 = vunpack.c.l.s4 1983009808
        %v3820 = vunpack.c.0.s8 %v3819
        %v3821 = vlaneseq
        %v3822 = vshrl.u32 %v3821, 7
        %v3823 = vsub.s32 %v3820, %v3822
        %v3824 = vrot.slane %v3817, %v3823
        %v3825 = vcombine.low %v3235, %v3239
        %v3827 = vunpack.c.l.s4 1983009808
        %v3828 = vunpack.c.0.s8 %v3827
        %v3829 = vlaneseq
        %v3830 = vshrl.u32 %v3829, 7
        %v3831 = vsub.s32 %v3828, %v3830
        %v3832 = vrot.slane %v3825, %v3831
        %v3833 = vcombine.low %v3241, %v3245
        %v3835 = vunpack.c.l.s4 1983009808
        %v3836 = vunpack.c.0.s8 %v3835
        %v3837 = vlaneseq
        %v3838 = vshrl.u32 %v3837, 7
        %v3839 = vsub.s32 %v3836, %v3838
        %v3840 = vrot.slane %v3833, %v3839
        %v3841 = vcombine.low %v3243, %v3247
        %v3843 = vunpack.c.l.s4 1983009808
        %v3844 = vunpack.c.0.s8 %v3843
        %v3845 = vlaneseq
        %v3846 = vshrl.u32 %v3845, 7
        %v3847 = vsub.s32 %v3844, %v3846
        %v3848 = vrot.slane %v3841, %v3847
        %v3849 = vcombine.low %v3824, %v3832
        %v3851 = vunpack.c.l.s4 1934713408
        %v3852 = vunpack.c.0.s8 %v3851
        %v3853 = vlaneseq
        %v3854 = vshrl.u32 %v3853, 7
        %v3855 = vsub.s32 %v3852, %v3854
        %v3856 = vrot.slane %v3849, %v3855
        %v3857 = vcombine.low %v3840, %v3848
        %v3859 = vunpack.c.l.s4 1934713408
        %v3860 = vunpack.c.0.s8 %v3859
        %v3861 = vlaneseq
        %v3862 = vshrl.u32 %v3861, 7
        %v3863 = vsub.s32 %v3860, %v3862
        %v3864 = vrot.slane %v3857, %v3863
        %v3865 = vcombine.low %v3856, %v3864
        %v3866 = vcombine.low %v3234, %v3238
        %v3868 = vunpack.c.l.s4 1983009808
        %v3869 = vunpack.c.0.s8 %v3868
        %v3870 = vlaneseq
        %v3871 = vshrl.u32 %v3870, 7
        %v3872 = vsub.s32 %v3869, %v3871
        %v3873 = vrot.slane %v3866, %v3872
        %v3874 = vcombine.low %v3236, %v3240
        %v3876 = vunpack.c.l.s4 1983009808
        %v3877 = vunpack.c.0.s8 %v3876
        %v3878 = vlaneseq
        %v3879 = vshrl.u32 %v3878, 7
        %v3880 = vsub.s32 %v3877, %v3879
        %v3881 = vrot.slane %v3874, %v3880
        %v3882 = vcombine.low %v3242, %v3246
        %v3884 = vunpack.c.l.s4 1983009808
        %v3885 = vunpack.c.0.s8 %v3884
        %v3886 = vlaneseq
        %v3887 = vshrl.u32 %v3886, 7
        %v3888 = vsub.s32 %v3885, %v3887
        %v3889 = vrot.slane %v3882, %v3888
        %v3890 = vcombine.low %v3244, %v3248
        %v3892 = vunpack.c.l.s4 1983009808
        %v3893 = vunpack.c.0.s8 %v3892
        %v3894 = vlaneseq
        %v3895 = vshrl.u32 %v3894, 7
        %v3896 = vsub.s32 %v3893, %v3895
        %v3897 = vrot.slane %v3890, %v3896
        %v3898 = vcombine.low %v3873, %v3881
        %v3900 = vunpack.c.l.s4 1934713408
        %v3901 = vunpack.c.0.s8 %v3900
        %v3902 = vlaneseq
        %v3903 = vshrl.u32 %v3902, 7
        %v3904 = vsub.s32 %v3901, %v3903
        %v3905 = vrot.slane %v3898, %v3904
        %v3906 = vcombine.low %v3889, %v3897
        %v3908 = vunpack.c.l.s4 1934713408
        %v3909 = vunpack.c.0.s8 %v3908
        %v3910 = vlaneseq
        %v3911 = vshrl.u32 %v3910, 7
        %v3912 = vsub.s32 %v3909, %v3911
        %v3913 = vrot.slane %v3906, %v3912
        %v3914 = vcombine.low %v3905, %v3913
        %v3915 = vcombine.low %v3249, %v3253
        %v3917 = vunpack.c.l.s4 1983009808
        %v3918 = vunpack.c.0.s8 %v3917
        %v3919 = vlaneseq
        %v3920 = vshrl.u32 %v3919, 7
        %v3921 = vsub.s32 %v3918, %v3920
        %v3922 = vrot.slane %v3915, %v3921
        %v3923 = vcombine.low %v3251, %v3255
        %v3925 = vunpack.c.l.s4 1983009808
        %v3926 = vunpack.c.0.s8 %v3925
        %v3927 = vlaneseq
        %v3928 = vshrl.u32 %v3927, 7
        %v3929 = vsub.s32 %v3926, %v3928
        %v3930 = vrot.slane %v3923, %v3929
        %v3931 = vcombine.low %v3257, %v3261
        %v3933 = vunpack.c.l.s4 1983009808
        %v3934 = vunpack.c.0.s8 %v3933
        %v3935 = vlaneseq
        %v3936 = vshrl.u32 %v3935, 7
        %v3937 = vsub.s32 %v3934, %v3936
        %v3938 = vrot.slane %v3931, %v3937
        %v3939 = vcombine.low %v3259, %v3263
        %v3941 = vunpack.c.l.s4 1983009808
        %v3942 = vunpack.c.0.s8 %v3941
        %v3943 = vlaneseq
        %v3944 = vshrl.u32 %v3943, 7
        %v3945 = vsub.s32 %v3942, %v3944
        %v3946 = vrot.slane %v3939, %v3945
        %v3947 = vcombine.low %v3922, %v3930
        %v3949 = vunpack.c.l.s4 1934713408
        %v3950 = vunpack.c.0.s8 %v3949
        %v3951 = vlaneseq
        %v3952 = vshrl.u32 %v3951, 7
        %v3953 = vsub.s32 %v3950, %v3952
        %v3954 = vrot.slane %v3947, %v3953
        %v3955 = vcombine.low %v3938, %v3946
        %v3957 = vunpack.c.l.s4 1934713408
        %v3958 = vunpack.c.0.s8 %v3957
        %v3959 = vlaneseq
        %v3960 = vshrl.u32 %v3959, 7
        %v3961 = vsub.s32 %v3958, %v3960
        %v3962 = vrot.slane %v3955, %v3961
        %v3963 = vcombine.low %v3954, %v3962
        %v3964 = vcombine.low %v3250, %v3254
        %v3966 = vunpack.c.l.s4 1983009808
        %v3967 = vunpack.c.0.s8 %v3966
        %v3968 = vlaneseq
        %v3969 = vshrl.u32 %v3968, 7
        %v3970 = vsub.s32 %v3967, %v3969
        %v3971 = vrot.slane %v3964, %v3970
        %v3972 = vcombine.low %v3252, %v3256
        %v3974 = vunpack.c.l.s4 1983009808
        %v3975 = vunpack.c.0.s8 %v3974
        %v3976 = vlaneseq
        %v3977 = vshrl.u32 %v3976, 7
        %v3978 = vsub.s32 %v3975, %v3977
        %v3979 = vrot.slane %v3972, %v3978
        %v3980 = vcombine.low %v3258, %v3262
        %v3982 = vunpack.c.l.s4 1983009808
        %v3983 = vunpack.c.0.s8 %v3982
        %v3984 = vlaneseq
        %v3985 = vshrl.u32 %v3984, 7
        %v3986 = vsub.s32 %v3983, %v3985
        %v3987 = vrot.slane %v3980, %v3986
        %v3988 = vcombine.low %v3260, %v3264
        %v3990 = vunpack.c.l.s4 1983009808
        %v3991 = vunpack.c.0.s8 %v3990
        %v3992 = vlaneseq
        %v3993 = vshrl.u32 %v3992, 7
        %v3994 = vsub.s32 %v3991, %v3993
        %v3995 = vrot.slane %v3988, %v3994
        %v3996 = vcombine.low %v3971, %v3979
        %v3998 = vunpack.c.l.s4 1934713408
        %v3999 = vunpack.c.0.s8 %v3998
        %v4000 = vlaneseq
        %v4001 = vshrl.u32 %v4000, 7
        %v4002 = vsub.s32 %v3999, %v4001
        %v4003 = vrot.slane %v3996, %v4002
        %v4004 = vcombine.low %v3987, %v3995
        %v4006 = vunpack.c.l.s4 1934713408
        %v4007 = vunpack.c.0.s8 %v4006
        %v4008 = vlaneseq
        %v4009 = vshrl.u32 %v4008, 7
        %v4010 = vsub.s32 %v4007, %v4009
        %v4011 = vrot.slane %v4004, %v4010
        %v4012 = vcombine.low %v4003, %v4011
        %v4013 = vcombine.low %v3265, %v3269
        %v4015 = vunpack.c.l.s4 1983009808
        %v4016 = vunpack.c.0.s8 %v4015
        %v4017 = vlaneseq
        %v4018 = vshrl.u32 %v4017, 7
        %v4019 = vsub.s32 %v4016, %v4018
        %v4020 = vrot.slane %v4013, %v4019
        %v4021 = vcombine.low %v3267, %v3271
        %v4023 = vunpack.c.l.s4 1983009808
        %v4024 = vunpack.c.0.s8 %v4023
        %v4025 = vlaneseq
        %v4026 = vshrl.u32 %v4025, 7
        %v4027 = vsub.s32 %v4024, %v4026
        %v4028 = vrot.slane %v4021, %v4027
        %v4029 = vcombine.low %v3273, %v3277
        %v4031 = vunpack.c.l.s4 1983009808
        %v4032 = vunpack.c.0.s8 %v4031
        %v4033 = vlaneseq
        %v4034 = vshrl.u32 %v4033, 7
        %v4035 = vsub.s32 %v4032, %v4034
        %v4036 = vrot.slane %v4029, %v4035
        %v4037 = vcombine.low %v3275, %v3279
        %v4039 = vunpack.c.l.s4 1983009808
        %v4040 = vunpack.c.0.s8 %v4039
        %v4041 = vlaneseq
        %v4042 = vshrl.u32 %v4041, 7
        %v4043 = vsub.s32 %v4040, %v4042
        %v4044 = vrot.slane %v4037, %v4043
        %v4045 = vcombine.low %v4020, %v4028
        %v4047 = vunpack.c.l.s4 1934713408
        %v4048 = vunpack.c.0.s8 %v4047
        %v4049 = vlaneseq
        %v4050 = vshrl.u32 %v4049, 7
        %v4051 = vsub.s32 %v4048, %v4050
        %v4052 = vrot.slane %v4045, %v4051
        %v4053 = vcombine.low %v4036, %v4044
        %v4055 = vunpack.c.l.s4 1934713408
        %v4056 = vunpack.c.0.s8 %v4055
        %v4057 = vlaneseq
        %v4058 = vshrl.u32 %v4057, 7
        %v4059 = vsub.s32 %v4056, %v4058
        %v4060 = vrot.slane %v4053, %v4059
        %v4061 = vcombine.low %v4052, %v4060
        %v4062 = vcombine.low %v3266, %v3270
        %v4064 = vunpack.c.l.s4 1983009808
        %v4065 = vunpack.c.0.s8 %v4064
        %v4066 = vlaneseq
        %v4067 = vshrl.u32 %v4066, 7
        %v4068 = vsub.s32 %v4065, %v4067
        %v4069 = vrot.slane %v4062, %v4068
        %v4070 = vcombine.low %v3268, %v3272
        %v4072 = vunpack.c.l.s4 1983009808
        %v4073 = vunpack.c.0.s8 %v4072
        %v4074 = vlaneseq
        %v4075 = vshrl.u32 %v4074, 7
        %v4076 = vsub.s32 %v4073, %v4075
        %v4077 = vrot.slane %v4070, %v4076
        %v4078 = vcombine.low %v3274, %v3278
        %v4080 = vunpack.c.l.s4 1983009808
        %v4081 = vunpack.c.0.s8 %v4080
        %v4082 = vlaneseq
        %v4083 = vshrl.u32 %v4082, 7
        %v4084 = vsub.s32 %v4081, %v4083
        %v4085 = vrot.slane %v4078, %v4084
        %v4086 = vcombine.low %v3276, %v3280
        %v4088 = vunpack.c.l.s4 1983009808
        %v4089 = vunpack.c.0.s8 %v4088
        %v4090 = vlaneseq
        %v4091 = vshrl.u32 %v4090, 7
        %v4092 = vsub.s32 %v4089, %v4091
        %v4093 = vrot.slane %v4086, %v4092
        %v4094 = vcombine.low %v4069, %v4077
        %v4096 = vunpack.c.l.s4 1934713408
        %v4097 = vunpack.c.0.s8 %v4096
        %v4098 = vlaneseq
        %v4099 = vshrl.u32 %v4098, 7
        %v4100 = vsub.s32 %v4097, %v4099
        %v4101 = vrot.slane %v4094, %v4100
        %v4102 = vcombine.low %v4085, %v4093
        %v4104 = vunpack.c.l.s4 1934713408
        %v4105 = vunpack.c.0.s8 %v4104
        %v4106 = vlaneseq
        %v4107 = vshrl.u32 %v4106, 7
        %v4108 = vsub.s32 %v4105, %v4107
        %v4109 = vrot.slane %v4102, %v4108
        %v4110 = vcombine.low %v4101, %v4109
        %v4111 = vcombine.low %v3281, %v3285
        %v4113 = vunpack.c.l.s4 1983009808
        %v4114 = vunpack.c.0.s8 %v4113
        %v4115 = vlaneseq
        %v4116 = vshrl.u32 %v4115, 7
        %v4117 = vsub.s32 %v4114, %v4116
        %v4118 = vrot.slane %v4111, %v4117
        %v4119 = vcombine.low %v3283, %v3287
        %v4121 = vunpack.c.l.s4 1983009808
        %v4122 = vunpack.c.0.s8 %v4121
        %v4123 = vlaneseq
        %v4124 = vshrl.u32 %v4123, 7
        %v4125 = vsub.s32 %v4122, %v4124
        %v4126 = vrot.slane %v4119, %v4125
        %v4127 = vcombine.low %v3289, %v3293
        %v4129 = vunpack.c.l.s4 1983009808
        %v4130 = vunpack.c.0.s8 %v4129
        %v4131 = vlaneseq
        %v4132 = vshrl.u32 %v4131, 7
        %v4133 = vsub.s32 %v4130, %v4132
        %v4134 = vrot.slane %v4127, %v4133
        %v4135 = vcombine.low %v3291, %v3295
        %v4137 = vunpack.c.l.s4 1983009808
        %v4138 = vunpack.c.0.s8 %v4137
        %v4139 = vlaneseq
        %v4140 = vshrl.u32 %v4139, 7
        %v4141 = vsub.s32 %v4138, %v4140
        %v4142 = vrot.slane %v4135, %v4141
        %v4143 = vcombine.low %v4118, %v4126
        %v4145 = vunpack.c.l.s4 1934713408
        %v4146 = vunpack.c.0.s8 %v4145
        %v4147 = vlaneseq
        %v4148 = vshrl.u32 %v4147, 7
        %v4149 = vsub.s32 %v4146, %v4148
        %v4150 = vrot.slane %v4143, %v4149
        %v4151 = vcombine.low %v4134, %v4142
        %v4153 = vunpack.c.l.s4 1934713408
        %v4154 = vunpack.c.0.s8 %v4153
        %v4155 = vlaneseq
        %v4156 = vshrl.u32 %v4155, 7
        %v4157 = vsub.s32 %v4154, %v4156
        %v4158 = vrot.slane %v4151, %v4157
        %v4159 = vcombine.low %v4150, %v4158
        %v4160 = vcombine.low %v3282, %v3286
        %v4162 = vunpack.c.l.s4 1983009808
        %v4163 = vunpack.c.0.s8 %v4162
        %v4164 = vlaneseq
        %v4165 = vshrl.u32 %v4164, 7
        %v4166 = vsub.s32 %v4163, %v4165
        %v4167 = vrot.slane %v4160, %v4166
        %v4168 = vcombine.low %v3284, %v3288
        %v4170 = vunpack.c.l.s4 1983009808
        %v4171 = vunpack.c.0.s8 %v4170
        %v4172 = vlaneseq
        %v4173 = vshrl.u32 %v4172, 7
        %v4174 = vsub.s32 %v4171, %v4173
        %v4175 = vrot.slane %v4168, %v4174
        %v4176 = vcombine.low %v3290, %v3294
        %v4178 = vunpack.c.l.s4 1983009808
        %v4179 = vunpack.c.0.s8 %v4178
        %v4180 = vlaneseq
        %v4181 = vshrl.u32 %v4180, 7
        %v4182 = vsub.s32 %v4179, %v4181
        %v4183 = vrot.slane %v4176, %v4182
        %v4184 = vcombine.low %v3292, %v3296
        %v4186 = vunpack.c.l.s4 1983009808
        %v4187 = vunpack.c.0.s8 %v4186
        %v4188 = vlaneseq
        %v4189 = vshrl.u32 %v4188, 7
        %v4190 = vsub.s32 %v4187, %v4189
        %v4191 = vrot.slane %v4184, %v4190
        %v4192 = vcombine.low %v4167, %v4175
        %v4194 = vunpack.c.l.s4 1934713408
        %v4195 = vunpack.c.0.s8 %v4194
        %v4196 = vlaneseq
        %v4197 = vshrl.u32 %v4196, 7
        %v4198 = vsub.s32 %v4195, %v4197
        %v4199 = vrot.slane %v4192, %v4198
        %v4200 = vcombine.low %v4183, %v4191
        %v4202 = vunpack.c.l.s4 1934713408
        %v4203 = vunpack.c.0.s8 %v4202
        %v4204 = vlaneseq
        %v4205 = vshrl.u32 %v4204, 7
        %v4206 = vsub.s32 %v4203, %v4205
        %v4207 = vrot.slane %v4200, %v4206
        %v4208 = vcombine.low %v4199, %v4207
        %v4209 = vcombine.low %v3297, %v3301
        %v4211 = vunpack.c.l.s4 1983009808
        %v4212 = vunpack.c.0.s8 %v4211
        %v4213 = vlaneseq
        %v4214 = vshrl.u32 %v4213, 7
        %v4215 = vsub.s32 %v4212, %v4214
        %v4216 = vrot.slane %v4209, %v4215
        %v4217 = vcombine.low %v3299, %v3303
        %v4219 = vunpack.c.l.s4 1983009808
        %v4220 = vunpack.c.0.s8 %v4219
        %v4221 = vlaneseq
        %v4222 = vshrl.u32 %v4221, 7
        %v4223 = vsub.s32 %v4220, %v4222
        %v4224 = vrot.slane %v4217, %v4223
        %v4225 = vcombine.low %v3305, %v3309
        %v4227 = vunpack.c.l.s4 1983009808
        %v4228 = vunpack.c.0.s8 %v4227
        %v4229 = vlaneseq
        %v4230 = vshrl.u32 %v4229, 7
        %v4231 = vsub.s32 %v4228, %v4230
        %v4232 = vrot.slane %v4225, %v4231
        %v4233 = vcombine.low %v3307, %v3311
        %v4235 = vunpack.c.l.s4 1983009808
        %v4236 = vunpack.c.0.s8 %v4235
        %v4237 = vlaneseq
        %v4238 = vshrl.u32 %v4237, 7
        %v4239 = vsub.s32 %v4236, %v4238
        %v4240 = vrot.slane %v4233, %v4239
        %v4241 = vcombine.low %v4216, %v4224
        %v4243 = vunpack.c.l.s4 1934713408
        %v4244 = vunpack.c.0.s8 %v4243
        %v4245 = vlaneseq
        %v4246 = vshrl.u32 %v4245, 7
        %v4247 = vsub.s32 %v4244, %v4246
        %v4248 = vrot.slane %v4241, %v4247
        %v4249 = vcombine.low %v4232, %v4240
        %v4251 = vunpack.c.l.s4 1934713408
        %v4252 = vunpack.c.0.s8 %v4251
        %v4253 = vlaneseq
        %v4254 = vshrl.u32 %v4253, 7
        %v4255 = vsub.s32 %v4252, %v4254
        %v4256 = vrot.slane %v4249, %v4255
        %v4257 = vcombine.low %v4248, %v4256
        %v4258 = vcombine.low %v3298, %v3302
        %v4260 = vunpack.c.l.s4 1983009808
        %v4261 = vunpack.c.0.s8 %v4260
        %v4262 = vlaneseq
        %v4263 = vshrl.u32 %v4262, 7
        %v4264 = vsub.s32 %v4261, %v4263
        %v4265 = vrot.slane %v4258, %v4264
        %v4266 = vcombine.low %v3300, %v3304
        %v4268 = vunpack.c.l.s4 1983009808
        %v4269 = vunpack.c.0.s8 %v4268
        %v4270 = vlaneseq
        %v4271 = vshrl.u32 %v4270, 7
        %v4272 = vsub.s32 %v4269, %v4271
        %v4273 = vrot.slane %v4266, %v4272
        %v4274 = vcombine.low %v3306, %v3310
        %v4276 = vunpack.c.l.s4 1983009808
        %v4277 = vunpack.c.0.s8 %v4276
        %v4278 = vlaneseq
        %v4279 = vshrl.u32 %v4278, 7
        %v4280 = vsub.s32 %v4277, %v4279
        %v4281 = vrot.slane %v4274, %v4280
        %v4282 = vcombine.low %v3308, %v3312
        %v4284 = vunpack.c.l.s4 1983009808
        %v4285 = vunpack.c.0.s8 %v4284
        %v4286 = vlaneseq
        %v4287 = vshrl.u32 %v4286, 7
        %v4288 = vsub.s32 %v4285, %v4287
        %v4289 = vrot.slane %v4282, %v4288
        %v4290 = vcombine.low %v4265, %v4273
        %v4292 = vunpack.c.l.s4 1934713408
        %v4293 = vunpack.c.0.s8 %v4292
        %v4294 = vlaneseq
        %v4295 = vshrl.u32 %v4294, 7
        %v4296 = vsub.s32 %v4293, %v4295
        %v4297 = vrot.slane %v4290, %v4296
        %v4298 = vcombine.low %v4281, %v4289
        %v4300 = vunpack.c.l.s4 1934713408
        %v4301 = vunpack.c.0.s8 %v4300
        %v4302 = vlaneseq
        %v4303 = vshrl.u32 %v4302, 7
        %v4304 = vsub.s32 %v4301, %v4303
        %v4305 = vrot.slane %v4298, %v4304
        %v4306 = vcombine.low %v4297, %v4305
        %v4307 = vcombine.low %v3313, %v3317
        %v4309 = vunpack.c.l.s4 1983009808
        %v4310 = vunpack.c.0.s8 %v4309
        %v4311 = vlaneseq
        %v4312 = vshrl.u32 %v4311, 7
        %v4313 = vsub.s32 %v4310, %v4312
        %v4314 = vrot.slane %v4307, %v4313
        %v4315 = vcombine.low %v3315, %v3319
        %v4317 = vunpack.c.l.s4 1983009808
        %v4318 = vunpack.c.0.s8 %v4317
        %v4319 = vlaneseq
        %v4320 = vshrl.u32 %v4319, 7
        %v4321 = vsub.s32 %v4318, %v4320
        %v4322 = vrot.slane %v4315, %v4321
        %v4323 = vcombine.low %v3321, %v3325
        %v4325 = vunpack.c.l.s4 1983009808
        %v4326 = vunpack.c.0.s8 %v4325
        %v4327 = vlaneseq
        %v4328 = vshrl.u32 %v4327, 7
        %v4329 = vsub.s32 %v4326, %v4328
        %v4330 = vrot.slane %v4323, %v4329
        %v4331 = vcombine.low %v3323, %v3327
        %v4333 = vunpack.c.l.s4 1983009808
        %v4334 = vunpack.c.0.s8 %v4333
        %v4335 = vlaneseq
        %v4336 = vshrl.u32 %v4335, 7
        %v4337 = vsub.s32 %v4334, %v4336
        %v4338 = vrot.slane %v4331, %v4337
        %v4339 = vcombine.low %v4314, %v4322
        %v4341 = vunpack.c.l.s4 1934713408
        %v4342 = vunpack.c.0.s8 %v4341
        %v4343 = vlaneseq
        %v4344 = vshrl.u32 %v4343, 7
        %v4345 = vsub.s32 %v4342, %v4344
        %v4346 = vrot.slane %v4339, %v4345
        %v4347 = vcombine.low %v4330, %v4338
        %v4349 = vunpack.c.l.s4 1934713408
        %v4350 = vunpack.c.0.s8 %v4349
        %v4351 = vlaneseq
        %v4352 = vshrl.u32 %v4351, 7
        %v4353 = vsub.s32 %v4350, %v4352
        %v4354 = vrot.slane %v4347, %v4353
        %v4355 = vcombine.low %v4346, %v4354
        %v4356 = vcombine.low %v3314, %v3318
        %v4358 = vunpack.c.l.s4 1983009808
        %v4359 = vunpack.c.0.s8 %v4358
        %v4360 = vlaneseq
        %v4361 = vshrl.u32 %v4360, 7
        %v4362 = vsub.s32 %v4359, %v4361
        %v4363 = vrot.slane %v4356, %v4362
        %v4364 = vcombine.low %v3316, %v3320
        %v4366 = vunpack.c.l.s4 1983009808
        %v4367 = vunpack.c.0.s8 %v4366
        %v4368 = vlaneseq
        %v4369 = vshrl.u32 %v4368, 7
        %v4370 = vsub.s32 %v4367, %v4369
        %v4371 = vrot.slane %v4364, %v4370
        %v4372 = vcombine.low %v3322, %v3326
        %v4374 = vunpack.c.l.s4 1983009808
        %v4375 = vunpack.c.0.s8 %v4374
        %v4376 = vlaneseq
        %v4377 = vshrl.u32 %v4376, 7
        %v4378 = vsub.s32 %v4375, %v4377
        %v4379 = vrot.slane %v4372, %v4378
        %v4380 = vcombine.low %v3324, %v3328
        %v4382 = vunpack.c.l.s4 1983009808
        %v4383 = vunpack.c.0.s8 %v4382
        %v4384 = vlaneseq
        %v4385 = vshrl.u32 %v4384, 7
        %v4386 = vsub.s32 %v4383, %v4385
        %v4387 = vrot.slane %v4380, %v4386
        %v4388 = vcombine.low %v4363, %v4371
        %v4390 = vunpack.c.l.s4 1934713408
        %v4391 = vunpack.c.0.s8 %v4390
        %v4392 = vlaneseq
        %v4393 = vshrl.u32 %v4392, 7
        %v4394 = vsub.s32 %v4391, %v4393
        %v4395 = vrot.slane %v4388, %v4394
        %v4396 = vcombine.low %v4379, %v4387
        %v4398 = vunpack.c.l.s4 1934713408
        %v4399 = vunpack.c.0.s8 %v4398
        %v4400 = vlaneseq
        %v4401 = vshrl.u32 %v4400, 7
        %v4402 = vsub.s32 %v4399, %v4401
        %v4403 = vrot.slane %v4396, %v4402
        %v4404 = vcombine.low %v4395, %v4403
        %v4405 = vcombine.low %v3329, %v3333
        %v4407 = vunpack.c.l.s4 1983009808
        %v4408 = vunpack.c.0.s8 %v4407
        %v4409 = vlaneseq
        %v4410 = vshrl.u32 %v4409, 7
        %v4411 = vsub.s32 %v4408, %v4410
        %v4412 = vrot.slane %v4405, %v4411
        %v4413 = vcombine.low %v3331, %v3335
        %v4415 = vunpack.c.l.s4 1983009808
        %v4416 = vunpack.c.0.s8 %v4415
        %v4417 = vlaneseq
        %v4418 = vshrl.u32 %v4417, 7
        %v4419 = vsub.s32 %v4416, %v4418
        %v4420 = vrot.slane %v4413, %v4419
        %v4421 = vcombine.low %v3337, %v3341
        %v4423 = vunpack.c.l.s4 1983009808
        %v4424 = vunpack.c.0.s8 %v4423
        %v4425 = vlaneseq
        %v4426 = vshrl.u32 %v4425, 7
        %v4427 = vsub.s32 %v4424, %v4426
        %v4428 = vrot.slane %v4421, %v4427
        %v4429 = vcombine.low %v3339, %v3343
        %v4431 = vunpack.c.l.s4 1983009808
        %v4432 = vunpack.c.0.s8 %v4431
        %v4433 = vlaneseq
        %v4434 = vshrl.u32 %v4433, 7
        %v4435 = vsub.s32 %v4432, %v4434
        %v4436 = vrot.slane %v4429, %v4435
        %v4437 = vcombine.low %v4412, %v4420
        %v4439 = vunpack.c.l.s4 1934713408
        %v4440 = vunpack.c.0.s8 %v4439
        %v4441 = vlaneseq
        %v4442 = vshrl.u32 %v4441, 7
        %v4443 = vsub.s32 %v4440, %v4442
        %v4444 = vrot.slane %v4437, %v4443
        %v4445 = vcombine.low %v4428, %v4436
        %v4447 = vunpack.c.l.s4 1934713408
        %v4448 = vunpack.c.0.s8 %v4447
        %v4449 = vlaneseq
        %v4450 = vshrl.u32 %v4449, 7
        %v4451 = vsub.s32 %v4448, %v4450
        %v4452 = vrot.slane %v4445, %v4451
        %v4453 = vcombine.low %v4444, %v4452
        %v4454 = vcombine.low %v3330, %v3334
        %v4456 = vunpack.c.l.s4 1983009808
        %v4457 = vunpack.c.0.s8 %v4456
        %v4458 = vlaneseq
        %v4459 = vshrl.u32 %v4458, 7
        %v4460 = vsub.s32 %v4457, %v4459
        %v4461 = vrot.slane %v4454, %v4460
        %v4462 = vcombine.low %v3332, %v3336
        %v4464 = vunpack.c.l.s4 1983009808
        %v4465 = vunpack.c.0.s8 %v4464
        %v4466 = vlaneseq
        %v4467 = vshrl.u32 %v4466, 7
        %v4468 = vsub.s32 %v4465, %v4467
        %v4469 = vrot.slane %v4462, %v4468
        %v4470 = vcombine.low %v3338, %v3342
        %v4472 = vunpack.c.l.s4 1983009808
        %v4473 = vunpack.c.0.s8 %v4472
        %v4474 = vlaneseq
        %v4475 = vshrl.u32 %v4474, 7
        %v4476 = vsub.s32 %v4473, %v4475
        %v4477 = vrot.slane %v4470, %v4476
        %v4478 = vcombine.low %v3340, %v3344
        %v4480 = vunpack.c.l.s4 1983009808
        %v4481 = vunpack.c.0.s8 %v4480
        %v4482 = vlaneseq
        %v4483 = vshrl.u32 %v4482, 7
        %v4484 = vsub.s32 %v4481, %v4483
        %v4485 = vrot.slane %v4478, %v4484
        %v4486 = vcombine.low %v4461, %v4469
        %v4488 = vunpack.c.l.s4 1934713408
        %v4489 = vunpack.c.0.s8 %v4488
        %v4490 = vlaneseq
        %v4491 = vshrl.u32 %v4490, 7
        %v4492 = vsub.s32 %v4489, %v4491
        %v4493 = vrot.slane %v4486, %v4492
        %v4494 = vcombine.low %v4477, %v4485
        %v4496 = vunpack.c.l.s4 1934713408
        %v4497 = vunpack.c.0.s8 %v4496
        %v4498 = vlaneseq
        %v4499 = vshrl.u32 %v4498, 7
        %v4500 = vsub.s32 %v4497, %v4499
        %v4501 = vrot.slane %v4494, %v4500
        %v4502 = vcombine.low %v4493, %v4501
        %v4503 = vcombine.low %v3345, %v3349
        %v4505 = vunpack.c.l.s4 1983009808
        %v4506 = vunpack.c.0.s8 %v4505
        %v4507 = vlaneseq
        %v4508 = vshrl.u32 %v4507, 7
        %v4509 = vsub.s32 %v4506, %v4508
        %v4510 = vrot.slane %v4503, %v4509
        %v4511 = vcombine.low %v3347, %v3351
        %v4513 = vunpack.c.l.s4 1983009808
        %v4514 = vunpack.c.0.s8 %v4513
        %v4515 = vlaneseq
        %v4516 = vshrl.u32 %v4515, 7
        %v4517 = vsub.s32 %v4514, %v4516
        %v4518 = vrot.slane %v4511, %v4517
        %v4519 = vcombine.low %v3353, %v3357
        %v4521 = vunpack.c.l.s4 1983009808
        %v4522 = vunpack.c.0.s8 %v4521
        %v4523 = vlaneseq
        %v4524 = vshrl.u32 %v4523, 7
        %v4525 = vsub.s32 %v4522, %v4524
        %v4526 = vrot.slane %v4519, %v4525
        %v4527 = vcombine.low %v3355, %v3359
        %v4529 = vunpack.c.l.s4 1983009808
        %v4530 = vunpack.c.0.s8 %v4529
        %v4531 = vlaneseq
        %v4532 = vshrl.u32 %v4531, 7
        %v4533 = vsub.s32 %v4530, %v4532
        %v4534 = vrot.slane %v4527, %v4533
        %v4535 = vcombine.low %v4510, %v4518
        %v4537 = vunpack.c.l.s4 1934713408
        %v4538 = vunpack.c.0.s8 %v4537
        %v4539 = vlaneseq
        %v4540 = vshrl.u32 %v4539, 7
        %v4541 = vsub.s32 %v4538, %v4540
        %v4542 = vrot.slane %v4535, %v4541
        %v4543 = vcombine.low %v4526, %v4534
        %v4545 = vunpack.c.l.s4 1934713408
        %v4546 = vunpack.c.0.s8 %v4545
        %v4547 = vlaneseq
        %v4548 = vshrl.u32 %v4547, 7
        %v4549 = vsub.s32 %v4546, %v4548
        %v4550 = vrot.slane %v4543, %v4549
        %v4551 = vcombine.low %v4542, %v4550
        %v4552 = vcombine.low %v3346, %v3350
        %v4554 = vunpack.c.l.s4 1983009808
        %v4555 = vunpack.c.0.s8 %v4554
        %v4556 = vlaneseq
        %v4557 = vshrl.u32 %v4556, 7
        %v4558 = vsub.s32 %v4555, %v4557
        %v4559 = vrot.slane %v4552, %v4558
        %v4560 = vcombine.low %v3348, %v3352
        %v4562 = vunpack.c.l.s4 1983009808
        %v4563 = vunpack.c.0.s8 %v4562
        %v4564 = vlaneseq
        %v4565 = vshrl.u32 %v4564, 7
        %v4566 = vsub.s32 %v4563, %v4565
        %v4567 = vrot.slane %v4560, %v4566
        %v4568 = vcombine.low %v3354, %v3358
        %v4570 = vunpack.c.l.s4 1983009808
        %v4571 = vunpack.c.0.s8 %v4570
        %v4572 = vlaneseq
        %v4573 = vshrl.u32 %v4572, 7
        %v4574 = vsub.s32 %v4571, %v4573
        %v4575 = vrot.slane %v4568, %v4574
        %v4576 = vcombine.low %v3356, %v3360
        %v4578 = vunpack.c.l.s4 1983009808
        %v4579 = vunpack.c.0.s8 %v4578
        %v4580 = vlaneseq
        %v4581 = vshrl.u32 %v4580, 7
        %v4582 = vsub.s32 %v4579, %v4581
        %v4583 = vrot.slane %v4576, %v4582
        %v4584 = vcombine.low %v4559, %v4567
        %v4586 = vunpack.c.l.s4 1934713408
        %v4587 = vunpack.c.0.s8 %v4586
        %v4588 = vlaneseq
        %v4589 = vshrl.u32 %v4588, 7
        %v4590 = vsub.s32 %v4587, %v4589
        %v4591 = vrot.slane %v4584, %v4590
        %v4592 = vcombine.low %v4575, %v4583
        %v4594 = vunpack.c.l.s4 1934713408
        %v4595 = vunpack.c.0.s8 %v4594
        %v4596 = vlaneseq
        %v4597 = vshrl.u32 %v4596, 7
        %v4598 = vsub.s32 %v4595, %v4597
        %v4599 = vrot.slane %v4592, %v4598
        %v4600 = vcombine.low %v4591, %v4599
        %v4601 = vcombine.low %v3361, %v3365
        %v4603 = vunpack.c.l.s4 1983009808
        %v4604 = vunpack.c.0.s8 %v4603
        %v4605 = vlaneseq
        %v4606 = vshrl.u32 %v4605, 7
        %v4607 = vsub.s32 %v4604, %v4606
        %v4608 = vrot.slane %v4601, %v4607
        %v4609 = vcombine.low %v3363, %v3367
        %v4611 = vunpack.c.l.s4 1983009808
        %v4612 = vunpack.c.0.s8 %v4611
        %v4613 = vlaneseq
        %v4614 = vshrl.u32 %v4613, 7
        %v4615 = vsub.s32 %v4612, %v4614
        %v4616 = vrot.slane %v4609, %v4615
        %v4617 = vcombine.low %v3369, %v3373
        %v4619 = vunpack.c.l.s4 1983009808
        %v4620 = vunpack.c.0.s8 %v4619
        %v4621 = vlaneseq
        %v4622 = vshrl.u32 %v4621, 7
        %v4623 = vsub.s32 %v4620, %v4622
        %v4624 = vrot.slane %v4617, %v4623
        %v4625 = vcombine.low %v3371, %v3375
        %v4627 = vunpack.c.l.s4 1983009808
        %v4628 = vunpack.c.0.s8 %v4627
        %v4629 = vlaneseq
        %v4630 = vshrl.u32 %v4629, 7
        %v4631 = vsub.s32 %v4628, %v4630
        %v4632 = vrot.slane %v4625, %v4631
        %v4633 = vcombine.low %v4608, %v4616
        %v4635 = vunpack.c.l.s4 1934713408
        %v4636 = vunpack.c.0.s8 %v4635
        %v4637 = vlaneseq
        %v4638 = vshrl.u32 %v4637, 7
        %v4639 = vsub.s32 %v4636, %v4638
        %v4640 = vrot.slane %v4633, %v4639
        %v4641 = vcombine.low %v4624, %v4632
        %v4643 = vunpack.c.l.s4 1934713408
        %v4644 = vunpack.c.0.s8 %v4643
        %v4645 = vlaneseq
        %v4646 = vshrl.u32 %v4645, 7
        %v4647 = vsub.s32 %v4644, %v4646
        %v4648 = vrot.slane %v4641, %v4647
        %v4649 = vcombine.low %v4640, %v4648
        %v4650 = vcombine.low %v3362, %v3366
        %v4652 = vunpack.c.l.s4 1983009808
        %v4653 = vunpack.c.0.s8 %v4652
        %v4654 = vlaneseq
        %v4655 = vshrl.u32 %v4654, 7
        %v4656 = vsub.s32 %v4653, %v4655
        %v4657 = vrot.slane %v4650, %v4656
        %v4658 = vcombine.low %v3364, %v3368
        %v4660 = vunpack.c.l.s4 1983009808
        %v4661 = vunpack.c.0.s8 %v4660
        %v4662 = vlaneseq
        %v4663 = vshrl.u32 %v4662, 7
        %v4664 = vsub.s32 %v4661, %v4663
        %v4665 = vrot.slane %v4658, %v4664
        %v4666 = vcombine.low %v3370, %v3374
        %v4668 = vunpack.c.l.s4 1983009808
        %v4669 = vunpack.c.0.s8 %v4668
        %v4670 = vlaneseq
        %v4671 = vshrl.u32 %v4670, 7
        %v4672 = vsub.s32 %v4669, %v4671
        %v4673 = vrot.slane %v4666, %v4672
        %v4674 = vcombine.low %v3372, %v3376
        %v4676 = vunpack.c.l.s4 1983009808
        %v4677 = vunpack.c.0.s8 %v4676
        %v4678 = vlaneseq
        %v4679 = vshrl.u32 %v4678, 7
        %v4680 = vsub.s32 %v4677, %v4679
        %v4681 = vrot.slane %v4674, %v4680
        %v4682 = vcombine.low %v4657, %v4665
        %v4684 = vunpack.c.l.s4 1934713408
        %v4685 = vunpack.c.0.s8 %v4684
        %v4686 = vlaneseq
        %v4687 = vshrl.u32 %v4686, 7
        %v4688 = vsub.s32 %v4685, %v4687
        %v4689 = vrot.slane %v4682, %v4688
        %v4690 = vcombine.low %v4673, %v4681
        %v4692 = vunpack.c.l.s4 1934713408
        %v4693 = vunpack.c.0.s8 %v4692
        %v4694 = vlaneseq
        %v4695 = vshrl.u32 %v4694, 7
        %v4696 = vsub.s32 %v4693, %v4695
        %v4697 = vrot.slane %v4690, %v4696
        %v4698 = vcombine.low %v4689, %v4697
        %v4699 = vcombine.low %v3377, %v3381
        %v4701 = vunpack.c.l.s4 1983009808
        %v4702 = vunpack.c.0.s8 %v4701
        %v4703 = vlaneseq
        %v4704 = vshrl.u32 %v4703, 7
        %v4705 = vsub.s32 %v4702, %v4704
        %v4706 = vrot.slane %v4699, %v4705
        %v4707 = vcombine.low %v3379, %v3383
        %v4709 = vunpack.c.l.s4 1983009808
        %v4710 = vunpack.c.0.s8 %v4709
        %v4711 = vlaneseq
        %v4712 = vshrl.u32 %v4711, 7
        %v4713 = vsub.s32 %v4710, %v4712
        %v4714 = vrot.slane %v4707, %v4713
        %v4715 = vcombine.low %v3385, %v3389
        %v4717 = vunpack.c.l.s4 1983009808
        %v4718 = vunpack.c.0.s8 %v4717
        %v4719 = vlaneseq
        %v4720 = vshrl.u32 %v4719, 7
        %v4721 = vsub.s32 %v4718, %v4720
        %v4722 = vrot.slane %v4715, %v4721
        %v4723 = vcombine.low %v3387, %v3391
        %v4725 = vunpack.c.l.s4 1983009808
        %v4726 = vunpack.c.0.s8 %v4725
        %v4727 = vlaneseq
        %v4728 = vshrl.u32 %v4727, 7
        %v4729 = vsub.s32 %v4726, %v4728
        %v4730 = vrot.slane %v4723, %v4729
        %v4731 = vcombine.low %v4706, %v4714
        %v4733 = vunpack.c.l.s4 1934713408
        %v4734 = vunpack.c.0.s8 %v4733
        %v4735 = vlaneseq
        %v4736 = vshrl.u32 %v4735, 7
        %v4737 = vsub.s32 %v4734, %v4736
        %v4738 = vrot.slane %v4731, %v4737
        %v4739 = vcombine.low %v4722, %v4730
        %v4741 = vunpack.c.l.s4 1934713408
        %v4742 = vunpack.c.0.s8 %v4741
        %v4743 = vlaneseq
        %v4744 = vshrl.u32 %v4743, 7
        %v4745 = vsub.s32 %v4742, %v4744
        %v4746 = vrot.slane %v4739, %v4745
        %v4747 = vcombine.low %v4738, %v4746
        %v4748 = vcombine.low %v3378, %v3382
        %v4750 = vunpack.c.l.s4 1983009808
        %v4751 = vunpack.c.0.s8 %v4750
        %v4752 = vlaneseq
        %v4753 = vshrl.u32 %v4752, 7
        %v4754 = vsub.s32 %v4751, %v4753
        %v4755 = vrot.slane %v4748, %v4754
        %v4756 = vcombine.low %v3380, %v3384
        %v4758 = vunpack.c.l.s4 1983009808
        %v4759 = vunpack.c.0.s8 %v4758
        %v4760 = vlaneseq
        %v4761 = vshrl.u32 %v4760, 7
        %v4762 = vsub.s32 %v4759, %v4761
        %v4763 = vrot.slane %v4756, %v4762
        %v4764 = vcombine.low %v3386, %v3390
        %v4766 = vunpack.c.l.s4 1983009808
        %v4767 = vunpack.c.0.s8 %v4766
        %v4768 = vlaneseq
        %v4769 = vshrl.u32 %v4768, 7
        %v4770 = vsub.s32 %v4767, %v4769
        %v4771 = vrot.slane %v4764, %v4770
        %v4772 = vcombine.low %v3388, %v3392
        %v4774 = vunpack.c.l.s4 1983009808
        %v4775 = vunpack.c.0.s8 %v4774
        %v4776 = vlaneseq
        %v4777 = vshrl.u32 %v4776, 7
        %v4778 = vsub.s32 %v4775, %v4777
        %v4779 = vrot.slane %v4772, %v4778
        %v4780 = vcombine.low %v4755, %v4763
        %v4782 = vunpack.c.l.s4 1934713408
        %v4783 = vunpack.c.0.s8 %v4782
        %v4784 = vlaneseq
        %v4785 = vshrl.u32 %v4784, 7
        %v4786 = vsub.s32 %v4783, %v4785
        %v4787 = vrot.slane %v4780, %v4786
        %v4788 = vcombine.low %v4771, %v4779
        %v4790 = vunpack.c.l.s4 1934713408
        %v4791 = vunpack.c.0.s8 %v4790
        %v4792 = vlaneseq
        %v4793 = vshrl.u32 %v4792, 7
        %v4794 = vsub.s32 %v4791, %v4793
        %v4795 = vrot.slane %v4788, %v4794
        %v4796 = vcombine.low %v4787, %v4795
        %v4797 = vcombine.low %v3393, %v3397
        %v4799 = vunpack.c.l.s4 1983009808
        %v4800 = vunpack.c.0.s8 %v4799
        %v4801 = vlaneseq
        %v4802 = vshrl.u32 %v4801, 7
        %v4803 = vsub.s32 %v4800, %v4802
        %v4804 = vrot.slane %v4797, %v4803
        %v4805 = vcombine.low %v3395, %v3399
        %v4807 = vunpack.c.l.s4 1983009808
        %v4808 = vunpack.c.0.s8 %v4807
        %v4809 = vlaneseq
        %v4810 = vshrl.u32 %v4809, 7
        %v4811 = vsub.s32 %v4808, %v4810
        %v4812 = vrot.slane %v4805, %v4811
        %v4813 = vcombine.low %v3401, %v3405
        %v4815 = vunpack.c.l.s4 1983009808
        %v4816 = vunpack.c.0.s8 %v4815
        %v4817 = vlaneseq
        %v4818 = vshrl.u32 %v4817, 7
        %v4819 = vsub.s32 %v4816, %v4818
        %v4820 = vrot.slane %v4813, %v4819
        %v4821 = vcombine.low %v3403, %v3407
        %v4823 = vunpack.c.l.s4 1983009808
        %v4824 = vunpack.c.0.s8 %v4823
        %v4825 = vlaneseq
        %v4826 = vshrl.u32 %v4825, 7
        %v4827 = vsub.s32 %v4824, %v4826
        %v4828 = vrot.slane %v4821, %v4827
        %v4829 = vcombine.low %v4804, %v4812
        %v4831 = vunpack.c.l.s4 1934713408
        %v4832 = vunpack.c.0.s8 %v4831
        %v4833 = vlaneseq
        %v4834 = vshrl.u32 %v4833, 7
        %v4835 = vsub.s32 %v4832, %v4834
        %v4836 = vrot.slane %v4829, %v4835
        %v4837 = vcombine.low %v4820, %v4828
        %v4839 = vunpack.c.l.s4 1934713408
        %v4840 = vunpack.c.0.s8 %v4839
        %v4841 = vlaneseq
        %v4842 = vshrl.u32 %v4841, 7
        %v4843 = vsub.s32 %v4840, %v4842
        %v4844 = vrot.slane %v4837, %v4843
        %v4845 = vcombine.low %v4836, %v4844
        %v4846 = vcombine.low %v3394, %v3398
        %v4848 = vunpack.c.l.s4 1983009808
        %v4849 = vunpack.c.0.s8 %v4848
        %v4850 = vlaneseq
        %v4851 = vshrl.u32 %v4850, 7
        %v4852 = vsub.s32 %v4849, %v4851
        %v4853 = vrot.slane %v4846, %v4852
        %v4854 = vcombine.low %v3396, %v3400
        %v4856 = vunpack.c.l.s4 1983009808
        %v4857 = vunpack.c.0.s8 %v4856
        %v4858 = vlaneseq
        %v4859 = vshrl.u32 %v4858, 7
        %v4860 = vsub.s32 %v4857, %v4859
        %v4861 = vrot.slane %v4854, %v4860
        %v4862 = vcombine.low %v3402, %v3406
        %v4864 = vunpack.c.l.s4 1983009808
        %v4865 = vunpack.c.0.s8 %v4864
        %v4866 = vlaneseq
        %v4867 = vshrl.u32 %v4866, 7
        %v4868 = vsub.s32 %v4865, %v4867
        %v4869 = vrot.slane %v4862, %v4868
        %v4870 = vcombine.low %v3404, %v3408
        %v4872 = vunpack.c.l.s4 1983009808
        %v4873 = vunpack.c.0.s8 %v4872
        %v4874 = vlaneseq
        %v4875 = vshrl.u32 %v4874, 7
        %v4876 = vsub.s32 %v4873, %v4875
        %v4877 = vrot.slane %v4870, %v4876
        %v4878 = vcombine.low %v4853, %v4861
        %v4880 = vunpack.c.l.s4 1934713408
        %v4881 = vunpack.c.0.s8 %v4880
        %v4882 = vlaneseq
        %v4883 = vshrl.u32 %v4882, 7
        %v4884 = vsub.s32 %v4881, %v4883
        %v4885 = vrot.slane %v4878, %v4884
        %v4886 = vcombine.low %v4869, %v4877
        %v4888 = vunpack.c.l.s4 1934713408
        %v4889 = vunpack.c.0.s8 %v4888
        %v4890 = vlaneseq
        %v4891 = vshrl.u32 %v4890, 7
        %v4892 = vsub.s32 %v4889, %v4891
        %v4893 = vrot.slane %v4886, %v4892
        %v4894 = vcombine.low %v4885, %v4893
        %v4895 = vcombine.low %v3409, %v3413
        %v4897 = vunpack.c.l.s4 1983009808
        %v4898 = vunpack.c.0.s8 %v4897
        %v4899 = vlaneseq
        %v4900 = vshrl.u32 %v4899, 7
        %v4901 = vsub.s32 %v4898, %v4900
        %v4902 = vrot.slane %v4895, %v4901
        %v4903 = vcombine.low %v3411, %v3415
        %v4905 = vunpack.c.l.s4 1983009808
        %v4906 = vunpack.c.0.s8 %v4905
        %v4907 = vlaneseq
        %v4908 = vshrl.u32 %v4907, 7
        %v4909 = vsub.s32 %v4906, %v4908
        %v4910 = vrot.slane %v4903, %v4909
        %v4911 = vcombine.low %v3417, %v3421
        %v4913 = vunpack.c.l.s4 1983009808
        %v4914 = vunpack.c.0.s8 %v4913
        %v4915 = vlaneseq
        %v4916 = vshrl.u32 %v4915, 7
        %v4917 = vsub.s32 %v4914, %v4916
        %v4918 = vrot.slane %v4911, %v4917
        %v4919 = vcombine.low %v3419, %v3423
        %v4921 = vunpack.c.l.s4 1983009808
        %v4922 = vunpack.c.0.s8 %v4921
        %v4923 = vlaneseq
        %v4924 = vshrl.u32 %v4923, 7
        %v4925 = vsub.s32 %v4922, %v4924
        %v4926 = vrot.slane %v4919, %v4925
        %v4927 = vcombine.low %v4902, %v4910
        %v4929 = vunpack.c.l.s4 1934713408
        %v4930 = vunpack.c.0.s8 %v4929
        %v4931 = vlaneseq
        %v4932 = vshrl.u32 %v4931, 7
        %v4933 = vsub.s32 %v4930, %v4932
        %v4934 = vrot.slane %v4927, %v4933
        %v4935 = vcombine.low %v4918, %v4926
        %v4937 = vunpack.c.l.s4 1934713408
        %v4938 = vunpack.c.0.s8 %v4937
        %v4939 = vlaneseq
        %v4940 = vshrl.u32 %v4939, 7
        %v4941 = vsub.s32 %v4938, %v4940
        %v4942 = vrot.slane %v4935, %v4941
        %v4943 = vcombine.low %v4934, %v4942
        %v4944 = vcombine.low %v3410, %v3414
        %v4946 = vunpack.c.l.s4 1983009808
        %v4947 = vunpack.c.0.s8 %v4946
        %v4948 = vlaneseq
        %v4949 = vshrl.u32 %v4948, 7
        %v4950 = vsub.s32 %v4947, %v4949
        %v4951 = vrot.slane %v4944, %v4950
        %v4952 = vcombine.low %v3412, %v3416
        %v4954 = vunpack.c.l.s4 1983009808
        %v4955 = vunpack.c.0.s8 %v4954
        %v4956 = vlaneseq
        %v4957 = vshrl.u32 %v4956, 7
        %v4958 = vsub.s32 %v4955, %v4957
        %v4959 = vrot.slane %v4952, %v4958
        %v4960 = vcombine.low %v3418, %v3422
        %v4962 = vunpack.c.l.s4 1983009808
        %v4963 = vunpack.c.0.s8 %v4962
        %v4964 = vlaneseq
        %v4965 = vshrl.u32 %v4964, 7
        %v4966 = vsub.s32 %v4963, %v4965
        %v4967 = vrot.slane %v4960, %v4966
        %v4968 = vcombine.low %v3420, %v3424
        %v4970 = vunpack.c.l.s4 1983009808
        %v4971 = vunpack.c.0.s8 %v4970
        %v4972 = vlaneseq
        %v4973 = vshrl.u32 %v4972, 7
        %v4974 = vsub.s32 %v4971, %v4973
        %v4975 = vrot.slane %v4968, %v4974
        %v4976 = vcombine.low %v4951, %v4959
        %v4978 = vunpack.c.l.s4 1934713408
        %v4979 = vunpack.c.0.s8 %v4978
        %v4980 = vlaneseq
        %v4981 = vshrl.u32 %v4980, 7
        %v4982 = vsub.s32 %v4979, %v4981
        %v4983 = vrot.slane %v4976, %v4982
        %v4984 = vcombine.low %v4967, %v4975
        %v4986 = vunpack.c.l.s4 1934713408
        %v4987 = vunpack.c.0.s8 %v4986
        %v4988 = vlaneseq
        %v4989 = vshrl.u32 %v4988, 7
        %v4990 = vsub.s32 %v4987, %v4989
        %v4991 = vrot.slane %v4984, %v4990
        %v4992 = vcombine.low %v4983, %v4991
        %v4995 = vpack.i.b16 %v3522, %v3473
        %v4997 = vshrl.u32 %v3473, 16
        %v4998 = vshrl.u32 %v3522, 16
        %v4999 = vpack.i.b16 %v4998, %v4997
        %v5003 = vpack.i.b16 %v3620, %v3571
        %v5005 = vshrl.u32 %v3571, 16
        %v5006 = vshrl.u32 %v3620, 16
        %v5007 = vpack.i.b16 %v5006, %v5005
        %v5011 = vpack.i.b16 %v3718, %v3669
        %v5013 = vshrl.u32 %v3669, 16
        %v5014 = vshrl.u32 %v3718, 16
        %v5015 = vpack.i.b16 %v5014, %v5013
        %v5019 = vpack.i.b16 %v3816, %v3767
        %v5021 = vshrl.u32 %v3767, 16
        %v5022 = vshrl.u32 %v3816, 16
        %v5023 = vpack.i.b16 %v5022, %v5021
        %v5027 = vpack.i.b16 %v3914, %v3865
        %v5029 = vshrl.u32 %v3865, 16
        %v5030 = vshrl.u32 %v3914, 16
        %v5031 = vpack.i.b16 %v5030, %v5029
        %v5035 = vpack.i.b16 %v4012, %v3963
        %v5037 = vshrl.u32 %v3963, 16
        %v5038 = vshrl.u32 %v4012, 16
        %v5039 = vpack.i.b16 %v5038, %v5037
        %v5043 = vpack.i.b16 %v4110, %v4061
        %v5045 = vshrl.u32 %v4061, 16
        %v5046 = vshrl.u32 %v4110, 16
        %v5047 = vpack.i.b16 %v5046, %v5045
        %v5051 = vpack.i.b16 %v4208, %v4159
        %v5053 = vshrl.u32 %v4159, 16
        %v5054 = vshrl.u32 %v4208, 16
        %v5055 = vpack.i.b16 %v5054, %v5053
        %v5059 = vpack.i.b16 %v4306, %v4257
        %v5061 = vshrl.u32 %v4257, 16
        %v5062 = vshrl.u32 %v4306, 16
        %v5063 = vpack.i.b16 %v5062, %v5061
        %v5067 = vpack.i.b16 %v4404, %v4355
        %v5069 = vshrl.u32 %v4355, 16
        %v5070 = vshrl.u32 %v4404, 16
        %v5071 = vpack.i.b16 %v5070, %v5069
        %v5075 = vpack.i.b16 %v4502, %v4453
        %v5077 = vshrl.u32 %v4453, 16
        %v5078 = vshrl.u32 %v4502, 16
        %v5079 = vpack.i.b16 %v5078, %v5077
        %v5083 = vpack.i.b16 %v4600, %v4551
        %v5085 = vshrl.u32 %v4551, 16
        %v5086 = vshrl.u32 %v4600, 16
        %v5087 = vpack.i.b16 %v5086, %v5085
        %v5091 = vpack.i.b16 %v4698, %v4649
        %v5093 = vshrl.u32 %v4649, 16
        %v5094 = vshrl.u32 %v4698, 16
        %v5095 = vpack.i.b16 %v5094, %v5093
        %v5099 = vpack.i.b16 %v4796, %v4747
        %v5101 = vshrl.u32 %v4747, 16
        %v5102 = vshrl.u32 %v4796, 16
        %v5103 = vpack.i.b16 %v5102, %v5101
        %v5107 = vpack.i.b16 %v4894, %v4845
        %v5109 = vshrl.u32 %v4845, 16
        %v5110 = vshrl.u32 %v4894, 16
        %v5111 = vpack.i.b16 %v5110, %v5109
        %v5115 = vpack.i.b16 %v4992, %v4943
        %v5117 = vshrl.u32 %v4943, 16
        %v5118 = vshrl.u32 %v4992, 16
        %v5119 = vpack.i.b16 %v5118, %v5117
        %v5121 = vld [vmem:[%s449] sm:$0xf]
        %v5122 = vld [vmem:[%s449 + $0x4] sm:$0xf]
        %5123 = vmatprep.subr.bf16.mxu0 0
        %5124 = vmatpush1.bf16.xpose.msra.mxu0 %v5121
        %5125 = vmatprep.subr.bf16.mxu0 0
        %5126 = vmatpush1.bf16.xpose.msra.mxu0 0
        %5127 = vmatprep.subr.bf16.mxu0 0
        %5128 = vmatpush1.bf16.xpose.msra.mxu0 0
        %5129 = vmatprep.subr.bf16.mxu0 0
        %5130 = vmatpush1.bf16.xpose.msra.mxu0 0
        %5131 = vmatprep.subr.bf16.mxu0 0
        %5132 = vmatpush1.bf16.xpose.msra.mxu0 0
        %5133 = vmatprep.subr.bf16.mxu0 0
        %5134 = vmatpush1.bf16.xpose.msra.mxu0 0
        %5135 = vmatprep.subr.bf16.mxu0 0
        %5136 = vmatpush1.bf16.xpose.msra.mxu0 0
        %5137 = vmatprep.subr.bf16.mxu0 0
        %5138 = vmatpush1.bf16.xpose.msra.mxu0 0
        %5139 = vmatprep.subr.bf16.mxu0 0
        %5140 = vmatpush1.bf16.xpose.msra.mxu0 0
        %5141 = vmatprep.subr.bf16.mxu0 0
        %5142 = vmatpush1.bf16.xpose.msra.mxu0 0
        %5143 = vmatprep.subr.bf16.mxu0 0
        %5144 = vmatpush1.bf16.xpose.msra.mxu0 0
        %5145 = vmatprep.subr.bf16.mxu0 0
        %5146 = vmatpush1.bf16.xpose.msra.mxu0 0
        %5147 = vmatprep.subr.bf16.mxu0 0
        %5148 = vmatpush1.bf16.xpose.msra.mxu0 0
        %5149 = vmatprep.subr.bf16.mxu0 0
        %5150 = vmatpush1.bf16.xpose.msra.mxu0 0
        %5151 = vmatprep.subr.bf16.mxu0 0
        %5152 = vmatpush1.bf16.xpose.msra.mxu0 0
        %5153 = vmatprep.subr.bf16.mxu0 0
        %5154 = vmatpush1.bf16.xpose.msra.mxu0 0
        %5155 = vmatprep.mubr.bf16.mxu0 0
        %5156 = vmatmul.mubr.bf16.gmra.mrb[0].mxu0 %v4995
        %v5157 = vpop.f32.mrb[0].mxu0
        %v5158 = vadd.f32 0.0, %v5157
        %v5159 = vpop.f32.mrb[0].mxu0
        %v5160 = vpop.f32.mrb[0].mxu0
        %v5161 = vadd.f32 0.0, %v5160
        %v5162 = vpop.f32.mrb[0].mxu0
        %5163 = vmatprep.mubr.bf16.mxu0 0
        %5164 = vmatmul.mubr.bf16.gmra.mrb[0].mxu0 %v5003
        %v5165 = vpop.f32.mrb[0].mxu0
        %v5166 = vadd.f32 0.0, %v5165
        %v5167 = vpop.f32.mrb[0].mxu0
        %v5168 = vpop.f32.mrb[0].mxu0
        %v5169 = vadd.f32 0.0, %v5168
        %v5170 = vpop.f32.mrb[0].mxu0
        %5171 = vmatprep.mubr.bf16.mxu0 0
        %5172 = vmatmul.mubr.bf16.gmra.mrb[0].mxu0 %v5011
        %v5173 = vpop.f32.mrb[0].mxu0
        %v5174 = vadd.f32 0.0, %v5173
        %v5175 = vpop.f32.mrb[0].mxu0
        %v5176 = vpop.f32.mrb[0].mxu0
        %v5177 = vadd.f32 0.0, %v5176
        %v5178 = vpop.f32.mrb[0].mxu0
        %5179 = vmatprep.mubr.bf16.mxu0 0
        %5180 = vmatmul.mubr.bf16.gmra.mrb[0].mxu0 %v5019
        %v5181 = vpop.f32.mrb[0].mxu0
        %v5182 = vadd.f32 0.0, %v5181
        %v5183 = vpop.f32.mrb[0].mxu0
        %v5184 = vpop.f32.mrb[0].mxu0
        %v5185 = vadd.f32 0.0, %v5184
        %v5186 = vpop.f32.mrb[0].mxu0
        %5187 = vmatprep.mubr.bf16.mxu0 0
        %5188 = vmatmul.mubr.bf16.gmra.mrb[0].mxu0 %v5027
        %v5189 = vpop.f32.mrb[0].mxu0
        %v5190 = vadd.f32 0.0, %v5189
        %v5191 = vpop.f32.mrb[0].mxu0
        %v5192 = vpop.f32.mrb[0].mxu0
        %v5193 = vadd.f32 0.0, %v5192
        %v5194 = vpop.f32.mrb[0].mxu0
        %5195 = vmatprep.mubr.bf16.mxu0 0
        %5196 = vmatmul.mubr.bf16.gmra.mrb[0].mxu0 %v5035
        %v5197 = vpop.f32.mrb[0].mxu0
        %v5198 = vadd.f32 0.0, %v5197
        %v5199 = vpop.f32.mrb[0].mxu0
        %v5200 = vpop.f32.mrb[0].mxu0
        %v5201 = vadd.f32 0.0, %v5200
        %v5202 = vpop.f32.mrb[0].mxu0
        %5203 = vmatprep.mubr.bf16.mxu0 0
        %5204 = vmatmul.mubr.bf16.gmra.mrb[0].mxu0 %v5043
        %v5205 = vpop.f32.mrb[0].mxu0
        %v5206 = vadd.f32 0.0, %v5205
        %v5207 = vpop.f32.mrb[0].mxu0
        %v5208 = vpop.f32.mrb[0].mxu0
        %v5209 = vadd.f32 0.0, %v5208
        %v5210 = vpop.f32.mrb[0].mxu0
        %5211 = vmatprep.mubr.bf16.mxu0 0
        %5212 = vmatmul.mubr.bf16.gmra.mrb[0].mxu0 %v5051
        %v5213 = vpop.f32.mrb[0].mxu0
        %v5214 = vadd.f32 0.0, %v5213
        %v5215 = vpop.f32.mrb[0].mxu0
        %v5216 = vpop.f32.mrb[0].mxu0
        %v5217 = vadd.f32 0.0, %v5216
        %v5218 = vpop.f32.mrb[0].mxu0
        %5219 = vmatprep.mubr.bf16.mxu0 0
        %5220 = vmatmul.mubr.bf16.gmra.mrb[0].mxu0 %v5059
        %v5221 = vpop.f32.mrb[0].mxu0
        %v5222 = vadd.f32 0.0, %v5221
        %v5223 = vpop.f32.mrb[0].mxu0
        %v5224 = vpop.f32.mrb[0].mxu0
        %v5225 = vadd.f32 0.0, %v5224
        %v5226 = vpop.f32.mrb[0].mxu0
        %5227 = vmatprep.mubr.bf16.mxu0 0
        %5228 = vmatmul.mubr.bf16.gmra.mrb[0].mxu0 %v5067
        %v5229 = vpop.f32.mrb[0].mxu0
        %v5230 = vadd.f32 0.0, %v5229
        %v5231 = vpop.f32.mrb[0].mxu0
        %v5232 = vpop.f32.mrb[0].mxu0
        %v5233 = vadd.f32 0.0, %v5232
        %v5234 = vpop.f32.mrb[0].mxu0
        %5235 = vmatprep.mubr.bf16.mxu0 0
        %5236 = vmatmul.mubr.bf16.gmra.mrb[0].mxu0 %v5075
        %v5237 = vpop.f32.mrb[0].mxu0
        %v5238 = vadd.f32 0.0, %v5237
        %v5239 = vpop.f32.mrb[0].mxu0
        %v5240 = vpop.f32.mrb[0].mxu0
        %v5241 = vadd.f32 0.0, %v5240
        %v5242 = vpop.f32.mrb[0].mxu0
        %5243 = vmatprep.mubr.bf16.mxu0 0
        %5244 = vmatmul.mubr.bf16.gmra.mrb[0].mxu0 %v5083
        %v5245 = vpop.f32.mrb[0].mxu0
        %v5246 = vadd.f32 0.0, %v5245
        %v5247 = vpop.f32.mrb[0].mxu0
        %v5248 = vpop.f32.mrb[0].mxu0
        %v5249 = vadd.f32 0.0, %v5248
        %v5250 = vpop.f32.mrb[0].mxu0
        %5251 = vmatprep.mubr.bf16.mxu0 0
        %5252 = vmatmul.mubr.bf16.gmra.mrb[0].mxu0 %v5091
        %v5253 = vpop.f32.mrb[0].mxu0
        %v5254 = vadd.f32 0.0, %v5253
        %v5255 = vpop.f32.mrb[0].mxu0
        %v5256 = vpop.f32.mrb[0].mxu0
        %v5257 = vadd.f32 0.0, %v5256
        %v5258 = vpop.f32.mrb[0].mxu0
        %5259 = vmatprep.mubr.bf16.mxu0 0
        %5260 = vmatmul.mubr.bf16.gmra.mrb[0].mxu0 %v5099
        %v5261 = vpop.f32.mrb[0].mxu0
        %v5262 = vadd.f32 0.0, %v5261
        %v5263 = vpop.f32.mrb[0].mxu0
        %v5264 = vpop.f32.mrb[0].mxu0
        %v5265 = vadd.f32 0.0, %v5264
        %v5266 = vpop.f32.mrb[0].mxu0
        %5267 = vmatprep.mubr.bf16.mxu0 0
        %5268 = vmatmul.mubr.bf16.gmra.mrb[0].mxu0 %v5107
        %v5269 = vpop.f32.mrb[0].mxu0
        %v5270 = vadd.f32 0.0, %v5269
        %v5271 = vpop.f32.mrb[0].mxu0
        %v5272 = vpop.f32.mrb[0].mxu0
        %v5273 = vadd.f32 0.0, %v5272
        %v5274 = vpop.f32.mrb[0].mxu0
        %5275 = vmatprep.mubr.bf16.mxu0 0
        %5276 = vmatmul.mubr.bf16.gmra.mrb[0].mxu0 %v5115
        %v5277 = vpop.f32.mrb[0].mxu0
        %v5278 = vadd.f32 0.0, %v5277
        %v5279 = vpop.f32.mrb[0].mxu0
        %v5280 = vpop.f32.mrb[0].mxu0
        %v5281 = vadd.f32 0.0, %v5280
        %v5282 = vpop.f32.mrb[0].mxu0
        %5283 = vdwg.mxu0
        %5284 = vmatprep.subr.bf16.mxu0 0
        %5285 = vmatpush1.bf16.xpose.msra.mxu0 %v5122
        %5286 = vmatprep.subr.bf16.mxu0 0
        %5287 = vmatpush1.bf16.xpose.msra.mxu0 0
        %5288 = vmatprep.subr.bf16.mxu0 0
        %5289 = vmatpush1.bf16.xpose.msra.mxu0 0
        %5290 = vmatprep.subr.bf16.mxu0 0
        %5291 = vmatpush1.bf16.xpose.msra.mxu0 0
        %5292 = vmatprep.subr.bf16.mxu0 0
        %5293 = vmatpush1.bf16.xpose.msra.mxu0 0
        %5294 = vmatprep.subr.bf16.mxu0 0
        %5295 = vmatpush1.bf16.xpose.msra.mxu0 0
        %5296 = vmatprep.subr.bf16.mxu0 0
        %5297 = vmatpush1.bf16.xpose.msra.mxu0 0
        %5298 = vmatprep.subr.bf16.mxu0 0
        %5299 = vmatpush1.bf16.xpose.msra.mxu0 0
        %5300 = vmatprep.subr.bf16.mxu0 0
        %5301 = vmatpush1.bf16.xpose.msra.mxu0 0
        %5302 = vmatprep.subr.bf16.mxu0 0
        %5303 = vmatpush1.bf16.xpose.msra.mxu0 0
        %5304 = vmatprep.subr.bf16.mxu0 0
        %5305 = vmatpush1.bf16.xpose.msra.mxu0 0
        %5306 = vmatprep.subr.bf16.mxu0 0
        %5307 = vmatpush1.bf16.xpose.msra.mxu0 0
        %5308 = vmatprep.subr.bf16.mxu0 0
        %5309 = vmatpush1.bf16.xpose.msra.mxu0 0
        %5310 = vmatprep.subr.bf16.mxu0 0
        %5311 = vmatpush1.bf16.xpose.msra.mxu0 0
        %5312 = vmatprep.subr.bf16.mxu0 0
        %5313 = vmatpush1.bf16.xpose.msra.mxu0 0
        %5314 = vmatprep.subr.bf16.mxu0 0
        %5315 = vmatpush1.bf16.xpose.msra.mxu0 0
        %5316 = vmatprep.mubr.bf16.mxu0 0
        %5317 = vmatmul.mubr.bf16.gmra.mrb[0].mxu0 %v4999
        %v5318 = vpop.f32.mrb[0].mxu0
        %v5319 = vadd.f32 0.0, %v5318
        %v5320 = vpop.f32.mrb[0].mxu0
        %v5321 = vpop.f32.mrb[0].mxu0
        %v5322 = vadd.f32 0.0, %v5321
        %v5323 = vpop.f32.mrb[0].mxu0
        %5324 = vmatprep.mubr.bf16.mxu0 0
        %5325 = vmatmul.mubr.bf16.gmra.mrb[0].mxu0 %v5007
        %v5326 = vpop.f32.mrb[0].mxu0
        %v5327 = vadd.f32 0.0, %v5326
        %v5328 = vpop.f32.mrb[0].mxu0
        %v5329 = vpop.f32.mrb[0].mxu0
        %v5330 = vadd.f32 0.0, %v5329
        %v5331 = vpop.f32.mrb[0].mxu0
        %5332 = vmatprep.mubr.bf16.mxu0 0
        %5333 = vmatmul.mubr.bf16.gmra.mrb[0].mxu0 %v5015
        %v5334 = vpop.f32.mrb[0].mxu0
        %v5335 = vadd.f32 0.0, %v5334
        %v5336 = vpop.f32.mrb[0].mxu0
        %v5337 = vpop.f32.mrb[0].mxu0
        %v5338 = vadd.f32 0.0, %v5337
        %v5339 = vpop.f32.mrb[0].mxu0
        %5340 = vmatprep.mubr.bf16.mxu0 0
        %5341 = vmatmul.mubr.bf16.gmra.mrb[0].mxu0 %v5023
        %v5342 = vpop.f32.mrb[0].mxu0
        %v5343 = vadd.f32 0.0, %v5342
        %v5344 = vpop.f32.mrb[0].mxu0
        %v5345 = vpop.f32.mrb[0].mxu0
        %v5346 = vadd.f32 0.0, %v5345
        %v5347 = vpop.f32.mrb[0].mxu0
        %5348 = vmatprep.mubr.bf16.mxu0 0
        %5349 = vmatmul.mubr.bf16.gmra.mrb[0].mxu0 %v5031
        %v5350 = vpop.f32.mrb[0].mxu0
        %v5351 = vadd.f32 0.0, %v5350
        %v5352 = vpop.f32.mrb[0].mxu0
        %v5353 = vpop.f32.mrb[0].mxu0
        %v5354 = vadd.f32 0.0, %v5353
        %v5355 = vpop.f32.mrb[0].mxu0
        %5356 = vmatprep.mubr.bf16.mxu0 0
        %5357 = vmatmul.mubr.bf16.gmra.mrb[0].mxu0 %v5039
        %v5358 = vpop.f32.mrb[0].mxu0
        %v5359 = vadd.f32 0.0, %v5358
        %v5360 = vpop.f32.mrb[0].mxu0
        %v5361 = vpop.f32.mrb[0].mxu0
        %v5362 = vadd.f32 0.0, %v5361
        %v5363 = vpop.f32.mrb[0].mxu0
        %5364 = vmatprep.mubr.bf16.mxu0 0
        %5365 = vmatmul.mubr.bf16.gmra.mrb[0].mxu0 %v5047
        %v5366 = vpop.f32.mrb[0].mxu0
        %v5367 = vadd.f32 0.0, %v5366
        %v5368 = vpop.f32.mrb[0].mxu0
        %v5369 = vpop.f32.mrb[0].mxu0
        %v5370 = vadd.f32 0.0, %v5369
        %v5371 = vpop.f32.mrb[0].mxu0
        %5372 = vmatprep.mubr.bf16.mxu0 0
        %5373 = vmatmul.mubr.bf16.gmra.mrb[0].mxu0 %v5055
        %v5374 = vpop.f32.mrb[0].mxu0
        %v5375 = vadd.f32 0.0, %v5374
        %v5376 = vpop.f32.mrb[0].mxu0
        %v5377 = vpop.f32.mrb[0].mxu0
        %v5378 = vadd.f32 0.0, %v5377
        %v5379 = vpop.f32.mrb[0].mxu0
        %5380 = vmatprep.mubr.bf16.mxu0 0
        %5381 = vmatmul.mubr.bf16.gmra.mrb[0].mxu0 %v5063
        %v5382 = vpop.f32.mrb[0].mxu0
        %v5383 = vadd.f32 0.0, %v5382
        %v5384 = vpop.f32.mrb[0].mxu0
        %v5385 = vpop.f32.mrb[0].mxu0
        %v5386 = vadd.f32 0.0, %v5385
        %v5387 = vpop.f32.mrb[0].mxu0
        %5388 = vmatprep.mubr.bf16.mxu0 0
        %5389 = vmatmul.mubr.bf16.gmra.mrb[0].mxu0 %v5071
        %v5390 = vpop.f32.mrb[0].mxu0
        %v5391 = vadd.f32 0.0, %v5390
        %v5392 = vpop.f32.mrb[0].mxu0
        %v5393 = vpop.f32.mrb[0].mxu0
        %v5394 = vadd.f32 0.0, %v5393
        %v5395 = vpop.f32.mrb[0].mxu0
        %5396 = vmatprep.mubr.bf16.mxu0 0
        %5397 = vmatmul.mubr.bf16.gmra.mrb[0].mxu0 %v5079
        %v5398 = vpop.f32.mrb[0].mxu0
        %v5399 = vadd.f32 0.0, %v5398
        %v5400 = vpop.f32.mrb[0].mxu0
        %v5401 = vpop.f32.mrb[0].mxu0
        %v5402 = vadd.f32 0.0, %v5401
        %v5403 = vpop.f32.mrb[0].mxu0
        %5404 = vmatprep.mubr.bf16.mxu0 0
        %5405 = vmatmul.mubr.bf16.gmra.mrb[0].mxu0 %v5087
        %v5406 = vpop.f32.mrb[0].mxu0
        %v5407 = vadd.f32 0.0, %v5406
        %v5408 = vpop.f32.mrb[0].mxu0
        %v5409 = vpop.f32.mrb[0].mxu0
        %v5410 = vadd.f32 0.0, %v5409
        %v5411 = vpop.f32.mrb[0].mxu0
        %5412 = vmatprep.mubr.bf16.mxu0 0
        %5413 = vmatmul.mubr.bf16.gmra.mrb[0].mxu0 %v5095
        %v5414 = vpop.f32.mrb[0].mxu0
        %v5415 = vadd.f32 0.0, %v5414
        %v5416 = vpop.f32.mrb[0].mxu0
        %v5417 = vpop.f32.mrb[0].mxu0
        %v5418 = vadd.f32 0.0, %v5417
        %v5419 = vpop.f32.mrb[0].mxu0
        %5420 = vmatprep.mubr.bf16.mxu0 0
        %5421 = vmatmul.mubr.bf16.gmra.mrb[0].mxu0 %v5103
        %v5422 = vpop.f32.mrb[0].mxu0
        %v5423 = vadd.f32 0.0, %v5422
        %v5424 = vpop.f32.mrb[0].mxu0
        %v5425 = vpop.f32.mrb[0].mxu0
        %v5426 = vadd.f32 0.0, %v5425
        %v5427 = vpop.f32.mrb[0].mxu0
        %5428 = vmatprep.mubr.bf16.mxu0 0
        %5429 = vmatmul.mubr.bf16.gmra.mrb[0].mxu0 %v5111
        %v5430 = vpop.f32.mrb[0].mxu0
        %v5431 = vadd.f32 0.0, %v5430
        %v5432 = vpop.f32.mrb[0].mxu0
        %v5433 = vpop.f32.mrb[0].mxu0
        %v5434 = vadd.f32 0.0, %v5433
        %v5435 = vpop.f32.mrb[0].mxu0
        %5436 = vmatprep.mubr.bf16.mxu0 0
        %5437 = vmatmul.mubr.bf16.gmra.mrb[0].mxu0 %v5119
        %v5438 = vpop.f32.mrb[0].mxu0
        %v5439 = vadd.f32 0.0, %v5438
        %v5440 = vpop.f32.mrb[0].mxu0
        %v5441 = vpop.f32.mrb[0].mxu0
        %v5442 = vadd.f32 0.0, %v5441
        %v5443 = vpop.f32.mrb[0].mxu0
        %5444 = vdwg.mxu0
        %vm5445 = vcmask 64512
        %v5446 = vsel %vm5445, %v5158, -inf
        %5447 = vmax.xlane.f32.xlu0 %v5446
        %v5448 = vpop.xlane.xlu0 %5447
        %v5449 = vsel %vm5445, %v5161, -inf
        %5450 = vmax.xlane.f32.xlu0 %v5449
        %v5451 = vpop.xlane.xlu0 %5450
        %v5452 = vsel %vm5445, %v5166, -inf
        %5453 = vmax.xlane.f32.xlu0 %v5452
        %v5454 = vpop.xlane.xlu0 %5453
        %v5455 = vsel %vm5445, %v5169, -inf
        %5456 = vmax.xlane.f32.xlu0 %v5455
        %v5457 = vpop.xlane.xlu0 %5456
        %v5458 = vsel %vm5445, %v5174, -inf
        %5459 = vmax.xlane.f32.xlu0 %v5458
        %v5460 = vpop.xlane.xlu0 %5459
        %v5461 = vsel %vm5445, %v5177, -inf
        %5462 = vmax.xlane.f32.xlu0 %v5461
        %v5463 = vpop.xlane.xlu0 %5462
        %v5464 = vsel %vm5445, %v5182, -inf
        %5465 = vmax.xlane.f32.xlu0 %v5464
        %v5466 = vpop.xlane.xlu0 %5465
        %v5467 = vsel %vm5445, %v5185, -inf
        %5468 = vmax.xlane.f32.xlu0 %v5467
        %v5469 = vpop.xlane.xlu0 %5468
        %v5470 = vsel %vm5445, %v5190, -inf
        %5471 = vmax.xlane.f32.xlu0 %v5470
        %v5472 = vpop.xlane.xlu0 %5471
        %v5473 = vsel %vm5445, %v5193, -inf
        %5474 = vmax.xlane.f32.xlu0 %v5473
        %v5475 = vpop.xlane.xlu0 %5474
        %v5476 = vsel %vm5445, %v5198, -inf
        %5477 = vmax.xlane.f32.xlu0 %v5476
        %v5478 = vpop.xlane.xlu0 %5477
        %v5479 = vsel %vm5445, %v5201, -inf
        %5480 = vmax.xlane.f32.xlu0 %v5479
        %v5481 = vpop.xlane.xlu0 %5480
        %v5482 = vsel %vm5445, %v5206, -inf
        %5483 = vmax.xlane.f32.xlu0 %v5482
        %v5484 = vpop.xlane.xlu0 %5483
        %v5485 = vsel %vm5445, %v5209, -inf
        %5486 = vmax.xlane.f32.xlu0 %v5485
        %v5487 = vpop.xlane.xlu0 %5486
        %v5488 = vsel %vm5445, %v5214, -inf
        %5489 = vmax.xlane.f32.xlu0 %v5488
        %v5490 = vpop.xlane.xlu0 %5489
        %v5491 = vsel %vm5445, %v5217, -inf
        %5492 = vmax.xlane.f32.xlu0 %v5491
        %v5493 = vpop.xlane.xlu0 %5492
        %v5494 = vsel %vm5445, %v5222, -inf
        %5495 = vmax.xlane.f32.xlu0 %v5494
        %v5496 = vpop.xlane.xlu0 %5495
        %v5497 = vsel %vm5445, %v5225, -inf
        %5498 = vmax.xlane.f32.xlu0 %v5497
        %v5499 = vpop.xlane.xlu0 %5498
        %v5500 = vsel %vm5445, %v5230, -inf
        %5501 = vmax.xlane.f32.xlu0 %v5500
        %v5502 = vpop.xlane.xlu0 %5501
        %v5503 = vsel %vm5445, %v5233, -inf
        %5504 = vmax.xlane.f32.xlu0 %v5503
        %v5505 = vpop.xlane.xlu0 %5504
        %v5506 = vsel %vm5445, %v5238, -inf
        %5507 = vmax.xlane.f32.xlu0 %v5506
        %v5508 = vpop.xlane.xlu0 %5507
        %v5509 = vsel %vm5445, %v5241, -inf
        %5510 = vmax.xlane.f32.xlu0 %v5509
        %v5511 = vpop.xlane.xlu0 %5510
        %v5512 = vsel %vm5445, %v5246, -inf
        %5513 = vmax.xlane.f32.xlu0 %v5512
        %v5514 = vpop.xlane.xlu0 %5513
        %v5515 = vsel %vm5445, %v5249, -inf
        %5516 = vmax.xlane.f32.xlu0 %v5515
        %v5517 = vpop.xlane.xlu0 %5516
        %v5518 = vsel %vm5445, %v5254, -inf
        %5519 = vmax.xlane.f32.xlu0 %v5518
        %v5520 = vpop.xlane.xlu0 %5519
        %v5521 = vsel %vm5445, %v5257, -inf
        %5522 = vmax.xlane.f32.xlu0 %v5521
        %v5523 = vpop.xlane.xlu0 %5522
        %v5524 = vsel %vm5445, %v5262, -inf
        %5525 = vmax.xlane.f32.xlu0 %v5524
        %v5526 = vpop.xlane.xlu0 %5525
        %v5527 = vsel %vm5445, %v5265, -inf
        %5528 = vmax.xlane.f32.xlu0 %v5527
        %v5529 = vpop.xlane.xlu0 %5528
        %v5530 = vsel %vm5445, %v5270, -inf
        %5531 = vmax.xlane.f32.xlu0 %v5530
        %v5532 = vpop.xlane.xlu0 %5531
        %v5533 = vsel %vm5445, %v5273, -inf
        %5534 = vmax.xlane.f32.xlu0 %v5533
        %v5535 = vpop.xlane.xlu0 %5534
        %v5536 = vsel %vm5445, %v5278, -inf
        %5537 = vmax.xlane.f32.xlu0 %v5536
        %v5538 = vpop.xlane.xlu0 %5537
        %v5539 = vsel %vm5445, %v5281, -inf
        %5540 = vmax.xlane.f32.xlu0 %v5539
        %v5541 = vpop.xlane.xlu0 %5540
        %v5542 = vsel %vm5445, %v5319, -inf
        %5543 = vmax.xlane.f32.xlu0 %v5542
        %v5544 = vpop.xlane.xlu0 %5543
        %v5545 = vsel %vm5445, %v5322, -inf
        %5546 = vmax.xlane.f32.xlu0 %v5545
        %v5547 = vpop.xlane.xlu0 %5546
        %v5548 = vsel %vm5445, %v5327, -inf
        %5549 = vmax.xlane.f32.xlu0 %v5548
        %v5550 = vpop.xlane.xlu0 %5549
        %v5551 = vsel %vm5445, %v5330, -inf
        %5552 = vmax.xlane.f32.xlu0 %v5551
        %v5553 = vpop.xlane.xlu0 %5552
        %v5554 = vsel %vm5445, %v5335, -inf
        %5555 = vmax.xlane.f32.xlu0 %v5554
        %v5556 = vpop.xlane.xlu0 %5555
        %v5557 = vsel %vm5445, %v5338, -inf
        %5558 = vmax.xlane.f32.xlu0 %v5557
        %v5559 = vpop.xlane.xlu0 %5558
        %v5560 = vsel %vm5445, %v5343, -inf
        %5561 = vmax.xlane.f32.xlu0 %v5560
        %v5562 = vpop.xlane.xlu0 %5561
        %v5563 = vsel %vm5445, %v5346, -inf
        %5564 = vmax.xlane.f32.xlu0 %v5563
        %v5565 = vpop.xlane.xlu0 %5564
        %v5566 = vsel %vm5445, %v5351, -inf
        %5567 = vmax.xlane.f32.xlu0 %v5566
        %v5568 = vpop.xlane.xlu0 %5567
        %v5569 = vsel %vm5445, %v5354, -inf
        %5570 = vmax.xlane.f32.xlu0 %v5569
        %v5571 = vpop.xlane.xlu0 %5570
        %v5572 = vsel %vm5445, %v5359, -inf
        %5573 = vmax.xlane.f32.xlu0 %v5572
        %v5574 = vpop.xlane.xlu0 %5573
        %v5575 = vsel %vm5445, %v5362, -inf
        %5576 = vmax.xlane.f32.xlu0 %v5575
        %v5577 = vpop.xlane.xlu0 %5576
        %v5578 = vsel %vm5445, %v5367, -inf
        %5579 = vmax.xlane.f32.xlu0 %v5578
        %v5580 = vpop.xlane.xlu0 %5579
        %v5581 = vsel %vm5445, %v5370, -inf
        %5582 = vmax.xlane.f32.xlu0 %v5581
        %v5583 = vpop.xlane.xlu0 %5582
        %v5584 = vsel %vm5445, %v5375, -inf
        %5585 = vmax.xlane.f32.xlu0 %v5584
        %v5586 = vpop.xlane.xlu0 %5585
        %v5587 = vsel %vm5445, %v5378, -inf
        %5588 = vmax.xlane.f32.xlu0 %v5587
        %v5589 = vpop.xlane.xlu0 %5588
        %v5590 = vsel %vm5445, %v5383, -inf
        %5591 = vmax.xlane.f32.xlu0 %v5590
        %v5592 = vpop.xlane.xlu0 %5591
        %v5593 = vsel %vm5445, %v5386, -inf
        %5594 = vmax.xlane.f32.xlu0 %v5593
        %v5595 = vpop.xlane.xlu0 %5594
        %v5596 = vsel %vm5445, %v5391, -inf
        %5597 = vmax.xlane.f32.xlu0 %v5596
        %v5598 = vpop.xlane.xlu0 %5597
        %v5599 = vsel %vm5445, %v5394, -inf
        %5600 = vmax.xlane.f32.xlu0 %v5599
        %v5601 = vpop.xlane.xlu0 %5600
        %v5602 = vsel %vm5445, %v5399, -inf
        %5603 = vmax.xlane.f32.xlu0 %v5602
        %v5604 = vpop.xlane.xlu0 %5603
        %v5605 = vsel %vm5445, %v5402, -inf
        %5606 = vmax.xlane.f32.xlu0 %v5605
        %v5607 = vpop.xlane.xlu0 %5606
        %v5608 = vsel %vm5445, %v5407, -inf
        %5609 = vmax.xlane.f32.xlu0 %v5608
        %v5610 = vpop.xlane.xlu0 %5609
        %v5611 = vsel %vm5445, %v5410, -inf
        %5612 = vmax.xlane.f32.xlu0 %v5611
        %v5613 = vpop.xlane.xlu0 %5612
        %v5614 = vsel %vm5445, %v5415, -inf
        %5615 = vmax.xlane.f32.xlu0 %v5614
        %v5616 = vpop.xlane.xlu0 %5615
        %v5617 = vsel %vm5445, %v5418, -inf
        %5618 = vmax.xlane.f32.xlu0 %v5617
        %v5619 = vpop.xlane.xlu0 %5618
        %v5620 = vsel %vm5445, %v5423, -inf
        %5621 = vmax.xlane.f32.xlu0 %v5620
        %v5622 = vpop.xlane.xlu0 %5621
        %v5623 = vsel %vm5445, %v5426, -inf
        %5624 = vmax.xlane.f32.xlu0 %v5623
        %v5625 = vpop.xlane.xlu0 %5624
        %v5626 = vsel %vm5445, %v5431, -inf
        %5627 = vmax.xlane.f32.xlu0 %v5626
        %v5628 = vpop.xlane.xlu0 %5627
        %v5629 = vsel %vm5445, %v5434, -inf
        %5630 = vmax.xlane.f32.xlu0 %v5629
        %v5631 = vpop.xlane.xlu0 %5630
        %v5632 = vsel %vm5445, %v5439, -inf
        %5633 = vmax.xlane.f32.xlu0 %v5632
        %v5634 = vpop.xlane.xlu0 %5633
        %v5635 = vsel %vm5445, %v5442, -inf
        %5636 = vmax.xlane.f32.xlu0 %v5635
        %v5637 = vpop.xlane.xlu0 %5636
        %v5638 = vsub.f32 %v5158, %v5448
        %v5639 = vsub.f32 %v5161, %v5451
        %v5640 = vsub.f32 %v5166, %v5454
        %v5641 = vsub.f32 %v5169, %v5457
        %v5642 = vsub.f32 %v5174, %v5460
        %v5643 = vsub.f32 %v5177, %v5463
        %v5644 = vsub.f32 %v5182, %v5466
        %v5645 = vsub.f32 %v5185, %v5469
        %v5646 = vsub.f32 %v5190, %v5472
        %v5647 = vsub.f32 %v5193, %v5475
        %v5648 = vsub.f32 %v5198, %v5478
        %v5649 = vsub.f32 %v5201, %v5481
        %v5650 = vsub.f32 %v5206, %v5484
        %v5651 = vsub.f32 %v5209, %v5487
        %v5652 = vsub.f32 %v5214, %v5490
        %v5653 = vsub.f32 %v5217, %v5493
        %v5654 = vsub.f32 %v5222, %v5496
        %v5655 = vsub.f32 %v5225, %v5499
        %v5656 = vsub.f32 %v5230, %v5502
        %v5657 = vsub.f32 %v5233, %v5505
        %v5658 = vsub.f32 %v5238, %v5508
        %v5659 = vsub.f32 %v5241, %v5511
        %v5660 = vsub.f32 %v5246, %v5514
        %v5661 = vsub.f32 %v5249, %v5517
        %v5662 = vsub.f32 %v5254, %v5520
        %v5663 = vsub.f32 %v5257, %v5523
        %v5664 = vsub.f32 %v5262, %v5526
        %v5665 = vsub.f32 %v5265, %v5529
        %v5666 = vsub.f32 %v5270, %v5532
        %v5667 = vsub.f32 %v5273, %v5535
        %v5668 = vsub.f32 %v5278, %v5538
        %v5669 = vsub.f32 %v5281, %v5541
        %v5670 = vsub.f32 %v5319, %v5544
        %v5671 = vsub.f32 %v5322, %v5547
        %v5672 = vsub.f32 %v5327, %v5550
        %v5673 = vsub.f32 %v5330, %v5553
        %v5674 = vsub.f32 %v5335, %v5556
        %v5675 = vsub.f32 %v5338, %v5559
        %v5676 = vsub.f32 %v5343, %v5562
        %v5677 = vsub.f32 %v5346, %v5565
        %v5678 = vsub.f32 %v5351, %v5568
        %v5679 = vsub.f32 %v5354, %v5571
        %v5680 = vsub.f32 %v5359, %v5574
        %v5681 = vsub.f32 %v5362, %v5577
        %v5682 = vsub.f32 %v5367, %v5580
        %v5683 = vsub.f32 %v5370, %v5583
        %v5684 = vsub.f32 %v5375, %v5586
        %v5685 = vsub.f32 %v5378, %v5589
        %v5686 = vsub.f32 %v5383, %v5592
        %v5687 = vsub.f32 %v5386, %v5595
        %v5688 = vsub.f32 %v5391, %v5598
        %v5689 = vsub.f32 %v5394, %v5601
        %v5690 = vsub.f32 %v5399, %v5604
        %v5691 = vsub.f32 %v5402, %v5607
        %v5692 = vsub.f32 %v5407, %v5610
        %v5693 = vsub.f32 %v5410, %v5613
        %v5694 = vsub.f32 %v5415, %v5616
        %v5695 = vsub.f32 %v5418, %v5619
        %v5696 = vsub.f32 %v5423, %v5622
        %v5697 = vsub.f32 %v5426, %v5625
        %v5698 = vsub.f32 %v5431, %v5628
        %v5699 = vsub.f32 %v5434, %v5631
        %v5700 = vsub.f32 %v5439, %v5634
        %v5701 = vsub.f32 %v5442, %v5637
        %v5702 = vmul.f32 %v5638, 1.442695
        %v5703 = vpow.pop %v5702
        %v5704 = vmul.f32 %v5639, 1.442695
        %v5705 = vpow.pop %v5704
        %v5706 = vmul.f32 %v5640, 1.442695
        %v5707 = vpow.pop %v5706
        %v5708 = vmul.f32 %v5641, 1.442695
        %v5709 = vpow.pop %v5708
        %v5710 = vmul.f32 %v5642, 1.442695
        %v5711 = vpow.pop %v5710
        %v5712 = vmul.f32 %v5643, 1.442695
        %v5713 = vpow.pop %v5712
        %v5714 = vmul.f32 %v5644, 1.442695
        %v5715 = vpow.pop %v5714
        %v5716 = vmul.f32 %v5645, 1.442695
        %v5717 = vpow.pop %v5716
        %v5718 = vmul.f32 %v5646, 1.442695
        %v5719 = vpow.pop %v5718
        %v5720 = vmul.f32 %v5647, 1.442695
        %v5721 = vpow.pop %v5720
        %v5722 = vmul.f32 %v5648, 1.442695
        %v5723 = vpow.pop %v5722
        %v5724 = vmul.f32 %v5649, 1.442695
        %v5725 = vpow.pop %v5724
        %v5726 = vmul.f32 %v5650, 1.442695
        %v5727 = vpow.pop %v5726
        %v5728 = vmul.f32 %v5651, 1.442695
        %v5729 = vpow.pop %v5728
        %v5730 = vmul.f32 %v5652, 1.442695
        %v5731 = vpow.pop %v5730
        %v5732 = vmul.f32 %v5653, 1.442695
        %v5733 = vpow.pop %v5732
        %v5734 = vmul.f32 %v5654, 1.442695
        %v5735 = vpow.pop %v5734
        %v5736 = vmul.f32 %v5655, 1.442695
        %v5737 = vpow.pop %v5736
        %v5738 = vmul.f32 %v5656, 1.442695
        %v5739 = vpow.pop %v5738
        %v5740 = vmul.f32 %v5657, 1.442695
        %v5741 = vpow.pop %v5740
        %v5742 = vmul.f32 %v5658, 1.442695
        %v5743 = vpow.pop %v5742
        %v5744 = vmul.f32 %v5659, 1.442695
        %v5745 = vpow.pop %v5744
        %v5746 = vmul.f32 %v5660, 1.442695
        %v5747 = vpow.pop %v5746
        %v5748 = vmul.f32 %v5661, 1.442695
        %v5749 = vpow.pop %v5748
        %v5750 = vmul.f32 %v5662, 1.442695
        %v5751 = vpow.pop %v5750
        %v5752 = vmul.f32 %v5663, 1.442695
        %v5753 = vpow.pop %v5752
        %v5754 = vmul.f32 %v5664, 1.442695
        %v5755 = vpow.pop %v5754
        %v5756 = vmul.f32 %v5665, 1.442695
        %v5757 = vpow.pop %v5756
        %v5758 = vmul.f32 %v5666, 1.442695
        %v5759 = vpow.pop %v5758
        %v5760 = vmul.f32 %v5667, 1.442695
        %v5761 = vpow.pop %v5760
        %v5762 = vmul.f32 %v5668, 1.442695
        %v5763 = vpow.pop %v5762
        %v5764 = vmul.f32 %v5669, 1.442695
        %v5765 = vpow.pop %v5764
        %v5766 = vmul.f32 %v5670, 1.442695
        %v5767 = vpow.pop %v5766
        %v5768 = vmul.f32 %v5671, 1.442695
        %v5769 = vpow.pop %v5768
        %v5770 = vmul.f32 %v5672, 1.442695
        %v5771 = vpow.pop %v5770
        %v5772 = vmul.f32 %v5673, 1.442695
        %v5773 = vpow.pop %v5772
        %v5774 = vmul.f32 %v5674, 1.442695
        %v5775 = vpow.pop %v5774
        %v5776 = vmul.f32 %v5675, 1.442695
        %v5777 = vpow.pop %v5776
        %v5778 = vmul.f32 %v5676, 1.442695
        %v5779 = vpow.pop %v5778
        %v5780 = vmul.f32 %v5677, 1.442695
        %v5781 = vpow.pop %v5780
        %v5782 = vmul.f32 %v5678, 1.442695
        %v5783 = vpow.pop %v5782
        %v5784 = vmul.f32 %v5679, 1.442695
        %v5785 = vpow.pop %v5784
        %v5786 = vmul.f32 %v5680, 1.442695
        %v5787 = vpow.pop %v5786
        %v5788 = vmul.f32 %v5681, 1.442695
        %v5789 = vpow.pop %v5788
        %v5790 = vmul.f32 %v5682, 1.442695
        %v5791 = vpow.pop %v5790
        %v5792 = vmul.f32 %v5683, 1.442695
        %v5793 = vpow.pop %v5792
        %v5794 = vmul.f32 %v5684, 1.442695
        %v5795 = vpow.pop %v5794
        %v5796 = vmul.f32 %v5685, 1.442695
        %v5797 = vpow.pop %v5796
        %v5798 = vmul.f32 %v5686, 1.442695
        %v5799 = vpow.pop %v5798
        %v5800 = vmul.f32 %v5687, 1.442695
        %v5801 = vpow.pop %v5800
        %v5802 = vmul.f32 %v5688, 1.442695
        %v5803 = vpow.pop %v5802
        %v5804 = vmul.f32 %v5689, 1.442695
        %v5805 = vpow.pop %v5804
        %v5806 = vmul.f32 %v5690, 1.442695
        %v5807 = vpow.pop %v5806
        %v5808 = vmul.f32 %v5691, 1.442695
        %v5809 = vpow.pop %v5808
        %v5810 = vmul.f32 %v5692, 1.442695
        %v5811 = vpow.pop %v5810
        %v5812 = vmul.f32 %v5693, 1.442695
        %v5813 = vpow.pop %v5812
        %v5814 = vmul.f32 %v5694, 1.442695
        %v5815 = vpow.pop %v5814
        %v5816 = vmul.f32 %v5695, 1.442695
        %v5817 = vpow.pop %v5816
        %v5818 = vmul.f32 %v5696, 1.442695
        %v5819 = vpow.pop %v5818
        %v5820 = vmul.f32 %v5697, 1.442695
        %v5821 = vpow.pop %v5820
        %v5822 = vmul.f32 %v5698, 1.442695
        %v5823 = vpow.pop %v5822
        %v5824 = vmul.f32 %v5699, 1.442695
        %v5825 = vpow.pop %v5824
        %v5826 = vmul.f32 %v5700, 1.442695
        %v5827 = vpow.pop %v5826
        %v5828 = vmul.f32 %v5701, 1.442695
        %v5829 = vpow.pop %v5828
        %v5830 = vsel %vm5445, %v5703, 0.0
        %5831 = vadd.xlane.f32.xlu0 %v5830
        %v5832 = vpop.xlane.xlu0 %5831
        %v5833 = vsel %vm5445, %v5705, 0.0
        %5834 = vadd.xlane.f32.xlu0 %v5833
        %v5835 = vpop.xlane.xlu0 %5834
        %v5836 = vsel %vm5445, %v5707, 0.0
        %5837 = vadd.xlane.f32.xlu0 %v5836
        %v5838 = vpop.xlane.xlu0 %5837
        %v5839 = vsel %vm5445, %v5709, 0.0
        %5840 = vadd.xlane.f32.xlu0 %v5839
        %v5841 = vpop.xlane.xlu0 %5840
        %v5842 = vsel %vm5445, %v5711, 0.0
        %5843 = vadd.xlane.f32.xlu0 %v5842
        %v5844 = vpop.xlane.xlu0 %5843
        %v5845 = vsel %vm5445, %v5713, 0.0
        %5846 = vadd.xlane.f32.xlu0 %v5845
        %v5847 = vpop.xlane.xlu0 %5846
        %v5848 = vsel %vm5445, %v5715, 0.0
        %5849 = vadd.xlane.f32.xlu0 %v5848
        %v5850 = vpop.xlane.xlu0 %5849
        %v5851 = vsel %vm5445, %v5717, 0.0
        %5852 = vadd.xlane.f32.xlu0 %v5851
        %v5853 = vpop.xlane.xlu0 %5852
        %v5854 = vsel %vm5445, %v5719, 0.0
        %5855 = vadd.xlane.f32.xlu0 %v5854
        %v5856 = vpop.xlane.xlu0 %5855
        %v5857 = vsel %vm5445, %v5721, 0.0
        %5858 = vadd.xlane.f32.xlu0 %v5857
        %v5859 = vpop.xlane.xlu0 %5858
        %v5860 = vsel %vm5445, %v5723, 0.0
        %5861 = vadd.xlane.f32.xlu0 %v5860
        %v5862 = vpop.xlane.xlu0 %5861
        %v5863 = vsel %vm5445, %v5725, 0.0
        %5864 = vadd.xlane.f32.xlu0 %v5863
        %v5865 = vpop.xlane.xlu0 %5864
        %v5866 = vsel %vm5445, %v5727, 0.0
        %5867 = vadd.xlane.f32.xlu0 %v5866
        %v5868 = vpop.xlane.xlu0 %5867
        %v5869 = vsel %vm5445, %v5729, 0.0
        %5870 = vadd.xlane.f32.xlu0 %v5869
        %v5871 = vpop.xlane.xlu0 %5870
        %v5872 = vsel %vm5445, %v5731, 0.0
        %5873 = vadd.xlane.f32.xlu0 %v5872
        %v5874 = vpop.xlane.xlu0 %5873
        %v5875 = vsel %vm5445, %v5733, 0.0
        %5876 = vadd.xlane.f32.xlu0 %v5875
        %v5877 = vpop.xlane.xlu0 %5876
        %v5878 = vsel %vm5445, %v5735, 0.0
        %5879 = vadd.xlane.f32.xlu0 %v5878
        %v5880 = vpop.xlane.xlu0 %5879
        %v5881 = vsel %vm5445, %v5737, 0.0
        %5882 = vadd.xlane.f32.xlu0 %v5881
        %v5883 = vpop.xlane.xlu0 %5882
        %v5884 = vsel %vm5445, %v5739, 0.0
        %5885 = vadd.xlane.f32.xlu0 %v5884
        %v5886 = vpop.xlane.xlu0 %5885
        %v5887 = vsel %vm5445, %v5741, 0.0
        %5888 = vadd.xlane.f32.xlu0 %v5887
        %v5889 = vpop.xlane.xlu0 %5888
        %v5890 = vsel %vm5445, %v5743, 0.0
        %5891 = vadd.xlane.f32.xlu0 %v5890
        %v5892 = vpop.xlane.xlu0 %5891
        %v5893 = vsel %vm5445, %v5745, 0.0
        %5894 = vadd.xlane.f32.xlu0 %v5893
        %v5895 = vpop.xlane.xlu0 %5894
        %v5896 = vsel %vm5445, %v5747, 0.0
        %5897 = vadd.xlane.f32.xlu0 %v5896
        %v5898 = vpop.xlane.xlu0 %5897
        %v5899 = vsel %vm5445, %v5749, 0.0
        %5900 = vadd.xlane.f32.xlu0 %v5899
        %v5901 = vpop.xlane.xlu0 %5900
        %v5902 = vsel %vm5445, %v5751, 0.0
        %5903 = vadd.xlane.f32.xlu0 %v5902
        %v5904 = vpop.xlane.xlu0 %5903
        %v5905 = vsel %vm5445, %v5753, 0.0
        %5906 = vadd.xlane.f32.xlu0 %v5905
        %v5907 = vpop.xlane.xlu0 %5906
        %v5908 = vsel %vm5445, %v5755, 0.0
        %5909 = vadd.xlane.f32.xlu0 %v5908
        %v5910 = vpop.xlane.xlu0 %5909
        %v5911 = vsel %vm5445, %v5757, 0.0
        %5912 = vadd.xlane.f32.xlu0 %v5911
        %v5913 = vpop.xlane.xlu0 %5912
        %v5914 = vsel %vm5445, %v5759, 0.0
        %5915 = vadd.xlane.f32.xlu0 %v5914
        %v5916 = vpop.xlane.xlu0 %5915
        %v5917 = vsel %vm5445, %v5761, 0.0
        %5918 = vadd.xlane.f32.xlu0 %v5917
        %v5919 = vpop.xlane.xlu0 %5918
        %v5920 = vsel %vm5445, %v5763, 0.0
        %5921 = vadd.xlane.f32.xlu0 %v5920
        %v5922 = vpop.xlane.xlu0 %5921
        %v5923 = vsel %vm5445, %v5765, 0.0
        %5924 = vadd.xlane.f32.xlu0 %v5923
        %v5925 = vpop.xlane.xlu0 %5924
        %v5926 = vsel %vm5445, %v5767, 0.0
        %5927 = vadd.xlane.f32.xlu0 %v5926
        %v5928 = vpop.xlane.xlu0 %5927
        %v5929 = vsel %vm5445, %v5769, 0.0
        %5930 = vadd.xlane.f32.xlu0 %v5929
        %v5931 = vpop.xlane.xlu0 %5930
        %v5932 = vsel %vm5445, %v5771, 0.0
        %5933 = vadd.xlane.f32.xlu0 %v5932
        %v5934 = vpop.xlane.xlu0 %5933
        %v5935 = vsel %vm5445, %v5773, 0.0
        %5936 = vadd.xlane.f32.xlu0 %v5935
        %v5937 = vpop.xlane.xlu0 %5936
        %v5938 = vsel %vm5445, %v5775, 0.0
        %5939 = vadd.xlane.f32.xlu0 %v5938
        %v5940 = vpop.xlane.xlu0 %5939
        %v5941 = vsel %vm5445, %v5777, 0.0
        %5942 = vadd.xlane.f32.xlu0 %v5941
        %v5943 = vpop.xlane.xlu0 %5942
        %v5944 = vsel %vm5445, %v5779, 0.0
        %5945 = vadd.xlane.f32.xlu0 %v5944
        %v5946 = vpop.xlane.xlu0 %5945
        %v5947 = vsel %vm5445, %v5781, 0.0
        %5948 = vadd.xlane.f32.xlu0 %v5947
        %v5949 = vpop.xlane.xlu0 %5948
        %v5950 = vsel %vm5445, %v5783, 0.0
        %5951 = vadd.xlane.f32.xlu0 %v5950
        %v5952 = vpop.xlane.xlu0 %5951
        %v5953 = vsel %vm5445, %v5785, 0.0
        %5954 = vadd.xlane.f32.xlu0 %v5953
        %v5955 = vpop.xlane.xlu0 %5954
        %v5956 = vsel %vm5445, %v5787, 0.0
        %5957 = vadd.xlane.f32.xlu0 %v5956
        %v5958 = vpop.xlane.xlu0 %5957
        %v5959 = vsel %vm5445, %v5789, 0.0
        %5960 = vadd.xlane.f32.xlu0 %v5959
        %v5961 = vpop.xlane.xlu0 %5960
        %v5962 = vsel %vm5445, %v5791, 0.0
        %5963 = vadd.xlane.f32.xlu0 %v5962
        %v5964 = vpop.xlane.xlu0 %5963
        %v5965 = vsel %vm5445, %v5793, 0.0
        %5966 = vadd.xlane.f32.xlu0 %v5965
        %v5967 = vpop.xlane.xlu0 %5966
        %v5968 = vsel %vm5445, %v5795, 0.0
        %5969 = vadd.xlane.f32.xlu0 %v5968
        %v5970 = vpop.xlane.xlu0 %5969
        %v5971 = vsel %vm5445, %v5797, 0.0
        %5972 = vadd.xlane.f32.xlu0 %v5971
        %v5973 = vpop.xlane.xlu0 %5972
        %v5974 = vsel %vm5445, %v5799, 0.0
        %5975 = vadd.xlane.f32.xlu0 %v5974
        %v5976 = vpop.xlane.xlu0 %5975
        %v5977 = vsel %vm5445, %v5801, 0.0
        %5978 = vadd.xlane.f32.xlu0 %v5977
        %v5979 = vpop.xlane.xlu0 %5978
        %v5980 = vsel %vm5445, %v5803, 0.0
        %5981 = vadd.xlane.f32.xlu0 %v5980
        %v5982 = vpop.xlane.xlu0 %5981
        %v5983 = vsel %vm5445, %v5805, 0.0
        %5984 = vadd.xlane.f32.xlu0 %v5983
        %v5985 = vpop.xlane.xlu0 %5984
        %v5986 = vsel %vm5445, %v5807, 0.0
        %5987 = vadd.xlane.f32.xlu0 %v5986
        %v5988 = vpop.xlane.xlu0 %5987
        %v5989 = vsel %vm5445, %v5809, 0.0
        %5990 = vadd.xlane.f32.xlu0 %v5989
        %v5991 = vpop.xlane.xlu0 %5990
        %v5992 = vsel %vm5445, %v5811, 0.0
        %5993 = vadd.xlane.f32.xlu0 %v5992
        %v5994 = vpop.xlane.xlu0 %5993
        %v5995 = vsel %vm5445, %v5813, 0.0
        %5996 = vadd.xlane.f32.xlu0 %v5995
        %v5997 = vpop.xlane.xlu0 %5996
        %v5998 = vsel %vm5445, %v5815, 0.0
        %5999 = vadd.xlane.f32.xlu0 %v5998
        %v6000 = vpop.xlane.xlu0 %5999
        %v6001 = vsel %vm5445, %v5817, 0.0
        %6002 = vadd.xlane.f32.xlu0 %v6001
        %v6003 = vpop.xlane.xlu0 %6002
        %v6004 = vsel %vm5445, %v5819, 0.0
        %6005 = vadd.xlane.f32.xlu0 %v6004
        %v6006 = vpop.xlane.xlu0 %6005
        %v6007 = vsel %vm5445, %v5821, 0.0
        %6008 = vadd.xlane.f32.xlu0 %v6007
        %v6009 = vpop.xlane.xlu0 %6008
        %v6010 = vsel %vm5445, %v5823, 0.0
        %6011 = vadd.xlane.f32.xlu0 %v6010
        %v6012 = vpop.xlane.xlu0 %6011
        %v6013 = vsel %vm5445, %v5825, 0.0
        %6014 = vadd.xlane.f32.xlu0 %v6013
        %v6015 = vpop.xlane.xlu0 %6014
        %v6016 = vsel %vm5445, %v5827, 0.0
        %6017 = vadd.xlane.f32.xlu0 %v6016
        %v6018 = vpop.xlane.xlu0 %6017
        %v6019 = vsel %vm5445, %v5829, 0.0
        %6020 = vadd.xlane.f32.xlu0 %v6019
        %v6021 = vpop.xlane.xlu0 %6020
        %v6022 = vrcp.pop %v5832
        %v6023 = vrcp.pop %v5835
        %v6024 = vrcp.pop %v5838
        %v6025 = vrcp.pop %v5841
        %v6026 = vrcp.pop %v5844
        %v6027 = vrcp.pop %v5847
        %v6028 = vrcp.pop %v5850
        %v6029 = vrcp.pop %v5853
        %v6030 = vrcp.pop %v5856
        %v6031 = vrcp.pop %v5859
        %v6032 = vrcp.pop %v5862
        %v6033 = vrcp.pop %v5865
        %v6034 = vrcp.pop %v5868
        %v6035 = vrcp.pop %v5871
        %v6036 = vrcp.pop %v5874
        %v6037 = vrcp.pop %v5877
        %v6038 = vrcp.pop %v5880
        %v6039 = vrcp.pop %v5883
        %v6040 = vrcp.pop %v5886
        %v6041 = vrcp.pop %v5889
        %v6042 = vrcp.pop %v5892
        %v6043 = vrcp.pop %v5895
        %v6044 = vrcp.pop %v5898
        %v6045 = vrcp.pop %v5901
        %v6046 = vrcp.pop %v5904
        %v6047 = vrcp.pop %v5907
        %v6048 = vrcp.pop %v5910
        %v6049 = vrcp.pop %v5913
        %v6050 = vrcp.pop %v5916
        %v6051 = vrcp.pop %v5919
        %v6052 = vrcp.pop %v5922
        %v6053 = vrcp.pop %v5925
        %v6054 = vrcp.pop %v5928
        %v6055 = vrcp.pop %v5931
        %v6056 = vrcp.pop %v5934
        %v6057 = vrcp.pop %v5937
        %v6058 = vrcp.pop %v5940
        %v6059 = vrcp.pop %v5943
        %v6060 = vrcp.pop %v5946
        %v6061 = vrcp.pop %v5949
        %v6062 = vrcp.pop %v5952
        %v6063 = vrcp.pop %v5955
        %v6064 = vrcp.pop %v5958
        %v6065 = vrcp.pop %v5961
        %v6066 = vrcp.pop %v5964
        %v6067 = vrcp.pop %v5967
        %v6068 = vrcp.pop %v5970
        %v6069 = vrcp.pop %v5973
        %v6070 = vrcp.pop %v5976
        %v6071 = vrcp.pop %v5979
        %v6072 = vrcp.pop %v5982
        %v6073 = vrcp.pop %v5985
        %v6074 = vrcp.pop %v5988
        %v6075 = vrcp.pop %v5991
        %v6076 = vrcp.pop %v5994
        %v6077 = vrcp.pop %v5997
        %v6078 = vrcp.pop %v6000
        %v6079 = vrcp.pop %v6003
        %v6080 = vrcp.pop %v6006
        %v6081 = vrcp.pop %v6009
        %v6082 = vrcp.pop %v6012
        %v6083 = vrcp.pop %v6015
        %v6084 = vrcp.pop %v6018
        %v6085 = vrcp.pop %v6021
        %v6086 = vmul.f32 %v5703, %v6022
        %v6087 = vmul.f32 %v5705, %v6023
        %v6088 = vmul.f32 %v5707, %v6024
        %v6089 = vmul.f32 %v5709, %v6025
        %v6090 = vmul.f32 %v5711, %v6026
        %v6091 = vmul.f32 %v5713, %v6027
        %v6092 = vmul.f32 %v5715, %v6028
        %v6093 = vmul.f32 %v5717, %v6029
        %v6094 = vmul.f32 %v5719, %v6030
        %v6095 = vmul.f32 %v5721, %v6031
        %v6096 = vmul.f32 %v5723, %v6032
        %v6097 = vmul.f32 %v5725, %v6033
        %v6098 = vmul.f32 %v5727, %v6034
        %v6099 = vmul.f32 %v5729, %v6035
        %v6100 = vmul.f32 %v5731, %v6036
        %v6101 = vmul.f32 %v5733, %v6037
        %v6102 = vmul.f32 %v5735, %v6038
        %v6103 = vmul.f32 %v5737, %v6039
        %v6104 = vmul.f32 %v5739, %v6040
        %v6105 = vmul.f32 %v5741, %v6041
        %v6106 = vmul.f32 %v5743, %v6042
        %v6107 = vmul.f32 %v5745, %v6043
        %v6108 = vmul.f32 %v5747, %v6044
        %v6109 = vmul.f32 %v5749, %v6045
        %v6110 = vmul.f32 %v5751, %v6046
        %v6111 = vmul.f32 %v5753, %v6047
        %v6112 = vmul.f32 %v5755, %v6048
        %v6113 = vmul.f32 %v5757, %v6049
        %v6114 = vmul.f32 %v5759, %v6050
        %v6115 = vmul.f32 %v5761, %v6051
        %v6116 = vmul.f32 %v5763, %v6052
        %v6117 = vmul.f32 %v5765, %v6053
        %v6118 = vmul.f32 %v5767, %v6054
        %v6119 = vmul.f32 %v5769, %v6055
        %v6120 = vmul.f32 %v5771, %v6056
        %v6121 = vmul.f32 %v5773, %v6057
        %v6122 = vmul.f32 %v5775, %v6058
        %v6123 = vmul.f32 %v5777, %v6059
        %v6124 = vmul.f32 %v5779, %v6060
        %v6125 = vmul.f32 %v5781, %v6061
        %v6126 = vmul.f32 %v5783, %v6062
        %v6127 = vmul.f32 %v5785, %v6063
        %v6128 = vmul.f32 %v5787, %v6064
        %v6129 = vmul.f32 %v5789, %v6065
        %v6130 = vmul.f32 %v5791, %v6066
        %v6131 = vmul.f32 %v5793, %v6067
        %v6132 = vmul.f32 %v5795, %v6068
        %v6133 = vmul.f32 %v5797, %v6069
        %v6134 = vmul.f32 %v5799, %v6070
        %v6135 = vmul.f32 %v5801, %v6071
        %v6136 = vmul.f32 %v5803, %v6072
        %v6137 = vmul.f32 %v5805, %v6073
        %v6138 = vmul.f32 %v5807, %v6074
        %v6139 = vmul.f32 %v5809, %v6075
        %v6140 = vmul.f32 %v5811, %v6076
        %v6141 = vmul.f32 %v5813, %v6077
        %v6142 = vmul.f32 %v5815, %v6078
        %v6143 = vmul.f32 %v5817, %v6079
        %v6144 = vmul.f32 %v5819, %v6080
        %v6145 = vmul.f32 %v5821, %v6081
        %v6146 = vmul.f32 %v5823, %v6082
        %v6147 = vmul.f32 %v5825, %v6083
        %v6148 = vmul.f32 %v5827, %v6084
        %v6149 = vmul.f32 %v5829, %v6085
        %v6150 = vpack.c.bf16 %v6087, %v6086
        %v6151 = vpack.c.bf16 %v6089, %v6088
        %v6152 = vpack.c.bf16 %v6091, %v6090
        %v6153 = vpack.c.bf16 %v6093, %v6092
        %v6154 = vpack.c.bf16 %v6095, %v6094
        %v6155 = vpack.c.bf16 %v6097, %v6096
        %v6156 = vpack.c.bf16 %v6099, %v6098
        %v6157 = vpack.c.bf16 %v6101, %v6100
        %v6158 = vpack.c.bf16 %v6103, %v6102
        %v6159 = vpack.c.bf16 %v6105, %v6104
        %v6160 = vpack.c.bf16 %v6107, %v6106
        %v6161 = vpack.c.bf16 %v6109, %v6108
        %v6162 = vpack.c.bf16 %v6111, %v6110
        %v6163 = vpack.c.bf16 %v6113, %v6112
        %v6164 = vpack.c.bf16 %v6115, %v6114
        %v6165 = vpack.c.bf16 %v6117, %v6116
        %v6166 = vpack.c.bf16 %v6119, %v6118
        %v6167 = vpack.c.bf16 %v6121, %v6120
        %v6168 = vpack.c.bf16 %v6123, %v6122
        %v6169 = vpack.c.bf16 %v6125, %v6124
        %v6170 = vpack.c.bf16 %v6127, %v6126
        %v6171 = vpack.c.bf16 %v6129, %v6128
        %v6172 = vpack.c.bf16 %v6131, %v6130
        %v6173 = vpack.c.bf16 %v6133, %v6132
        %v6174 = vpack.c.bf16 %v6135, %v6134
        %v6175 = vpack.c.bf16 %v6137, %v6136
        %v6176 = vpack.c.bf16 %v6139, %v6138
        %v6177 = vpack.c.bf16 %v6141, %v6140
        %v6178 = vpack.c.bf16 %v6143, %v6142
        %v6179 = vpack.c.bf16 %v6145, %v6144
        %v6180 = vpack.c.bf16 %v6147, %v6146
        %v6181 = vpack.c.bf16 %v6149, %v6148
        %v6182 = vld [vmem:[%s454] sm:$0xf]
        %v6183 = vld [vmem:[%s454 + $0x4] sm:$0xf]
        %v6185 = vsel %vm5445, %v6150, 0
        %v6188 = vsel %vm5445, %v6151, 0
        %v6191 = vsel %vm5445, %v6152, 0
        %v6194 = vsel %vm5445, %v6153, 0
        %v6197 = vsel %vm5445, %v6154, 0
        %v6200 = vsel %vm5445, %v6155, 0
        %v6203 = vsel %vm5445, %v6156, 0
        %v6206 = vsel %vm5445, %v6157, 0
        %v6209 = vsel %vm5445, %v6158, 0
        %v6212 = vsel %vm5445, %v6159, 0
        %v6215 = vsel %vm5445, %v6160, 0
        %v6218 = vsel %vm5445, %v6161, 0
        %v6221 = vsel %vm5445, %v6162, 0
        %v6224 = vsel %vm5445, %v6163, 0
        %v6227 = vsel %vm5445, %v6164, 0
        %v6230 = vsel %vm5445, %v6165, 0
        %vm6232 = vcmask 1043456
        %v6234 = vsel %vm6232, %v6182, 0
        %6236 = vmatprep.subr.bf16.mxu0 0
        %6237 = vmatpush1.bf16.msra.mxu0 %v6234
        %6238 = vmatprep.subr.bf16.mxu0 0
        %6239 = vmatpush1.bf16.msra.mxu0 0
        %6240 = vmatprep.subr.bf16.mxu0 0
        %6241 = vmatpush1.bf16.msra.mxu0 0
        %6242 = vmatprep.subr.bf16.mxu0 0
        %6243 = vmatpush1.bf16.msra.mxu0 0
        %6244 = vmatprep.subr.bf16.mxu0 0
        %6245 = vmatpush1.bf16.msra.mxu0 0
        %6246 = vmatprep.subr.bf16.mxu0 0
        %6247 = vmatpush1.bf16.msra.mxu0 0
        %6248 = vmatprep.subr.bf16.mxu0 0
        %6249 = vmatpush1.bf16.msra.mxu0 0
        %6250 = vmatprep.subr.bf16.mxu0 0
        %6251 = vmatpush1.bf16.msra.mxu0 0
        %6252 = vmatprep.subr.bf16.mxu0 0
        %6253 = vmatpush1.bf16.msra.mxu0 0
        %6254 = vmatprep.subr.bf16.mxu0 0
        %6255 = vmatpush1.bf16.msra.mxu0 0
        %6256 = vmatprep.subr.bf16.mxu0 0
        %6257 = vmatpush1.bf16.msra.mxu0 0
        %6258 = vmatprep.subr.bf16.mxu0 0
        %6259 = vmatpush1.bf16.msra.mxu0 0
        %6260 = vmatprep.subr.bf16.mxu0 0
        %6261 = vmatpush1.bf16.msra.mxu0 0
        %6262 = vmatprep.subr.bf16.mxu0 0
        %6263 = vmatpush1.bf16.msra.mxu0 0
        %6264 = vmatprep.subr.bf16.mxu0 0
        %6265 = vmatpush1.bf16.msra.mxu0 0
        %6266 = vmatprep.subr.bf16.mxu0 0
        %6267 = vmatpush1.bf16.msra.mxu0 0
        %6268 = vmatprep.mubr.bf16.mxu0 0
        %6269 = vmatmul.mubr.bf16.gmra.mrb[0].mxu0 %v6185
        %v6270 = vpop.f32.mrb[0].mxu0
        %v6271 = vadd.f32 0.0, %v6270
        %v6272 = vpop.f32.mrb[0].mxu0
        %v6273 = vpop.f32.mrb[0].mxu0
        %v6274 = vadd.f32 0.0, %v6273
        %v6275 = vpop.f32.mrb[0].mxu0
        %6276 = vmatprep.mubr.bf16.mxu0 0
        %6277 = vmatmul.mubr.bf16.gmra.mrb[0].mxu0 %v6188
        %v6278 = vpop.f32.mrb[0].mxu0
        %v6279 = vadd.f32 0.0, %v6278
        %v6280 = vpop.f32.mrb[0].mxu0
        %v6281 = vpop.f32.mrb[0].mxu0
        %v6282 = vadd.f32 0.0, %v6281
        %v6283 = vpop.f32.mrb[0].mxu0
        %6284 = vmatprep.mubr.bf16.mxu0 0
        %6285 = vmatmul.mubr.bf16.gmra.mrb[0].mxu0 %v6191
        %v6286 = vpop.f32.mrb[0].mxu0
        %v6287 = vadd.f32 0.0, %v6286
        %v6288 = vpop.f32.mrb[0].mxu0
        %v6289 = vpop.f32.mrb[0].mxu0
        %v6290 = vadd.f32 0.0, %v6289
        %v6291 = vpop.f32.mrb[0].mxu0
        %6292 = vmatprep.mubr.bf16.mxu0 0
        %6293 = vmatmul.mubr.bf16.gmra.mrb[0].mxu0 %v6194
        %v6294 = vpop.f32.mrb[0].mxu0
        %v6295 = vadd.f32 0.0, %v6294
        %v6296 = vpop.f32.mrb[0].mxu0
        %v6297 = vpop.f32.mrb[0].mxu0
        %v6298 = vadd.f32 0.0, %v6297
        %v6299 = vpop.f32.mrb[0].mxu0
        %6300 = vmatprep.mubr.bf16.mxu0 0
        %6301 = vmatmul.mubr.bf16.gmra.mrb[0].mxu0 %v6197
        %v6302 = vpop.f32.mrb[0].mxu0
        %v6303 = vadd.f32 0.0, %v6302
        %v6304 = vpop.f32.mrb[0].mxu0
        %v6305 = vpop.f32.mrb[0].mxu0
        %v6306 = vadd.f32 0.0, %v6305
        %v6307 = vpop.f32.mrb[0].mxu0
        %6308 = vmatprep.mubr.bf16.mxu0 0
        %6309 = vmatmul.mubr.bf16.gmra.mrb[0].mxu0 %v6200
        %v6310 = vpop.f32.mrb[0].mxu0
        %v6311 = vadd.f32 0.0, %v6310
        %v6312 = vpop.f32.mrb[0].mxu0
        %v6313 = vpop.f32.mrb[0].mxu0
        %v6314 = vadd.f32 0.0, %v6313
        %v6315 = vpop.f32.mrb[0].mxu0
        %6316 = vmatprep.mubr.bf16.mxu0 0
        %6317 = vmatmul.mubr.bf16.gmra.mrb[0].mxu0 %v6203
        %v6318 = vpop.f32.mrb[0].mxu0
        %v6319 = vadd.f32 0.0, %v6318
        %v6320 = vpop.f32.mrb[0].mxu0
        %v6321 = vpop.f32.mrb[0].mxu0
        %v6322 = vadd.f32 0.0, %v6321
        %v6323 = vpop.f32.mrb[0].mxu0
        %6324 = vmatprep.mubr.bf16.mxu0 0
        %6325 = vmatmul.mubr.bf16.gmra.mrb[0].mxu0 %v6206
        %v6326 = vpop.f32.mrb[0].mxu0
        %v6327 = vadd.f32 0.0, %v6326
        %v6328 = vpop.f32.mrb[0].mxu0
        %v6329 = vpop.f32.mrb[0].mxu0
        %v6330 = vadd.f32 0.0, %v6329
        %v6331 = vpop.f32.mrb[0].mxu0
        %6332 = vmatprep.mubr.bf16.mxu0 0
        %6333 = vmatmul.mubr.bf16.gmra.mrb[0].mxu0 %v6209
        %v6334 = vpop.f32.mrb[0].mxu0
        %v6335 = vadd.f32 0.0, %v6334
        %v6336 = vpop.f32.mrb[0].mxu0
        %v6337 = vpop.f32.mrb[0].mxu0
        %v6338 = vadd.f32 0.0, %v6337
        %v6339 = vpop.f32.mrb[0].mxu0
        %6340 = vmatprep.mubr.bf16.mxu0 0
        %6341 = vmatmul.mubr.bf16.gmra.mrb[0].mxu0 %v6212
        %v6342 = vpop.f32.mrb[0].mxu0
        %v6343 = vadd.f32 0.0, %v6342
        %v6344 = vpop.f32.mrb[0].mxu0
        %v6345 = vpop.f32.mrb[0].mxu0
        %v6346 = vadd.f32 0.0, %v6345
        %v6347 = vpop.f32.mrb[0].mxu0
        %6348 = vmatprep.mubr.bf16.mxu0 0
        %6349 = vmatmul.mubr.bf16.gmra.mrb[0].mxu0 %v6215
        %v6350 = vpop.f32.mrb[0].mxu0
        %v6351 = vadd.f32 0.0, %v6350
        %v6352 = vpop.f32.mrb[0].mxu0
        %v6353 = vpop.f32.mrb[0].mxu0
        %v6354 = vadd.f32 0.0, %v6353
        %v6355 = vpop.f32.mrb[0].mxu0
        %6356 = vmatprep.mubr.bf16.mxu0 0
        %6357 = vmatmul.mubr.bf16.gmra.mrb[0].mxu0 %v6218
        %v6358 = vpop.f32.mrb[0].mxu0
        %v6359 = vadd.f32 0.0, %v6358
        %v6360 = vpop.f32.mrb[0].mxu0
        %v6361 = vpop.f32.mrb[0].mxu0
        %v6362 = vadd.f32 0.0, %v6361
        %v6363 = vpop.f32.mrb[0].mxu0
        %6364 = vmatprep.mubr.bf16.mxu0 0
        %6365 = vmatmul.mubr.bf16.gmra.mrb[0].mxu0 %v6221
        %v6366 = vpop.f32.mrb[0].mxu0
        %v6367 = vadd.f32 0.0, %v6366
        %v6368 = vpop.f32.mrb[0].mxu0
        %v6369 = vpop.f32.mrb[0].mxu0
        %v6370 = vadd.f32 0.0, %v6369
        %v6371 = vpop.f32.mrb[0].mxu0
        %6372 = vmatprep.mubr.bf16.mxu0 0
        %6373 = vmatmul.mubr.bf16.gmra.mrb[0].mxu0 %v6224
        %v6374 = vpop.f32.mrb[0].mxu0
        %v6375 = vadd.f32 0.0, %v6374
        %v6376 = vpop.f32.mrb[0].mxu0
        %v6377 = vpop.f32.mrb[0].mxu0
        %v6378 = vadd.f32 0.0, %v6377
        %v6379 = vpop.f32.mrb[0].mxu0
        %6380 = vmatprep.mubr.bf16.mxu0 0
        %6381 = vmatmul.mubr.bf16.gmra.mrb[0].mxu0 %v6227
        %v6382 = vpop.f32.mrb[0].mxu0
        %v6383 = vadd.f32 0.0, %v6382
        %v6384 = vpop.f32.mrb[0].mxu0
        %v6385 = vpop.f32.mrb[0].mxu0
        %v6386 = vadd.f32 0.0, %v6385
        %v6387 = vpop.f32.mrb[0].mxu0
        %6388 = vmatprep.mubr.bf16.mxu0 0
        %6389 = vmatmul.mubr.bf16.gmra.mrb[0].mxu0 %v6230
        %v6390 = vpop.f32.mrb[0].mxu0
        %v6391 = vadd.f32 0.0, %v6390
        %v6392 = vpop.f32.mrb[0].mxu0
        %v6393 = vpop.f32.mrb[0].mxu0
        %v6394 = vadd.f32 0.0, %v6393
        %v6395 = vpop.f32.mrb[0].mxu0
        %6396 = vdwg.mxu0
        %v6398 = vsel %vm5445, %v6166, 0
        %v6401 = vsel %vm5445, %v6167, 0
        %v6404 = vsel %vm5445, %v6168, 0
        %v6407 = vsel %vm5445, %v6169, 0
        %v6410 = vsel %vm5445, %v6170, 0
        %v6413 = vsel %vm5445, %v6171, 0
        %v6416 = vsel %vm5445, %v6172, 0
        %v6419 = vsel %vm5445, %v6173, 0
        %v6422 = vsel %vm5445, %v6174, 0
        %v6425 = vsel %vm5445, %v6175, 0
        %v6428 = vsel %vm5445, %v6176, 0
        %v6431 = vsel %vm5445, %v6177, 0
        %v6434 = vsel %vm5445, %v6178, 0
        %v6437 = vsel %vm5445, %v6179, 0
        %v6440 = vsel %vm5445, %v6180, 0
        %v6443 = vsel %vm5445, %v6181, 0
        %v6446 = vsel %vm6232, %v6183, 0
        %6448 = vmatprep.subr.bf16.mxu0 0
        %6449 = vmatpush1.bf16.msra.mxu0 %v6446
        %6450 = vmatprep.subr.bf16.mxu0 0
        %6451 = vmatpush1.bf16.msra.mxu0 0
        %6452 = vmatprep.subr.bf16.mxu0 0
        %6453 = vmatpush1.bf16.msra.mxu0 0
        %6454 = vmatprep.subr.bf16.mxu0 0
        %6455 = vmatpush1.bf16.msra.mxu0 0
        %6456 = vmatprep.subr.bf16.mxu0 0
        %6457 = vmatpush1.bf16.msra.mxu0 0
        %6458 = vmatprep.subr.bf16.mxu0 0
        %6459 = vmatpush1.bf16.msra.mxu0 0
        %6460 = vmatprep.subr.bf16.mxu0 0
        %6461 = vmatpush1.bf16.msra.mxu0 0
        %6462 = vmatprep.subr.bf16.mxu0 0
        %6463 = vmatpush1.bf16.msra.mxu0 0
        %6464 = vmatprep.subr.bf16.mxu0 0
        %6465 = vmatpush1.bf16.msra.mxu0 0
        %6466 = vmatprep.subr.bf16.mxu0 0
        %6467 = vmatpush1.bf16.msra.mxu0 0
        %6468 = vmatprep.subr.bf16.mxu0 0
        %6469 = vmatpush1.bf16.msra.mxu0 0
        %6470 = vmatprep.subr.bf16.mxu0 0
        %6471 = vmatpush1.bf16.msra.mxu0 0
        %6472 = vmatprep.subr.bf16.mxu0 0
        %6473 = vmatpush1.bf16.msra.mxu0 0
        %6474 = vmatprep.subr.bf16.mxu0 0
        %6475 = vmatpush1.bf16.msra.mxu0 0
        %6476 = vmatprep.subr.bf16.mxu0 0
        %6477 = vmatpush1.bf16.msra.mxu0 0
        %6478 = vmatprep.subr.bf16.mxu0 0
        %6479 = vmatpush1.bf16.msra.mxu0 0
        %6480 = vmatprep.mubr.bf16.mxu0 0
        %6481 = vmatmul.mubr.bf16.gmra.mrb[0].mxu0 %v6398
        %v6482 = vpop.f32.mrb[0].mxu0
        %v6483 = vadd.f32 0.0, %v6482
        %v6484 = vpop.f32.mrb[0].mxu0
        %v6485 = vpop.f32.mrb[0].mxu0
        %v6486 = vadd.f32 0.0, %v6485
        %v6487 = vpop.f32.mrb[0].mxu0
        %6488 = vmatprep.mubr.bf16.mxu0 0
        %6489 = vmatmul.mubr.bf16.gmra.mrb[0].mxu0 %v6401
        %v6490 = vpop.f32.mrb[0].mxu0
        %v6491 = vadd.f32 0.0, %v6490
        %v6492 = vpop.f32.mrb[0].mxu0
        %v6493 = vpop.f32.mrb[0].mxu0
        %v6494 = vadd.f32 0.0, %v6493
        %v6495 = vpop.f32.mrb[0].mxu0
        %6496 = vmatprep.mubr.bf16.mxu0 0
        %6497 = vmatmul.mubr.bf16.gmra.mrb[0].mxu0 %v6404
        %v6498 = vpop.f32.mrb[0].mxu0
        %v6499 = vadd.f32 0.0, %v6498
        %v6500 = vpop.f32.mrb[0].mxu0
        %v6501 = vpop.f32.mrb[0].mxu0
        %v6502 = vadd.f32 0.0, %v6501
        %v6503 = vpop.f32.mrb[0].mxu0
        %6504 = vmatprep.mubr.bf16.mxu0 0
        %6505 = vmatmul.mubr.bf16.gmra.mrb[0].mxu0 %v6407
        %v6506 = vpop.f32.mrb[0].mxu0
        %v6507 = vadd.f32 0.0, %v6506
        %v6508 = vpop.f32.mrb[0].mxu0
        %v6509 = vpop.f32.mrb[0].mxu0
        %v6510 = vadd.f32 0.0, %v6509
        %v6511 = vpop.f32.mrb[0].mxu0
        %6512 = vmatprep.mubr.bf16.mxu0 0
        %6513 = vmatmul.mubr.bf16.gmra.mrb[0].mxu0 %v6410
        %v6514 = vpop.f32.mrb[0].mxu0
        %v6515 = vadd.f32 0.0, %v6514
        %v6516 = vpop.f32.mrb[0].mxu0
        %v6517 = vpop.f32.mrb[0].mxu0
        %v6518 = vadd.f32 0.0, %v6517
        %v6519 = vpop.f32.mrb[0].mxu0
        %6520 = vmatprep.mubr.bf16.mxu0 0
        %6521 = vmatmul.mubr.bf16.gmra.mrb[0].mxu0 %v6413
        %v6522 = vpop.f32.mrb[0].mxu0
        %v6523 = vadd.f32 0.0, %v6522
        %v6524 = vpop.f32.mrb[0].mxu0
        %v6525 = vpop.f32.mrb[0].mxu0
        %v6526 = vadd.f32 0.0, %v6525
        %v6527 = vpop.f32.mrb[0].mxu0
        %6528 = vmatprep.mubr.bf16.mxu0 0
        %6529 = vmatmul.mubr.bf16.gmra.mrb[0].mxu0 %v6416
        %v6530 = vpop.f32.mrb[0].mxu0
        %v6531 = vadd.f32 0.0, %v6530
        %v6532 = vpop.f32.mrb[0].mxu0
        %v6533 = vpop.f32.mrb[0].mxu0
        %v6534 = vadd.f32 0.0, %v6533
        %v6535 = vpop.f32.mrb[0].mxu0
        %6536 = vmatprep.mubr.bf16.mxu0 0
        %6537 = vmatmul.mubr.bf16.gmra.mrb[0].mxu0 %v6419
        %v6538 = vpop.f32.mrb[0].mxu0
        %v6539 = vadd.f32 0.0, %v6538
        %v6540 = vpop.f32.mrb[0].mxu0
        %v6541 = vpop.f32.mrb[0].mxu0
        %v6542 = vadd.f32 0.0, %v6541
        %v6543 = vpop.f32.mrb[0].mxu0
        %6544 = vmatprep.mubr.bf16.mxu0 0
        %6545 = vmatmul.mubr.bf16.gmra.mrb[0].mxu0 %v6422
        %v6546 = vpop.f32.mrb[0].mxu0
        %v6547 = vadd.f32 0.0, %v6546
        %v6548 = vpop.f32.mrb[0].mxu0
        %v6549 = vpop.f32.mrb[0].mxu0
        %v6550 = vadd.f32 0.0, %v6549
        %v6551 = vpop.f32.mrb[0].mxu0
        %6552 = vmatprep.mubr.bf16.mxu0 0
        %6553 = vmatmul.mubr.bf16.gmra.mrb[0].mxu0 %v6425
        %v6554 = vpop.f32.mrb[0].mxu0
        %v6555 = vadd.f32 0.0, %v6554
        %v6556 = vpop.f32.mrb[0].mxu0
        %v6557 = vpop.f32.mrb[0].mxu0
        %v6558 = vadd.f32 0.0, %v6557
        %v6559 = vpop.f32.mrb[0].mxu0
        %6560 = vmatprep.mubr.bf16.mxu0 0
        %6561 = vmatmul.mubr.bf16.gmra.mrb[0].mxu0 %v6428
        %v6562 = vpop.f32.mrb[0].mxu0
        %v6563 = vadd.f32 0.0, %v6562
        %v6564 = vpop.f32.mrb[0].mxu0
        %v6565 = vpop.f32.mrb[0].mxu0
        %v6566 = vadd.f32 0.0, %v6565
        %v6567 = vpop.f32.mrb[0].mxu0
        %6568 = vmatprep.mubr.bf16.mxu0 0
        %6569 = vmatmul.mubr.bf16.gmra.mrb[0].mxu0 %v6431
        %v6570 = vpop.f32.mrb[0].mxu0
        %v6571 = vadd.f32 0.0, %v6570
        %v6572 = vpop.f32.mrb[0].mxu0
        %v6573 = vpop.f32.mrb[0].mxu0
        %v6574 = vadd.f32 0.0, %v6573
        %v6575 = vpop.f32.mrb[0].mxu0
        %6576 = vmatprep.mubr.bf16.mxu0 0
        %6577 = vmatmul.mubr.bf16.gmra.mrb[0].mxu0 %v6434
        %v6578 = vpop.f32.mrb[0].mxu0
        %v6579 = vadd.f32 0.0, %v6578
        %v6580 = vpop.f32.mrb[0].mxu0
        %v6581 = vpop.f32.mrb[0].mxu0
        %v6582 = vadd.f32 0.0, %v6581
        %v6583 = vpop.f32.mrb[0].mxu0
        %6584 = vmatprep.mubr.bf16.mxu0 0
        %6585 = vmatmul.mubr.bf16.gmra.mrb[0].mxu0 %v6437
        %v6586 = vpop.f32.mrb[0].mxu0
        %v6587 = vadd.f32 0.0, %v6586
        %v6588 = vpop.f32.mrb[0].mxu0
        %v6589 = vpop.f32.mrb[0].mxu0
        %v6590 = vadd.f32 0.0, %v6589
        %v6591 = vpop.f32.mrb[0].mxu0
        %6592 = vmatprep.mubr.bf16.mxu0 0
        %6593 = vmatmul.mubr.bf16.gmra.mrb[0].mxu0 %v6440
        %v6594 = vpop.f32.mrb[0].mxu0
        %v6595 = vadd.f32 0.0, %v6594
        %v6596 = vpop.f32.mrb[0].mxu0
        %v6597 = vpop.f32.mrb[0].mxu0
        %v6598 = vadd.f32 0.0, %v6597
        %v6599 = vpop.f32.mrb[0].mxu0
        %6600 = vmatprep.mubr.bf16.mxu0 0
        %6601 = vmatmul.mubr.bf16.gmra.mrb[0].mxu0 %v6443
        %v6602 = vpop.f32.mrb[0].mxu0
        %v6603 = vadd.f32 0.0, %v6602
        %v6604 = vpop.f32.mrb[0].mxu0
        %v6605 = vpop.f32.mrb[0].mxu0
        %v6606 = vadd.f32 0.0, %v6605
        %v6607 = vpop.f32.mrb[0].mxu0
        %6608 = vdwg.mxu0
        %v6609 = vpack.c.bf16 %v6274, %v6271
        %v6610 = vpack.c.bf16 %v6282, %v6279
        %v6611 = vpack.c.bf16 %v6290, %v6287
        %v6612 = vpack.c.bf16 %v6298, %v6295
        %v6613 = vpack.c.bf16 %v6306, %v6303
        %v6614 = vpack.c.bf16 %v6314, %v6311
        %v6615 = vpack.c.bf16 %v6322, %v6319
        %v6616 = vpack.c.bf16 %v6330, %v6327
        %v6617 = vpack.c.bf16 %v6338, %v6335
        %v6618 = vpack.c.bf16 %v6346, %v6343
        %v6619 = vpack.c.bf16 %v6354, %v6351
        %v6620 = vpack.c.bf16 %v6362, %v6359
        %v6621 = vpack.c.bf16 %v6370, %v6367
        %v6622 = vpack.c.bf16 %v6378, %v6375
        %v6623 = vpack.c.bf16 %v6386, %v6383
        %v6624 = vpack.c.bf16 %v6394, %v6391
        %v6625 = vpack.c.bf16 %v6486, %v6483
        %v6626 = vpack.c.bf16 %v6494, %v6491
        %v6627 = vpack.c.bf16 %v6502, %v6499
        %v6628 = vpack.c.bf16 %v6510, %v6507
        %v6629 = vpack.c.bf16 %v6518, %v6515
        %v6630 = vpack.c.bf16 %v6526, %v6523
        %v6631 = vpack.c.bf16 %v6534, %v6531
        %v6632 = vpack.c.bf16 %v6542, %v6539
        %v6633 = vpack.c.bf16 %v6550, %v6547
        %v6634 = vpack.c.bf16 %v6558, %v6555
        %v6635 = vpack.c.bf16 %v6566, %v6563
        %v6636 = vpack.c.bf16 %v6574, %v6571
        %v6637 = vpack.c.bf16 %v6582, %v6579
        %v6638 = vpack.c.bf16 %v6590, %v6587
        %v6639 = vpack.c.bf16 %v6598, %v6595
        %v6640 = vpack.c.bf16 %v6606, %v6603
        %v6641 = vld [vmem:[%s5] sm:$0xf]
        %v6642 = vld [vmem:[%s5 + $0x4] sm:$0xf]
        %v6643 = vld [vmem:[%s5 + $0x8] sm:$0xf]
        %v6644 = vld [vmem:[%s5 + $0xc] sm:$0xf]
        %v6645 = vld [vmem:[%s5 + $0x10] sm:$0xf]
        %v6646 = vld [vmem:[%s5 + $0x14] sm:$0xf]
        %v6647 = vld [vmem:[%s5 + $0x18] sm:$0xf]
        %v6648 = vld [vmem:[%s5 + $0x1c] sm:$0xf]
        %v6649 = vld [vmem:[%s5 + $0x20] sm:$0xf]
        %v6650 = vld [vmem:[%s5 + $0x24] sm:$0xf]
        %v6651 = vld [vmem:[%s5 + $0x28] sm:$0xf]
        %v6652 = vld [vmem:[%s5 + $0x2c] sm:$0xf]
        %v6653 = vld [vmem:[%s5 + $0x30] sm:$0xf]
        %v6654 = vld [vmem:[%s5 + $0x34] sm:$0xf]
        %v6655 = vld [vmem:[%s5 + $0x38] sm:$0xf]
        %v6656 = vld [vmem:[%s5 + $0x3c] sm:$0xf]
        %v6657 = vld [vmem:[%s5 + $0x40] sm:$0xf]
        %v6658 = vld [vmem:[%s5 + $0x44] sm:$0xf]
        %v6659 = vld [vmem:[%s5 + $0x48] sm:$0xf]
        %v6660 = vld [vmem:[%s5 + $0x4c] sm:$0xf]
        %v6661 = vld [vmem:[%s5 + $0x50] sm:$0xf]
        %v6662 = vld [vmem:[%s5 + $0x54] sm:$0xf]
        %v6663 = vld [vmem:[%s5 + $0x58] sm:$0xf]
        %v6664 = vld [vmem:[%s5 + $0x5c] sm:$0xf]
        %v6665 = vld [vmem:[%s5 + $0x60] sm:$0xf]
        %v6666 = vld [vmem:[%s5 + $0x64] sm:$0xf]
        %v6667 = vld [vmem:[%s5 + $0x68] sm:$0xf]
        %v6668 = vld [vmem:[%s5 + $0x6c] sm:$0xf]
        %v6669 = vld [vmem:[%s5 + $0x70] sm:$0xf]
        %v6670 = vld [vmem:[%s5 + $0x74] sm:$0xf]
        %v6671 = vld [vmem:[%s5 + $0x78] sm:$0xf]
        %v6672 = vld [vmem:[%s5 + $0x7c] sm:$0xf]
        %v6689 = vunpack.c.l.b16 %v6641
        %v6690 = vunpack.c.l.b16 %v6642
        %v6691 = vunpack.c.l.b16 %v6643
        %v6692 = vunpack.c.l.b16 %v6644
        %v6693 = vunpack.c.l.b16 %v6645
        %v6694 = vunpack.c.l.b16 %v6646
        %v6695 = vunpack.c.l.b16 %v6647
        %v6696 = vunpack.c.l.b16 %v6648
        %v6697 = vunpack.c.l.b16 %v6649
        %v6698 = vunpack.c.l.b16 %v6650
        %v6699 = vunpack.c.l.b16 %v6651
        %v6700 = vunpack.c.l.b16 %v6652
        %v6701 = vunpack.c.l.b16 %v6653
        %v6702 = vunpack.c.l.b16 %v6654
        %v6703 = vunpack.c.l.b16 %v6655
        %v6704 = vunpack.c.l.b16 %v6656
        %v6705 = vpack.c.b16 %v6690, %v6689
        %v6706 = vpack.c.b16 %v6692, %v6691
        %v6707 = vpack.c.b16 %v6694, %v6693
        %v6708 = vpack.c.b16 %v6696, %v6695
        %v6709 = vpack.c.b16 %v6698, %v6697
        %v6710 = vpack.c.b16 %v6700, %v6699
        %v6711 = vpack.c.b16 %v6702, %v6701
        %v6712 = vpack.c.b16 %v6704, %v6703
        %6721 = vmatprep.subr.bf16.mxu0 0
        %6722 = vmatpush1.bf16.msra.mxu0 %v6705
        %6723 = vmatprep.subr.bf16.mxu0 0
        %6724 = vmatpush1.bf16.msra.mxu0 %v6706
        %6725 = vmatprep.subr.bf16.mxu0 0
        %6726 = vmatpush1.bf16.msra.mxu0 %v6707
        %6727 = vmatprep.subr.bf16.mxu0 0
        %6728 = vmatpush1.bf16.msra.mxu0 %v6708
        %6729 = vmatprep.subr.bf16.mxu0 0
        %6730 = vmatpush1.bf16.msra.mxu0 %v6709
        %6731 = vmatprep.subr.bf16.mxu0 0
        %6732 = vmatpush1.bf16.msra.mxu0 %v6710
        %6733 = vmatprep.subr.bf16.mxu0 0
        %6734 = vmatpush1.bf16.msra.mxu0 %v6711
        %6735 = vmatprep.subr.bf16.mxu0 0
        %6736 = vmatpush1.bf16.msra.mxu0 %v6712
        %6737 = vmatprep.subr.bf16.mxu0 0
        %6738 = vmatpush1.bf16.msra.mxu0 0
        %6739 = vmatprep.subr.bf16.mxu0 0
        %6740 = vmatpush1.bf16.msra.mxu0 0
        %6741 = vmatprep.subr.bf16.mxu0 0
        %6742 = vmatpush1.bf16.msra.mxu0 0
        %6743 = vmatprep.subr.bf16.mxu0 0
        %6744 = vmatpush1.bf16.msra.mxu0 0
        %6745 = vmatprep.subr.bf16.mxu0 0
        %6746 = vmatpush1.bf16.msra.mxu0 0
        %6747 = vmatprep.subr.bf16.mxu0 0
        %6748 = vmatpush1.bf16.msra.mxu0 0
        %6749 = vmatprep.subr.bf16.mxu0 0
        %6750 = vmatpush1.bf16.msra.mxu0 0
        %6751 = vmatprep.subr.bf16.mxu0 0
        %6752 = vmatpush1.bf16.msra.mxu0 0
        %6753 = vmatprep.mubr.bf16.mxu0 0
        %6754 = vmatmul.mubr.bf16.gmra.mrb[0].mxu0 %v6609
        %v6755 = vpop.f32.mrb[0].mxu0
        %v6756 = vadd.f32 0.0, %v6755
        %v6757 = vpop.f32.mrb[0].mxu0
        %v6758 = vpop.f32.mrb[0].mxu0
        %v6759 = vadd.f32 0.0, %v6758
        %v6760 = vpop.f32.mrb[0].mxu0
        %6761 = vmatprep.mubr.bf16.mxu0 0
        %6762 = vmatmul.mubr.bf16.gmra.mrb[0].mxu0 %v6610
        %v6763 = vpop.f32.mrb[0].mxu0
        %v6764 = vadd.f32 0.0, %v6763
        %v6765 = vpop.f32.mrb[0].mxu0
        %v6766 = vpop.f32.mrb[0].mxu0
        %v6767 = vadd.f32 0.0, %v6766
        %v6768 = vpop.f32.mrb[0].mxu0
        %6769 = vmatprep.mubr.bf16.mxu0 0
        %6770 = vmatmul.mubr.bf16.gmra.mrb[0].mxu0 %v6611
        %v6771 = vpop.f32.mrb[0].mxu0
        %v6772 = vadd.f32 0.0, %v6771
        %v6773 = vpop.f32.mrb[0].mxu0
        %v6774 = vpop.f32.mrb[0].mxu0
        %v6775 = vadd.f32 0.0, %v6774
        %v6776 = vpop.f32.mrb[0].mxu0
        %6777 = vmatprep.mubr.bf16.mxu0 0
        %6778 = vmatmul.mubr.bf16.gmra.mrb[0].mxu0 %v6612
        %v6779 = vpop.f32.mrb[0].mxu0
        %v6780 = vadd.f32 0.0, %v6779
        %v6781 = vpop.f32.mrb[0].mxu0
        %v6782 = vpop.f32.mrb[0].mxu0
        %v6783 = vadd.f32 0.0, %v6782
        %v6784 = vpop.f32.mrb[0].mxu0
        %6785 = vmatprep.mubr.bf16.mxu0 0
        %6786 = vmatmul.mubr.bf16.gmra.mrb[0].mxu0 %v6613
        %v6787 = vpop.f32.mrb[0].mxu0
        %v6788 = vadd.f32 0.0, %v6787
        %v6789 = vpop.f32.mrb[0].mxu0
        %v6790 = vpop.f32.mrb[0].mxu0
        %v6791 = vadd.f32 0.0, %v6790
        %v6792 = vpop.f32.mrb[0].mxu0
        %6793 = vmatprep.mubr.bf16.mxu0 0
        %6794 = vmatmul.mubr.bf16.gmra.mrb[0].mxu0 %v6614
        %v6795 = vpop.f32.mrb[0].mxu0
        %v6796 = vadd.f32 0.0, %v6795
        %v6797 = vpop.f32.mrb[0].mxu0
        %v6798 = vpop.f32.mrb[0].mxu0
        %v6799 = vadd.f32 0.0, %v6798
        %v6800 = vpop.f32.mrb[0].mxu0
        %6801 = vmatprep.mubr.bf16.mxu0 0
        %6802 = vmatmul.mubr.bf16.gmra.mrb[0].mxu0 %v6615
        %v6803 = vpop.f32.mrb[0].mxu0
        %v6804 = vadd.f32 0.0, %v6803
        %v6805 = vpop.f32.mrb[0].mxu0
        %v6806 = vpop.f32.mrb[0].mxu0
        %v6807 = vadd.f32 0.0, %v6806
        %v6808 = vpop.f32.mrb[0].mxu0
        %6809 = vmatprep.mubr.bf16.mxu0 0
        %6810 = vmatmul.mubr.bf16.gmra.mrb[0].mxu0 %v6616
        %v6811 = vpop.f32.mrb[0].mxu0
        %v6812 = vadd.f32 0.0, %v6811
        %v6813 = vpop.f32.mrb[0].mxu0
        %v6814 = vpop.f32.mrb[0].mxu0
        %v6815 = vadd.f32 0.0, %v6814
        %v6816 = vpop.f32.mrb[0].mxu0
        %6817 = vmatprep.mubr.bf16.mxu0 0
        %6818 = vmatmul.mubr.bf16.gmra.mrb[0].mxu0 %v6617
        %v6819 = vpop.f32.mrb[0].mxu0
        %v6820 = vadd.f32 0.0, %v6819
        %v6821 = vpop.f32.mrb[0].mxu0
        %v6822 = vpop.f32.mrb[0].mxu0
        %v6823 = vadd.f32 0.0, %v6822
        %v6824 = vpop.f32.mrb[0].mxu0
        %6825 = vmatprep.mubr.bf16.mxu0 0
        %6826 = vmatmul.mubr.bf16.gmra.mrb[0].mxu0 %v6618
        %v6827 = vpop.f32.mrb[0].mxu0
        %v6828 = vadd.f32 0.0, %v6827
        %v6829 = vpop.f32.mrb[0].mxu0
        %v6830 = vpop.f32.mrb[0].mxu0
        %v6831 = vadd.f32 0.0, %v6830
        %v6832 = vpop.f32.mrb[0].mxu0
        %6833 = vmatprep.mubr.bf16.mxu0 0
        %6834 = vmatmul.mubr.bf16.gmra.mrb[0].mxu0 %v6619
        %v6835 = vpop.f32.mrb[0].mxu0
        %v6836 = vadd.f32 0.0, %v6835
        %v6837 = vpop.f32.mrb[0].mxu0
        %v6838 = vpop.f32.mrb[0].mxu0
        %v6839 = vadd.f32 0.0, %v6838
        %v6840 = vpop.f32.mrb[0].mxu0
        %6841 = vmatprep.mubr.bf16.mxu0 0
        %6842 = vmatmul.mubr.bf16.gmra.mrb[0].mxu0 %v6620
        %v6843 = vpop.f32.mrb[0].mxu0
        %v6844 = vadd.f32 0.0, %v6843
        %v6845 = vpop.f32.mrb[0].mxu0
        %v6846 = vpop.f32.mrb[0].mxu0
        %v6847 = vadd.f32 0.0, %v6846
        %v6848 = vpop.f32.mrb[0].mxu0
        %6849 = vmatprep.mubr.bf16.mxu0 0
        %6850 = vmatmul.mubr.bf16.gmra.mrb[0].mxu0 %v6621
        %v6851 = vpop.f32.mrb[0].mxu0
        %v6852 = vadd.f32 0.0, %v6851
        %v6853 = vpop.f32.mrb[0].mxu0
        %v6854 = vpop.f32.mrb[0].mxu0
        %v6855 = vadd.f32 0.0, %v6854
        %v6856 = vpop.f32.mrb[0].mxu0
        %6857 = vmatprep.mubr.bf16.mxu0 0
        %6858 = vmatmul.mubr.bf16.gmra.mrb[0].mxu0 %v6622
        %v6859 = vpop.f32.mrb[0].mxu0
        %v6860 = vadd.f32 0.0, %v6859
        %v6861 = vpop.f32.mrb[0].mxu0
        %v6862 = vpop.f32.mrb[0].mxu0
        %v6863 = vadd.f32 0.0, %v6862
        %v6864 = vpop.f32.mrb[0].mxu0
        %6865 = vmatprep.mubr.bf16.mxu0 0
        %6866 = vmatmul.mubr.bf16.gmra.mrb[0].mxu0 %v6623
        %v6867 = vpop.f32.mrb[0].mxu0
        %v6868 = vadd.f32 0.0, %v6867
        %v6869 = vpop.f32.mrb[0].mxu0
        %v6870 = vpop.f32.mrb[0].mxu0
        %v6871 = vadd.f32 0.0, %v6870
        %v6872 = vpop.f32.mrb[0].mxu0
        %6873 = vmatprep.mubr.bf16.mxu0 0
        %6874 = vmatmul.mubr.bf16.gmra.mrb[0].mxu0 %v6624
        %v6875 = vpop.f32.mrb[0].mxu0
        %v6876 = vadd.f32 0.0, %v6875
        %v6877 = vpop.f32.mrb[0].mxu0
        %v6878 = vpop.f32.mrb[0].mxu0
        %v6879 = vadd.f32 0.0, %v6878
        %v6880 = vpop.f32.mrb[0].mxu0
        %6881 = vdwg.mxu0
        %v6898 = vunpack.c.l.b16 %v6657
        %v6899 = vunpack.c.l.b16 %v6658
        %v6900 = vunpack.c.l.b16 %v6659
        %v6901 = vunpack.c.l.b16 %v6660
        %v6902 = vunpack.c.l.b16 %v6661
        %v6903 = vunpack.c.l.b16 %v6662
        %v6904 = vunpack.c.l.b16 %v6663
        %v6905 = vunpack.c.l.b16 %v6664
        %v6906 = vunpack.c.l.b16 %v6665
        %v6907 = vunpack.c.l.b16 %v6666
        %v6908 = vunpack.c.l.b16 %v6667
        %v6909 = vunpack.c.l.b16 %v6668
        %v6910 = vunpack.c.l.b16 %v6669
        %v6911 = vunpack.c.l.b16 %v6670
        %v6912 = vunpack.c.l.b16 %v6671
        %v6913 = vunpack.c.l.b16 %v6672
        %v6914 = vpack.c.b16 %v6899, %v6898
        %v6915 = vpack.c.b16 %v6901, %v6900
        %v6916 = vpack.c.b16 %v6903, %v6902
        %v6917 = vpack.c.b16 %v6905, %v6904
        %v6918 = vpack.c.b16 %v6907, %v6906
        %v6919 = vpack.c.b16 %v6909, %v6908
        %v6920 = vpack.c.b16 %v6911, %v6910
        %v6921 = vpack.c.b16 %v6913, %v6912
        %6930 = vmatprep.subr.bf16.mxu0 0
        %6931 = vmatpush1.bf16.msra.mxu0 %v6914
        %6932 = vmatprep.subr.bf16.mxu0 0
        %6933 = vmatpush1.bf16.msra.mxu0 %v6915
        %6934 = vmatprep.subr.bf16.mxu0 0
        %6935 = vmatpush1.bf16.msra.mxu0 %v6916
        %6936 = vmatprep.subr.bf16.mxu0 0
        %6937 = vmatpush1.bf16.msra.mxu0 %v6917
        %6938 = vmatprep.subr.bf16.mxu0 0
        %6939 = vmatpush1.bf16.msra.mxu0 %v6918
        %6940 = vmatprep.subr.bf16.mxu0 0
        %6941 = vmatpush1.bf16.msra.mxu0 %v6919
        %6942 = vmatprep.subr.bf16.mxu0 0
        %6943 = vmatpush1.bf16.msra.mxu0 %v6920
        %6944 = vmatprep.subr.bf16.mxu0 0
        %6945 = vmatpush1.bf16.msra.mxu0 %v6921
        %6946 = vmatprep.subr.bf16.mxu0 0
        %6947 = vmatpush1.bf16.msra.mxu0 0
        %6948 = vmatprep.subr.bf16.mxu0 0
        %6949 = vmatpush1.bf16.msra.mxu0 0
        %6950 = vmatprep.subr.bf16.mxu0 0
        %6951 = vmatpush1.bf16.msra.mxu0 0
        %6952 = vmatprep.subr.bf16.mxu0 0
        %6953 = vmatpush1.bf16.msra.mxu0 0
        %6954 = vmatprep.subr.bf16.mxu0 0
        %6955 = vmatpush1.bf16.msra.mxu0 0
        %6956 = vmatprep.subr.bf16.mxu0 0
        %6957 = vmatpush1.bf16.msra.mxu0 0
        %6958 = vmatprep.subr.bf16.mxu0 0
        %6959 = vmatpush1.bf16.msra.mxu0 0
        %6960 = vmatprep.subr.bf16.mxu0 0
        %6961 = vmatpush1.bf16.msra.mxu0 0
        %6962 = vmatprep.mubr.bf16.mxu0 0
        %6963 = vmatmul.mubr.bf16.gmra.mrb[0].mxu0 %v6625
        %v6964 = vpop.f32.mrb[0].mxu0
        %v6965 = vadd.f32 0.0, %v6964
        %v6966 = vpop.f32.mrb[0].mxu0
        %v6967 = vpop.f32.mrb[0].mxu0
        %v6968 = vadd.f32 0.0, %v6967
        %v6969 = vpop.f32.mrb[0].mxu0
        %6970 = vmatprep.mubr.bf16.mxu0 0
        %6971 = vmatmul.mubr.bf16.gmra.mrb[0].mxu0 %v6626
        %v6972 = vpop.f32.mrb[0].mxu0
        %v6973 = vadd.f32 0.0, %v6972
        %v6974 = vpop.f32.mrb[0].mxu0
        %v6975 = vpop.f32.mrb[0].mxu0
        %v6976 = vadd.f32 0.0, %v6975
        %v6977 = vpop.f32.mrb[0].mxu0
        %6978 = vmatprep.mubr.bf16.mxu0 0
        %6979 = vmatmul.mubr.bf16.gmra.mrb[0].mxu0 %v6627
        %v6980 = vpop.f32.mrb[0].mxu0
        %v6981 = vadd.f32 0.0, %v6980
        %v6982 = vpop.f32.mrb[0].mxu0
        %v6983 = vpop.f32.mrb[0].mxu0
        %v6984 = vadd.f32 0.0, %v6983
        %v6985 = vpop.f32.mrb[0].mxu0
        %6986 = vmatprep.mubr.bf16.mxu0 0
        %6987 = vmatmul.mubr.bf16.gmra.mrb[0].mxu0 %v6628
        %v6988 = vpop.f32.mrb[0].mxu0
        %v6989 = vadd.f32 0.0, %v6988
        %v6990 = vpop.f32.mrb[0].mxu0
        %v6991 = vpop.f32.mrb[0].mxu0
        %v6992 = vadd.f32 0.0, %v6991
        %v6993 = vpop.f32.mrb[0].mxu0
        %6994 = vmatprep.mubr.bf16.mxu0 0
        %6995 = vmatmul.mubr.bf16.gmra.mrb[0].mxu0 %v6629
        %v6996 = vpop.f32.mrb[0].mxu0
        %v6997 = vadd.f32 0.0, %v6996
        %v6998 = vpop.f32.mrb[0].mxu0
        %v6999 = vpop.f32.mrb[0].mxu0
        %v7000 = vadd.f32 0.0, %v6999
        %v7001 = vpop.f32.mrb[0].mxu0
        %7002 = vmatprep.mubr.bf16.mxu0 0
        %7003 = vmatmul.mubr.bf16.gmra.mrb[0].mxu0 %v6630
        %v7004 = vpop.f32.mrb[0].mxu0
        %v7005 = vadd.f32 0.0, %v7004
        %v7006 = vpop.f32.mrb[0].mxu0
        %v7007 = vpop.f32.mrb[0].mxu0
        %v7008 = vadd.f32 0.0, %v7007
        %v7009 = vpop.f32.mrb[0].mxu0
        %7010 = vmatprep.mubr.bf16.mxu0 0
        %7011 = vmatmul.mubr.bf16.gmra.mrb[0].mxu0 %v6631
        %v7012 = vpop.f32.mrb[0].mxu0
        %v7013 = vadd.f32 0.0, %v7012
        %v7014 = vpop.f32.mrb[0].mxu0
        %v7015 = vpop.f32.mrb[0].mxu0
        %v7016 = vadd.f32 0.0, %v7015
        %v7017 = vpop.f32.mrb[0].mxu0
        %7018 = vmatprep.mubr.bf16.mxu0 0
        %7019 = vmatmul.mubr.bf16.gmra.mrb[0].mxu0 %v6632
        %v7020 = vpop.f32.mrb[0].mxu0
        %v7021 = vadd.f32 0.0, %v7020
        %v7022 = vpop.f32.mrb[0].mxu0
        %v7023 = vpop.f32.mrb[0].mxu0
        %v7024 = vadd.f32 0.0, %v7023
        %v7025 = vpop.f32.mrb[0].mxu0
        %7026 = vmatprep.mubr.bf16.mxu0 0
        %7027 = vmatmul.mubr.bf16.gmra.mrb[0].mxu0 %v6633
        %v7028 = vpop.f32.mrb[0].mxu0
        %v7029 = vadd.f32 0.0, %v7028
        %v7030 = vpop.f32.mrb[0].mxu0
        %v7031 = vpop.f32.mrb[0].mxu0
        %v7032 = vadd.f32 0.0, %v7031
        %v7033 = vpop.f32.mrb[0].mxu0
        %7034 = vmatprep.mubr.bf16.mxu0 0
        %7035 = vmatmul.mubr.bf16.gmra.mrb[0].mxu0 %v6634
        %v7036 = vpop.f32.mrb[0].mxu0
        %v7037 = vadd.f32 0.0, %v7036
        %v7038 = vpop.f32.mrb[0].mxu0
        %v7039 = vpop.f32.mrb[0].mxu0
        %v7040 = vadd.f32 0.0, %v7039
        %v7041 = vpop.f32.mrb[0].mxu0
        %7042 = vmatprep.mubr.bf16.mxu0 0
        %7043 = vmatmul.mubr.bf16.gmra.mrb[0].mxu0 %v6635
        %v7044 = vpop.f32.mrb[0].mxu0
        %v7045 = vadd.f32 0.0, %v7044
        %v7046 = vpop.f32.mrb[0].mxu0
        %v7047 = vpop.f32.mrb[0].mxu0
        %v7048 = vadd.f32 0.0, %v7047
        %v7049 = vpop.f32.mrb[0].mxu0
        %7050 = vmatprep.mubr.bf16.mxu0 0
        %7051 = vmatmul.mubr.bf16.gmra.mrb[0].mxu0 %v6636
        %v7052 = vpop.f32.mrb[0].mxu0
        %v7053 = vadd.f32 0.0, %v7052
        %v7054 = vpop.f32.mrb[0].mxu0
        %v7055 = vpop.f32.mrb[0].mxu0
        %v7056 = vadd.f32 0.0, %v7055
        %v7057 = vpop.f32.mrb[0].mxu0
        %7058 = vmatprep.mubr.bf16.mxu0 0
        %7059 = vmatmul.mubr.bf16.gmra.mrb[0].mxu0 %v6637
        %v7060 = vpop.f32.mrb[0].mxu0
        %v7061 = vadd.f32 0.0, %v7060
        %v7062 = vpop.f32.mrb[0].mxu0
        %v7063 = vpop.f32.mrb[0].mxu0
        %v7064 = vadd.f32 0.0, %v7063
        %v7065 = vpop.f32.mrb[0].mxu0
        %7066 = vmatprep.mubr.bf16.mxu0 0
        %7067 = vmatmul.mubr.bf16.gmra.mrb[0].mxu0 %v6638
        %v7068 = vpop.f32.mrb[0].mxu0
        %v7069 = vadd.f32 0.0, %v7068
        %v7070 = vpop.f32.mrb[0].mxu0
        %v7071 = vpop.f32.mrb[0].mxu0
        %v7072 = vadd.f32 0.0, %v7071
        %v7073 = vpop.f32.mrb[0].mxu0
        %7074 = vmatprep.mubr.bf16.mxu0 0
        %7075 = vmatmul.mubr.bf16.gmra.mrb[0].mxu0 %v6639
        %v7076 = vpop.f32.mrb[0].mxu0
        %v7077 = vadd.f32 0.0, %v7076
        %v7078 = vpop.f32.mrb[0].mxu0
        %v7079 = vpop.f32.mrb[0].mxu0
        %v7080 = vadd.f32 0.0, %v7079
        %v7081 = vpop.f32.mrb[0].mxu0
        %7082 = vmatprep.mubr.bf16.mxu0 0
        %7083 = vmatmul.mubr.bf16.gmra.mrb[0].mxu0 %v6640
        %v7084 = vpop.f32.mrb[0].mxu0
        %v7085 = vadd.f32 0.0, %v7084
        %v7086 = vpop.f32.mrb[0].mxu0
        %v7087 = vpop.f32.mrb[0].mxu0
        %v7088 = vadd.f32 0.0, %v7087
        %v7089 = vpop.f32.mrb[0].mxu0
        %7090 = vdwg.mxu0
        %v7091 = vadd.f32 %v6756, %v6965
        %v7092 = vadd.f32 %v6759, %v6968
        %v7093 = vadd.f32 %v6764, %v6973
        %v7094 = vadd.f32 %v6767, %v6976
        %v7095 = vadd.f32 %v6772, %v6981
        %v7096 = vadd.f32 %v6775, %v6984
        %v7097 = vadd.f32 %v6780, %v6989
        %v7098 = vadd.f32 %v6783, %v6992
        %v7099 = vadd.f32 %v6788, %v6997
        %v7100 = vadd.f32 %v6791, %v7000
        %v7101 = vadd.f32 %v6796, %v7005
        %v7102 = vadd.f32 %v6799, %v7008
        %v7103 = vadd.f32 %v6804, %v7013
        %v7104 = vadd.f32 %v6807, %v7016
        %v7105 = vadd.f32 %v6812, %v7021
        %v7106 = vadd.f32 %v6815, %v7024
        %v7107 = vadd.f32 %v6820, %v7029
        %v7108 = vadd.f32 %v6823, %v7032
        %v7109 = vadd.f32 %v6828, %v7037
        %v7110 = vadd.f32 %v6831, %v7040
        %v7111 = vadd.f32 %v6836, %v7045
        %v7112 = vadd.f32 %v6839, %v7048
        %v7113 = vadd.f32 %v6844, %v7053
        %v7114 = vadd.f32 %v6847, %v7056
        %v7115 = vadd.f32 %v6852, %v7061
        %v7116 = vadd.f32 %v6855, %v7064
        %v7117 = vadd.f32 %v6860, %v7069
        %v7118 = vadd.f32 %v6863, %v7072
        %v7119 = vadd.f32 %v6868, %v7077
        %v7120 = vadd.f32 %v6871, %v7080
        %v7121 = vadd.f32 %v6876, %v7085
        %v7122 = vadd.f32 %v6879, %v7088
        %v7123 = vadd.f32 %v7091, %v457
        %v7124 = vadd.f32 %v7092, %v458
        %v7125 = vadd.f32 %v7093, %v459
        %v7126 = vadd.f32 %v7094, %v460
        %v7127 = vadd.f32 %v7095, %v461
        %v7128 = vadd.f32 %v7096, %v462
        %v7129 = vadd.f32 %v7097, %v463
        %v7130 = vadd.f32 %v7098, %v464
        %v7131 = vadd.f32 %v7099, %v465
        %v7132 = vadd.f32 %v7100, %v466
        %v7133 = vadd.f32 %v7101, %v467
        %v7134 = vadd.f32 %v7102, %v468
        %v7135 = vadd.f32 %v7103, %v469
        %v7136 = vadd.f32 %v7104, %v470
        %v7137 = vadd.f32 %v7105, %v471
        %v7138 = vadd.f32 %v7106, %v472
        %v7139 = vadd.f32 %v7107, %v473
        %v7140 = vadd.f32 %v7108, %v474
        %v7141 = vadd.f32 %v7109, %v475
        %v7142 = vadd.f32 %v7110, %v476
        %v7143 = vadd.f32 %v7111, %v477
        %v7144 = vadd.f32 %v7112, %v478
        %v7145 = vadd.f32 %v7113, %v479
        %v7146 = vadd.f32 %v7114, %v480
        %v7147 = vadd.f32 %v7115, %v481
        %v7148 = vadd.f32 %v7116, %v482
        %v7149 = vadd.f32 %v7117, %v483
        %v7150 = vadd.f32 %v7118, %v484
        %v7151 = vadd.f32 %v7119, %v485
        %v7152 = vadd.f32 %v7120, %v486
        %v7153 = vadd.f32 %v7121, %v487
        %v7154 = vadd.f32 %v7122, %v488
        %v7155 = vmul.f32 %v7123, %v7123
        %v7156 = vmul.f32 %v7124, %v7124
        %v7157 = vmul.f32 %v7125, %v7125
        %v7158 = vmul.f32 %v7126, %v7126
        %v7159 = vmul.f32 %v7127, %v7127
        %v7160 = vmul.f32 %v7128, %v7128
        %v7161 = vmul.f32 %v7129, %v7129
        %v7162 = vmul.f32 %v7130, %v7130
        %v7163 = vmul.f32 %v7131, %v7131
        %v7164 = vmul.f32 %v7132, %v7132
        %v7165 = vmul.f32 %v7133, %v7133
        %v7166 = vmul.f32 %v7134, %v7134
        %v7167 = vmul.f32 %v7135, %v7135
        %v7168 = vmul.f32 %v7136, %v7136
        %v7169 = vmul.f32 %v7137, %v7137
        %v7170 = vmul.f32 %v7138, %v7138
        %v7171 = vmul.f32 %v7139, %v7139
        %v7172 = vmul.f32 %v7140, %v7140
        %v7173 = vmul.f32 %v7141, %v7141
        %v7174 = vmul.f32 %v7142, %v7142
        %v7175 = vmul.f32 %v7143, %v7143
        %v7176 = vmul.f32 %v7144, %v7144
        %v7177 = vmul.f32 %v7145, %v7145
        %v7178 = vmul.f32 %v7146, %v7146
        %v7179 = vmul.f32 %v7147, %v7147
        %v7180 = vmul.f32 %v7148, %v7148
        %v7181 = vmul.f32 %v7149, %v7149
        %v7182 = vmul.f32 %v7150, %v7150
        %v7183 = vmul.f32 %v7151, %v7151
        %v7184 = vmul.f32 %v7152, %v7152
        %v7185 = vmul.f32 %v7153, %v7153
        %v7186 = vmul.f32 %v7154, %v7154
        %7187 = vadd.xlane.f32.xlu0 %v7155
        %v7188 = vpop.xlane.xlu0 %7187
        %7189 = vadd.xlane.f32.xlu0 %v7156
        %v7190 = vpop.xlane.xlu0 %7189
        %7191 = vadd.xlane.f32.xlu0 %v7157
        %v7192 = vpop.xlane.xlu0 %7191
        %7193 = vadd.xlane.f32.xlu0 %v7158
        %v7194 = vpop.xlane.xlu0 %7193
        %7195 = vadd.xlane.f32.xlu0 %v7159
        %v7196 = vpop.xlane.xlu0 %7195
        %7197 = vadd.xlane.f32.xlu0 %v7160
        %v7198 = vpop.xlane.xlu0 %7197
        %7199 = vadd.xlane.f32.xlu0 %v7161
        %v7200 = vpop.xlane.xlu0 %7199
        %7201 = vadd.xlane.f32.xlu0 %v7162
        %v7202 = vpop.xlane.xlu0 %7201
        %7203 = vadd.xlane.f32.xlu0 %v7163
        %v7204 = vpop.xlane.xlu0 %7203
        %7205 = vadd.xlane.f32.xlu0 %v7164
        %v7206 = vpop.xlane.xlu0 %7205
        %7207 = vadd.xlane.f32.xlu0 %v7165
        %v7208 = vpop.xlane.xlu0 %7207
        %7209 = vadd.xlane.f32.xlu0 %v7166
        %v7210 = vpop.xlane.xlu0 %7209
        %7211 = vadd.xlane.f32.xlu0 %v7167
        %v7212 = vpop.xlane.xlu0 %7211
        %7213 = vadd.xlane.f32.xlu0 %v7168
        %v7214 = vpop.xlane.xlu0 %7213
        %7215 = vadd.xlane.f32.xlu0 %v7169
        %v7216 = vpop.xlane.xlu0 %7215
        %7217 = vadd.xlane.f32.xlu0 %v7170
        %v7218 = vpop.xlane.xlu0 %7217
        %7219 = vadd.xlane.f32.xlu0 %v7171
        %v7220 = vpop.xlane.xlu0 %7219
        %7221 = vadd.xlane.f32.xlu0 %v7172
        %v7222 = vpop.xlane.xlu0 %7221
        %7223 = vadd.xlane.f32.xlu0 %v7173
        %v7224 = vpop.xlane.xlu0 %7223
        %7225 = vadd.xlane.f32.xlu0 %v7174
        %v7226 = vpop.xlane.xlu0 %7225
        %7227 = vadd.xlane.f32.xlu0 %v7175
        %v7228 = vpop.xlane.xlu0 %7227
        %7229 = vadd.xlane.f32.xlu0 %v7176
        %v7230 = vpop.xlane.xlu0 %7229
        %7231 = vadd.xlane.f32.xlu0 %v7177
        %v7232 = vpop.xlane.xlu0 %7231
        %7233 = vadd.xlane.f32.xlu0 %v7178
        %v7234 = vpop.xlane.xlu0 %7233
        %7235 = vadd.xlane.f32.xlu0 %v7179
        %v7236 = vpop.xlane.xlu0 %7235
        %7237 = vadd.xlane.f32.xlu0 %v7180
        %v7238 = vpop.xlane.xlu0 %7237
        %7239 = vadd.xlane.f32.xlu0 %v7181
        %v7240 = vpop.xlane.xlu0 %7239
        %7241 = vadd.xlane.f32.xlu0 %v7182
        %v7242 = vpop.xlane.xlu0 %7241
        %7243 = vadd.xlane.f32.xlu0 %v7183
        %v7244 = vpop.xlane.xlu0 %7243
        %7245 = vadd.xlane.f32.xlu0 %v7184
        %v7246 = vpop.xlane.xlu0 %7245
        %7247 = vadd.xlane.f32.xlu0 %v7185
        %v7248 = vpop.xlane.xlu0 %7247
        %7249 = vadd.xlane.f32.xlu0 %v7186
        %v7250 = vpop.xlane.xlu0 %7249
        %v7251 = vmax.f32 %v7188, 1e-24
        %v7252 = vmax.f32 %v7190, 1e-24
        %v7253 = vmax.f32 %v7192, 1e-24
        %v7254 = vmax.f32 %v7194, 1e-24
        %v7255 = vmax.f32 %v7196, 1e-24
        %v7256 = vmax.f32 %v7198, 1e-24
        %v7257 = vmax.f32 %v7200, 1e-24
        %v7258 = vmax.f32 %v7202, 1e-24
        %v7259 = vmax.f32 %v7204, 1e-24
        %v7260 = vmax.f32 %v7206, 1e-24
        %v7261 = vmax.f32 %v7208, 1e-24
        %v7262 = vmax.f32 %v7210, 1e-24
        %v7263 = vmax.f32 %v7212, 1e-24
        %v7264 = vmax.f32 %v7214, 1e-24
        %v7265 = vmax.f32 %v7216, 1e-24
        %v7266 = vmax.f32 %v7218, 1e-24
        %v7267 = vmax.f32 %v7220, 1e-24
        %v7268 = vmax.f32 %v7222, 1e-24
        %v7269 = vmax.f32 %v7224, 1e-24
        %v7270 = vmax.f32 %v7226, 1e-24
        %v7271 = vmax.f32 %v7228, 1e-24
        %v7272 = vmax.f32 %v7230, 1e-24
        %v7273 = vmax.f32 %v7232, 1e-24
        %v7274 = vmax.f32 %v7234, 1e-24
        %v7275 = vmax.f32 %v7236, 1e-24
        %v7276 = vmax.f32 %v7238, 1e-24
        %v7277 = vmax.f32 %v7240, 1e-24
        %v7278 = vmax.f32 %v7242, 1e-24
        %v7279 = vmax.f32 %v7244, 1e-24
        %v7280 = vmax.f32 %v7246, 1e-24
        %v7281 = vmax.f32 %v7248, 1e-24
        %v7282 = vmax.f32 %v7250, 1e-24
        %v7283 = vrsqrt.pop %v7251
        %v7284 = vrsqrt.pop %v7252
        %v7285 = vrsqrt.pop %v7253
        %v7286 = vrsqrt.pop %v7254
        %v7287 = vrsqrt.pop %v7255
        %v7288 = vrsqrt.pop %v7256
        %v7289 = vrsqrt.pop %v7257
        %v7290 = vrsqrt.pop %v7258
        %v7291 = vrsqrt.pop %v7259
        %v7292 = vrsqrt.pop %v7260
        %v7293 = vrsqrt.pop %v7261
        %v7294 = vrsqrt.pop %v7262
        %v7295 = vrsqrt.pop %v7263
        %v7296 = vrsqrt.pop %v7264
        %v7297 = vrsqrt.pop %v7265
        %v7298 = vrsqrt.pop %v7266
        %v7299 = vrsqrt.pop %v7267
        %v7300 = vrsqrt.pop %v7268
        %v7301 = vrsqrt.pop %v7269
        %v7302 = vrsqrt.pop %v7270
        %v7303 = vrsqrt.pop %v7271
        %v7304 = vrsqrt.pop %v7272
        %v7305 = vrsqrt.pop %v7273
        %v7306 = vrsqrt.pop %v7274
        %v7307 = vrsqrt.pop %v7275
        %v7308 = vrsqrt.pop %v7276
        %v7309 = vrsqrt.pop %v7277
        %v7310 = vrsqrt.pop %v7278
        %v7311 = vrsqrt.pop %v7279
        %v7312 = vrsqrt.pop %v7280
        %v7313 = vrsqrt.pop %v7281
        %v7314 = vrsqrt.pop %v7282
        %v7315 = vmul.f32 %v7123, %v7283
        %v7316 = vmul.f32 %v7124, %v7284
        %v7317 = vmul.f32 %v7125, %v7285
        %v7318 = vmul.f32 %v7126, %v7286
        %v7319 = vmul.f32 %v7127, %v7287
        %v7320 = vmul.f32 %v7128, %v7288
        %v7321 = vmul.f32 %v7129, %v7289
        %v7322 = vmul.f32 %v7130, %v7290
        %v7323 = vmul.f32 %v7131, %v7291
        %v7324 = vmul.f32 %v7132, %v7292
        %v7325 = vmul.f32 %v7133, %v7293
        %v7326 = vmul.f32 %v7134, %v7294
        %v7327 = vmul.f32 %v7135, %v7295
        %v7328 = vmul.f32 %v7136, %v7296
        %v7329 = vmul.f32 %v7137, %v7297
        %v7330 = vmul.f32 %v7138, %v7298
        %v7331 = vmul.f32 %v7139, %v7299
        %v7332 = vmul.f32 %v7140, %v7300
        %v7333 = vmul.f32 %v7141, %v7301
        %v7334 = vmul.f32 %v7142, %v7302
        %v7335 = vmul.f32 %v7143, %v7303
        %v7336 = vmul.f32 %v7144, %v7304
        %v7337 = vmul.f32 %v7145, %v7305
        %v7338 = vmul.f32 %v7146, %v7306
        %v7339 = vmul.f32 %v7147, %v7307
        %v7340 = vmul.f32 %v7148, %v7308
        %v7341 = vmul.f32 %v7149, %v7309
        %v7342 = vmul.f32 %v7150, %v7310
        %v7343 = vmul.f32 %v7151, %v7311
        %v7344 = vmul.f32 %v7152, %v7312
        %v7345 = vmul.f32 %v7153, %v7313
        %v7346 = vmul.f32 %v7154, %v7314
        %v7347 = vmul.f32 %v7315, 11.313708
        %v7348 = vmul.f32 %v7316, 11.313708
        %v7349 = vmul.f32 %v7317, 11.313708
        %v7350 = vmul.f32 %v7318, 11.313708
        %v7351 = vmul.f32 %v7319, 11.313708
        %v7352 = vmul.f32 %v7320, 11.313708
        %v7353 = vmul.f32 %v7321, 11.313708
        %v7354 = vmul.f32 %v7322, 11.313708
        %v7355 = vmul.f32 %v7323, 11.313708
        %v7356 = vmul.f32 %v7324, 11.313708
        %v7357 = vmul.f32 %v7325, 11.313708
        %v7358 = vmul.f32 %v7326, 11.313708
        %v7359 = vmul.f32 %v7327, 11.313708
        %v7360 = vmul.f32 %v7328, 11.313708
        %v7361 = vmul.f32 %v7329, 11.313708
        %v7362 = vmul.f32 %v7330, 11.313708
        %v7363 = vmul.f32 %v7331, 11.313708
        %v7364 = vmul.f32 %v7332, 11.313708
        %v7365 = vmul.f32 %v7333, 11.313708
        %v7366 = vmul.f32 %v7334, 11.313708
        %v7367 = vmul.f32 %v7335, 11.313708
        %v7368 = vmul.f32 %v7336, 11.313708
        %v7369 = vmul.f32 %v7337, 11.313708
        %v7370 = vmul.f32 %v7338, 11.313708
        %v7371 = vmul.f32 %v7339, 11.313708
        %v7372 = vmul.f32 %v7340, 11.313708
        %v7373 = vmul.f32 %v7341, 11.313708
        %v7374 = vmul.f32 %v7342, 11.313708
        %v7375 = vmul.f32 %v7343, 11.313708
        %v7376 = vmul.f32 %v7344, 11.313708
        %v7377 = vmul.f32 %v7345, 11.313708
        %v7378 = vmul.f32 %v7346, 11.313708
        %v7379 = vld [vmem:[%s6] sm:$0x1]
        %v7381 = vlaneseq
        %v7382 = vshrl.u32 %v7381, 7
        %v7383 = vsub.s32 0, %v7382
        %v7384 = vrot.slane %v7379, %v7383
        %v7386 = vmul.f32 %v7347, %v7384
        %v7387 = vmul.f32 %v7348, %v7384
        %v7388 = vmul.f32 %v7349, %v7384
        %v7389 = vmul.f32 %v7350, %v7384
        %v7390 = vmul.f32 %v7351, %v7384
        %v7391 = vmul.f32 %v7352, %v7384
        %v7392 = vmul.f32 %v7353, %v7384
        %v7393 = vmul.f32 %v7354, %v7384
        %v7394 = vmul.f32 %v7355, %v7384
        %v7395 = vmul.f32 %v7356, %v7384
        %v7396 = vmul.f32 %v7357, %v7384
        %v7397 = vmul.f32 %v7358, %v7384
        %v7398 = vmul.f32 %v7359, %v7384
        %v7399 = vmul.f32 %v7360, %v7384
        %v7400 = vmul.f32 %v7361, %v7384
        %v7401 = vmul.f32 %v7362, %v7384
        %v7402 = vmul.f32 %v7363, %v7384
        %v7403 = vmul.f32 %v7364, %v7384
        %v7404 = vmul.f32 %v7365, %v7384
        %v7405 = vmul.f32 %v7366, %v7384
        %v7406 = vmul.f32 %v7367, %v7384
        %v7407 = vmul.f32 %v7368, %v7384
        %v7408 = vmul.f32 %v7369, %v7384
        %v7409 = vmul.f32 %v7370, %v7384
        %v7410 = vmul.f32 %v7371, %v7384
        %v7411 = vmul.f32 %v7372, %v7384
        %v7412 = vmul.f32 %v7373, %v7384
        %v7413 = vmul.f32 %v7374, %v7384
        %v7414 = vmul.f32 %v7375, %v7384
        %v7415 = vmul.f32 %v7376, %v7384
        %v7416 = vmul.f32 %v7377, %v7384
        %v7417 = vmul.f32 %v7378, %v7384
        %v7418 = vpack.c.bf16 %v7387, %v7386
        %v7419 = vpack.c.bf16 %v7389, %v7388
        %v7420 = vpack.c.bf16 %v7391, %v7390
        %v7421 = vpack.c.bf16 %v7393, %v7392
        %v7422 = vpack.c.bf16 %v7395, %v7394
        %v7423 = vpack.c.bf16 %v7397, %v7396
        %v7424 = vpack.c.bf16 %v7399, %v7398
        %v7425 = vpack.c.bf16 %v7401, %v7400
        %v7426 = vpack.c.bf16 %v7403, %v7402
        %v7427 = vpack.c.bf16 %v7405, %v7404
        %v7428 = vpack.c.bf16 %v7407, %v7406
        %v7429 = vpack.c.bf16 %v7409, %v7408
        %v7430 = vpack.c.bf16 %v7411, %v7410
        %v7431 = vpack.c.bf16 %v7413, %v7412
        %v7432 = vpack.c.bf16 %v7415, %v7414
        %v7433 = vpack.c.bf16 %v7417, %v7416
        %v7434 = vld [vmem:[%s7] sm:$0xff]
        %v7435 = vld [vmem:[%s7 + $0x8] sm:$0xff]
        %v7436 = vld [vmem:[%s7 + $0x10] sm:$0xff]
        %v7437 = vld [vmem:[%s7 + $0x18] sm:$0xff]
        %v7438 = vld [vmem:[%s7 + $0x20] sm:$0xff]
        %v7439 = vld [vmem:[%s7 + $0x28] sm:$0xff]
        %v7440 = vld [vmem:[%s7 + $0x30] sm:$0xff]
        %v7441 = vld [vmem:[%s7 + $0x38] sm:$0xff]
        %v7442 = vld [vmem:[%s7 + $0x40] sm:$0xff]
        %v7443 = vld [vmem:[%s7 + $0x48] sm:$0xff]
        %v7444 = vld [vmem:[%s7 + $0x50] sm:$0xff]
        %v7445 = vld [vmem:[%s7 + $0x58] sm:$0xff]
        %v7446 = vld [vmem:[%s7 + $0x60] sm:$0xff]
        %v7447 = vld [vmem:[%s7 + $0x68] sm:$0xff]
        %v7448 = vld [vmem:[%s7 + $0x70] sm:$0xff]
        %v7449 = vld [vmem:[%s7 + $0x78] sm:$0xff]
        %v7450 = vld [vmem:[%s7 + $0x80] sm:$0xff]
        %v7451 = vld [vmem:[%s7 + $0x88] sm:$0xff]
        %v7452 = vld [vmem:[%s7 + $0x90] sm:$0xff]
        %v7453 = vld [vmem:[%s7 + $0x98] sm:$0xff]
        %v7454 = vld [vmem:[%s7 + $0xa0] sm:$0xff]
        %v7455 = vld [vmem:[%s7 + $0xa8] sm:$0xff]
        %v7456 = vld [vmem:[%s7 + $0xb0] sm:$0xff]
        %v7457 = vld [vmem:[%s7 + $0xb8] sm:$0xff]
        %v7458 = vld [vmem:[%s7 + $0xc0] sm:$0xff]
        %v7459 = vld [vmem:[%s7 + $0xc8] sm:$0xff]
        %v7460 = vld [vmem:[%s7 + $0xd0] sm:$0xff]
        %v7461 = vld [vmem:[%s7 + $0xd8] sm:$0xff]
        %v7462 = vld [vmem:[%s7 + $0xe0] sm:$0xff]
        %v7463 = vld [vmem:[%s7 + $0xe8] sm:$0xff]
        %v7464 = vld [vmem:[%s7 + $0xf0] sm:$0xff]
        %v7465 = vld [vmem:[%s7 + $0xf8] sm:$0xff]
        %v7466 = vld [vmem:[%s8] sm:$0xf]
        %v7468 = vlaneseq
        %v7469 = vshrl.u32 %v7468, 7
        %v7470 = vsub.s32 0, %v7469
        %v7471 = vrot.slane %v7466, %v7470
        %v7472 = vlaneseq
        %v7473 = vshrl.u32 %v7472, 7
        %v7474 = vsub.s32 1, %v7473
        %v7475 = vrot.slane %v7466, %v7474
        %v7476 = vlaneseq
        %v7477 = vshrl.u32 %v7476, 7
        %v7478 = vsub.s32 2, %v7477
        %v7479 = vrot.slane %v7466, %v7478
        %v7480 = vlaneseq
        %v7481 = vshrl.u32 %v7480, 7
        %v7482 = vsub.s32 3, %v7481
        %v7483 = vrot.slane %v7466, %v7482
        %v7520 = vunpack.c.l.b16 %v7434
        %v7521 = vunpack.c.h.b16 %v7434
        %v7522 = vunpack.c.l.b16 %v7435
        %v7523 = vunpack.c.h.b16 %v7435
        %v7524 = vunpack.c.l.b16 %v7436
        %v7525 = vunpack.c.h.b16 %v7436
        %v7526 = vunpack.c.l.b16 %v7437
        %v7527 = vunpack.c.h.b16 %v7437
        %v7528 = vunpack.c.l.b16 %v7438
        %v7529 = vunpack.c.h.b16 %v7438
        %v7530 = vunpack.c.l.b16 %v7439
        %v7531 = vunpack.c.h.b16 %v7439
        %v7532 = vunpack.c.l.b16 %v7440
        %v7533 = vunpack.c.h.b16 %v7440
        %v7534 = vunpack.c.l.b16 %v7441
        %v7535 = vunpack.c.h.b16 %v7441
        %v7536 = vunpack.c.l.b16 %v7442
        %v7537 = vunpack.c.h.b16 %v7442
        %v7538 = vunpack.c.l.b16 %v7443
        %v7539 = vunpack.c.h.b16 %v7443
        %v7540 = vunpack.c.l.b16 %v7444
        %v7541 = vunpack.c.h.b16 %v7444
        %v7542 = vunpack.c.l.b16 %v7445
        %v7543 = vunpack.c.h.b16 %v7445
        %v7544 = vunpack.c.l.b16 %v7446
        %v7545 = vunpack.c.h.b16 %v7446
        %v7546 = vunpack.c.l.b16 %v7447
        %v7547 = vunpack.c.h.b16 %v7447
        %v7548 = vunpack.c.l.b16 %v7448
        %v7549 = vunpack.c.h.b16 %v7448
        %v7550 = vunpack.c.l.b16 %v7449
        %v7551 = vunpack.c.h.b16 %v7449
        %v7552 = vunpack.c.l.b16 %v7450
        %v7553 = vunpack.c.h.b16 %v7450
        %v7554 = vunpack.c.l.b16 %v7451
        %v7555 = vunpack.c.h.b16 %v7451
        %v7556 = vunpack.c.l.b16 %v7452
        %v7557 = vunpack.c.h.b16 %v7452
        %v7558 = vunpack.c.l.b16 %v7453
        %v7559 = vunpack.c.h.b16 %v7453
        %v7560 = vunpack.c.l.b16 %v7454
        %v7561 = vunpack.c.h.b16 %v7454
        %v7562 = vunpack.c.l.b16 %v7455
        %v7563 = vunpack.c.h.b16 %v7455
        %v7564 = vunpack.c.l.b16 %v7456
        %v7565 = vunpack.c.h.b16 %v7456
        %v7566 = vunpack.c.l.b16 %v7457
        %v7567 = vunpack.c.h.b16 %v7457
        %v7568 = vunpack.c.l.b16 %v7458
        %v7569 = vunpack.c.h.b16 %v7458
        %v7570 = vunpack.c.l.b16 %v7459
        %v7571 = vunpack.c.h.b16 %v7459
        %v7572 = vunpack.c.l.b16 %v7460
        %v7573 = vunpack.c.h.b16 %v7460
        %v7574 = vunpack.c.l.b16 %v7461
        %v7575 = vunpack.c.h.b16 %v7461
        %v7576 = vunpack.c.l.b16 %v7462
        %v7577 = vunpack.c.h.b16 %v7462
        %v7578 = vunpack.c.l.b16 %v7463
        %v7579 = vunpack.c.h.b16 %v7463
        %v7580 = vunpack.c.l.b16 %v7464
        %v7581 = vunpack.c.h.b16 %v7464
        %v7582 = vunpack.c.l.b16 %v7465
        %v7583 = vunpack.c.h.b16 %v7465
        %v7584 = vpack.c.b16 %v7524, %v7520
        %v7585 = vpack.c.b16 %v7525, %v7521
        %v7586 = vpack.c.b16 %v7526, %v7522
        %v7587 = vpack.c.b16 %v7527, %v7523
        %v7588 = vpack.c.b16 %v7532, %v7528
        %v7589 = vpack.c.b16 %v7533, %v7529
        %v7590 = vpack.c.b16 %v7534, %v7530
        %v7591 = vpack.c.b16 %v7535, %v7531
        %v7592 = vpack.c.b16 %v7540, %v7536
        %v7593 = vpack.c.b16 %v7541, %v7537
        %v7594 = vpack.c.b16 %v7542, %v7538
        %v7595 = vpack.c.b16 %v7543, %v7539
        %v7596 = vpack.c.b16 %v7548, %v7544
        %v7597 = vpack.c.b16 %v7549, %v7545
        %v7598 = vpack.c.b16 %v7550, %v7546
        %v7599 = vpack.c.b16 %v7551, %v7547
        %v7600 = vpack.c.b16 %v7556, %v7552
        %v7601 = vpack.c.b16 %v7557, %v7553
        %v7602 = vpack.c.b16 %v7558, %v7554
        %v7603 = vpack.c.b16 %v7559, %v7555
        %v7604 = vpack.c.b16 %v7564, %v7560
        %v7605 = vpack.c.b16 %v7565, %v7561
        %v7606 = vpack.c.b16 %v7566, %v7562
        %v7607 = vpack.c.b16 %v7567, %v7563
        %v7608 = vpack.c.b16 %v7572, %v7568
        %v7609 = vpack.c.b16 %v7573, %v7569
        %v7610 = vpack.c.b16 %v7574, %v7570
        %v7611 = vpack.c.b16 %v7575, %v7571
        %v7612 = vpack.c.b16 %v7580, %v7576
        %v7613 = vpack.c.b16 %v7581, %v7577
        %v7614 = vpack.c.b16 %v7582, %v7578
        %v7615 = vpack.c.b16 %v7583, %v7579
        %7648 = vmatprep.subr.bf16.mxu0 %v7585
        %7649 = vmatpush1.bf16.msra.mxu0 %v7584
        %7650 = vmatprep.subr.bf16.mxu0 %v7589
        %7651 = vmatpush1.bf16.msra.mxu0 %v7588
        %7652 = vmatprep.subr.bf16.mxu0 %v7593
        %7653 = vmatpush1.bf16.msra.mxu0 %v7592
        %7654 = vmatprep.subr.bf16.mxu0 %v7597
        %7655 = vmatpush1.bf16.msra.mxu0 %v7596
        %7656 = vmatprep.subr.bf16.mxu0 %v7601
        %7657 = vmatpush1.bf16.msra.mxu0 %v7600
        %7658 = vmatprep.subr.bf16.mxu0 %v7605
        %7659 = vmatpush1.bf16.msra.mxu0 %v7604
        %7660 = vmatprep.subr.bf16.mxu0 %v7609
        %7661 = vmatpush1.bf16.msra.mxu0 %v7608
        %7662 = vmatprep.subr.bf16.mxu0 %v7613
        %7663 = vmatpush1.bf16.msra.mxu0 %v7612
        %7664 = vmatprep.subr.bf16.mxu0 0
        %7665 = vmatpush1.bf16.msra.mxu0 0
        %7666 = vmatprep.subr.bf16.mxu0 0
        %7667 = vmatpush1.bf16.msra.mxu0 0
        %7668 = vmatprep.subr.bf16.mxu0 0
        %7669 = vmatpush1.bf16.msra.mxu0 0
        %7670 = vmatprep.subr.bf16.mxu0 0
        %7671 = vmatpush1.bf16.msra.mxu0 0
        %7672 = vmatprep.subr.bf16.mxu0 0
        %7673 = vmatpush1.bf16.msra.mxu0 0
        %7674 = vmatprep.subr.bf16.mxu0 0
        %7675 = vmatpush1.bf16.msra.mxu0 0
        %7676 = vmatprep.subr.bf16.mxu0 0
        %7677 = vmatpush1.bf16.msra.mxu0 0
        %7678 = vmatprep.subr.bf16.mxu0 0
        %7679 = vmatpush1.bf16.msra.mxu0 0
        %7680 = vmatprep.mubr.bf16.mxu0 0
        %7681 = vmatmul.mubr.bf16.gmra.mrb[0].mxu0 %v7418
        %v7682 = vpop.f32.mrb[0].mxu0
        %v7683 = vadd.f32 %v7471, %v7682
        %v7684 = vpop.f32.mrb[0].mxu0
        %v7685 = vadd.f32 %v7475, %v7684
        %v7686 = vpop.f32.mrb[0].mxu0
        %v7687 = vadd.f32 %v7471, %v7686
        %v7688 = vpop.f32.mrb[0].mxu0
        %v7689 = vadd.f32 %v7475, %v7688
        %7690 = vmatprep.mubr.bf16.mxu0 0
        %7691 = vmatmul.mubr.bf16.gmra.mrb[0].mxu0 %v7419
        %v7692 = vpop.f32.mrb[0].mxu0
        %v7693 = vadd.f32 %v7471, %v7692
        %v7694 = vpop.f32.mrb[0].mxu0
        %v7695 = vadd.f32 %v7475, %v7694
        %v7696 = vpop.f32.mrb[0].mxu0
        %v7697 = vadd.f32 %v7471, %v7696
        %v7698 = vpop.f32.mrb[0].mxu0
        %v7699 = vadd.f32 %v7475, %v7698
        %7700 = vmatprep.mubr.bf16.mxu0 0
        %7701 = vmatmul.mubr.bf16.gmra.mrb[0].mxu0 %v7420
        %v7702 = vpop.f32.mrb[0].mxu0
        %v7703 = vadd.f32 %v7471, %v7702
        %v7704 = vpop.f32.mrb[0].mxu0
        %v7705 = vadd.f32 %v7475, %v7704
        %v7706 = vpop.f32.mrb[0].mxu0
        %v7707 = vadd.f32 %v7471, %v7706
        %v7708 = vpop.f32.mrb[0].mxu0
        %v7709 = vadd.f32 %v7475, %v7708
        %7710 = vmatprep.mubr.bf16.mxu0 0
        %7711 = vmatmul.mubr.bf16.gmra.mrb[0].mxu0 %v7421
        %v7712 = vpop.f32.mrb[0].mxu0
        %v7713 = vadd.f32 %v7471, %v7712
        %v7714 = vpop.f32.mrb[0].mxu0
        %v7715 = vadd.f32 %v7475, %v7714
        %v7716 = vpop.f32.mrb[0].mxu0
        %v7717 = vadd.f32 %v7471, %v7716
        %v7718 = vpop.f32.mrb[0].mxu0
        %v7719 = vadd.f32 %v7475, %v7718
        %7720 = vmatprep.mubr.bf16.mxu0 0
        %7721 = vmatmul.mubr.bf16.gmra.mrb[0].mxu0 %v7422
        %v7722 = vpop.f32.mrb[0].mxu0
        %v7723 = vadd.f32 %v7471, %v7722
        %v7724 = vpop.f32.mrb[0].mxu0
        %v7725 = vadd.f32 %v7475, %v7724
        %v7726 = vpop.f32.mrb[0].mxu0
        %v7727 = vadd.f32 %v7471, %v7726
        %v7728 = vpop.f32.mrb[0].mxu0
        %v7729 = vadd.f32 %v7475, %v7728
        %7730 = vmatprep.mubr.bf16.mxu0 0
        %7731 = vmatmul.mubr.bf16.gmra.mrb[0].mxu0 %v7423
        %v7732 = vpop.f32.mrb[0].mxu0
        %v7733 = vadd.f32 %v7471, %v7732
        %v7734 = vpop.f32.mrb[0].mxu0
        %v7735 = vadd.f32 %v7475, %v7734
        %v7736 = vpop.f32.mrb[0].mxu0
        %v7737 = vadd.f32 %v7471, %v7736
        %v7738 = vpop.f32.mrb[0].mxu0
        %v7739 = vadd.f32 %v7475, %v7738
        %7740 = vmatprep.mubr.bf16.mxu0 0
        %7741 = vmatmul.mubr.bf16.gmra.mrb[0].mxu0 %v7424
        %v7742 = vpop.f32.mrb[0].mxu0
        %v7743 = vadd.f32 %v7471, %v7742
        %v7744 = vpop.f32.mrb[0].mxu0
        %v7745 = vadd.f32 %v7475, %v7744
        %v7746 = vpop.f32.mrb[0].mxu0
        %v7747 = vadd.f32 %v7471, %v7746
        %v7748 = vpop.f32.mrb[0].mxu0
        %v7749 = vadd.f32 %v7475, %v7748
        %7750 = vmatprep.mubr.bf16.mxu0 0
        %7751 = vmatmul.mubr.bf16.gmra.mrb[0].mxu0 %v7425
        %v7752 = vpop.f32.mrb[0].mxu0
        %v7753 = vadd.f32 %v7471, %v7752
        %v7754 = vpop.f32.mrb[0].mxu0
        %v7755 = vadd.f32 %v7475, %v7754
        %v7756 = vpop.f32.mrb[0].mxu0
        %v7757 = vadd.f32 %v7471, %v7756
        %v7758 = vpop.f32.mrb[0].mxu0
        %v7759 = vadd.f32 %v7475, %v7758
        %7760 = vmatprep.mubr.bf16.mxu0 0
        %7761 = vmatmul.mubr.bf16.gmra.mrb[0].mxu0 %v7426
        %v7762 = vpop.f32.mrb[0].mxu0
        %v7763 = vadd.f32 %v7471, %v7762
        %v7764 = vpop.f32.mrb[0].mxu0
        %v7765 = vadd.f32 %v7475, %v7764
        %v7766 = vpop.f32.mrb[0].mxu0
        %v7767 = vadd.f32 %v7471, %v7766
        %v7768 = vpop.f32.mrb[0].mxu0
        %v7769 = vadd.f32 %v7475, %v7768
        %7770 = vmatprep.mubr.bf16.mxu0 0
        %7771 = vmatmul.mubr.bf16.gmra.mrb[0].mxu0 %v7427
        %v7772 = vpop.f32.mrb[0].mxu0
        %v7773 = vadd.f32 %v7471, %v7772
        %v7774 = vpop.f32.mrb[0].mxu0
        %v7775 = vadd.f32 %v7475, %v7774
        %v7776 = vpop.f32.mrb[0].mxu0
        %v7777 = vadd.f32 %v7471, %v7776
        %v7778 = vpop.f32.mrb[0].mxu0
        %v7779 = vadd.f32 %v7475, %v7778
        %7780 = vmatprep.mubr.bf16.mxu0 0
        %7781 = vmatmul.mubr.bf16.gmra.mrb[0].mxu0 %v7428
        %v7782 = vpop.f32.mrb[0].mxu0
        %v7783 = vadd.f32 %v7471, %v7782
        %v7784 = vpop.f32.mrb[0].mxu0
        %v7785 = vadd.f32 %v7475, %v7784
        %v7786 = vpop.f32.mrb[0].mxu0
        %v7787 = vadd.f32 %v7471, %v7786
        %v7788 = vpop.f32.mrb[0].mxu0
        %v7789 = vadd.f32 %v7475, %v7788
        %7790 = vmatprep.mubr.bf16.mxu0 0
        %7791 = vmatmul.mubr.bf16.gmra.mrb[0].mxu0 %v7429
        %v7792 = vpop.f32.mrb[0].mxu0
        %v7793 = vadd.f32 %v7471, %v7792
        %v7794 = vpop.f32.mrb[0].mxu0
        %v7795 = vadd.f32 %v7475, %v7794
        %v7796 = vpop.f32.mrb[0].mxu0
        %v7797 = vadd.f32 %v7471, %v7796
        %v7798 = vpop.f32.mrb[0].mxu0
        %v7799 = vadd.f32 %v7475, %v7798
        %7800 = vmatprep.mubr.bf16.mxu0 0
        %7801 = vmatmul.mubr.bf16.gmra.mrb[0].mxu0 %v7430
        %v7802 = vpop.f32.mrb[0].mxu0
        %v7803 = vadd.f32 %v7471, %v7802
        %v7804 = vpop.f32.mrb[0].mxu0
        %v7805 = vadd.f32 %v7475, %v7804
        %v7806 = vpop.f32.mrb[0].mxu0
        %v7807 = vadd.f32 %v7471, %v7806
        %v7808 = vpop.f32.mrb[0].mxu0
        %v7809 = vadd.f32 %v7475, %v7808
        %7810 = vmatprep.mubr.bf16.mxu0 0
        %7811 = vmatmul.mubr.bf16.gmra.mrb[0].mxu0 %v7431
        %v7812 = vpop.f32.mrb[0].mxu0
        %v7813 = vadd.f32 %v7471, %v7812
        %v7814 = vpop.f32.mrb[0].mxu0
        %v7815 = vadd.f32 %v7475, %v7814
        %v7816 = vpop.f32.mrb[0].mxu0
        %v7817 = vadd.f32 %v7471, %v7816
        %v7818 = vpop.f32.mrb[0].mxu0
        %v7819 = vadd.f32 %v7475, %v7818
        %7820 = vmatprep.mubr.bf16.mxu0 0
        %7821 = vmatmul.mubr.bf16.gmra.mrb[0].mxu0 %v7432
        %v7822 = vpop.f32.mrb[0].mxu0
        %v7823 = vadd.f32 %v7471, %v7822
        %v7824 = vpop.f32.mrb[0].mxu0
        %v7825 = vadd.f32 %v7475, %v7824
        %v7826 = vpop.f32.mrb[0].mxu0
        %v7827 = vadd.f32 %v7471, %v7826
        %v7828 = vpop.f32.mrb[0].mxu0
        %v7829 = vadd.f32 %v7475, %v7828
        %7830 = vmatprep.mubr.bf16.mxu0 0
        %7831 = vmatmul.mubr.bf16.gmra.mrb[0].mxu0 %v7433
        %v7832 = vpop.f32.mrb[0].mxu0
        %v7833 = vadd.f32 %v7471, %v7832
        %v7834 = vpop.f32.mrb[0].mxu0
        %v7835 = vadd.f32 %v7475, %v7834
        %v7836 = vpop.f32.mrb[0].mxu0
        %v7837 = vadd.f32 %v7471, %v7836
        %v7838 = vpop.f32.mrb[0].mxu0
        %v7839 = vadd.f32 %v7475, %v7838
        %7840 = vdwg.mxu0
        %7841 = vmatprep.subr.bf16.mxu0 %v7587
        %7842 = vmatpush1.bf16.msra.mxu0 %v7586
        %7843 = vmatprep.subr.bf16.mxu0 %v7591
        %7844 = vmatpush1.bf16.msra.mxu0 %v7590
        %7845 = vmatprep.subr.bf16.mxu0 %v7595
        %7846 = vmatpush1.bf16.msra.mxu0 %v7594
        %7847 = vmatprep.subr.bf16.mxu0 %v7599
        %7848 = vmatpush1.bf16.msra.mxu0 %v7598
        %7849 = vmatprep.subr.bf16.mxu0 %v7603
        %7850 = vmatpush1.bf16.msra.mxu0 %v7602
        %7851 = vmatprep.subr.bf16.mxu0 %v7607
        %7852 = vmatpush1.bf16.msra.mxu0 %v7606
        %7853 = vmatprep.subr.bf16.mxu0 %v7611
        %7854 = vmatpush1.bf16.msra.mxu0 %v7610
        %7855 = vmatprep.subr.bf16.mxu0 %v7615
        %7856 = vmatpush1.bf16.msra.mxu0 %v7614
        %7857 = vmatprep.subr.bf16.mxu0 0
        %7858 = vmatpush1.bf16.msra.mxu0 0
        %7859 = vmatprep.subr.bf16.mxu0 0
        %7860 = vmatpush1.bf16.msra.mxu0 0
        %7861 = vmatprep.subr.bf16.mxu0 0
        %7862 = vmatpush1.bf16.msra.mxu0 0
        %7863 = vmatprep.subr.bf16.mxu0 0
        %7864 = vmatpush1.bf16.msra.mxu0 0
        %7865 = vmatprep.subr.bf16.mxu0 0
        %7866 = vmatpush1.bf16.msra.mxu0 0
        %7867 = vmatprep.subr.bf16.mxu0 0
        %7868 = vmatpush1.bf16.msra.mxu0 0
        %7869 = vmatprep.subr.bf16.mxu0 0
        %7870 = vmatpush1.bf16.msra.mxu0 0
        %7871 = vmatprep.subr.bf16.mxu0 0
        %7872 = vmatpush1.bf16.msra.mxu0 0
        %7873 = vmatprep.mubr.bf16.mxu0 0
        %7874 = vmatmul.mubr.bf16.gmra.mrb[0].mxu0 %v7418
        %v7875 = vpop.f32.mrb[0].mxu0
        %v7876 = vadd.f32 %v7479, %v7875
        %v7877 = vpop.f32.mrb[0].mxu0
        %v7878 = vadd.f32 %v7483, %v7877
        %v7879 = vpop.f32.mrb[0].mxu0
        %v7880 = vadd.f32 %v7479, %v7879
        %v7881 = vpop.f32.mrb[0].mxu0
        %v7882 = vadd.f32 %v7483, %v7881
        %7883 = vmatprep.mubr.bf16.mxu0 0
        %7884 = vmatmul.mubr.bf16.gmra.mrb[0].mxu0 %v7419
        %v7885 = vpop.f32.mrb[0].mxu0
        %v7886 = vadd.f32 %v7479, %v7885
        %v7887 = vpop.f32.mrb[0].mxu0
        %v7888 = vadd.f32 %v7483, %v7887
        %v7889 = vpop.f32.mrb[0].mxu0
        %v7890 = vadd.f32 %v7479, %v7889
        %v7891 = vpop.f32.mrb[0].mxu0
        %v7892 = vadd.f32 %v7483, %v7891
        %7893 = vmatprep.mubr.bf16.mxu0 0
        %7894 = vmatmul.mubr.bf16.gmra.mrb[0].mxu0 %v7420
        %v7895 = vpop.f32.mrb[0].mxu0
        %v7896 = vadd.f32 %v7479, %v7895
        %v7897 = vpop.f32.mrb[0].mxu0
        %v7898 = vadd.f32 %v7483, %v7897
        %v7899 = vpop.f32.mrb[0].mxu0
        %v7900 = vadd.f32 %v7479, %v7899
        %v7901 = vpop.f32.mrb[0].mxu0
        %v7902 = vadd.f32 %v7483, %v7901
        %7903 = vmatprep.mubr.bf16.mxu0 0
        %7904 = vmatmul.mubr.bf16.gmra.mrb[0].mxu0 %v7421
        %v7905 = vpop.f32.mrb[0].mxu0
        %v7906 = vadd.f32 %v7479, %v7905
        %v7907 = vpop.f32.mrb[0].mxu0
        %v7908 = vadd.f32 %v7483, %v7907
        %v7909 = vpop.f32.mrb[0].mxu0
        %v7910 = vadd.f32 %v7479, %v7909
        %v7911 = vpop.f32.mrb[0].mxu0
        %v7912 = vadd.f32 %v7483, %v7911
        %7913 = vmatprep.mubr.bf16.mxu0 0
        %7914 = vmatmul.mubr.bf16.gmra.mrb[0].mxu0 %v7422
        %v7915 = vpop.f32.mrb[0].mxu0
        %v7916 = vadd.f32 %v7479, %v7915
        %v7917 = vpop.f32.mrb[0].mxu0
        %v7918 = vadd.f32 %v7483, %v7917
        %v7919 = vpop.f32.mrb[0].mxu0
        %v7920 = vadd.f32 %v7479, %v7919
        %v7921 = vpop.f32.mrb[0].mxu0
        %v7922 = vadd.f32 %v7483, %v7921
        %7923 = vmatprep.mubr.bf16.mxu0 0
        %7924 = vmatmul.mubr.bf16.gmra.mrb[0].mxu0 %v7423
        %v7925 = vpop.f32.mrb[0].mxu0
        %v7926 = vadd.f32 %v7479, %v7925
        %v7927 = vpop.f32.mrb[0].mxu0
        %v7928 = vadd.f32 %v7483, %v7927
        %v7929 = vpop.f32.mrb[0].mxu0
        %v7930 = vadd.f32 %v7479, %v7929
        %v7931 = vpop.f32.mrb[0].mxu0
        %v7932 = vadd.f32 %v7483, %v7931
        %7933 = vmatprep.mubr.bf16.mxu0 0
        %7934 = vmatmul.mubr.bf16.gmra.mrb[0].mxu0 %v7424
        %v7935 = vpop.f32.mrb[0].mxu0
        %v7936 = vadd.f32 %v7479, %v7935
        %v7937 = vpop.f32.mrb[0].mxu0
        %v7938 = vadd.f32 %v7483, %v7937
        %v7939 = vpop.f32.mrb[0].mxu0
        %v7940 = vadd.f32 %v7479, %v7939
        %v7941 = vpop.f32.mrb[0].mxu0
        %v7942 = vadd.f32 %v7483, %v7941
        %7943 = vmatprep.mubr.bf16.mxu0 0
        %7944 = vmatmul.mubr.bf16.gmra.mrb[0].mxu0 %v7425
        %v7945 = vpop.f32.mrb[0].mxu0
        %v7946 = vadd.f32 %v7479, %v7945
        %v7947 = vpop.f32.mrb[0].mxu0
        %v7948 = vadd.f32 %v7483, %v7947
        %v7949 = vpop.f32.mrb[0].mxu0
        %v7950 = vadd.f32 %v7479, %v7949
        %v7951 = vpop.f32.mrb[0].mxu0
        %v7952 = vadd.f32 %v7483, %v7951
        %7953 = vmatprep.mubr.bf16.mxu0 0
        %7954 = vmatmul.mubr.bf16.gmra.mrb[0].mxu0 %v7426
        %v7955 = vpop.f32.mrb[0].mxu0
        %v7956 = vadd.f32 %v7479, %v7955
        %v7957 = vpop.f32.mrb[0].mxu0
        %v7958 = vadd.f32 %v7483, %v7957
        %v7959 = vpop.f32.mrb[0].mxu0
        %v7960 = vadd.f32 %v7479, %v7959
        %v7961 = vpop.f32.mrb[0].mxu0
        %v7962 = vadd.f32 %v7483, %v7961
        %7963 = vmatprep.mubr.bf16.mxu0 0
        %7964 = vmatmul.mubr.bf16.gmra.mrb[0].mxu0 %v7427
        %v7965 = vpop.f32.mrb[0].mxu0
        %v7966 = vadd.f32 %v7479, %v7965
        %v7967 = vpop.f32.mrb[0].mxu0
        %v7968 = vadd.f32 %v7483, %v7967
        %v7969 = vpop.f32.mrb[0].mxu0
        %v7970 = vadd.f32 %v7479, %v7969
        %v7971 = vpop.f32.mrb[0].mxu0
        %v7972 = vadd.f32 %v7483, %v7971
        %7973 = vmatprep.mubr.bf16.mxu0 0
        %7974 = vmatmul.mubr.bf16.gmra.mrb[0].mxu0 %v7428
        %v7975 = vpop.f32.mrb[0].mxu0
        %v7976 = vadd.f32 %v7479, %v7975
        %v7977 = vpop.f32.mrb[0].mxu0
        %v7978 = vadd.f32 %v7483, %v7977
        %v7979 = vpop.f32.mrb[0].mxu0
        %v7980 = vadd.f32 %v7479, %v7979
        %v7981 = vpop.f32.mrb[0].mxu0
        %v7982 = vadd.f32 %v7483, %v7981
        %7983 = vmatprep.mubr.bf16.mxu0 0
        %7984 = vmatmul.mubr.bf16.gmra.mrb[0].mxu0 %v7429
        %v7985 = vpop.f32.mrb[0].mxu0
        %v7986 = vadd.f32 %v7479, %v7985
        %v7987 = vpop.f32.mrb[0].mxu0
        %v7988 = vadd.f32 %v7483, %v7987
        %v7989 = vpop.f32.mrb[0].mxu0
        %v7990 = vadd.f32 %v7479, %v7989
        %v7991 = vpop.f32.mrb[0].mxu0
        %v7992 = vadd.f32 %v7483, %v7991
        %7993 = vmatprep.mubr.bf16.mxu0 0
        %7994 = vmatmul.mubr.bf16.gmra.mrb[0].mxu0 %v7430
        %v7995 = vpop.f32.mrb[0].mxu0
        %v7996 = vadd.f32 %v7479, %v7995
        %v7997 = vpop.f32.mrb[0].mxu0
        %v7998 = vadd.f32 %v7483, %v7997
        %v7999 = vpop.f32.mrb[0].mxu0
        %v8000 = vadd.f32 %v7479, %v7999
        %v8001 = vpop.f32.mrb[0].mxu0
        %v8002 = vadd.f32 %v7483, %v8001
        %8003 = vmatprep.mubr.bf16.mxu0 0
        %8004 = vmatmul.mubr.bf16.gmra.mrb[0].mxu0 %v7431
        %v8005 = vpop.f32.mrb[0].mxu0
        %v8006 = vadd.f32 %v7479, %v8005
        %v8007 = vpop.f32.mrb[0].mxu0
        %v8008 = vadd.f32 %v7483, %v8007
        %v8009 = vpop.f32.mrb[0].mxu0
        %v8010 = vadd.f32 %v7479, %v8009
        %v8011 = vpop.f32.mrb[0].mxu0
        %v8012 = vadd.f32 %v7483, %v8011
        %8013 = vmatprep.mubr.bf16.mxu0 0
        %8014 = vmatmul.mubr.bf16.gmra.mrb[0].mxu0 %v7432
        %v8015 = vpop.f32.mrb[0].mxu0
        %v8016 = vadd.f32 %v7479, %v8015
        %v8017 = vpop.f32.mrb[0].mxu0
        %v8018 = vadd.f32 %v7483, %v8017
        %v8019 = vpop.f32.mrb[0].mxu0
        %v8020 = vadd.f32 %v7479, %v8019
        %v8021 = vpop.f32.mrb[0].mxu0
        %v8022 = vadd.f32 %v7483, %v8021
        %8023 = vmatprep.mubr.bf16.mxu0 0
        %8024 = vmatmul.mubr.bf16.gmra.mrb[0].mxu0 %v7433
        %v8025 = vpop.f32.mrb[0].mxu0
        %v8026 = vadd.f32 %v7479, %v8025
        %v8027 = vpop.f32.mrb[0].mxu0
        %v8028 = vadd.f32 %v7483, %v8027
        %v8029 = vpop.f32.mrb[0].mxu0
        %v8030 = vadd.f32 %v7479, %v8029
        %v8031 = vpop.f32.mrb[0].mxu0
        %v8032 = vadd.f32 %v7483, %v8031
        %8033 = vdwg.mxu0
        %v8034 = vmul.f32 %v7683, %v7683
        %v8035 = vmul.f32 %v7685, %v7685
        %v8036 = vmul.f32 %v7876, %v7876
        %v8037 = vmul.f32 %v7878, %v7878
        %v8038 = vmul.f32 %v7687, %v7687
        %v8039 = vmul.f32 %v7689, %v7689
        %v8040 = vmul.f32 %v7880, %v7880
        %v8041 = vmul.f32 %v7882, %v7882
        %v8042 = vmul.f32 %v7693, %v7693
        %v8043 = vmul.f32 %v7695, %v7695
        %v8044 = vmul.f32 %v7886, %v7886
        %v8045 = vmul.f32 %v7888, %v7888
        %v8046 = vmul.f32 %v7697, %v7697
        %v8047 = vmul.f32 %v7699, %v7699
        %v8048 = vmul.f32 %v7890, %v7890
        %v8049 = vmul.f32 %v7892, %v7892
        %v8050 = vmul.f32 %v7703, %v7703
        %v8051 = vmul.f32 %v7705, %v7705
        %v8052 = vmul.f32 %v7896, %v7896
        %v8053 = vmul.f32 %v7898, %v7898
        %v8054 = vmul.f32 %v7707, %v7707
        %v8055 = vmul.f32 %v7709, %v7709
        %v8056 = vmul.f32 %v7900, %v7900
        %v8057 = vmul.f32 %v7902, %v7902
        %v8058 = vmul.f32 %v7713, %v7713
        %v8059 = vmul.f32 %v7715, %v7715
        %v8060 = vmul.f32 %v7906, %v7906
        %v8061 = vmul.f32 %v7908, %v7908
        %v8062 = vmul.f32 %v7717, %v7717
        %v8063 = vmul.f32 %v7719, %v7719
        %v8064 = vmul.f32 %v7910, %v7910
        %v8065 = vmul.f32 %v7912, %v7912
        %v8066 = vmul.f32 %v7723, %v7723
        %v8067 = vmul.f32 %v7725, %v7725
        %v8068 = vmul.f32 %v7916, %v7916
        %v8069 = vmul.f32 %v7918, %v7918
        %v8070 = vmul.f32 %v7727, %v7727
        %v8071 = vmul.f32 %v7729, %v7729
        %v8072 = vmul.f32 %v7920, %v7920
        %v8073 = vmul.f32 %v7922, %v7922
        %v8074 = vmul.f32 %v7733, %v7733
        %v8075 = vmul.f32 %v7735, %v7735
        %v8076 = vmul.f32 %v7926, %v7926
        %v8077 = vmul.f32 %v7928, %v7928
        %v8078 = vmul.f32 %v7737, %v7737
        %v8079 = vmul.f32 %v7739, %v7739
        %v8080 = vmul.f32 %v7930, %v7930
        %v8081 = vmul.f32 %v7932, %v7932
        %v8082 = vmul.f32 %v7743, %v7743
        %v8083 = vmul.f32 %v7745, %v7745
        %v8084 = vmul.f32 %v7936, %v7936
        %v8085 = vmul.f32 %v7938, %v7938
        %v8086 = vmul.f32 %v7747, %v7747
        %v8087 = vmul.f32 %v7749, %v7749
        %v8088 = vmul.f32 %v7940, %v7940
        %v8089 = vmul.f32 %v7942, %v7942
        %v8090 = vmul.f32 %v7753, %v7753
        %v8091 = vmul.f32 %v7755, %v7755
        %v8092 = vmul.f32 %v7946, %v7946
        %v8093 = vmul.f32 %v7948, %v7948
        %v8094 = vmul.f32 %v7757, %v7757
        %v8095 = vmul.f32 %v7759, %v7759
        %v8096 = vmul.f32 %v7950, %v7950
        %v8097 = vmul.f32 %v7952, %v7952
        %v8098 = vmul.f32 %v7763, %v7763
        %v8099 = vmul.f32 %v7765, %v7765
        %v8100 = vmul.f32 %v7956, %v7956
        %v8101 = vmul.f32 %v7958, %v7958
        %v8102 = vmul.f32 %v7767, %v7767
        %v8103 = vmul.f32 %v7769, %v7769
        %v8104 = vmul.f32 %v7960, %v7960
        %v8105 = vmul.f32 %v7962, %v7962
        %v8106 = vmul.f32 %v7773, %v7773
        %v8107 = vmul.f32 %v7775, %v7775
        %v8108 = vmul.f32 %v7966, %v7966
        %v8109 = vmul.f32 %v7968, %v7968
        %v8110 = vmul.f32 %v7777, %v7777
        %v8111 = vmul.f32 %v7779, %v7779
        %v8112 = vmul.f32 %v7970, %v7970
        %v8113 = vmul.f32 %v7972, %v7972
        %v8114 = vmul.f32 %v7783, %v7783
        %v8115 = vmul.f32 %v7785, %v7785
        %v8116 = vmul.f32 %v7976, %v7976
        %v8117 = vmul.f32 %v7978, %v7978
        %v8118 = vmul.f32 %v7787, %v7787
        %v8119 = vmul.f32 %v7789, %v7789
        %v8120 = vmul.f32 %v7980, %v7980
        %v8121 = vmul.f32 %v7982, %v7982
        %v8122 = vmul.f32 %v7793, %v7793
        %v8123 = vmul.f32 %v7795, %v7795
        %v8124 = vmul.f32 %v7986, %v7986
        %v8125 = vmul.f32 %v7988, %v7988
        %v8126 = vmul.f32 %v7797, %v7797
        %v8127 = vmul.f32 %v7799, %v7799
        %v8128 = vmul.f32 %v7990, %v7990
        %v8129 = vmul.f32 %v7992, %v7992
        %v8130 = vmul.f32 %v7803, %v7803
        %v8131 = vmul.f32 %v7805, %v7805
        %v8132 = vmul.f32 %v7996, %v7996
        %v8133 = vmul.f32 %v7998, %v7998
        %v8134 = vmul.f32 %v7807, %v7807
        %v8135 = vmul.f32 %v7809, %v7809
        %v8136 = vmul.f32 %v8000, %v8000
        %v8137 = vmul.f32 %v8002, %v8002
        %v8138 = vmul.f32 %v7813, %v7813
        %v8139 = vmul.f32 %v7815, %v7815
        %v8140 = vmul.f32 %v8006, %v8006
        %v8141 = vmul.f32 %v8008, %v8008
        %v8142 = vmul.f32 %v7817, %v7817
        %v8143 = vmul.f32 %v7819, %v7819
        %v8144 = vmul.f32 %v8010, %v8010
        %v8145 = vmul.f32 %v8012, %v8012
        %v8146 = vmul.f32 %v7823, %v7823
        %v8147 = vmul.f32 %v7825, %v7825
        %v8148 = vmul.f32 %v8016, %v8016
        %v8149 = vmul.f32 %v8018, %v8018
        %v8150 = vmul.f32 %v7827, %v7827
        %v8151 = vmul.f32 %v7829, %v7829
        %v8152 = vmul.f32 %v8020, %v8020
        %v8153 = vmul.f32 %v8022, %v8022
        %v8154 = vmul.f32 %v7833, %v7833
        %v8155 = vmul.f32 %v7835, %v7835
        %v8156 = vmul.f32 %v8026, %v8026
        %v8157 = vmul.f32 %v8028, %v8028
        %v8158 = vmul.f32 %v7837, %v7837
        %v8159 = vmul.f32 %v7839, %v7839
        %v8160 = vmul.f32 %v8030, %v8030
        %v8161 = vmul.f32 %v8032, %v8032
        %v8162 = vmul.f32 %v7683, %v8034
        %v8163 = vmul.f32 %v7685, %v8035
        %v8164 = vmul.f32 %v7876, %v8036
        %v8165 = vmul.f32 %v7878, %v8037
        %v8166 = vmul.f32 %v7687, %v8038
        %v8167 = vmul.f32 %v7689, %v8039
        %v8168 = vmul.f32 %v7880, %v8040
        %v8169 = vmul.f32 %v7882, %v8041
        %v8170 = vmul.f32 %v7693, %v8042
        %v8171 = vmul.f32 %v7695, %v8043
        %v8172 = vmul.f32 %v7886, %v8044
        %v8173 = vmul.f32 %v7888, %v8045
        %v8174 = vmul.f32 %v7697, %v8046
        %v8175 = vmul.f32 %v7699, %v8047
        %v8176 = vmul.f32 %v7890, %v8048
        %v8177 = vmul.f32 %v7892, %v8049
        %v8178 = vmul.f32 %v7703, %v8050
        %v8179 = vmul.f32 %v7705, %v8051
        %v8180 = vmul.f32 %v7896, %v8052
        %v8181 = vmul.f32 %v7898, %v8053
        %v8182 = vmul.f32 %v7707, %v8054
        %v8183 = vmul.f32 %v7709, %v8055
        %v8184 = vmul.f32 %v7900, %v8056
        %v8185 = vmul.f32 %v7902, %v8057
        %v8186 = vmul.f32 %v7713, %v8058
        %v8187 = vmul.f32 %v7715, %v8059
        %v8188 = vmul.f32 %v7906, %v8060
        %v8189 = vmul.f32 %v7908, %v8061
        %v8190 = vmul.f32 %v7717, %v8062
        %v8191 = vmul.f32 %v7719, %v8063
        %v8192 = vmul.f32 %v7910, %v8064
        %v8193 = vmul.f32 %v7912, %v8065
        %v8194 = vmul.f32 %v7723, %v8066
        %v8195 = vmul.f32 %v7725, %v8067
        %v8196 = vmul.f32 %v7916, %v8068
        %v8197 = vmul.f32 %v7918, %v8069
        %v8198 = vmul.f32 %v7727, %v8070
        %v8199 = vmul.f32 %v7729, %v8071
        %v8200 = vmul.f32 %v7920, %v8072
        %v8201 = vmul.f32 %v7922, %v8073
        %v8202 = vmul.f32 %v7733, %v8074
        %v8203 = vmul.f32 %v7735, %v8075
        %v8204 = vmul.f32 %v7926, %v8076
        %v8205 = vmul.f32 %v7928, %v8077
        %v8206 = vmul.f32 %v7737, %v8078
        %v8207 = vmul.f32 %v7739, %v8079
        %v8208 = vmul.f32 %v7930, %v8080
        %v8209 = vmul.f32 %v7932, %v8081
        %v8210 = vmul.f32 %v7743, %v8082
        %v8211 = vmul.f32 %v7745, %v8083
        %v8212 = vmul.f32 %v7936, %v8084
        %v8213 = vmul.f32 %v7938, %v8085
        %v8214 = vmul.f32 %v7747, %v8086
        %v8215 = vmul.f32 %v7749, %v8087
        %v8216 = vmul.f32 %v7940, %v8088
        %v8217 = vmul.f32 %v7942, %v8089
        %v8218 = vmul.f32 %v7753, %v8090
        %v8219 = vmul.f32 %v7755, %v8091
        %v8220 = vmul.f32 %v7946, %v8092
        %v8221 = vmul.f32 %v7948, %v8093
        %v8222 = vmul.f32 %v7757, %v8094
        %v8223 = vmul.f32 %v7759, %v8095
        %v8224 = vmul.f32 %v7950, %v8096
        %v8225 = vmul.f32 %v7952, %v8097
        %v8226 = vmul.f32 %v7763, %v8098
        %v8227 = vmul.f32 %v7765, %v8099
        %v8228 = vmul.f32 %v7956, %v8100
        %v8229 = vmul.f32 %v7958, %v8101
        %v8230 = vmul.f32 %v7767, %v8102
        %v8231 = vmul.f32 %v7769, %v8103
        %v8232 = vmul.f32 %v7960, %v8104
        %v8233 = vmul.f32 %v7962, %v8105
        %v8234 = vmul.f32 %v7773, %v8106
        %v8235 = vmul.f32 %v7775, %v8107
        %v8236 = vmul.f32 %v7966, %v8108
        %v8237 = vmul.f32 %v7968, %v8109
        %v8238 = vmul.f32 %v7777, %v8110
        %v8239 = vmul.f32 %v7779, %v8111
        %v8240 = vmul.f32 %v7970, %v8112
        %v8241 = vmul.f32 %v7972, %v8113
        %v8242 = vmul.f32 %v7783, %v8114
        %v8243 = vmul.f32 %v7785, %v8115
        %v8244 = vmul.f32 %v7976, %v8116
        %v8245 = vmul.f32 %v7978, %v8117
        %v8246 = vmul.f32 %v7787, %v8118
        %v8247 = vmul.f32 %v7789, %v8119
        %v8248 = vmul.f32 %v7980, %v8120
        %v8249 = vmul.f32 %v7982, %v8121
        %v8250 = vmul.f32 %v7793, %v8122
        %v8251 = vmul.f32 %v7795, %v8123
        %v8252 = vmul.f32 %v7986, %v8124
        %v8253 = vmul.f32 %v7988, %v8125
        %v8254 = vmul.f32 %v7797, %v8126
        %v8255 = vmul.f32 %v7799, %v8127
        %v8256 = vmul.f32 %v7990, %v8128
        %v8257 = vmul.f32 %v7992, %v8129
        %v8258 = vmul.f32 %v7803, %v8130
        %v8259 = vmul.f32 %v7805, %v8131
        %v8260 = vmul.f32 %v7996, %v8132
        %v8261 = vmul.f32 %v7998, %v8133
        %v8262 = vmul.f32 %v7807, %v8134
        %v8263 = vmul.f32 %v7809, %v8135
        %v8264 = vmul.f32 %v8000, %v8136
        %v8265 = vmul.f32 %v8002, %v8137
        %v8266 = vmul.f32 %v7813, %v8138
        %v8267 = vmul.f32 %v7815, %v8139
        %v8268 = vmul.f32 %v8006, %v8140
        %v8269 = vmul.f32 %v8008, %v8141
        %v8270 = vmul.f32 %v7817, %v8142
        %v8271 = vmul.f32 %v7819, %v8143
        %v8272 = vmul.f32 %v8010, %v8144
        %v8273 = vmul.f32 %v8012, %v8145
        %v8274 = vmul.f32 %v7823, %v8146
        %v8275 = vmul.f32 %v7825, %v8147
        %v8276 = vmul.f32 %v8016, %v8148
        %v8277 = vmul.f32 %v8018, %v8149
        %v8278 = vmul.f32 %v7827, %v8150
        %v8279 = vmul.f32 %v7829, %v8151
        %v8280 = vmul.f32 %v8020, %v8152
        %v8281 = vmul.f32 %v8022, %v8153
        %v8282 = vmul.f32 %v7833, %v8154
        %v8283 = vmul.f32 %v7835, %v8155
        %v8284 = vmul.f32 %v8026, %v8156
        %v8285 = vmul.f32 %v8028, %v8157
        %v8286 = vmul.f32 %v7837, %v8158
        %v8287 = vmul.f32 %v7839, %v8159
        %v8288 = vmul.f32 %v8030, %v8160
        %v8289 = vmul.f32 %v8032, %v8161
        %v8290 = vmul.f32 %v8162, 0.044715
        %v8291 = vmul.f32 %v8163, 0.044715
        %v8292 = vmul.f32 %v8164, 0.044715
        %v8293 = vmul.f32 %v8165, 0.044715
        %v8294 = vmul.f32 %v8166, 0.044715
        %v8295 = vmul.f32 %v8167, 0.044715
        %v8296 = vmul.f32 %v8168, 0.044715
        %v8297 = vmul.f32 %v8169, 0.044715
        %v8298 = vmul.f32 %v8170, 0.044715
        %v8299 = vmul.f32 %v8171, 0.044715
        %v8300 = vmul.f32 %v8172, 0.044715
        %v8301 = vmul.f32 %v8173, 0.044715
        %v8302 = vmul.f32 %v8174, 0.044715
        %v8303 = vmul.f32 %v8175, 0.044715
        %v8304 = vmul.f32 %v8176, 0.044715
        %v8305 = vmul.f32 %v8177, 0.044715
        %v8306 = vmul.f32 %v8178, 0.044715
        %v8307 = vmul.f32 %v8179, 0.044715
        %v8308 = vmul.f32 %v8180, 0.044715
        %v8309 = vmul.f32 %v8181, 0.044715
        %v8310 = vmul.f32 %v8182, 0.044715
        %v8311 = vmul.f32 %v8183, 0.044715
        %v8312 = vmul.f32 %v8184, 0.044715
        %v8313 = vmul.f32 %v8185, 0.044715
        %v8314 = vmul.f32 %v8186, 0.044715
        %v8315 = vmul.f32 %v8187, 0.044715
        %v8316 = vmul.f32 %v8188, 0.044715
        %v8317 = vmul.f32 %v8189, 0.044715
        %v8318 = vmul.f32 %v8190, 0.044715
        %v8319 = vmul.f32 %v8191, 0.044715
        %v8320 = vmul.f32 %v8192, 0.044715
        %v8321 = vmul.f32 %v8193, 0.044715
        %v8322 = vmul.f32 %v8194, 0.044715
        %v8323 = vmul.f32 %v8195, 0.044715
        %v8324 = vmul.f32 %v8196, 0.044715
        %v8325 = vmul.f32 %v8197, 0.044715
        %v8326 = vmul.f32 %v8198, 0.044715
        %v8327 = vmul.f32 %v8199, 0.044715
        %v8328 = vmul.f32 %v8200, 0.044715
        %v8329 = vmul.f32 %v8201, 0.044715
        %v8330 = vmul.f32 %v8202, 0.044715
        %v8331 = vmul.f32 %v8203, 0.044715
        %v8332 = vmul.f32 %v8204, 0.044715
        %v8333 = vmul.f32 %v8205, 0.044715
        %v8334 = vmul.f32 %v8206, 0.044715
        %v8335 = vmul.f32 %v8207, 0.044715
        %v8336 = vmul.f32 %v8208, 0.044715
        %v8337 = vmul.f32 %v8209, 0.044715
        %v8338 = vmul.f32 %v8210, 0.044715
        %v8339 = vmul.f32 %v8211, 0.044715
        %v8340 = vmul.f32 %v8212, 0.044715
        %v8341 = vmul.f32 %v8213, 0.044715
        %v8342 = vmul.f32 %v8214, 0.044715
        %v8343 = vmul.f32 %v8215, 0.044715
        %v8344 = vmul.f32 %v8216, 0.044715
        %v8345 = vmul.f32 %v8217, 0.044715
        %v8346 = vmul.f32 %v8218, 0.044715
        %v8347 = vmul.f32 %v8219, 0.044715
        %v8348 = vmul.f32 %v8220, 0.044715
        %v8349 = vmul.f32 %v8221, 0.044715
        %v8350 = vmul.f32 %v8222, 0.044715
        %v8351 = vmul.f32 %v8223, 0.044715
        %v8352 = vmul.f32 %v8224, 0.044715
        %v8353 = vmul.f32 %v8225, 0.044715
        %v8354 = vmul.f32 %v8226, 0.044715
        %v8355 = vmul.f32 %v8227, 0.044715
        %v8356 = vmul.f32 %v8228, 0.044715
        %v8357 = vmul.f32 %v8229, 0.044715
        %v8358 = vmul.f32 %v8230, 0.044715
        %v8359 = vmul.f32 %v8231, 0.044715
        %v8360 = vmul.f32 %v8232, 0.044715
        %v8361 = vmul.f32 %v8233, 0.044715
        %v8362 = vmul.f32 %v8234, 0.044715
        %v8363 = vmul.f32 %v8235, 0.044715
        %v8364 = vmul.f32 %v8236, 0.044715
        %v8365 = vmul.f32 %v8237, 0.044715
        %v8366 = vmul.f32 %v8238, 0.044715
        %v8367 = vmul.f32 %v8239, 0.044715
        %v8368 = vmul.f32 %v8240, 0.044715
        %v8369 = vmul.f32 %v8241, 0.044715
        %v8370 = vmul.f32 %v8242, 0.044715
        %v8371 = vmul.f32 %v8243, 0.044715
        %v8372 = vmul.f32 %v8244, 0.044715
        %v8373 = vmul.f32 %v8245, 0.044715
        %v8374 = vmul.f32 %v8246, 0.044715
        %v8375 = vmul.f32 %v8247, 0.044715
        %v8376 = vmul.f32 %v8248, 0.044715
        %v8377 = vmul.f32 %v8249, 0.044715
        %v8378 = vmul.f32 %v8250, 0.044715
        %v8379 = vmul.f32 %v8251, 0.044715
        %v8380 = vmul.f32 %v8252, 0.044715
        %v8381 = vmul.f32 %v8253, 0.044715
        %v8382 = vmul.f32 %v8254, 0.044715
        %v8383 = vmul.f32 %v8255, 0.044715
        %v8384 = vmul.f32 %v8256, 0.044715
        %v8385 = vmul.f32 %v8257, 0.044715
        %v8386 = vmul.f32 %v8258, 0.044715
        %v8387 = vmul.f32 %v8259, 0.044715
        %v8388 = vmul.f32 %v8260, 0.044715
        %v8389 = vmul.f32 %v8261, 0.044715
        %v8390 = vmul.f32 %v8262, 0.044715
        %v8391 = vmul.f32 %v8263, 0.044715
        %v8392 = vmul.f32 %v8264, 0.044715
        %v8393 = vmul.f32 %v8265, 0.044715
        %v8394 = vmul.f32 %v8266, 0.044715
        %v8395 = vmul.f32 %v8267, 0.044715
        %v8396 = vmul.f32 %v8268, 0.044715
        %v8397 = vmul.f32 %v8269, 0.044715
        %v8398 = vmul.f32 %v8270, 0.044715
        %v8399 = vmul.f32 %v8271, 0.044715
        %v8400 = vmul.f32 %v8272, 0.044715
        %v8401 = vmul.f32 %v8273, 0.044715
        %v8402 = vmul.f32 %v8274, 0.044715
        %v8403 = vmul.f32 %v8275, 0.044715
        %v8404 = vmul.f32 %v8276, 0.044715
        %v8405 = vmul.f32 %v8277, 0.044715
        %v8406 = vmul.f32 %v8278, 0.044715
        %v8407 = vmul.f32 %v8279, 0.044715
        %v8408 = vmul.f32 %v8280, 0.044715
        %v8409 = vmul.f32 %v8281, 0.044715
        %v8410 = vmul.f32 %v8282, 0.044715
        %v8411 = vmul.f32 %v8283, 0.044715
        %v8412 = vmul.f32 %v8284, 0.044715
        %v8413 = vmul.f32 %v8285, 0.044715
        %v8414 = vmul.f32 %v8286, 0.044715
        %v8415 = vmul.f32 %v8287, 0.044715
        %v8416 = vmul.f32 %v8288, 0.044715
        %v8417 = vmul.f32 %v8289, 0.044715
        %v8418 = vadd.f32 %v7683, %v8290
        %v8419 = vadd.f32 %v7685, %v8291
        %v8420 = vadd.f32 %v7876, %v8292
        %v8421 = vadd.f32 %v7878, %v8293
        %v8422 = vadd.f32 %v7687, %v8294
        %v8423 = vadd.f32 %v7689, %v8295
        %v8424 = vadd.f32 %v7880, %v8296
        %v8425 = vadd.f32 %v7882, %v8297
        %v8426 = vadd.f32 %v7693, %v8298
        %v8427 = vadd.f32 %v7695, %v8299
        %v8428 = vadd.f32 %v7886, %v8300
        %v8429 = vadd.f32 %v7888, %v8301
        %v8430 = vadd.f32 %v7697, %v8302
        %v8431 = vadd.f32 %v7699, %v8303
        %v8432 = vadd.f32 %v7890, %v8304
        %v8433 = vadd.f32 %v7892, %v8305
        %v8434 = vadd.f32 %v7703, %v8306
        %v8435 = vadd.f32 %v7705, %v8307
        %v8436 = vadd.f32 %v7896, %v8308
        %v8437 = vadd.f32 %v7898, %v8309
        %v8438 = vadd.f32 %v7707, %v8310
        %v8439 = vadd.f32 %v7709, %v8311
        %v8440 = vadd.f32 %v7900, %v8312
        %v8441 = vadd.f32 %v7902, %v8313
        %v8442 = vadd.f32 %v7713, %v8314
        %v8443 = vadd.f32 %v7715, %v8315
        %v8444 = vadd.f32 %v7906, %v8316
        %v8445 = vadd.f32 %v7908, %v8317
        %v8446 = vadd.f32 %v7717, %v8318
        %v8447 = vadd.f32 %v7719, %v8319
        %v8448 = vadd.f32 %v7910, %v8320
        %v8449 = vadd.f32 %v7912, %v8321
        %v8450 = vadd.f32 %v7723, %v8322
        %v8451 = vadd.f32 %v7725, %v8323
        %v8452 = vadd.f32 %v7916, %v8324
        %v8453 = vadd.f32 %v7918, %v8325
        %v8454 = vadd.f32 %v7727, %v8326
        %v8455 = vadd.f32 %v7729, %v8327
        %v8456 = vadd.f32 %v7920, %v8328
        %v8457 = vadd.f32 %v7922, %v8329
        %v8458 = vadd.f32 %v7733, %v8330
        %v8459 = vadd.f32 %v7735, %v8331
        %v8460 = vadd.f32 %v7926, %v8332
        %v8461 = vadd.f32 %v7928, %v8333
        %v8462 = vadd.f32 %v7737, %v8334
        %v8463 = vadd.f32 %v7739, %v8335
        %v8464 = vadd.f32 %v7930, %v8336
        %v8465 = vadd.f32 %v7932, %v8337
        %v8466 = vadd.f32 %v7743, %v8338
        %v8467 = vadd.f32 %v7745, %v8339
        %v8468 = vadd.f32 %v7936, %v8340
        %v8469 = vadd.f32 %v7938, %v8341
        %v8470 = vadd.f32 %v7747, %v8342
        %v8471 = vadd.f32 %v7749, %v8343
        %v8472 = vadd.f32 %v7940, %v8344
        %v8473 = vadd.f32 %v7942, %v8345
        %v8474 = vadd.f32 %v7753, %v8346
        %v8475 = vadd.f32 %v7755, %v8347
        %v8476 = vadd.f32 %v7946, %v8348
        %v8477 = vadd.f32 %v7948, %v8349
        %v8478 = vadd.f32 %v7757, %v8350
        %v8479 = vadd.f32 %v7759, %v8351
        %v8480 = vadd.f32 %v7950, %v8352
        %v8481 = vadd.f32 %v7952, %v8353
        %v8482 = vadd.f32 %v7763, %v8354
        %v8483 = vadd.f32 %v7765, %v8355
        %v8484 = vadd.f32 %v7956, %v8356
        %v8485 = vadd.f32 %v7958, %v8357
        %v8486 = vadd.f32 %v7767, %v8358
        %v8487 = vadd.f32 %v7769, %v8359
        %v8488 = vadd.f32 %v7960, %v8360
        %v8489 = vadd.f32 %v7962, %v8361
        %v8490 = vadd.f32 %v7773, %v8362
        %v8491 = vadd.f32 %v7775, %v8363
        %v8492 = vadd.f32 %v7966, %v8364
        %v8493 = vadd.f32 %v7968, %v8365
        %v8494 = vadd.f32 %v7777, %v8366
        %v8495 = vadd.f32 %v7779, %v8367
        %v8496 = vadd.f32 %v7970, %v8368
        %v8497 = vadd.f32 %v7972, %v8369
        %v8498 = vadd.f32 %v7783, %v8370
        %v8499 = vadd.f32 %v7785, %v8371
        %v8500 = vadd.f32 %v7976, %v8372
        %v8501 = vadd.f32 %v7978, %v8373
        %v8502 = vadd.f32 %v7787, %v8374
        %v8503 = vadd.f32 %v7789, %v8375
        %v8504 = vadd.f32 %v7980, %v8376
        %v8505 = vadd.f32 %v7982, %v8377
        %v8506 = vadd.f32 %v7793, %v8378
        %v8507 = vadd.f32 %v7795, %v8379
        %v8508 = vadd.f32 %v7986, %v8380
        %v8509 = vadd.f32 %v7988, %v8381
        %v8510 = vadd.f32 %v7797, %v8382
        %v8511 = vadd.f32 %v7799, %v8383
        %v8512 = vadd.f32 %v7990, %v8384
        %v8513 = vadd.f32 %v7992, %v8385
        %v8514 = vadd.f32 %v7803, %v8386
        %v8515 = vadd.f32 %v7805, %v8387
        %v8516 = vadd.f32 %v7996, %v8388
        %v8517 = vadd.f32 %v7998, %v8389
        %v8518 = vadd.f32 %v7807, %v8390
        %v8519 = vadd.f32 %v7809, %v8391
        %v8520 = vadd.f32 %v8000, %v8392
        %v8521 = vadd.f32 %v8002, %v8393
        %v8522 = vadd.f32 %v7813, %v8394
        %v8523 = vadd.f32 %v7815, %v8395
        %v8524 = vadd.f32 %v8006, %v8396
        %v8525 = vadd.f32 %v8008, %v8397
        %v8526 = vadd.f32 %v7817, %v8398
        %v8527 = vadd.f32 %v7819, %v8399
        %v8528 = vadd.f32 %v8010, %v8400
        %v8529 = vadd.f32 %v8012, %v8401
        %v8530 = vadd.f32 %v7823, %v8402
        %v8531 = vadd.f32 %v7825, %v8403
        %v8532 = vadd.f32 %v8016, %v8404
        %v8533 = vadd.f32 %v8018, %v8405
        %v8534 = vadd.f32 %v7827, %v8406
        %v8535 = vadd.f32 %v7829, %v8407
        %v8536 = vadd.f32 %v8020, %v8408
        %v8537 = vadd.f32 %v8022, %v8409
        %v8538 = vadd.f32 %v7833, %v8410
        %v8539 = vadd.f32 %v7835, %v8411
        %v8540 = vadd.f32 %v8026, %v8412
        %v8541 = vadd.f32 %v8028, %v8413
        %v8542 = vadd.f32 %v7837, %v8414
        %v8543 = vadd.f32 %v7839, %v8415
        %v8544 = vadd.f32 %v8030, %v8416
        %v8545 = vadd.f32 %v8032, %v8417
        %v8546 = vmul.f32 %v8418, 0.7978846
        %v8547 = vmul.f32 %v8419, 0.7978846
        %v8548 = vmul.f32 %v8420, 0.7978846
        %v8549 = vmul.f32 %v8421, 0.7978846
        %v8550 = vmul.f32 %v8422, 0.7978846
        %v8551 = vmul.f32 %v8423, 0.7978846
        %v8552 = vmul.f32 %v8424, 0.7978846
        %v8553 = vmul.f32 %v8425, 0.7978846
        %v8554 = vmul.f32 %v8426, 0.7978846
        %v8555 = vmul.f32 %v8427, 0.7978846
        %v8556 = vmul.f32 %v8428, 0.7978846
        %v8557 = vmul.f32 %v8429, 0.7978846
        %v8558 = vmul.f32 %v8430, 0.7978846
        %v8559 = vmul.f32 %v8431, 0.7978846
        %v8560 = vmul.f32 %v8432, 0.7978846
        %v8561 = vmul.f32 %v8433, 0.7978846
        %v8562 = vmul.f32 %v8434, 0.7978846
        %v8563 = vmul.f32 %v8435, 0.7978846
        %v8564 = vmul.f32 %v8436, 0.7978846
        %v8565 = vmul.f32 %v8437, 0.7978846
        %v8566 = vmul.f32 %v8438, 0.7978846
        %v8567 = vmul.f32 %v8439, 0.7978846
        %v8568 = vmul.f32 %v8440, 0.7978846
        %v8569 = vmul.f32 %v8441, 0.7978846
        %v8570 = vmul.f32 %v8442, 0.7978846
        %v8571 = vmul.f32 %v8443, 0.7978846
        %v8572 = vmul.f32 %v8444, 0.7978846
        %v8573 = vmul.f32 %v8445, 0.7978846
        %v8574 = vmul.f32 %v8446, 0.7978846
        %v8575 = vmul.f32 %v8447, 0.7978846
        %v8576 = vmul.f32 %v8448, 0.7978846
        %v8577 = vmul.f32 %v8449, 0.7978846
        %v8578 = vmul.f32 %v8450, 0.7978846
        %v8579 = vmul.f32 %v8451, 0.7978846
        %v8580 = vmul.f32 %v8452, 0.7978846
        %v8581 = vmul.f32 %v8453, 0.7978846
        %v8582 = vmul.f32 %v8454, 0.7978846
        %v8583 = vmul.f32 %v8455, 0.7978846
        %v8584 = vmul.f32 %v8456, 0.7978846
        %v8585 = vmul.f32 %v8457, 0.7978846
        %v8586 = vmul.f32 %v8458, 0.7978846
        %v8587 = vmul.f32 %v8459, 0.7978846
        %v8588 = vmul.f32 %v8460, 0.7978846
        %v8589 = vmul.f32 %v8461, 0.7978846
        %v8590 = vmul.f32 %v8462, 0.7978846
        %v8591 = vmul.f32 %v8463, 0.7978846
        %v8592 = vmul.f32 %v8464, 0.7978846
        %v8593 = vmul.f32 %v8465, 0.7978846
        %v8594 = vmul.f32 %v8466, 0.7978846
        %v8595 = vmul.f32 %v8467, 0.7978846
        %v8596 = vmul.f32 %v8468, 0.7978846
        %v8597 = vmul.f32 %v8469, 0.7978846
        %v8598 = vmul.f32 %v8470, 0.7978846
        %v8599 = vmul.f32 %v8471, 0.7978846
        %v8600 = vmul.f32 %v8472, 0.7978846
        %v8601 = vmul.f32 %v8473, 0.7978846
        %v8602 = vmul.f32 %v8474, 0.7978846
        %v8603 = vmul.f32 %v8475, 0.7978846
        %v8604 = vmul.f32 %v8476, 0.7978846
        %v8605 = vmul.f32 %v8477, 0.7978846
        %v8606 = vmul.f32 %v8478, 0.7978846
        %v8607 = vmul.f32 %v8479, 0.7978846
        %v8608 = vmul.f32 %v8480, 0.7978846
        %v8609 = vmul.f32 %v8481, 0.7978846
        %v8610 = vmul.f32 %v8482, 0.7978846
        %v8611 = vmul.f32 %v8483, 0.7978846
        %v8612 = vmul.f32 %v8484, 0.7978846
        %v8613 = vmul.f32 %v8485, 0.7978846
        %v8614 = vmul.f32 %v8486, 0.7978846
        %v8615 = vmul.f32 %v8487, 0.7978846
        %v8616 = vmul.f32 %v8488, 0.7978846
        %v8617 = vmul.f32 %v8489, 0.7978846
        %v8618 = vmul.f32 %v8490, 0.7978846
        %v8619 = vmul.f32 %v8491, 0.7978846
        %v8620 = vmul.f32 %v8492, 0.7978846
        %v8621 = vmul.f32 %v8493, 0.7978846
        %v8622 = vmul.f32 %v8494, 0.7978846
        %v8623 = vmul.f32 %v8495, 0.7978846
        %v8624 = vmul.f32 %v8496, 0.7978846
        %v8625 = vmul.f32 %v8497, 0.7978846
        %v8626 = vmul.f32 %v8498, 0.7978846
        %v8627 = vmul.f32 %v8499, 0.7978846
        %v8628 = vmul.f32 %v8500, 0.7978846
        %v8629 = vmul.f32 %v8501, 0.7978846
        %v8630 = vmul.f32 %v8502, 0.7978846
        %v8631 = vmul.f32 %v8503, 0.7978846
        %v8632 = vmul.f32 %v8504, 0.7978846
        %v8633 = vmul.f32 %v8505, 0.7978846
        %v8634 = vmul.f32 %v8506, 0.7978846
        %v8635 = vmul.f32 %v8507, 0.7978846
        %v8636 = vmul.f32 %v8508, 0.7978846
        %v8637 = vmul.f32 %v8509, 0.7978846
        %v8638 = vmul.f32 %v8510, 0.7978846
        %v8639 = vmul.f32 %v8511, 0.7978846
        %v8640 = vmul.f32 %v8512, 0.7978846
        %v8641 = vmul.f32 %v8513, 0.7978846
        %v8642 = vmul.f32 %v8514, 0.7978846
        %v8643 = vmul.f32 %v8515, 0.7978846
        %v8644 = vmul.f32 %v8516, 0.7978846
        %v8645 = vmul.f32 %v8517, 0.7978846
        %v8646 = vmul.f32 %v8518, 0.7978846
        %v8647 = vmul.f32 %v8519, 0.7978846
        %v8648 = vmul.f32 %v8520, 0.7978846
        %v8649 = vmul.f32 %v8521, 0.7978846
        %v8650 = vmul.f32 %v8522, 0.7978846
        %v8651 = vmul.f32 %v8523, 0.7978846
        %v8652 = vmul.f32 %v8524, 0.7978846
        %v8653 = vmul.f32 %v8525, 0.7978846
        %v8654 = vmul.f32 %v8526, 0.7978846
        %v8655 = vmul.f32 %v8527, 0.7978846
        %v8656 = vmul.f32 %v8528, 0.7978846
        %v8657 = vmul.f32 %v8529, 0.7978846
        %v8658 = vmul.f32 %v8530, 0.7978846
        %v8659 = vmul.f32 %v8531, 0.7978846
        %v8660 = vmul.f32 %v8532, 0.7978846
        %v8661 = vmul.f32 %v8533, 0.7978846
        %v8662 = vmul.f32 %v8534, 0.7978846
        %v8663 = vmul.f32 %v8535, 0.7978846
        %v8664 = vmul.f32 %v8536, 0.7978846
        %v8665 = vmul.f32 %v8537, 0.7978846
        %v8666 = vmul.f32 %v8538, 0.7978846
        %v8667 = vmul.f32 %v8539, 0.7978846
        %v8668 = vmul.f32 %v8540, 0.7978846
        %v8669 = vmul.f32 %v8541, 0.7978846
        %v8670 = vmul.f32 %v8542, 0.7978846
        %v8671 = vmul.f32 %v8543, 0.7978846
        %v8672 = vmul.f32 %v8544, 0.7978846
        %v8673 = vmul.f32 %v8545, 0.7978846
        %v8674 = vtanh.pop %v8546
        %v8675 = vtanh.pop %v8547
        %v8676 = vtanh.pop %v8548
        %v8677 = vtanh.pop %v8549
        %v8678 = vtanh.pop %v8550
        %v8679 = vtanh.pop %v8551
        %v8680 = vtanh.pop %v8552
        %v8681 = vtanh.pop %v8553
        %v8682 = vtanh.pop %v8554
        %v8683 = vtanh.pop %v8555
        %v8684 = vtanh.pop %v8556
        %v8685 = vtanh.pop %v8557
        %v8686 = vtanh.pop %v8558
        %v8687 = vtanh.pop %v8559
        %v8688 = vtanh.pop %v8560
        %v8689 = vtanh.pop %v8561
        %v8690 = vtanh.pop %v8562
        %v8691 = vtanh.pop %v8563
        %v8692 = vtanh.pop %v8564
        %v8693 = vtanh.pop %v8565
        %v8694 = vtanh.pop %v8566
        %v8695 = vtanh.pop %v8567
        %v8696 = vtanh.pop %v8568
        %v8697 = vtanh.pop %v8569
        %v8698 = vtanh.pop %v8570
        %v8699 = vtanh.pop %v8571
        %v8700 = vtanh.pop %v8572
        %v8701 = vtanh.pop %v8573
        %v8702 = vtanh.pop %v8574
        %v8703 = vtanh.pop %v8575
        %v8704 = vtanh.pop %v8576
        %v8705 = vtanh.pop %v8577
        %v8706 = vtanh.pop %v8578
        %v8707 = vtanh.pop %v8579
        %v8708 = vtanh.pop %v8580
        %v8709 = vtanh.pop %v8581
        %v8710 = vtanh.pop %v8582
        %v8711 = vtanh.pop %v8583
        %v8712 = vtanh.pop %v8584
        %v8713 = vtanh.pop %v8585
        %v8714 = vtanh.pop %v8586
        %v8715 = vtanh.pop %v8587
        %v8716 = vtanh.pop %v8588
        %v8717 = vtanh.pop %v8589
        %v8718 = vtanh.pop %v8590
        %v8719 = vtanh.pop %v8591
        %v8720 = vtanh.pop %v8592
        %v8721 = vtanh.pop %v8593
        %v8722 = vtanh.pop %v8594
        %v8723 = vtanh.pop %v8595
        %v8724 = vtanh.pop %v8596
        %v8725 = vtanh.pop %v8597
        %v8726 = vtanh.pop %v8598
        %v8727 = vtanh.pop %v8599
        %v8728 = vtanh.pop %v8600
        %v8729 = vtanh.pop %v8601
        %v8730 = vtanh.pop %v8602
        %v8731 = vtanh.pop %v8603
        %v8732 = vtanh.pop %v8604
        %v8733 = vtanh.pop %v8605
        %v8734 = vtanh.pop %v8606
        %v8735 = vtanh.pop %v8607
        %v8736 = vtanh.pop %v8608
        %v8737 = vtanh.pop %v8609
        %v8738 = vtanh.pop %v8610
        %v8739 = vtanh.pop %v8611
        %v8740 = vtanh.pop %v8612
        %v8741 = vtanh.pop %v8613
        %v8742 = vtanh.pop %v8614
        %v8743 = vtanh.pop %v8615
        %v8744 = vtanh.pop %v8616
        %v8745 = vtanh.pop %v8617
        %v8746 = vtanh.pop %v8618
        %v8747 = vtanh.pop %v8619
        %v8748 = vtanh.pop %v8620
        %v8749 = vtanh.pop %v8621
        %v8750 = vtanh.pop %v8622
        %v8751 = vtanh.pop %v8623
        %v8752 = vtanh.pop %v8624
        %v8753 = vtanh.pop %v8625
        %v8754 = vtanh.pop %v8626
        %v8755 = vtanh.pop %v8627
        %v8756 = vtanh.pop %v8628
        %v8757 = vtanh.pop %v8629
        %v8758 = vtanh.pop %v8630
        %v8759 = vtanh.pop %v8631
        %v8760 = vtanh.pop %v8632
        %v8761 = vtanh.pop %v8633
        %v8762 = vtanh.pop %v8634
        %v8763 = vtanh.pop %v8635
        %v8764 = vtanh.pop %v8636
        %v8765 = vtanh.pop %v8637
        %v8766 = vtanh.pop %v8638
        %v8767 = vtanh.pop %v8639
        %v8768 = vtanh.pop %v8640
        %v8769 = vtanh.pop %v8641
        %v8770 = vtanh.pop %v8642
        %v8771 = vtanh.pop %v8643
        %v8772 = vtanh.pop %v8644
        %v8773 = vtanh.pop %v8645
        %v8774 = vtanh.pop %v8646
        %v8775 = vtanh.pop %v8647
        %v8776 = vtanh.pop %v8648
        %v8777 = vtanh.pop %v8649
        %v8778 = vtanh.pop %v8650
        %v8779 = vtanh.pop %v8651
        %v8780 = vtanh.pop %v8652
        %v8781 = vtanh.pop %v8653
        %v8782 = vtanh.pop %v8654
        %v8783 = vtanh.pop %v8655
        %v8784 = vtanh.pop %v8656
        %v8785 = vtanh.pop %v8657
        %v8786 = vtanh.pop %v8658
        %v8787 = vtanh.pop %v8659
        %v8788 = vtanh.pop %v8660
        %v8789 = vtanh.pop %v8661
        %v8790 = vtanh.pop %v8662
        %v8791 = vtanh.pop %v8663
        %v8792 = vtanh.pop %v8664
        %v8793 = vtanh.pop %v8665
        %v8794 = vtanh.pop %v8666
        %v8795 = vtanh.pop %v8667
        %v8796 = vtanh.pop %v8668
        %v8797 = vtanh.pop %v8669
        %v8798 = vtanh.pop %v8670
        %v8799 = vtanh.pop %v8671
        %v8800 = vtanh.pop %v8672
        %v8801 = vtanh.pop %v8673
        %v8802 = vadd.f32 %v8674, 1.0
        %v8803 = vadd.f32 %v8675, 1.0
        %v8804 = vadd.f32 %v8676, 1.0
        %v8805 = vadd.f32 %v8677, 1.0
        %v8806 = vadd.f32 %v8678, 1.0
        %v8807 = vadd.f32 %v8679, 1.0
        %v8808 = vadd.f32 %v8680, 1.0
        %v8809 = vadd.f32 %v8681, 1.0
        %v8810 = vadd.f32 %v8682, 1.0
        %v8811 = vadd.f32 %v8683, 1.0
        %v8812 = vadd.f32 %v8684, 1.0
        %v8813 = vadd.f32 %v8685, 1.0
        %v8814 = vadd.f32 %v8686, 1.0
        %v8815 = vadd.f32 %v8687, 1.0
        %v8816 = vadd.f32 %v8688, 1.0
        %v8817 = vadd.f32 %v8689, 1.0
        %v8818 = vadd.f32 %v8690, 1.0
        %v8819 = vadd.f32 %v8691, 1.0
        %v8820 = vadd.f32 %v8692, 1.0
        %v8821 = vadd.f32 %v8693, 1.0
        %v8822 = vadd.f32 %v8694, 1.0
        %v8823 = vadd.f32 %v8695, 1.0
        %v8824 = vadd.f32 %v8696, 1.0
        %v8825 = vadd.f32 %v8697, 1.0
        %v8826 = vadd.f32 %v8698, 1.0
        %v8827 = vadd.f32 %v8699, 1.0
        %v8828 = vadd.f32 %v8700, 1.0
        %v8829 = vadd.f32 %v8701, 1.0
        %v8830 = vadd.f32 %v8702, 1.0
        %v8831 = vadd.f32 %v8703, 1.0
        %v8832 = vadd.f32 %v8704, 1.0
        %v8833 = vadd.f32 %v8705, 1.0
        %v8834 = vadd.f32 %v8706, 1.0
        %v8835 = vadd.f32 %v8707, 1.0
        %v8836 = vadd.f32 %v8708, 1.0
        %v8837 = vadd.f32 %v8709, 1.0
        %v8838 = vadd.f32 %v8710, 1.0
        %v8839 = vadd.f32 %v8711, 1.0
        %v8840 = vadd.f32 %v8712, 1.0
        %v8841 = vadd.f32 %v8713, 1.0
        %v8842 = vadd.f32 %v8714, 1.0
        %v8843 = vadd.f32 %v8715, 1.0
        %v8844 = vadd.f32 %v8716, 1.0
        %v8845 = vadd.f32 %v8717, 1.0
        %v8846 = vadd.f32 %v8718, 1.0
        %v8847 = vadd.f32 %v8719, 1.0
        %v8848 = vadd.f32 %v8720, 1.0
        %v8849 = vadd.f32 %v8721, 1.0
        %v8850 = vadd.f32 %v8722, 1.0
        %v8851 = vadd.f32 %v8723, 1.0
        %v8852 = vadd.f32 %v8724, 1.0
        %v8853 = vadd.f32 %v8725, 1.0
        %v8854 = vadd.f32 %v8726, 1.0
        %v8855 = vadd.f32 %v8727, 1.0
        %v8856 = vadd.f32 %v8728, 1.0
        %v8857 = vadd.f32 %v8729, 1.0
        %v8858 = vadd.f32 %v8730, 1.0
        %v8859 = vadd.f32 %v8731, 1.0
        %v8860 = vadd.f32 %v8732, 1.0
        %v8861 = vadd.f32 %v8733, 1.0
        %v8862 = vadd.f32 %v8734, 1.0
        %v8863 = vadd.f32 %v8735, 1.0
        %v8864 = vadd.f32 %v8736, 1.0
        %v8865 = vadd.f32 %v8737, 1.0
        %v8866 = vadd.f32 %v8738, 1.0
        %v8867 = vadd.f32 %v8739, 1.0
        %v8868 = vadd.f32 %v8740, 1.0
        %v8869 = vadd.f32 %v8741, 1.0
        %v8870 = vadd.f32 %v8742, 1.0
        %v8871 = vadd.f32 %v8743, 1.0
        %v8872 = vadd.f32 %v8744, 1.0
        %v8873 = vadd.f32 %v8745, 1.0
        %v8874 = vadd.f32 %v8746, 1.0
        %v8875 = vadd.f32 %v8747, 1.0
        %v8876 = vadd.f32 %v8748, 1.0
        %v8877 = vadd.f32 %v8749, 1.0
        %v8878 = vadd.f32 %v8750, 1.0
        %v8879 = vadd.f32 %v8751, 1.0
        %v8880 = vadd.f32 %v8752, 1.0
        %v8881 = vadd.f32 %v8753, 1.0
        %v8882 = vadd.f32 %v8754, 1.0
        %v8883 = vadd.f32 %v8755, 1.0
        %v8884 = vadd.f32 %v8756, 1.0
        %v8885 = vadd.f32 %v8757, 1.0
        %v8886 = vadd.f32 %v8758, 1.0
        %v8887 = vadd.f32 %v8759, 1.0
        %v8888 = vadd.f32 %v8760, 1.0
        %v8889 = vadd.f32 %v8761, 1.0
        %v8890 = vadd.f32 %v8762, 1.0
        %v8891 = vadd.f32 %v8763, 1.0
        %v8892 = vadd.f32 %v8764, 1.0
        %v8893 = vadd.f32 %v8765, 1.0
        %v8894 = vadd.f32 %v8766, 1.0
        %v8895 = vadd.f32 %v8767, 1.0
        %v8896 = vadd.f32 %v8768, 1.0
        %v8897 = vadd.f32 %v8769, 1.0
        %v8898 = vadd.f32 %v8770, 1.0
        %v8899 = vadd.f32 %v8771, 1.0
        %v8900 = vadd.f32 %v8772, 1.0
        %v8901 = vadd.f32 %v8773, 1.0
        %v8902 = vadd.f32 %v8774, 1.0
        %v8903 = vadd.f32 %v8775, 1.0
        %v8904 = vadd.f32 %v8776, 1.0
        %v8905 = vadd.f32 %v8777, 1.0
        %v8906 = vadd.f32 %v8778, 1.0
        %v8907 = vadd.f32 %v8779, 1.0
        %v8908 = vadd.f32 %v8780, 1.0
        %v8909 = vadd.f32 %v8781, 1.0
        %v8910 = vadd.f32 %v8782, 1.0
        %v8911 = vadd.f32 %v8783, 1.0
        %v8912 = vadd.f32 %v8784, 1.0
        %v8913 = vadd.f32 %v8785, 1.0
        %v8914 = vadd.f32 %v8786, 1.0
        %v8915 = vadd.f32 %v8787, 1.0
        %v8916 = vadd.f32 %v8788, 1.0
        %v8917 = vadd.f32 %v8789, 1.0
        %v8918 = vadd.f32 %v8790, 1.0
        %v8919 = vadd.f32 %v8791, 1.0
        %v8920 = vadd.f32 %v8792, 1.0
        %v8921 = vadd.f32 %v8793, 1.0
        %v8922 = vadd.f32 %v8794, 1.0
        %v8923 = vadd.f32 %v8795, 1.0
        %v8924 = vadd.f32 %v8796, 1.0
        %v8925 = vadd.f32 %v8797, 1.0
        %v8926 = vadd.f32 %v8798, 1.0
        %v8927 = vadd.f32 %v8799, 1.0
        %v8928 = vadd.f32 %v8800, 1.0
        %v8929 = vadd.f32 %v8801, 1.0
        %v8930 = vmul.f32 %v8802, 0.5
        %v8931 = vmul.f32 %v8803, 0.5
        %v8932 = vmul.f32 %v8804, 0.5
        %v8933 = vmul.f32 %v8805, 0.5
        %v8934 = vmul.f32 %v8806, 0.5
        %v8935 = vmul.f32 %v8807, 0.5
        %v8936 = vmul.f32 %v8808, 0.5
        %v8937 = vmul.f32 %v8809, 0.5
        %v8938 = vmul.f32 %v8810, 0.5
        %v8939 = vmul.f32 %v8811, 0.5
        %v8940 = vmul.f32 %v8812, 0.5
        %v8941 = vmul.f32 %v8813, 0.5
        %v8942 = vmul.f32 %v8814, 0.5
        %v8943 = vmul.f32 %v8815, 0.5
        %v8944 = vmul.f32 %v8816, 0.5
        %v8945 = vmul.f32 %v8817, 0.5
        %v8946 = vmul.f32 %v8818, 0.5
        %v8947 = vmul.f32 %v8819, 0.5
        %v8948 = vmul.f32 %v8820, 0.5
        %v8949 = vmul.f32 %v8821, 0.5
        %v8950 = vmul.f32 %v8822, 0.5
        %v8951 = vmul.f32 %v8823, 0.5
        %v8952 = vmul.f32 %v8824, 0.5
        %v8953 = vmul.f32 %v8825, 0.5
        %v8954 = vmul.f32 %v8826, 0.5
        %v8955 = vmul.f32 %v8827, 0.5
        %v8956 = vmul.f32 %v8828, 0.5
        %v8957 = vmul.f32 %v8829, 0.5
        %v8958 = vmul.f32 %v8830, 0.5
        %v8959 = vmul.f32 %v8831, 0.5
        %v8960 = vmul.f32 %v8832, 0.5
        %v8961 = vmul.f32 %v8833, 0.5
        %v8962 = vmul.f32 %v8834, 0.5
        %v8963 = vmul.f32 %v8835, 0.5
        %v8964 = vmul.f32 %v8836, 0.5
        %v8965 = vmul.f32 %v8837, 0.5
        %v8966 = vmul.f32 %v8838, 0.5
        %v8967 = vmul.f32 %v8839, 0.5
        %v8968 = vmul.f32 %v8840, 0.5
        %v8969 = vmul.f32 %v8841, 0.5
        %v8970 = vmul.f32 %v8842, 0.5
        %v8971 = vmul.f32 %v8843, 0.5
        %v8972 = vmul.f32 %v8844, 0.5
        %v8973 = vmul.f32 %v8845, 0.5
        %v8974 = vmul.f32 %v8846, 0.5
        %v8975 = vmul.f32 %v8847, 0.5
        %v8976 = vmul.f32 %v8848, 0.5
        %v8977 = vmul.f32 %v8849, 0.5
        %v8978 = vmul.f32 %v8850, 0.5
        %v8979 = vmul.f32 %v8851, 0.5
        %v8980 = vmul.f32 %v8852, 0.5
        %v8981 = vmul.f32 %v8853, 0.5
        %v8982 = vmul.f32 %v8854, 0.5
        %v8983 = vmul.f32 %v8855, 0.5
        %v8984 = vmul.f32 %v8856, 0.5
        %v8985 = vmul.f32 %v8857, 0.5
        %v8986 = vmul.f32 %v8858, 0.5
        %v8987 = vmul.f32 %v8859, 0.5
        %v8988 = vmul.f32 %v8860, 0.5
        %v8989 = vmul.f32 %v8861, 0.5
        %v8990 = vmul.f32 %v8862, 0.5
        %v8991 = vmul.f32 %v8863, 0.5
        %v8992 = vmul.f32 %v8864, 0.5
        %v8993 = vmul.f32 %v8865, 0.5
        %v8994 = vmul.f32 %v8866, 0.5
        %v8995 = vmul.f32 %v8867, 0.5
        %v8996 = vmul.f32 %v8868, 0.5
        %v8997 = vmul.f32 %v8869, 0.5
        %v8998 = vmul.f32 %v8870, 0.5
        %v8999 = vmul.f32 %v8871, 0.5
        %v9000 = vmul.f32 %v8872, 0.5
        %v9001 = vmul.f32 %v8873, 0.5
        %v9002 = vmul.f32 %v8874, 0.5
        %v9003 = vmul.f32 %v8875, 0.5
        %v9004 = vmul.f32 %v8876, 0.5
        %v9005 = vmul.f32 %v8877, 0.5
        %v9006 = vmul.f32 %v8878, 0.5
        %v9007 = vmul.f32 %v8879, 0.5
        %v9008 = vmul.f32 %v8880, 0.5
        %v9009 = vmul.f32 %v8881, 0.5
        %v9010 = vmul.f32 %v8882, 0.5
        %v9011 = vmul.f32 %v8883, 0.5
        %v9012 = vmul.f32 %v8884, 0.5
        %v9013 = vmul.f32 %v8885, 0.5
        %v9014 = vmul.f32 %v8886, 0.5
        %v9015 = vmul.f32 %v8887, 0.5
        %v9016 = vmul.f32 %v8888, 0.5
        %v9017 = vmul.f32 %v8889, 0.5
        %v9018 = vmul.f32 %v8890, 0.5
        %v9019 = vmul.f32 %v8891, 0.5
        %v9020 = vmul.f32 %v8892, 0.5
        %v9021 = vmul.f32 %v8893, 0.5
        %v9022 = vmul.f32 %v8894, 0.5
        %v9023 = vmul.f32 %v8895, 0.5
        %v9024 = vmul.f32 %v8896, 0.5
        %v9025 = vmul.f32 %v8897, 0.5
        %v9026 = vmul.f32 %v8898, 0.5
        %v9027 = vmul.f32 %v8899, 0.5
        %v9028 = vmul.f32 %v8900, 0.5
        %v9029 = vmul.f32 %v8901, 0.5
        %v9030 = vmul.f32 %v8902, 0.5
        %v9031 = vmul.f32 %v8903, 0.5
        %v9032 = vmul.f32 %v8904, 0.5
        %v9033 = vmul.f32 %v8905, 0.5
        %v9034 = vmul.f32 %v8906, 0.5
        %v9035 = vmul.f32 %v8907, 0.5
        %v9036 = vmul.f32 %v8908, 0.5
        %v9037 = vmul.f32 %v8909, 0.5
        %v9038 = vmul.f32 %v8910, 0.5
        %v9039 = vmul.f32 %v8911, 0.5
        %v9040 = vmul.f32 %v8912, 0.5
        %v9041 = vmul.f32 %v8913, 0.5
        %v9042 = vmul.f32 %v8914, 0.5
        %v9043 = vmul.f32 %v8915, 0.5
        %v9044 = vmul.f32 %v8916, 0.5
        %v9045 = vmul.f32 %v8917, 0.5
        %v9046 = vmul.f32 %v8918, 0.5
        %v9047 = vmul.f32 %v8919, 0.5
        %v9048 = vmul.f32 %v8920, 0.5
        %v9049 = vmul.f32 %v8921, 0.5
        %v9050 = vmul.f32 %v8922, 0.5
        %v9051 = vmul.f32 %v8923, 0.5
        %v9052 = vmul.f32 %v8924, 0.5
        %v9053 = vmul.f32 %v8925, 0.5
        %v9054 = vmul.f32 %v8926, 0.5
        %v9055 = vmul.f32 %v8927, 0.5
        %v9056 = vmul.f32 %v8928, 0.5
        %v9057 = vmul.f32 %v8929, 0.5
        %v9058 = vmul.f32 %v7683, %v8930
        %v9059 = vmul.f32 %v7685, %v8931
        %v9060 = vmul.f32 %v7876, %v8932
        %v9061 = vmul.f32 %v7878, %v8933
        %v9062 = vmul.f32 %v7687, %v8934
        %v9063 = vmul.f32 %v7689, %v8935
        %v9064 = vmul.f32 %v7880, %v8936
        %v9065 = vmul.f32 %v7882, %v8937
        %v9066 = vmul.f32 %v7693, %v8938
        %v9067 = vmul.f32 %v7695, %v8939
        %v9068 = vmul.f32 %v7886, %v8940
        %v9069 = vmul.f32 %v7888, %v8941
        %v9070 = vmul.f32 %v7697, %v8942
        %v9071 = vmul.f32 %v7699, %v8943
        %v9072 = vmul.f32 %v7890, %v8944
        %v9073 = vmul.f32 %v7892, %v8945
        %v9074 = vmul.f32 %v7703, %v8946
        %v9075 = vmul.f32 %v7705, %v8947
        %v9076 = vmul.f32 %v7896, %v8948
        %v9077 = vmul.f32 %v7898, %v8949
        %v9078 = vmul.f32 %v7707, %v8950
        %v9079 = vmul.f32 %v7709, %v8951
        %v9080 = vmul.f32 %v7900, %v8952
        %v9081 = vmul.f32 %v7902, %v8953
        %v9082 = vmul.f32 %v7713, %v8954
        %v9083 = vmul.f32 %v7715, %v8955
        %v9084 = vmul.f32 %v7906, %v8956
        %v9085 = vmul.f32 %v7908, %v8957
        %v9086 = vmul.f32 %v7717, %v8958
        %v9087 = vmul.f32 %v7719, %v8959
        %v9088 = vmul.f32 %v7910, %v8960
        %v9089 = vmul.f32 %v7912, %v8961
        %v9090 = vmul.f32 %v7723, %v8962
        %v9091 = vmul.f32 %v7725, %v8963
        %v9092 = vmul.f32 %v7916, %v8964
        %v9093 = vmul.f32 %v7918, %v8965
        %v9094 = vmul.f32 %v7727, %v8966
        %v9095 = vmul.f32 %v7729, %v8967
        %v9096 = vmul.f32 %v7920, %v8968
        %v9097 = vmul.f32 %v7922, %v8969
        %v9098 = vmul.f32 %v7733, %v8970
        %v9099 = vmul.f32 %v7735, %v8971
        %v9100 = vmul.f32 %v7926, %v8972
        %v9101 = vmul.f32 %v7928, %v8973
        %v9102 = vmul.f32 %v7737, %v8974
        %v9103 = vmul.f32 %v7739, %v8975
        %v9104 = vmul.f32 %v7930, %v8976
        %v9105 = vmul.f32 %v7932, %v8977
        %v9106 = vmul.f32 %v7743, %v8978
        %v9107 = vmul.f32 %v7745, %v8979
        %v9108 = vmul.f32 %v7936, %v8980
        %v9109 = vmul.f32 %v7938, %v8981
        %v9110 = vmul.f32 %v7747, %v8982
        %v9111 = vmul.f32 %v7749, %v8983
        %v9112 = vmul.f32 %v7940, %v8984
        %v9113 = vmul.f32 %v7942, %v8985
        %v9114 = vmul.f32 %v7753, %v8986
        %v9115 = vmul.f32 %v7755, %v8987
        %v9116 = vmul.f32 %v7946, %v8988
        %v9117 = vmul.f32 %v7948, %v8989
        %v9118 = vmul.f32 %v7757, %v8990
        %v9119 = vmul.f32 %v7759, %v8991
        %v9120 = vmul.f32 %v7950, %v8992
        %v9121 = vmul.f32 %v7952, %v8993
        %v9122 = vmul.f32 %v7763, %v8994
        %v9123 = vmul.f32 %v7765, %v8995
        %v9124 = vmul.f32 %v7956, %v8996
        %v9125 = vmul.f32 %v7958, %v8997
        %v9126 = vmul.f32 %v7767, %v8998
        %v9127 = vmul.f32 %v7769, %v8999
        %v9128 = vmul.f32 %v7960, %v9000
        %v9129 = vmul.f32 %v7962, %v9001
        %v9130 = vmul.f32 %v7773, %v9002
        %v9131 = vmul.f32 %v7775, %v9003
        %v9132 = vmul.f32 %v7966, %v9004
        %v9133 = vmul.f32 %v7968, %v9005
        %v9134 = vmul.f32 %v7777, %v9006
        %v9135 = vmul.f32 %v7779, %v9007
        %v9136 = vmul.f32 %v7970, %v9008
        %v9137 = vmul.f32 %v7972, %v9009
        %v9138 = vmul.f32 %v7783, %v9010
        %v9139 = vmul.f32 %v7785, %v9011
        %v9140 = vmul.f32 %v7976, %v9012
        %v9141 = vmul.f32 %v7978, %v9013
        %v9142 = vmul.f32 %v7787, %v9014
        %v9143 = vmul.f32 %v7789, %v9015
        %v9144 = vmul.f32 %v7980, %v9016
        %v9145 = vmul.f32 %v7982, %v9017
        %v9146 = vmul.f32 %v7793, %v9018
        %v9147 = vmul.f32 %v7795, %v9019
        %v9148 = vmul.f32 %v7986, %v9020
        %v9149 = vmul.f32 %v7988, %v9021
        %v9150 = vmul.f32 %v7797, %v9022
        %v9151 = vmul.f32 %v7799, %v9023
        %v9152 = vmul.f32 %v7990, %v9024
        %v9153 = vmul.f32 %v7992, %v9025
        %v9154 = vmul.f32 %v7803, %v9026
        %v9155 = vmul.f32 %v7805, %v9027
        %v9156 = vmul.f32 %v7996, %v9028
        %v9157 = vmul.f32 %v7998, %v9029
        %v9158 = vmul.f32 %v7807, %v9030
        %v9159 = vmul.f32 %v7809, %v9031
        %v9160 = vmul.f32 %v8000, %v9032
        %v9161 = vmul.f32 %v8002, %v9033
        %v9162 = vmul.f32 %v7813, %v9034
        %v9163 = vmul.f32 %v7815, %v9035
        %v9164 = vmul.f32 %v8006, %v9036
        %v9165 = vmul.f32 %v8008, %v9037
        %v9166 = vmul.f32 %v7817, %v9038
        %v9167 = vmul.f32 %v7819, %v9039
        %v9168 = vmul.f32 %v8010, %v9040
        %v9169 = vmul.f32 %v8012, %v9041
        %v9170 = vmul.f32 %v7823, %v9042
        %v9171 = vmul.f32 %v7825, %v9043
        %v9172 = vmul.f32 %v8016, %v9044
        %v9173 = vmul.f32 %v8018, %v9045
        %v9174 = vmul.f32 %v7827, %v9046
        %v9175 = vmul.f32 %v7829, %v9047
        %v9176 = vmul.f32 %v8020, %v9048
        %v9177 = vmul.f32 %v8022, %v9049
        %v9178 = vmul.f32 %v7833, %v9050
        %v9179 = vmul.f32 %v7835, %v9051
        %v9180 = vmul.f32 %v8026, %v9052
        %v9181 = vmul.f32 %v8028, %v9053
        %v9182 = vmul.f32 %v7837, %v9054
        %v9183 = vmul.f32 %v7839, %v9055
        %v9184 = vmul.f32 %v8030, %v9056
        %v9185 = vmul.f32 %v8032, %v9057
        %v9186 = vpack.c.bf16 %v9062, %v9058
        %v9187 = vpack.c.bf16 %v9063, %v9059
        %v9188 = vpack.c.bf16 %v9064, %v9060
        %v9189 = vpack.c.bf16 %v9065, %v9061
        %v9190 = vpack.c.bf16 %v9070, %v9066
        %v9191 = vpack.c.bf16 %v9071, %v9067
        %v9192 = vpack.c.bf16 %v9072, %v9068
        %v9193 = vpack.c.bf16 %v9073, %v9069
        %v9194 = vpack.c.bf16 %v9078, %v9074
        %v9195 = vpack.c.bf16 %v9079, %v9075
        %v9196 = vpack.c.bf16 %v9080, %v9076
        %v9197 = vpack.c.bf16 %v9081, %v9077
        %v9198 = vpack.c.bf16 %v9086, %v9082
        %v9199 = vpack.c.bf16 %v9087, %v9083
        %v9200 = vpack.c.bf16 %v9088, %v9084
        %v9201 = vpack.c.bf16 %v9089, %v9085
        %v9202 = vpack.c.bf16 %v9094, %v9090
        %v9203 = vpack.c.bf16 %v9095, %v9091
        %v9204 = vpack.c.bf16 %v9096, %v9092
        %v9205 = vpack.c.bf16 %v9097, %v9093
        %v9206 = vpack.c.bf16 %v9102, %v9098
        %v9207 = vpack.c.bf16 %v9103, %v9099
        %v9208 = vpack.c.bf16 %v9104, %v9100
        %v9209 = vpack.c.bf16 %v9105, %v9101
        %v9210 = vpack.c.bf16 %v9110, %v9106
        %v9211 = vpack.c.bf16 %v9111, %v9107
        %v9212 = vpack.c.bf16 %v9112, %v9108
        %v9213 = vpack.c.bf16 %v9113, %v9109
        %v9214 = vpack.c.bf16 %v9118, %v9114
        %v9215 = vpack.c.bf16 %v9119, %v9115
        %v9216 = vpack.c.bf16 %v9120, %v9116
        %v9217 = vpack.c.bf16 %v9121, %v9117
        %v9218 = vpack.c.bf16 %v9126, %v9122
        %v9219 = vpack.c.bf16 %v9127, %v9123
        %v9220 = vpack.c.bf16 %v9128, %v9124
        %v9221 = vpack.c.bf16 %v9129, %v9125
        %v9222 = vpack.c.bf16 %v9134, %v9130
        %v9223 = vpack.c.bf16 %v9135, %v9131
        %v9224 = vpack.c.bf16 %v9136, %v9132
        %v9225 = vpack.c.bf16 %v9137, %v9133
        %v9226 = vpack.c.bf16 %v9142, %v9138
        %v9227 = vpack.c.bf16 %v9143, %v9139
        %v9228 = vpack.c.bf16 %v9144, %v9140
        %v9229 = vpack.c.bf16 %v9145, %v9141
        %v9230 = vpack.c.bf16 %v9150, %v9146
        %v9231 = vpack.c.bf16 %v9151, %v9147
        %v9232 = vpack.c.bf16 %v9152, %v9148
        %v9233 = vpack.c.bf16 %v9153, %v9149
        %v9234 = vpack.c.bf16 %v9158, %v9154
        %v9235 = vpack.c.bf16 %v9159, %v9155
        %v9236 = vpack.c.bf16 %v9160, %v9156
        %v9237 = vpack.c.bf16 %v9161, %v9157
        %v9238 = vpack.c.bf16 %v9166, %v9162
        %v9239 = vpack.c.bf16 %v9167, %v9163
        %v9240 = vpack.c.bf16 %v9168, %v9164
        %v9241 = vpack.c.bf16 %v9169, %v9165
        %v9242 = vpack.c.bf16 %v9174, %v9170
        %v9243 = vpack.c.bf16 %v9175, %v9171
        %v9244 = vpack.c.bf16 %v9176, %v9172
        %v9245 = vpack.c.bf16 %v9177, %v9173
        %v9246 = vpack.c.bf16 %v9182, %v9178
        %v9247 = vpack.c.bf16 %v9183, %v9179
        %v9248 = vpack.c.bf16 %v9184, %v9180
        %v9249 = vpack.c.bf16 %v9185, %v9181
        %v9250 = vld [vmem:[%s9] sm:$0xf]
        %v9251 = vld [vmem:[%s9 + $0x4] sm:$0xf]
        %v9252 = vld [vmem:[%s9 + $0x8] sm:$0xf]
        %v9253 = vld [vmem:[%s9 + $0xc] sm:$0xf]
        %v9254 = vld [vmem:[%s9 + $0x10] sm:$0xf]
        %v9255 = vld [vmem:[%s9 + $0x14] sm:$0xf]
        %v9256 = vld [vmem:[%s9 + $0x18] sm:$0xf]
        %v9257 = vld [vmem:[%s9 + $0x1c] sm:$0xf]
        %v9258 = vld [vmem:[%s9 + $0x20] sm:$0xf]
        %v9259 = vld [vmem:[%s9 + $0x24] sm:$0xf]
        %v9260 = vld [vmem:[%s9 + $0x28] sm:$0xf]
        %v9261 = vld [vmem:[%s9 + $0x2c] sm:$0xf]
        %v9262 = vld [vmem:[%s9 + $0x30] sm:$0xf]
        %v9263 = vld [vmem:[%s9 + $0x34] sm:$0xf]
        %v9264 = vld [vmem:[%s9 + $0x38] sm:$0xf]
        %v9265 = vld [vmem:[%s9 + $0x3c] sm:$0xf]
        %v9266 = vld [vmem:[%s9 + $0x40] sm:$0xf]
        %v9267 = vld [vmem:[%s9 + $0x44] sm:$0xf]
        %v9268 = vld [vmem:[%s9 + $0x48] sm:$0xf]
        %v9269 = vld [vmem:[%s9 + $0x4c] sm:$0xf]
        %v9270 = vld [vmem:[%s9 + $0x50] sm:$0xf]
        %v9271 = vld [vmem:[%s9 + $0x54] sm:$0xf]
        %v9272 = vld [vmem:[%s9 + $0x58] sm:$0xf]
        %v9273 = vld [vmem:[%s9 + $0x5c] sm:$0xf]
        %v9274 = vld [vmem:[%s9 + $0x60] sm:$0xf]
        %v9275 = vld [vmem:[%s9 + $0x64] sm:$0xf]
        %v9276 = vld [vmem:[%s9 + $0x68] sm:$0xf]
        %v9277 = vld [vmem:[%s9 + $0x6c] sm:$0xf]
        %v9278 = vld [vmem:[%s9 + $0x70] sm:$0xf]
        %v9279 = vld [vmem:[%s9 + $0x74] sm:$0xf]
        %v9280 = vld [vmem:[%s9 + $0x78] sm:$0xf]
        %v9281 = vld [vmem:[%s9 + $0x7c] sm:$0xf]
        %v9282 = vld [vmem:[%s9 + $0x80] sm:$0xf]
        %v9283 = vld [vmem:[%s9 + $0x84] sm:$0xf]
        %v9284 = vld [vmem:[%s9 + $0x88] sm:$0xf]
        %v9285 = vld [vmem:[%s9 + $0x8c] sm:$0xf]
        %v9286 = vld [vmem:[%s9 + $0x90] sm:$0xf]
        %v9287 = vld [vmem:[%s9 + $0x94] sm:$0xf]
        %v9288 = vld [vmem:[%s9 + $0x98] sm:$0xf]
        %v9289 = vld [vmem:[%s9 + $0x9c] sm:$0xf]
        %v9290 = vld [vmem:[%s9 + $0xa0] sm:$0xf]
        %v9291 = vld [vmem:[%s9 + $0xa4] sm:$0xf]
        %v9292 = vld [vmem:[%s9 + $0xa8] sm:$0xf]
        %v9293 = vld [vmem:[%s9 + $0xac] sm:$0xf]
        %v9294 = vld [vmem:[%s9 + $0xb0] sm:$0xf]
        %v9295 = vld [vmem:[%s9 + $0xb4] sm:$0xf]
        %v9296 = vld [vmem:[%s9 + $0xb8] sm:$0xf]
        %v9297 = vld [vmem:[%s9 + $0xbc] sm:$0xf]
        %v9298 = vld [vmem:[%s9 + $0xc0] sm:$0xf]
        %v9299 = vld [vmem:[%s9 + $0xc4] sm:$0xf]
        %v9300 = vld [vmem:[%s9 + $0xc8] sm:$0xf]
        %v9301 = vld [vmem:[%s9 + $0xcc] sm:$0xf]
        %v9302 = vld [vmem:[%s9 + $0xd0] sm:$0xf]
        %v9303 = vld [vmem:[%s9 + $0xd4] sm:$0xf]
        %v9304 = vld [vmem:[%s9 + $0xd8] sm:$0xf]
        %v9305 = vld [vmem:[%s9 + $0xdc] sm:$0xf]
        %v9306 = vld [vmem:[%s9 + $0xe0] sm:$0xf]
        %v9307 = vld [vmem:[%s9 + $0xe4] sm:$0xf]
        %v9308 = vld [vmem:[%s9 + $0xe8] sm:$0xf]
        %v9309 = vld [vmem:[%s9 + $0xec] sm:$0xf]
        %v9310 = vld [vmem:[%s9 + $0xf0] sm:$0xf]
        %v9311 = vld [vmem:[%s9 + $0xf4] sm:$0xf]
        %v9312 = vld [vmem:[%s9 + $0xf8] sm:$0xf]
        %v9313 = vld [vmem:[%s9 + $0xfc] sm:$0xf]
        %v9314 = vld [vmem:[%s10] sm:$0x1]
        %v9316 = vlaneseq
        %v9317 = vshrl.u32 %v9316, 7
        %v9318 = vsub.s32 0, %v9317
        %v9319 = vrot.slane %v9314, %v9318
        %v9385 = vunpack.c.l.b16 %v9250
        %v9386 = vunpack.c.l.b16 %v9251
        %v9387 = vunpack.c.l.b16 %v9252
        %v9388 = vunpack.c.l.b16 %v9253
        %v9389 = vunpack.c.l.b16 %v9254
        %v9390 = vunpack.c.l.b16 %v9255
        %v9391 = vunpack.c.l.b16 %v9256
        %v9392 = vunpack.c.l.b16 %v9257
        %v9393 = vunpack.c.l.b16 %v9258
        %v9394 = vunpack.c.l.b16 %v9259
        %v9395 = vunpack.c.l.b16 %v9260
        %v9396 = vunpack.c.l.b16 %v9261
        %v9397 = vunpack.c.l.b16 %v9262
        %v9398 = vunpack.c.l.b16 %v9263
        %v9399 = vunpack.c.l.b16 %v9264
        %v9400 = vunpack.c.l.b16 %v9265
        %v9401 = vunpack.c.l.b16 %v9266
        %v9402 = vunpack.c.l.b16 %v9267
        %v9403 = vunpack.c.l.b16 %v9268
        %v9404 = vunpack.c.l.b16 %v9269
        %v9405 = vunpack.c.l.b16 %v9270
        %v9406 = vunpack.c.l.b16 %v9271
        %v9407 = vunpack.c.l.b16 %v9272
        %v9408 = vunpack.c.l.b16 %v9273
        %v9409 = vunpack.c.l.b16 %v9274
        %v9410 = vunpack.c.l.b16 %v9275
        %v9411 = vunpack.c.l.b16 %v9276
        %v9412 = vunpack.c.l.b16 %v9277
        %v9413 = vunpack.c.l.b16 %v9278
        %v9414 = vunpack.c.l.b16 %v9279
        %v9415 = vunpack.c.l.b16 %v9280
        %v9416 = vunpack.c.l.b16 %v9281
        %v9417 = vunpack.c.l.b16 %v9282
        %v9418 = vunpack.c.l.b16 %v9283
        %v9419 = vunpack.c.l.b16 %v9284
        %v9420 = vunpack.c.l.b16 %v9285
        %v9421 = vunpack.c.l.b16 %v9286
        %v9422 = vunpack.c.l.b16 %v9287
        %v9423 = vunpack.c.l.b16 %v9288
        %v9424 = vunpack.c.l.b16 %v9289
        %v9425 = vunpack.c.l.b16 %v9290
        %v9426 = vunpack.c.l.b16 %v9291
        %v9427 = vunpack.c.l.b16 %v9292
        %v9428 = vunpack.c.l.b16 %v9293
        %v9429 = vunpack.c.l.b16 %v9294
        %v9430 = vunpack.c.l.b16 %v9295
        %v9431 = vunpack.c.l.b16 %v9296
        %v9432 = vunpack.c.l.b16 %v9297
        %v9433 = vunpack.c.l.b16 %v9298
        %v9434 = vunpack.c.l.b16 %v9299
        %v9435 = vunpack.c.l.b16 %v9300
        %v9436 = vunpack.c.l.b16 %v9301
        %v9437 = vunpack.c.l.b16 %v9302
        %v9438 = vunpack.c.l.b16 %v9303
        %v9439 = vunpack.c.l.b16 %v9304
        %v9440 = vunpack.c.l.b16 %v9305
        %v9441 = vunpack.c.l.b16 %v9306
        %v9442 = vunpack.c.l.b16 %v9307
        %v9443 = vunpack.c.l.b16 %v9308
        %v9444 = vunpack.c.l.b16 %v9309
        %v9445 = vunpack.c.l.b16 %v9310
        %v9446 = vunpack.c.l.b16 %v9311
        %v9447 = vunpack.c.l.b16 %v9312
        %v9448 = vunpack.c.l.b16 %v9313
        %v9449 = vpack.c.b16 %v9386, %v9385
        %v9450 = vpack.c.b16 %v9388, %v9387
        %v9451 = vpack.c.b16 %v9390, %v9389
        %v9452 = vpack.c.b16 %v9392, %v9391
        %v9453 = vpack.c.b16 %v9394, %v9393
        %v9454 = vpack.c.b16 %v9396, %v9395
        %v9455 = vpack.c.b16 %v9398, %v9397
        %v9456 = vpack.c.b16 %v9400, %v9399
        %v9457 = vpack.c.b16 %v9402, %v9401
        %v9458 = vpack.c.b16 %v9404, %v9403
        %v9459 = vpack.c.b16 %v9406, %v9405
        %v9460 = vpack.c.b16 %v9408, %v9407
        %v9461 = vpack.c.b16 %v9410, %v9409
        %v9462 = vpack.c.b16 %v9412, %v9411
        %v9463 = vpack.c.b16 %v9414, %v9413
        %v9464 = vpack.c.b16 %v9416, %v9415
        %v9465 = vpack.c.b16 %v9418, %v9417
        %v9466 = vpack.c.b16 %v9420, %v9419
        %v9467 = vpack.c.b16 %v9422, %v9421
        %v9468 = vpack.c.b16 %v9424, %v9423
        %v9469 = vpack.c.b16 %v9426, %v9425
        %v9470 = vpack.c.b16 %v9428, %v9427
        %v9471 = vpack.c.b16 %v9430, %v9429
        %v9472 = vpack.c.b16 %v9432, %v9431
        %v9473 = vpack.c.b16 %v9434, %v9433
        %v9474 = vpack.c.b16 %v9436, %v9435
        %v9475 = vpack.c.b16 %v9438, %v9437
        %v9476 = vpack.c.b16 %v9440, %v9439
        %v9477 = vpack.c.b16 %v9442, %v9441
        %v9478 = vpack.c.b16 %v9444, %v9443
        %v9479 = vpack.c.b16 %v9446, %v9445
        %v9480 = vpack.c.b16 %v9448, %v9447
        %9513 = vmatprep.subr.bf16.mxu0 0
        %9514 = vmatpush1.bf16.msra.mxu0 %v9449
        %9515 = vmatprep.subr.bf16.mxu0 0
        %9516 = vmatpush1.bf16.msra.mxu0 %v9450
        %9517 = vmatprep.subr.bf16.mxu0 0
        %9518 = vmatpush1.bf16.msra.mxu0 %v9451
        %9519 = vmatprep.subr.bf16.mxu0 0
        %9520 = vmatpush1.bf16.msra.mxu0 %v9452
        %9521 = vmatprep.subr.bf16.mxu0 0
        %9522 = vmatpush1.bf16.msra.mxu0 %v9453
        %9523 = vmatprep.subr.bf16.mxu0 0
        %9524 = vmatpush1.bf16.msra.mxu0 %v9454
        %9525 = vmatprep.subr.bf16.mxu0 0
        %9526 = vmatpush1.bf16.msra.mxu0 %v9455
        %9527 = vmatprep.subr.bf16.mxu0 0
        %9528 = vmatpush1.bf16.msra.mxu0 %v9456
        %9529 = vmatprep.subr.bf16.mxu0 0
        %9530 = vmatpush1.bf16.msra.mxu0 %v9457
        %9531 = vmatprep.subr.bf16.mxu0 0
        %9532 = vmatpush1.bf16.msra.mxu0 %v9458
        %9533 = vmatprep.subr.bf16.mxu0 0
        %9534 = vmatpush1.bf16.msra.mxu0 %v9459
        %9535 = vmatprep.subr.bf16.mxu0 0
        %9536 = vmatpush1.bf16.msra.mxu0 %v9460
        %9537 = vmatprep.subr.bf16.mxu0 0
        %9538 = vmatpush1.bf16.msra.mxu0 %v9461
        %9539 = vmatprep.subr.bf16.mxu0 0
        %9540 = vmatpush1.bf16.msra.mxu0 %v9462
        %9541 = vmatprep.subr.bf16.mxu0 0
        %9542 = vmatpush1.bf16.msra.mxu0 %v9463
        %9543 = vmatprep.subr.bf16.mxu0 0
        %9544 = vmatpush1.bf16.msra.mxu0 %v9464
        %9545 = vmatprep.mubr.bf16.mxu0 %v9187
        %9546 = vmatmul.mubr.bf16.gmra.mrb[0].mxu0 %v9186
        %v9547 = vpop.f32.mrb[0].mxu0
        %v9548 = vadd.f32 %v9319, %v9547
        %v9549 = vpop.f32.mrb[0].mxu0
        %v9550 = vpop.f32.mrb[0].mxu0
        %v9551 = vadd.f32 %v9319, %v9550
        %v9552 = vpop.f32.mrb[0].mxu0
        %9553 = vmatprep.mubr.bf16.mxu0 %v9191
        %9554 = vmatmul.mubr.bf16.gmra.mrb[0].mxu0 %v9190
        %v9555 = vpop.f32.mrb[0].mxu0
        %v9556 = vadd.f32 %v9319, %v9555
        %v9557 = vpop.f32.mrb[0].mxu0
        %v9558 = vpop.f32.mrb[0].mxu0
        %v9559 = vadd.f32 %v9319, %v9558
        %v9560 = vpop.f32.mrb[0].mxu0
        %9561 = vmatprep.mubr.bf16.mxu0 %v9195
        %9562 = vmatmul.mubr.bf16.gmra.mrb[0].mxu0 %v9194
        %v9563 = vpop.f32.mrb[0].mxu0
        %v9564 = vadd.f32 %v9319, %v9563
        %v9565 = vpop.f32.mrb[0].mxu0
        %v9566 = vpop.f32.mrb[0].mxu0
        %v9567 = vadd.f32 %v9319, %v9566
        %v9568 = vpop.f32.mrb[0].mxu0
        %9569 = vmatprep.mubr.bf16.mxu0 %v9199
        %9570 = vmatmul.mubr.bf16.gmra.mrb[0].mxu0 %v9198
        %v9571 = vpop.f32.mrb[0].mxu0
        %v9572 = vadd.f32 %v9319, %v9571
        %v9573 = vpop.f32.mrb[0].mxu0
        %v9574 = vpop.f32.mrb[0].mxu0
        %v9575 = vadd.f32 %v9319, %v9574
        %v9576 = vpop.f32.mrb[0].mxu0
        %9577 = vmatprep.mubr.bf16.mxu0 %v9203
        %9578 = vmatmul.mubr.bf16.gmra.mrb[0].mxu0 %v9202
        %v9579 = vpop.f32.mrb[0].mxu0
        %v9580 = vadd.f32 %v9319, %v9579
        %v9581 = vpop.f32.mrb[0].mxu0
        %v9582 = vpop.f32.mrb[0].mxu0
        %v9583 = vadd.f32 %v9319, %v9582
        %v9584 = vpop.f32.mrb[0].mxu0
        %9585 = vmatprep.mubr.bf16.mxu0 %v9207
        %9586 = vmatmul.mubr.bf16.gmra.mrb[0].mxu0 %v9206
        %v9587 = vpop.f32.mrb[0].mxu0
        %v9588 = vadd.f32 %v9319, %v9587
        %v9589 = vpop.f32.mrb[0].mxu0
        %v9590 = vpop.f32.mrb[0].mxu0
        %v9591 = vadd.f32 %v9319, %v9590
        %v9592 = vpop.f32.mrb[0].mxu0
        %9593 = vmatprep.mubr.bf16.mxu0 %v9211
        %9594 = vmatmul.mubr.bf16.gmra.mrb[0].mxu0 %v9210
        %v9595 = vpop.f32.mrb[0].mxu0
        %v9596 = vadd.f32 %v9319, %v9595
        %v9597 = vpop.f32.mrb[0].mxu0
        %v9598 = vpop.f32.mrb[0].mxu0
        %v9599 = vadd.f32 %v9319, %v9598
        %v9600 = vpop.f32.mrb[0].mxu0
        %9601 = vmatprep.mubr.bf16.mxu0 %v9215
        %9602 = vmatmul.mubr.bf16.gmra.mrb[0].mxu0 %v9214
        %v9603 = vpop.f32.mrb[0].mxu0
        %v9604 = vadd.f32 %v9319, %v9603
        %v9605 = vpop.f32.mrb[0].mxu0
        %v9606 = vpop.f32.mrb[0].mxu0
        %v9607 = vadd.f32 %v9319, %v9606
        %v9608 = vpop.f32.mrb[0].mxu0
        %9609 = vmatprep.mubr.bf16.mxu0 %v9219
        %9610 = vmatmul.mubr.bf16.gmra.mrb[0].mxu0 %v9218
        %v9611 = vpop.f32.mrb[0].mxu0
        %v9612 = vadd.f32 %v9319, %v9611
        %v9613 = vpop.f32.mrb[0].mxu0
        %v9614 = vpop.f32.mrb[0].mxu0
        %v9615 = vadd.f32 %v9319, %v9614
        %v9616 = vpop.f32.mrb[0].mxu0
        %9617 = vmatprep.mubr.bf16.mxu0 %v9223
        %9618 = vmatmul.mubr.bf16.gmra.mrb[0].mxu0 %v9222
        %v9619 = vpop.f32.mrb[0].mxu0
        %v9620 = vadd.f32 %v9319, %v9619
        %v9621 = vpop.f32.mrb[0].mxu0
        %v9622 = vpop.f32.mrb[0].mxu0
        %v9623 = vadd.f32 %v9319, %v9622
        %v9624 = vpop.f32.mrb[0].mxu0
        %9625 = vmatprep.mubr.bf16.mxu0 %v9227
        %9626 = vmatmul.mubr.bf16.gmra.mrb[0].mxu0 %v9226
        %v9627 = vpop.f32.mrb[0].mxu0
        %v9628 = vadd.f32 %v9319, %v9627
        %v9629 = vpop.f32.mrb[0].mxu0
        %v9630 = vpop.f32.mrb[0].mxu0
        %v9631 = vadd.f32 %v9319, %v9630
        %v9632 = vpop.f32.mrb[0].mxu0
        %9633 = vmatprep.mubr.bf16.mxu0 %v9231
        %9634 = vmatmul.mubr.bf16.gmra.mrb[0].mxu0 %v9230
        %v9635 = vpop.f32.mrb[0].mxu0
        %v9636 = vadd.f32 %v9319, %v9635
        %v9637 = vpop.f32.mrb[0].mxu0
        %v9638 = vpop.f32.mrb[0].mxu0
        %v9639 = vadd.f32 %v9319, %v9638
        %v9640 = vpop.f32.mrb[0].mxu0
        %9641 = vmatprep.mubr.bf16.mxu0 %v9235
        %9642 = vmatmul.mubr.bf16.gmra.mrb[0].mxu0 %v9234
        %v9643 = vpop.f32.mrb[0].mxu0
        %v9644 = vadd.f32 %v9319, %v9643
        %v9645 = vpop.f32.mrb[0].mxu0
        %v9646 = vpop.f32.mrb[0].mxu0
        %v9647 = vadd.f32 %v9319, %v9646
        %v9648 = vpop.f32.mrb[0].mxu0
        %9649 = vmatprep.mubr.bf16.mxu0 %v9239
        %9650 = vmatmul.mubr.bf16.gmra.mrb[0].mxu0 %v9238
        %v9651 = vpop.f32.mrb[0].mxu0
        %v9652 = vadd.f32 %v9319, %v9651
        %v9653 = vpop.f32.mrb[0].mxu0
        %v9654 = vpop.f32.mrb[0].mxu0
        %v9655 = vadd.f32 %v9319, %v9654
        %v9656 = vpop.f32.mrb[0].mxu0
        %9657 = vmatprep.mubr.bf16.mxu0 %v9243
        %9658 = vmatmul.mubr.bf16.gmra.mrb[0].mxu0 %v9242
        %v9659 = vpop.f32.mrb[0].mxu0
        %v9660 = vadd.f32 %v9319, %v9659
        %v9661 = vpop.f32.mrb[0].mxu0
        %v9662 = vpop.f32.mrb[0].mxu0
        %v9663 = vadd.f32 %v9319, %v9662
        %v9664 = vpop.f32.mrb[0].mxu0
        %9665 = vmatprep.mubr.bf16.mxu0 %v9247
        %9666 = vmatmul.mubr.bf16.gmra.mrb[0].mxu0 %v9246
        %v9667 = vpop.f32.mrb[0].mxu0
        %v9668 = vadd.f32 %v9319, %v9667
        %v9669 = vpop.f32.mrb[0].mxu0
        %v9670 = vpop.f32.mrb[0].mxu0
        %v9671 = vadd.f32 %v9319, %v9670
        %v9672 = vpop.f32.mrb[0].mxu0
        %9673 = vdwg.mxu0
        %9674 = vmatprep.subr.bf16.mxu0 0
        %9675 = vmatpush1.bf16.msra.mxu0 %v9465
        %9676 = vmatprep.subr.bf16.mxu0 0
        %9677 = vmatpush1.bf16.msra.mxu0 %v9466
        %9678 = vmatprep.subr.bf16.mxu0 0
        %9679 = vmatpush1.bf16.msra.mxu0 %v9467
        %9680 = vmatprep.subr.bf16.mxu0 0
        %9681 = vmatpush1.bf16.msra.mxu0 %v9468
        %9682 = vmatprep.subr.bf16.mxu0 0
        %9683 = vmatpush1.bf16.msra.mxu0 %v9469
        %9684 = vmatprep.subr.bf16.mxu0 0
        %9685 = vmatpush1.bf16.msra.mxu0 %v9470
        %9686 = vmatprep.subr.bf16.mxu0 0
        %9687 = vmatpush1.bf16.msra.mxu0 %v9471
        %9688 = vmatprep.subr.bf16.mxu0 0
        %9689 = vmatpush1.bf16.msra.mxu0 %v9472
        %9690 = vmatprep.subr.bf16.mxu0 0
        %9691 = vmatpush1.bf16.msra.mxu0 %v9473
        %9692 = vmatprep.subr.bf16.mxu0 0
        %9693 = vmatpush1.bf16.msra.mxu0 %v9474
        %9694 = vmatprep.subr.bf16.mxu0 0
        %9695 = vmatpush1.bf16.msra.mxu0 %v9475
        %9696 = vmatprep.subr.bf16.mxu0 0
        %9697 = vmatpush1.bf16.msra.mxu0 %v9476
        %9698 = vmatprep.subr.bf16.mxu0 0
        %9699 = vmatpush1.bf16.msra.mxu0 %v9477
        %9700 = vmatprep.subr.bf16.mxu0 0
        %9701 = vmatpush1.bf16.msra.mxu0 %v9478
        %9702 = vmatprep.subr.bf16.mxu0 0
        %9703 = vmatpush1.bf16.msra.mxu0 %v9479
        %9704 = vmatprep.subr.bf16.mxu0 0
        %9705 = vmatpush1.bf16.msra.mxu0 %v9480
        %9706 = vmatprep.mubr.bf16.mxu0 %v9189
        %9707 = vmatmul.mubr.bf16.gmra.mrb[0].mxu0 %v9188
        %v9708 = vpop.f32.mrb[0].mxu0
        %v9709 = vadd.f32 %v9548, %v9708
        %v9710 = vpop.f32.mrb[0].mxu0
        %v9711 = vpop.f32.mrb[0].mxu0
        %v9712 = vadd.f32 %v9551, %v9711
        %v9713 = vpop.f32.mrb[0].mxu0
        %9714 = vmatprep.mubr.bf16.mxu0 %v9193
        %9715 = vmatmul.mubr.bf16.gmra.mrb[0].mxu0 %v9192
        %v9716 = vpop.f32.mrb[0].mxu0
        %v9717 = vadd.f32 %v9556, %v9716
        %v9718 = vpop.f32.mrb[0].mxu0
        %v9719 = vpop.f32.mrb[0].mxu0
        %v9720 = vadd.f32 %v9559, %v9719
        %v9721 = vpop.f32.mrb[0].mxu0
        %9722 = vmatprep.mubr.bf16.mxu0 %v9197
        %9723 = vmatmul.mubr.bf16.gmra.mrb[0].mxu0 %v9196
        %v9724 = vpop.f32.mrb[0].mxu0
        %v9725 = vadd.f32 %v9564, %v9724
        %v9726 = vpop.f32.mrb[0].mxu0
        %v9727 = vpop.f32.mrb[0].mxu0
        %v9728 = vadd.f32 %v9567, %v9727
        %v9729 = vpop.f32.mrb[0].mxu0
        %9730 = vmatprep.mubr.bf16.mxu0 %v9201
        %9731 = vmatmul.mubr.bf16.gmra.mrb[0].mxu0 %v9200
        %v9732 = vpop.f32.mrb[0].mxu0
        %v9733 = vadd.f32 %v9572, %v9732
        %v9734 = vpop.f32.mrb[0].mxu0
        %v9735 = vpop.f32.mrb[0].mxu0
        %v9736 = vadd.f32 %v9575, %v9735
        %v9737 = vpop.f32.mrb[0].mxu0
        %9738 = vmatprep.mubr.bf16.mxu0 %v9205
        %9739 = vmatmul.mubr.bf16.gmra.mrb[0].mxu0 %v9204
        %v9740 = vpop.f32.mrb[0].mxu0
        %v9741 = vadd.f32 %v9580, %v9740
        %v9742 = vpop.f32.mrb[0].mxu0
        %v9743 = vpop.f32.mrb[0].mxu0
        %v9744 = vadd.f32 %v9583, %v9743
        %v9745 = vpop.f32.mrb[0].mxu0
        %9746 = vmatprep.mubr.bf16.mxu0 %v9209
        %9747 = vmatmul.mubr.bf16.gmra.mrb[0].mxu0 %v9208
        %v9748 = vpop.f32.mrb[0].mxu0
        %v9749 = vadd.f32 %v9588, %v9748
        %v9750 = vpop.f32.mrb[0].mxu0
        %v9751 = vpop.f32.mrb[0].mxu0
        %v9752 = vadd.f32 %v9591, %v9751
        %v9753 = vpop.f32.mrb[0].mxu0
        %9754 = vmatprep.mubr.bf16.mxu0 %v9213
        %9755 = vmatmul.mubr.bf16.gmra.mrb[0].mxu0 %v9212
        %v9756 = vpop.f32.mrb[0].mxu0
        %v9757 = vadd.f32 %v9596, %v9756
        %v9758 = vpop.f32.mrb[0].mxu0
        %v9759 = vpop.f32.mrb[0].mxu0
        %v9760 = vadd.f32 %v9599, %v9759
        %v9761 = vpop.f32.mrb[0].mxu0
        %9762 = vmatprep.mubr.bf16.mxu0 %v9217
        %9763 = vmatmul.mubr.bf16.gmra.mrb[0].mxu0 %v9216
        %v9764 = vpop.f32.mrb[0].mxu0
        %v9765 = vadd.f32 %v9604, %v9764
        %v9766 = vpop.f32.mrb[0].mxu0
        %v9767 = vpop.f32.mrb[0].mxu0
        %v9768 = vadd.f32 %v9607, %v9767
        %v9769 = vpop.f32.mrb[0].mxu0
        %9770 = vmatprep.mubr.bf16.mxu0 %v9221
        %9771 = vmatmul.mubr.bf16.gmra.mrb[0].mxu0 %v9220
        %v9772 = vpop.f32.mrb[0].mxu0
        %v9773 = vadd.f32 %v9612, %v9772
        %v9774 = vpop.f32.mrb[0].mxu0
        %v9775 = vpop.f32.mrb[0].mxu0
        %v9776 = vadd.f32 %v9615, %v9775
        %v9777 = vpop.f32.mrb[0].mxu0
        %9778 = vmatprep.mubr.bf16.mxu0 %v9225
        %9779 = vmatmul.mubr.bf16.gmra.mrb[0].mxu0 %v9224
        %v9780 = vpop.f32.mrb[0].mxu0
        %v9781 = vadd.f32 %v9620, %v9780
        %v9782 = vpop.f32.mrb[0].mxu0
        %v9783 = vpop.f32.mrb[0].mxu0
        %v9784 = vadd.f32 %v9623, %v9783
        %v9785 = vpop.f32.mrb[0].mxu0
        %9786 = vmatprep.mubr.bf16.mxu0 %v9229
        %9787 = vmatmul.mubr.bf16.gmra.mrb[0].mxu0 %v9228
        %v9788 = vpop.f32.mrb[0].mxu0
        %v9789 = vadd.f32 %v9628, %v9788
        %v9790 = vpop.f32.mrb[0].mxu0
        %v9791 = vpop.f32.mrb[0].mxu0
        %v9792 = vadd.f32 %v9631, %v9791
        %v9793 = vpop.f32.mrb[0].mxu0
        %9794 = vmatprep.mubr.bf16.mxu0 %v9233
        %9795 = vmatmul.mubr.bf16.gmra.mrb[0].mxu0 %v9232
        %v9796 = vpop.f32.mrb[0].mxu0
        %v9797 = vadd.f32 %v9636, %v9796
        %v9798 = vpop.f32.mrb[0].mxu0
        %v9799 = vpop.f32.mrb[0].mxu0
        %v9800 = vadd.f32 %v9639, %v9799
        %v9801 = vpop.f32.mrb[0].mxu0
        %9802 = vmatprep.mubr.bf16.mxu0 %v9237
        %9803 = vmatmul.mubr.bf16.gmra.mrb[0].mxu0 %v9236
        %v9804 = vpop.f32.mrb[0].mxu0
        %v9805 = vadd.f32 %v9644, %v9804
        %v9806 = vpop.f32.mrb[0].mxu0
        %v9807 = vpop.f32.mrb[0].mxu0
        %v9808 = vadd.f32 %v9647, %v9807
        %v9809 = vpop.f32.mrb[0].mxu0
        %9810 = vmatprep.mubr.bf16.mxu0 %v9241
        %9811 = vmatmul.mubr.bf16.gmra.mrb[0].mxu0 %v9240
        %v9812 = vpop.f32.mrb[0].mxu0
        %v9813 = vadd.f32 %v9652, %v9812
        %v9814 = vpop.f32.mrb[0].mxu0
        %v9815 = vpop.f32.mrb[0].mxu0
        %v9816 = vadd.f32 %v9655, %v9815
        %v9817 = vpop.f32.mrb[0].mxu0
        %9818 = vmatprep.mubr.bf16.mxu0 %v9245
        %9819 = vmatmul.mubr.bf16.gmra.mrb[0].mxu0 %v9244
        %v9820 = vpop.f32.mrb[0].mxu0
        %v9821 = vadd.f32 %v9660, %v9820
        %v9822 = vpop.f32.mrb[0].mxu0
        %v9823 = vpop.f32.mrb[0].mxu0
        %v9824 = vadd.f32 %v9663, %v9823
        %v9825 = vpop.f32.mrb[0].mxu0
        %9826 = vmatprep.mubr.bf16.mxu0 %v9249
        %9827 = vmatmul.mubr.bf16.gmra.mrb[0].mxu0 %v9248
        %v9828 = vpop.f32.mrb[0].mxu0
        %v9829 = vadd.f32 %v9668, %v9828
        %v9830 = vpop.f32.mrb[0].mxu0
        %v9831 = vpop.f32.mrb[0].mxu0
        %v9832 = vadd.f32 %v9671, %v9831
        %v9833 = vpop.f32.mrb[0].mxu0
        %9834 = vdwg.mxu0
        %v9835 = vadd.f32 %v9709, %v7123
        %v9836 = vadd.f32 %v9712, %v7124
        %v9837 = vadd.f32 %v9717, %v7125
        %v9838 = vadd.f32 %v9720, %v7126
        %v9839 = vadd.f32 %v9725, %v7127
        %v9840 = vadd.f32 %v9728, %v7128
        %v9841 = vadd.f32 %v9733, %v7129
        %v9842 = vadd.f32 %v9736, %v7130
        %v9843 = vadd.f32 %v9741, %v7131
        %v9844 = vadd.f32 %v9744, %v7132
        %v9845 = vadd.f32 %v9749, %v7133
        %v9846 = vadd.f32 %v9752, %v7134
        %v9847 = vadd.f32 %v9757, %v7135
        %v9848 = vadd.f32 %v9760, %v7136
        %v9849 = vadd.f32 %v9765, %v7137
        %v9850 = vadd.f32 %v9768, %v7138
        %v9851 = vadd.f32 %v9773, %v7139
        %v9852 = vadd.f32 %v9776, %v7140
        %v9853 = vadd.f32 %v9781, %v7141
        %v9854 = vadd.f32 %v9784, %v7142
        %v9855 = vadd.f32 %v9789, %v7143
        %v9856 = vadd.f32 %v9792, %v7144
        %v9857 = vadd.f32 %v9797, %v7145
        %v9858 = vadd.f32 %v9800, %v7146
        %v9859 = vadd.f32 %v9805, %v7147
        %v9860 = vadd.f32 %v9808, %v7148
        %v9861 = vadd.f32 %v9813, %v7149
        %v9862 = vadd.f32 %v9816, %v7150
        %v9863 = vadd.f32 %v9821, %v7151
        %v9864 = vadd.f32 %v9824, %v7152
        %v9865 = vadd.f32 %v9829, %v7153
        %v9866 = vadd.f32 %v9832, %v7154
        %9867 = vst [vmem:[%s434] sm:$0xff] %v9835
        %9868 = vst [vmem:[%s434 + $0x8] sm:$0xff] %v9836
        %9869 = vst [vmem:[%s434 + $0x10] sm:$0xff] %v9837
        %9870 = vst [vmem:[%s434 + $0x18] sm:$0xff] %v9838
        %9871 = vst [vmem:[%s434 + $0x20] sm:$0xff] %v9839
        %9872 = vst [vmem:[%s434 + $0x28] sm:$0xff] %v9840
        %9873 = vst [vmem:[%s434 + $0x30] sm:$0xff] %v9841
        %9874 = vst [vmem:[%s434 + $0x38] sm:$0xff] %v9842
        %9875 = vst [vmem:[%s434 + $0x40] sm:$0xff] %v9843
        %9876 = vst [vmem:[%s434 + $0x48] sm:$0xff] %v9844
        %9877 = vst [vmem:[%s434 + $0x50] sm:$0xff] %v9845
        %9878 = vst [vmem:[%s434 + $0x58] sm:$0xff] %v9846
        %9879 = vst [vmem:[%s434 + $0x60] sm:$0xff] %v9847
        %9880 = vst [vmem:[%s434 + $0x68] sm:$0xff] %v9848
        %9881 = vst [vmem:[%s434 + $0x70] sm:$0xff] %v9849
        %9882 = vst [vmem:[%s434 + $0x78] sm:$0xff] %v9850
        %9883 = vst [vmem:[%s434 + $0x80] sm:$0xff] %v9851
        %9884 = vst [vmem:[%s434 + $0x88] sm:$0xff] %v9852
        %9885 = vst [vmem:[%s434 + $0x90] sm:$0xff] %v9853
        %9886 = vst [vmem:[%s434 + $0x98] sm:$0xff] %v9854
        %9887 = vst [vmem:[%s434 + $0xa0] sm:$0xff] %v9855
        %9888 = vst [vmem:[%s434 + $0xa8] sm:$0xff] %v9856
        %9889 = vst [vmem:[%s434 + $0xb0] sm:$0xff] %v9857
        %9890 = vst [vmem:[%s434 + $0xb8] sm:$0xff] %v9858
        %9891 = vst [vmem:[%s434 + $0xc0] sm:$0xff] %v9859
        %9892 = vst [vmem:[%s434 + $0xc8] sm:$0xff] %v9860
        %9893 = vst [vmem:[%s434 + $0xd0] sm:$0xff] %v9861
        %9894 = vst [vmem:[%s434 + $0xd8] sm:$0xff] %v9862
        %9895 = vst [vmem:[%s434 + $0xe0] sm:$0xff] %v9863
        %9896 = vst [vmem:[%s434 + $0xe8] sm:$0xff] %v9864
        %9897 = vst [vmem:[%s434 + $0xf0] sm:$0xff] %v9865
        %9898 = vst [vmem:[%s434 + $0xf8] sm:$0xff] %v9866
        %s9899 = sand.u32 %s295, 1
        %s9900 = scalar_lea.sflag [#allocation3], %s9899
        %s9901 = sand.u32 %s295, 1
        %s9902 = smul.addr %s9901, 256
        %s9903 = scalar_lea.vmem [#allocation2], %s9902
        // Predicated region
        $region65: #{cross_attention_block.1} parent=63 // pred_check
          %p9904 = pneg %p305
        $region66: #{cross_attention_block.1} parent=63 // pred_check_branch
          %9906 = sbr.rel (%p9904) target = $region68
        $region67: #{cross_attention_block.1} parent=63 // pred_region
          %s9907 = smul.u32 32, %s30
          %s9909 = ssub.s32 4096, 4096
          %9910 = vsyncadd %s9900, %s9909
          %s9911 = smul.addr %s29, 32
          %s9912 = sadd.s32 %s9907, %s9911
          %s9913 = smul.addr %s9912, 128
          %s9914 = scalar_lea.hbm %s11, %s9913
          %s9915 = sshll.u32 %s9903, 4
          %s9916 = int_to_ptr.vmem [resolvable:$true] %s9915
          %9921 = dma.vmem_to_hbm [thread:$0]  %s9916, 4096, %s9914, %s9900, 128, 128, 8
        $region68: #{cross_attention_block.1} parent=63 // pred_fallthru
          _
      $region64: #{cross_attention_block.1} parent=5 // pred_fallthru
        _
      %p9922 = scmp.le.s32.totalorder 2, %s20
      // Predicated region
      $region69: #{cross_attention_block.1} parent=5 // pred_check
        %p9923 = pneg %p9922
      $region70: #{cross_attention_block.1} parent=5 // pred_check_branch
        %9925 = sbr.rel (%p9923) target = $region72
      $region71: #{cross_attention_block.1} parent=5 // pred_region
        %s9926 = ssub.s32 %s20, 2
        // Predicated region
        $region73: #{cross_attention_block.1} parent=71 // pred_check
          %p9927 = pneg %p311
        $region74: #{cross_attention_block.1} parent=71 // pred_check_branch
          %9929 = sbr.rel (%p9927) target = $region76
        $region75: #{cross_attention_block.1} parent=71 // pred_region
          %s9930 = sand.u32 %s296, 1
          %s9931 = scalar_lea.sflag [#allocation3], %s9930
          %s9932 = sand.u32 %s296, 1
          %s9933 = smul.addr %s9932, 256
          %s9934 = scalar_lea.vmem [#allocation2], %s9933
          %9935 = dma.done %s9931, 4096
        $region76: #{cross_attention_block.1} parent=71 // pred_fallthru
          _
      $region72: #{cross_attention_block.1} parent=5 // pred_fallthru
        _
    $region6: #{cross_attention_block.1} parent=1 // loop_footer
      %s24 = sadd.s32 1, %s20
    $region7: #{cross_attention_block.1} parent=1 // loop_footer_branch
      %19 = sbr.rel target = $region3
    $region8: #{cross_attention_block.1} parent=1 // loop_exit
      _
    %9936 = vsyncpa [#allocation3], 1
    %s9937 = scalar_lea.sflag [#allocation3], 1
    %9938 = vsyncpa %s9937, 1

</llo_original>
